<compile_context>
chip_gen: v7x
topology: tpu7x:2x2x1
jax: 0.10.0
libtpu: 0.0.40
codegen_flags: <defaults>
</compile_context>

<pallas_src>
import functools
import math

import jax
import jax.numpy as jnp
from jax.experimental import pallas as pl
from jax.experimental.pallas import tpu as pltpu

# ----- model config (matches the PyTorch module defaults) -----
INPUT_DIM = 9
MODEL_DIM = 64
NUM_HEADS = 4
HEAD_DIM = MODEL_DIM // NUM_HEADS
NUM_LAYERS = 2
NUM_CLASSES = 2
FF_DIM = 2048          # nn.TransformerEncoderLayer default dim_feedforward
LN_EPS = 1e-5          # nn.TransformerEncoderLayer default layer_norm_eps
ATTN_SCALE = 1.0 / math.sqrt(HEAD_DIM)
LOGIT_PAD = 128        # lane-dense classifier output width

PARAM_ORDER = [
    "win", "bin", "cls",
    "qkv_w", "qkv_b", "out_w", "out_b",
    "ln1_g", "ln1_b",
    "ff1_w", "ff1_b", "ff2_w", "ff2_b",
    "ln2_g", "ln2_b",
    "fc_w", "fc_b",
]


def _layer_norm(y, g, b):
    mu = jnp.mean(y, axis=-1, keepdims=True)
    var = jnp.mean(jnp.square(y - mu), axis=-1, keepdims=True)
    return (y - mu) * jax.lax.rsqrt(var + LN_EPS) * g + b


def _transformer_kernel(xp_ref, is_cls_ref, mask_ref, sel_ref,
                        win_ref, bin_ref, cls_ref,
                        qkv_w_ref, qkv_b_ref, out_w_ref, out_b_ref,
                        ln1_g_ref, ln1_b_ref,
                        ff1_w_ref, ff1_b_ref, ff2_w_ref, ff2_b_ref,
                        ln2_g_ref, ln2_b_ref,
                        fc_w_ref, fc_b_ref,
                        o_ref, *, n_chunks, chunk_rows):
    f32 = jnp.float32
    bf16 = jnp.bfloat16

    # ---- input projection for the whole block: (rows, Din) @ (Din, D), f32 ----
    x = xp_ref[...]                                                          # (rows, Din)
    h = jnp.dot(x, win_ref[...], preferred_element_type=f32) + bin_ref[...]  # (rows, D)
    # CLS placeholder rows currently hold `bin` (their xp rows are zero); overwrite with cls.
    h = h + is_cls_ref[...] * (cls_ref[...] - bin_ref[...])

    mask_add = mask_ref[...]                        # (chunk_rows, chunk_rows), resident, f32

    for l in range(NUM_LAYERS):
        # ---- self attention (post-norm layer), chunked into 8-sequence groups ----
        qkv = jnp.dot(h.astype(bf16), qkv_w_ref[l],
                      preferred_element_type=f32) + qkv_b_ref[l]             # (rows, 3D) f32
        chunk_outs = []
        for c in range(n_chunks):
            qkv_c = qkv[c * chunk_rows:(c + 1) * chunk_rows, :]              # sublane-aligned
            heads = []
            for hh in range(NUM_HEADS):
                lo = hh * HEAD_DIM
                qh = qkv_c[:, lo:lo + HEAD_DIM]                              # (cr, Dh)
                kh = qkv_c[:, MODEL_DIM + lo:MODEL_DIM + lo + HEAD_DIM]
                vh = qkv_c[:, 2 * MODEL_DIM + lo:2 * MODEL_DIM + lo + HEAD_DIM]
                s = jax.lax.dot_general(qh, kh, (((1,), (1,)), ((), ())),
                                        preferred_element_type=f32)          # QK^T, no transpose
                s = s * ATTN_SCALE + mask_add
                s = s - jnp.max(s, axis=-1, keepdims=True)
                p = jnp.exp(s)
                inv = pl.reciprocal(jnp.sum(p, axis=-1, keepdims=True), approx=True)
                p = p * inv
                heads.append(jnp.dot(p, vh, preferred_element_type=f32))     # (cr, Dh)
            chunk_outs.append(jnp.concatenate(heads, axis=-1))               # (cr, D)
        attn = chunk_outs[0] if n_chunks == 1 else jnp.concatenate(chunk_outs, axis=0)
        attn = jnp.dot(attn.astype(bf16), out_w_ref[l],
                       preferred_element_type=f32) + out_b_ref[l]
        h = _layer_norm(h + attn, ln1_g_ref[l], ln1_b_ref[l])

        # ---- feed-forward (dominant FLOPs): bf16 inputs, f32 accumulation ----
        ff = jnp.dot(h.astype(bf16), ff1_w_ref[l],
                     preferred_element_type=f32) + ff1_b_ref[l]
        ff = jnp.maximum(ff, 0.0)                                            # ReLU (default)
        ff = jnp.dot(ff.astype(bf16), ff2_w_ref[l],
                     preferred_element_type=f32) + ff2_b_ref[l]
        h = _layer_norm(h + ff, ln2_g_ref[l], ln2_b_ref[l])

    # ---- classifier on the CLS token of every sequence (lane-dense padded output) ----
    cls_h = jnp.dot(sel_ref[...], h, preferred_element_type=f32)             # (bb, D)
    logits = jnp.dot(cls_h, fc_w_ref[...], preferred_element_type=f32) + fc_b_ref[...]
    o_ref[...] = logits                                                      # (bb, LOGIT_PAD)


def transformer_forward(x, params, *, block_batch=32):
    """x: (B, S, INPUT_DIM) float32 -> logits (B, NUM_CLASSES)."""
    B, S, Din = x.shape
    assert Din == INPUT_DIM
    t_real = S + 1                                    # +1 for the CLS token
    t_pad = max(8, ((t_real + 7) // 8) * 8)           # sublane-aligned sequence length

    # ---- sequences per grid step: multiple of 8 (or == B for tiny batches) ----
    bb = min(block_batch, B)
    if B < 8:
        bb = B                                        # single block, full-dim out spec
    else:
        bb = max(8, (bb // 8) * 8)
        if -(-B // bb) < 2 and bb >= 16:
            bb = max(8, (bb // 16) * 8)               # >=2 grid steps -> v7x megacore split
    b_pad = -(-B // bb) * bb
    rows = bb * t_pad

    chunk_seqs = min(bb, 8)                           # attention chunk = 8 sequences
    n_chunks = bb // chunk_seqs
    chunk_rows = chunk_seqs * t_pad

    # ---- host-side layout: (b_pad, t_pad, Din), row 0 = CLS placeholder (zeros) ----
    xp = jnp.zeros((b_pad, t_pad, Din), jnp.float32)
    xp = xp.at[:B, 1:t_real, :].set(x.astype(jnp.float32))
    xp_flat = xp.reshape(b_pad * t_pad, Din)

    # resident constants (computed once host-side, constant index_map)
    rr = jnp.arange(rows)
    is_cls = ((rr % t_pad) == 0).astype(jnp.float32).reshape(rows, 1)

    cr = jnp.arange(chunk_rows)
    same_seq = (cr[:, None] // t_pad) == (cr[None, :] // t_pad)
    valid_key = (cr[None, :] % t_pad) < t_real
    mask = jnp.where(same_seq & valid_key, 0.0, -1e30).astype(jnp.float32)

    sel = (jnp.arange(rows)[None, :] == (jnp.arange(bb) * t_pad)[:, None]).astype(jnp.float32)

    # weights: cast the big matmul weights to bf16 once; pad fc to lane-dense 128 classes
    bf16 = jnp.bfloat16
    weights = dict(params)
    weights["qkv_w"] = params["qkv_w"].astype(bf16)
    weights["out_w"] = params["out_w"].astype(bf16)
    weights["ff1_w"] = params["ff1_w"].astype(bf16)
    weights["ff2_w"] = params["ff2_w"].astype(bf16)
    weights["fc_w"] = jnp.zeros((MODEL_DIM, LOGIT_PAD), jnp.float32).at[:, :NUM_CLASSES].set(params["fc_w"])
    weights["fc_b"] = jnp.zeros((1, LOGIT_PAD), jnp.float32).at[:, :NUM_CLASSES].set(params["fc_b"])
    weight_args = [weights[k] for k in PARAM_ORDER]

    def full_spec(a):
        nd = a.ndim
        return pl.BlockSpec(a.shape, lambda b, _nd=nd: (0,) * _nd)

    const_args = [is_cls, mask, sel] + weight_args
    in_specs = [pl.BlockSpec((rows, Din), lambda b: (b, 0))] + [full_spec(a) for a in const_args]
    out_spec = pl.BlockSpec((bb, LOGIT_PAD), lambda b: (b, 0))

    kernel = functools.partial(_transformer_kernel, n_chunks=n_chunks, chunk_rows=chunk_rows)

    out = pl.pallas_call(
        kernel,
        out_shape=jax.ShapeDtypeStruct((b_pad, LOGIT_PAD), jnp.float32),
        grid=(b_pad // bb,),
        in_specs=in_specs,
        out_specs=out_spec,
        compiler_params=pltpu.CompilerParams(
            dimension_semantics=("parallel",),
            vmem_limit_bytes=32 * 1024 * 1024,
        ),
    )(xp_flat, *const_args)
    return out[:B, :NUM_CLASSES]


# ----------------- deterministic parameter init -----------------
def init_params(key):
    keys = iter(jax.random.split(key, 32))

    def w(shape, scale=0.02):
        return (scale * jax.random.normal(next(keys), shape)).astype(jnp.float32)

    p = {}
    p["win"] = w((INPUT_DIM, MODEL_DIM))
    p["bin"] = w((1, MODEL_DIM))
    p["cls"] = w((1, MODEL_DIM), scale=1.0)            # torch.randn(1,1,model_dim)
    p["qkv_w"] = w((NUM_LAYERS, MODEL_DIM, 3 * MODEL_DIM))
    p["qkv_b"] = w((NUM_LAYERS, 1, 3 * MODEL_DIM))
    p["out_w"] = w((NUM_LAYERS, MODEL_DIM, MODEL_DIM))
    p["out_b"] = w((NUM_LAYERS, 1, MODEL_DIM))
    p["ln1_g"] = jnp.ones((NUM_LAYERS, 1, MODEL_DIM), jnp.float32)
    p["ln1_b"] = jnp.zeros((NUM_LAYERS, 1, MODEL_DIM), jnp.float32)
    p["ff1_w"] = w((NUM_LAYERS, MODEL_DIM, FF_DIM))
    p["ff1_b"] = w((NUM_LAYERS, 1, FF_DIM))
    p["ff2_w"] = w((NUM_LAYERS, FF_DIM, MODEL_DIM))
    p["ff2_b"] = w((NUM_LAYERS, 1, MODEL_DIM))
    p["ln2_g"] = jnp.ones((NUM_LAYERS, 1, MODEL_DIM), jnp.float32)
    p["ln2_b"] = jnp.zeros((NUM_LAYERS, 1, MODEL_DIM), jnp.float32)
    p["fc_w"] = w((MODEL_DIM, NUM_CLASSES))
    p["fc_b"] = w((1, NUM_CLASSES))
    return p


# ----------------- pure-JAX reference (PyTorch eval semantics) -----------------
def reference_forward(x, p):
    B, S, _ = x.shape
    T = S + 1
    h = x @ p["win"] + p["bin"]                                       # (B, S, D)
    cls = jnp.broadcast_to(p["cls"][None], (B, 1, MODEL_DIM))
    h = jnp.concatenate([cls, h], axis=1)                             # (B, T, D)

    def ln(y, g, b):
        mu = y.mean(-1, keepdims=True)
        var = ((y - mu) ** 2).mean(-1, keepdims=True)
        return (y - mu) / jnp.sqrt(var + LN_EPS) * g + b

    for l in range(NUM_LAYERS):
        qkv = h @ p["qkv_w"][l] + p["qkv_b"][l]                       # (B, T, 3D)
        q, k, v = jnp.split(qkv, 3, axis=-1)
        q = q.reshape(B, T, NUM_HEADS, HEAD_DIM).transpose(0, 2, 1, 3)
        k = k.reshape(B, T, NUM_HEADS, HEAD_DIM).transpose(0, 2, 1, 3)
        v = v.reshape(B, T, NUM_HEADS, HEAD_DIM).transpose(0, 2, 1, 3)
        s = jnp.einsum("bhqd,bhkd->bhqk", q, k) * ATTN_SCALE
        a = jax.nn.softmax(s, axis=-1)
        o = jnp.einsum("bhqk,bhkd->bhqd", a, v).transpose(0, 2, 1, 3).reshape(B, T, MODEL_DIM)
        o = o @ p["out_w"][l] + p["out_b"][l]
        h = ln(h + o, p["ln1_g"][l], p["ln1_b"][l])
        f = jnp.maximum(h @ p["ff1_w"][l] + p["ff1_b"][l], 0.0) @ p["ff2_w"][l] + p["ff2_b"][l]
        h = ln(h + f, p["ln2_g"][l], p["ln2_b"][l])

    return h[:, 0, :] @ p["fc_w"] + p["fc_b"]


if __name__ == "__main__":
    key = jax.random.PRNGKey(0)
    kp, kx = jax.random.split(key)
    params = init_params(kp)

    B, S = 2, 8
    x = jax.random.normal(kx, (B, S, INPUT_DIM), dtype=jnp.float32)

    out = transformer_forward(x, params)
    out = jax.block_until_ready(out)

    ref = jax.block_until_ready(reference_forward(x, params))
    assert out.shape == (B, NUM_CLASSES), out.shape
    assert jnp.allclose(out, ref, rtol=2e-3, atol=2e-3), (out, ref)

    print("KERNEL_OK")
</pallas_src>

<mosaic_0001>
module attributes {stable_mosaic.version = 11 : i64} {
  func.func @_transformer_kernel(%arg0: i32, %arg1: memref<32x9xf32, #tpu.memory_space<vmem>>, %arg2: memref<32x1xf32, #tpu.memory_space<vmem>>, %arg3: memref<32x32xf32, #tpu.memory_space<vmem>>, %arg4: memref<2x32xf32, #tpu.memory_space<vmem>>, %arg5: memref<9x64xf32, #tpu.memory_space<vmem>>, %arg6: memref<1x64xf32, #tpu.memory_space<vmem>>, %arg7: memref<1x64xf32, #tpu.memory_space<vmem>>, %arg8: memref<2x64x192xbf16, #tpu.memory_space<vmem>>, %arg9: memref<2x1x192xf32, #tpu.memory_space<vmem>>, %arg10: memref<2x64x64xbf16, #tpu.memory_space<vmem>>, %arg11: memref<2x1x64xf32, #tpu.memory_space<vmem>>, %arg12: memref<2x1x64xf32, #tpu.memory_space<vmem>>, %arg13: memref<2x1x64xf32, #tpu.memory_space<vmem>>, %arg14: memref<2x64x2048xbf16, #tpu.memory_space<vmem>>, %arg15: memref<2x1x2048xf32, #tpu.memory_space<vmem>>, %arg16: memref<2x2048x64xbf16, #tpu.memory_space<vmem>>, %arg17: memref<2x1x64xf32, #tpu.memory_space<vmem>>, %arg18: memref<2x1x64xf32, #tpu.memory_space<vmem>>, %arg19: memref<2x1x64xf32, #tpu.memory_space<vmem>>, %arg20: memref<64x128xf32, #tpu.memory_space<vmem>>, %arg21: memref<1x128xf32, #tpu.memory_space<vmem>>, %arg22: memref<2x128xf32, #tpu.memory_space<vmem>>) attributes {dimension_semantics = [#tpu.dimension_semantics<parallel>], iteration_bounds = array<i64: 1>, scalar_prefetch = 0 : i64, scratch_operands = 0 : i64, tpu.core_type = #tpu.core_type<tc>, window_params = [{transform_indices = @transform_0, window_bounds = array<i64: 32, 9>}, {pipeline_mode = #tpu.pipeline_mode<synchronous>, transform_indices = @transform_1, window_bounds = array<i64: 32, 1>}, {pipeline_mode = #tpu.pipeline_mode<synchronous>, transform_indices = @transform_2, window_bounds = array<i64: 32, 32>}, {pipeline_mode = #tpu.pipeline_mode<synchronous>, transform_indices = @transform_3, window_bounds = array<i64: 2, 32>}, {pipeline_mode = #tpu.pipeline_mode<synchronous>, transform_indices = @transform_4, window_bounds = array<i64: 9, 64>}, {pipeline_mode = #tpu.pipeline_mode<synchronous>, transform_indices = @transform_5, window_bounds = array<i64: 1, 64>}, {pipeline_mode = #tpu.pipeline_mode<synchronous>, transform_indices = @transform_6, window_bounds = array<i64: 1, 64>}, {pipeline_mode = #tpu.pipeline_mode<synchronous>, transform_indices = @transform_7, window_bounds = array<i64: 2, 64, 192>}, {pipeline_mode = #tpu.pipeline_mode<synchronous>, transform_indices = @transform_8, window_bounds = array<i64: 2, 1, 192>}, {pipeline_mode = #tpu.pipeline_mode<synchronous>, transform_indices = @transform_9, window_bounds = array<i64: 2, 64, 64>}, {pipeline_mode = #tpu.pipeline_mode<synchronous>, transform_indices = @transform_10, window_bounds = array<i64: 2, 1, 64>}, {pipeline_mode = #tpu.pipeline_mode<synchronous>, transform_indices = @transform_11, window_bounds = array<i64: 2, 1, 64>}, {pipeline_mode = #tpu.pipeline_mode<synchronous>, transform_indices = @transform_12, window_bounds = array<i64: 2, 1, 64>}, {pipeline_mode = #tpu.pipeline_mode<synchronous>, transform_indices = @transform_13, window_bounds = array<i64: 2, 64, 2048>}, {pipeline_mode = #tpu.pipeline_mode<synchronous>, transform_indices = @transform_14, window_bounds = array<i64: 2, 1, 2048>}, {pipeline_mode = #tpu.pipeline_mode<synchronous>, transform_indices = @transform_15, window_bounds = array<i64: 2, 2048, 64>}, {pipeline_mode = #tpu.pipeline_mode<synchronous>, transform_indices = @transform_16, window_bounds = array<i64: 2, 1, 64>}, {pipeline_mode = #tpu.pipeline_mode<synchronous>, transform_indices = @transform_17, window_bounds = array<i64: 2, 1, 64>}, {pipeline_mode = #tpu.pipeline_mode<synchronous>, transform_indices = @transform_18, window_bounds = array<i64: 2, 1, 64>}, {pipeline_mode = #tpu.pipeline_mode<synchronous>, transform_indices = @transform_19, window_bounds = array<i64: 64, 128>}, {pipeline_mode = #tpu.pipeline_mode<synchronous>, transform_indices = @transform_20, window_bounds = array<i64: 1, 128>}, {transform_indices = @transform_21, window_bounds = array<i64: 2, 128>}]} {
    %c0 = arith.constant 0 : index
    %c0_0 = arith.constant 0 : index
    %0 = vector.load %arg1[%c0, %c0_0] : memref<32x9xf32, #tpu.memory_space<vmem>>, vector<32x9xf32>
    %c0_1 = arith.constant 0 : index
    %c0_2 = arith.constant 0 : index
    %1 = vector.load %arg5[%c0_1, %c0_2] : memref<9x64xf32, #tpu.memory_space<vmem>>, vector<9x64xf32>
    %cst = arith.constant dense<0.000000e+00> : vector<32x64xf32>
    %2 = tpu.matmul %0, %1, %cst {dimension_numbers = #tpu.dot_dimension_numbers<[1], [0], [0], [1], [0, 0, 1, 1], [], []>} : vector<32x9xf32>, vector<9x64xf32>, vector<32x64xf32> -> vector<32x64xf32>
    %c0_3 = arith.constant 0 : index
    %c0_4 = arith.constant 0 : index
    %3 = vector.load %arg6[%c0_3, %c0_4] : memref<1x64xf32, #tpu.memory_space<vmem>>, vector<1x64xf32>
    %4 = vector.broadcast %3 : vector<1x64xf32> to vector<32x64xf32>
    %5 = arith.addf %2, %4 : vector<32x64xf32>
    %c0_5 = arith.constant 0 : index
    %c0_6 = arith.constant 0 : index
    %6 = vector.load %arg2[%c0_5, %c0_6] : memref<32x1xf32, #tpu.memory_space<vmem>>, vector<32x1xf32>
    %c0_7 = arith.constant 0 : index
    %c0_8 = arith.constant 0 : index
    %7 = vector.load %arg7[%c0_7, %c0_8] : memref<1x64xf32, #tpu.memory_space<vmem>>, vector<1x64xf32>
    %c0_9 = arith.constant 0 : index
    %c0_10 = arith.constant 0 : index
    %8 = vector.load %arg6[%c0_9, %c0_10] : memref<1x64xf32, #tpu.memory_space<vmem>>, vector<1x64xf32>
    %9 = arith.subf %7, %8 : vector<1x64xf32>
    %10 = vector.broadcast %6 : vector<32x1xf32> to vector<32x64xf32>
    %11 = vector.broadcast %9 : vector<1x64xf32> to vector<32x64xf32>
    %12 = arith.mulf %10, %11 : vector<32x64xf32>
    %13 = arith.addf %5, %12 : vector<32x64xf32>
    %c0_11 = arith.constant 0 : index
    %c0_12 = arith.constant 0 : index
    %14 = vector.load %arg3[%c0_11, %c0_12] : memref<32x32xf32, #tpu.memory_space<vmem>>, vector<32x32xf32>
    %15 = arith.truncf %13 : vector<32x64xf32> to vector<32x64xbf16>
    %c0_13 = arith.constant 0 : index
    %c0_14 = arith.constant 0 : index
    %c0_15 = arith.constant 0 : index
    %16 = vector.load %arg8[%c0_13, %c0_14, %c0_15] : memref<2x64x192xbf16, #tpu.memory_space<vmem>>, vector<1x64x192xbf16>
    %17 = vector.shape_cast %16 : vector<1x64x192xbf16> to vector<64x192xbf16>
    %cst_16 = arith.constant dense<0.000000e+00> : vector<32x192xf32>
    %18 = tpu.matmul %15, %17, %cst_16 {dimension_numbers = #tpu.dot_dimension_numbers<[1], [0], [0], [1], [0, 0, 1, 1], [], []>} : vector<32x64xbf16>, vector<64x192xbf16>, vector<32x192xf32> -> vector<32x192xf32>
    %c0_17 = arith.constant 0 : index
    %c0_18 = arith.constant 0 : index
    %c0_19 = arith.constant 0 : index
    %19 = vector.load %arg9[%c0_17, %c0_18, %c0_19] : memref<2x1x192xf32, #tpu.memory_space<vmem>>, vector<1x1x192xf32>
    %20 = vector.shape_cast %19 : vector<1x1x192xf32> to vector<1x192xf32>
    %21 = vector.broadcast %20 : vector<1x192xf32> to vector<32x192xf32>
    %22 = arith.addf %18, %21 : vector<32x192xf32>
    %23 = vector.extract_strided_slice %22 {offsets = [0, 0], sizes = [32, 16], strides = [1, 1]} : vector<32x192xf32> to vector<32x16xf32>
    %24 = vector.extract_strided_slice %22 {offsets = [0, 64], sizes = [32, 16], strides = [1, 1]} : vector<32x192xf32> to vector<32x16xf32>
    %25 = vector.extract_strided_slice %22 {offsets = [0, 128], sizes = [32, 16], strides = [1, 1]} : vector<32x192xf32> to vector<32x16xf32>
    %cst_20 = arith.constant dense<0.000000e+00> : vector<32x32xf32>
    %26 = tpu.matmul %23, %24, %cst_20 {dimension_numbers = #tpu.dot_dimension_numbers<[1], [1], [0], [0], [0, 0, 1, 0], [], []>} : vector<32x16xf32>, vector<32x16xf32>, vector<32x32xf32> -> vector<32x32xf32>
    %cst_21 = arith.constant 2.500000e-01 : f32
    %27 = vector.broadcast %cst_21 : f32 to vector<32x32xf32>
    %28 = arith.mulf %26, %27 : vector<32x32xf32>
    %29 = arith.addf %28, %14 : vector<32x32xf32>
    %cst_22 = arith.constant dense<0xFF800000> : vector<32xf32>
    %30 = vector.multi_reduction <maximumf>, %29, %cst_22 [1] : vector<32x32xf32> to vector<32xf32>
    %31 = vector.shape_cast %30 : vector<32xf32> to vector<32x1xf32>
    %32 = vector.broadcast %31 : vector<32x1xf32> to vector<32x32xf32>
    %33 = arith.subf %29, %32 : vector<32x32xf32>
    %34 = math.exp %33 : vector<32x32xf32>
    %cst_23 = arith.constant dense<0.000000e+00> : vector<32xf32>
    %35 = vector.multi_reduction <add>, %34, %cst_23 [1] : vector<32x32xf32> to vector<32xf32>
    %36 = vector.shape_cast %35 : vector<32xf32> to vector<32x1xf32>
    %37 = tpu.reciprocal %36 {approx = true} : vector<32x1xf32> -> vector<32x1xf32>
    %38 = vector.broadcast %37 : vector<32x1xf32> to vector<32x32xf32>
    %39 = arith.mulf %34, %38 : vector<32x32xf32>
    %cst_24 = arith.constant dense<0.000000e+00> : vector<32x16xf32>
    %40 = tpu.matmul %39, %25, %cst_24 {dimension_numbers = #tpu.dot_dimension_numbers<[1], [0], [0], [1], [0, 0, 1, 1], [], []>} : vector<32x32xf32>, vector<32x16xf32>, vector<32x16xf32> -> vector<32x16xf32>
    %41 = vector.extract_strided_slice %22 {offsets = [0, 16], sizes = [32, 16], strides = [1, 1]} : vector<32x192xf32> to vector<32x16xf32>
    %42 = vector.extract_strided_slice %22 {offsets = [0, 80], sizes = [32, 16], strides = [1, 1]} : vector<32x192xf32> to vector<32x16xf32>
    %43 = vector.extract_strided_slice %22 {offsets = [0, 144], sizes = [32, 16], strides = [1, 1]} : vector<32x192xf32> to vector<32x16xf32>
    %cst_25 = arith.constant dense<0.000000e+00> : vector<32x32xf32>
    %44 = tpu.matmul %41, %42, %cst_25 {dimension_numbers = #tpu.dot_dimension_numbers<[1], [1], [0], [0], [0, 0, 1, 0], [], []>} : vector<32x16xf32>, vector<32x16xf32>, vector<32x32xf32> -> vector<32x32xf32>
    %cst_26 = arith.constant 2.500000e-01 : f32
    %45 = vector.broadcast %cst_26 : f32 to vector<32x32xf32>
    %46 = arith.mulf %44, %45 : vector<32x32xf32>
    %47 = arith.addf %46, %14 : vector<32x32xf32>
    %cst_27 = arith.constant dense<0xFF800000> : vector<32xf32>
    %48 = vector.multi_reduction <maximumf>, %47, %cst_27 [1] : vector<32x32xf32> to vector<32xf32>
    %49 = vector.shape_cast %48 : vector<32xf32> to vector<32x1xf32>
    %50 = vector.broadcast %49 : vector<32x1xf32> to vector<32x32xf32>
    %51 = arith.subf %47, %50 : vector<32x32xf32>
    %52 = math.exp %51 : vector<32x32xf32>
    %cst_28 = arith.constant dense<0.000000e+00> : vector<32xf32>
    %53 = vector.multi_reduction <add>, %52, %cst_28 [1] : vector<32x32xf32> to vector<32xf32>
    %54 = vector.shape_cast %53 : vector<32xf32> to vector<32x1xf32>
    %55 = tpu.reciprocal %54 {approx = true} : vector<32x1xf32> -> vector<32x1xf32>
    %56 = vector.broadcast %55 : vector<32x1xf32> to vector<32x32xf32>
    %57 = arith.mulf %52, %56 : vector<32x32xf32>
    %cst_29 = arith.constant dense<0.000000e+00> : vector<32x16xf32>
    %58 = tpu.matmul %57, %43, %cst_29 {dimension_numbers = #tpu.dot_dimension_numbers<[1], [0], [0], [1], [0, 0, 1, 1], [], []>} : vector<32x32xf32>, vector<32x16xf32>, vector<32x16xf32> -> vector<32x16xf32>
    %59 = vector.extract_strided_slice %22 {offsets = [0, 32], sizes = [32, 16], strides = [1, 1]} : vector<32x192xf32> to vector<32x16xf32>
    %60 = vector.extract_strided_slice %22 {offsets = [0, 96], sizes = [32, 16], strides = [1, 1]} : vector<32x192xf32> to vector<32x16xf32>
    %61 = vector.extract_strided_slice %22 {offsets = [0, 160], sizes = [32, 16], strides = [1, 1]} : vector<32x192xf32> to vector<32x16xf32>
    %cst_30 = arith.constant dense<0.000000e+00> : vector<32x32xf32>
    %62 = tpu.matmul %59, %60, %cst_30 {dimension_numbers = #tpu.dot_dimension_numbers<[1], [1], [0], [0], [0, 0, 1, 0], [], []>} : vector<32x16xf32>, vector<32x16xf32>, vector<32x32xf32> -> vector<32x32xf32>
    %cst_31 = arith.constant 2.500000e-01 : f32
    %63 = vector.broadcast %cst_31 : f32 to vector<32x32xf32>
    %64 = arith.mulf %62, %63 : vector<32x32xf32>
    %65 = arith.addf %64, %14 : vector<32x32xf32>
    %cst_32 = arith.constant dense<0xFF800000> : vector<32xf32>
    %66 = vector.multi_reduction <maximumf>, %65, %cst_32 [1] : vector<32x32xf32> to vector<32xf32>
    %67 = vector.shape_cast %66 : vector<32xf32> to vector<32x1xf32>
    %68 = vector.broadcast %67 : vector<32x1xf32> to vector<32x32xf32>
    %69 = arith.subf %65, %68 : vector<32x32xf32>
    %70 = math.exp %69 : vector<32x32xf32>
    %cst_33 = arith.constant dense<0.000000e+00> : vector<32xf32>
    %71 = vector.multi_reduction <add>, %70, %cst_33 [1] : vector<32x32xf32> to vector<32xf32>
    %72 = vector.shape_cast %71 : vector<32xf32> to vector<32x1xf32>
    %73 = tpu.reciprocal %72 {approx = true} : vector<32x1xf32> -> vector<32x1xf32>
    %74 = vector.broadcast %73 : vector<32x1xf32> to vector<32x32xf32>
    %75 = arith.mulf %70, %74 : vector<32x32xf32>
    %cst_34 = arith.constant dense<0.000000e+00> : vector<32x16xf32>
    %76 = tpu.matmul %75, %61, %cst_34 {dimension_numbers = #tpu.dot_dimension_numbers<[1], [0], [0], [1], [0, 0, 1, 1], [], []>} : vector<32x32xf32>, vector<32x16xf32>, vector<32x16xf32> -> vector<32x16xf32>
    %77 = vector.extract_strided_slice %22 {offsets = [0, 48], sizes = [32, 16], strides = [1, 1]} : vector<32x192xf32> to vector<32x16xf32>
    %78 = vector.extract_strided_slice %22 {offsets = [0, 112], sizes = [32, 16], strides = [1, 1]} : vector<32x192xf32> to vector<32x16xf32>
    %79 = vector.extract_strided_slice %22 {offsets = [0, 176], sizes = [32, 16], strides = [1, 1]} : vector<32x192xf32> to vector<32x16xf32>
    %cst_35 = arith.constant dense<0.000000e+00> : vector<32x32xf32>
    %80 = tpu.matmul %77, %78, %cst_35 {dimension_numbers = #tpu.dot_dimension_numbers<[1], [1], [0], [0], [0, 0, 1, 0], [], []>} : vector<32x16xf32>, vector<32x16xf32>, vector<32x32xf32> -> vector<32x32xf32>
    %cst_36 = arith.constant 2.500000e-01 : f32
    %81 = vector.broadcast %cst_36 : f32 to vector<32x32xf32>
    %82 = arith.mulf %80, %81 : vector<32x32xf32>
    %83 = arith.addf %82, %14 : vector<32x32xf32>
    %cst_37 = arith.constant dense<0xFF800000> : vector<32xf32>
    %84 = vector.multi_reduction <maximumf>, %83, %cst_37 [1] : vector<32x32xf32> to vector<32xf32>
    %85 = vector.shape_cast %84 : vector<32xf32> to vector<32x1xf32>
    %86 = vector.broadcast %85 : vector<32x1xf32> to vector<32x32xf32>
    %87 = arith.subf %83, %86 : vector<32x32xf32>
    %88 = math.exp %87 : vector<32x32xf32>
    %cst_38 = arith.constant dense<0.000000e+00> : vector<32xf32>
    %89 = vector.multi_reduction <add>, %88, %cst_38 [1] : vector<32x32xf32> to vector<32xf32>
    %90 = vector.shape_cast %89 : vector<32xf32> to vector<32x1xf32>
    %91 = tpu.reciprocal %90 {approx = true} : vector<32x1xf32> -> vector<32x1xf32>
    %92 = vector.broadcast %91 : vector<32x1xf32> to vector<32x32xf32>
    %93 = arith.mulf %88, %92 : vector<32x32xf32>
    %cst_39 = arith.constant dense<0.000000e+00> : vector<32x16xf32>
    %94 = tpu.matmul %93, %79, %cst_39 {dimension_numbers = #tpu.dot_dimension_numbers<[1], [0], [0], [1], [0, 0, 1, 1], [], []>} : vector<32x32xf32>, vector<32x16xf32>, vector<32x16xf32> -> vector<32x16xf32>
    %95 = tpu.concatenate %40, %58, %76, %94 in 1 : vector<32x16xf32>, vector<32x16xf32>, vector<32x16xf32>, vector<32x16xf32> -> vector<32x64xf32>
    %96 = arith.truncf %95 : vector<32x64xf32> to vector<32x64xbf16>
    %c0_40 = arith.constant 0 : index
    %c0_41 = arith.constant 0 : index
    %c0_42 = arith.constant 0 : index
    %97 = vector.load %arg10[%c0_40, %c0_41, %c0_42] : memref<2x64x64xbf16, #tpu.memory_space<vmem>>, vector<1x64x64xbf16>
    %98 = vector.shape_cast %97 : vector<1x64x64xbf16> to vector<64x64xbf16>
    %cst_43 = arith.constant dense<0.000000e+00> : vector<32x64xf32>
    %99 = tpu.matmul %96, %98, %cst_43 {dimension_numbers = #tpu.dot_dimension_numbers<[1], [0], [0], [1], [0, 0, 1, 1], [], []>} : vector<32x64xbf16>, vector<64x64xbf16>, vector<32x64xf32> -> vector<32x64xf32>
    %c0_44 = arith.constant 0 : index
    %c0_45 = arith.constant 0 : index
    %c0_46 = arith.constant 0 : index
    %100 = vector.load %arg11[%c0_44, %c0_45, %c0_46] : memref<2x1x64xf32, #tpu.memory_space<vmem>>, vector<1x1x64xf32>
    %101 = vector.shape_cast %100 : vector<1x1x64xf32> to vector<1x64xf32>
    %102 = vector.broadcast %101 : vector<1x64xf32> to vector<32x64xf32>
    %103 = arith.addf %99, %102 : vector<32x64xf32>
    %104 = arith.addf %13, %103 : vector<32x64xf32>
    %c0_47 = arith.constant 0 : index
    %c0_48 = arith.constant 0 : index
    %c0_49 = arith.constant 0 : index
    %105 = vector.load %arg12[%c0_47, %c0_48, %c0_49] : memref<2x1x64xf32, #tpu.memory_space<vmem>>, vector<1x1x64xf32>
    %106 = vector.shape_cast %105 : vector<1x1x64xf32> to vector<1x64xf32>
    %c0_50 = arith.constant 0 : index
    %c0_51 = arith.constant 0 : index
    %c0_52 = arith.constant 0 : index
    %107 = vector.load %arg13[%c0_50, %c0_51, %c0_52] : memref<2x1x64xf32, #tpu.memory_space<vmem>>, vector<1x1x64xf32>
    %108 = vector.shape_cast %107 : vector<1x1x64xf32> to vector<1x64xf32>
    %cst_53 = arith.constant dense<0.000000e+00> : vector<32xf32>
    %109 = vector.multi_reduction <add>, %104, %cst_53 [1] : vector<32x64xf32> to vector<32xf32>
    %110 = vector.shape_cast %109 : vector<32xf32> to vector<32x1xf32>
    %cst_54 = arith.constant 6.400000e+01 : f32
    %111 = vector.broadcast %cst_54 : f32 to vector<32x1xf32>
    %112 = arith.divf %110, %111 : vector<32x1xf32>
    %113 = vector.broadcast %112 : vector<32x1xf32> to vector<32x64xf32>
    %114 = arith.subf %104, %113 : vector<32x64xf32>
    %115 = arith.mulf %114, %114 : vector<32x64xf32>
    %cst_55 = arith.constant dense<0.000000e+00> : vector<32xf32>
    %116 = vector.multi_reduction <add>, %115, %cst_55 [1] : vector<32x64xf32> to vector<32xf32>
    %117 = vector.shape_cast %116 : vector<32xf32> to vector<32x1xf32>
    %cst_56 = arith.constant 6.400000e+01 : f32
    %118 = vector.broadcast %cst_56 : f32 to vector<32x1xf32>
    %119 = arith.divf %117, %118 : vector<32x1xf32>
    %120 = vector.broadcast %112 : vector<32x1xf32> to vector<32x64xf32>
    %121 = arith.subf %104, %120 : vector<32x64xf32>
    %cst_57 = arith.constant 9.99999974E-6 : f32
    %122 = vector.broadcast %cst_57 : f32 to vector<32x1xf32>
    %123 = arith.addf %119, %122 : vector<32x1xf32>
    %124 = math.rsqrt %123 : vector<32x1xf32>
    %125 = vector.broadcast %124 : vector<32x1xf32> to vector<32x64xf32>
    %126 = arith.mulf %121, %125 : vector<32x64xf32>
    %127 = vector.broadcast %106 : vector<1x64xf32> to vector<32x64xf32>
    %128 = arith.mulf %126, %127 : vector<32x64xf32>
    %129 = vector.broadcast %108 : vector<1x64xf32> to vector<32x64xf32>
    %130 = arith.addf %128, %129 : vector<32x64xf32>
    %131 = arith.truncf %130 : vector<32x64xf32> to vector<32x64xbf16>
    %c0_58 = arith.constant 0 : index
    %c0_59 = arith.constant 0 : index
    %c0_60 = arith.constant 0 : index
    %132 = vector.load %arg14[%c0_58, %c0_59, %c0_60] : memref<2x64x2048xbf16, #tpu.memory_space<vmem>>, vector<1x64x2048xbf16>
    %133 = vector.shape_cast %132 : vector<1x64x2048xbf16> to vector<64x2048xbf16>
    %cst_61 = arith.constant dense<0.000000e+00> : vector<32x2048xf32>
    %134 = tpu.matmul %131, %133, %cst_61 {dimension_numbers = #tpu.dot_dimension_numbers<[1], [0], [0], [1], [0, 0, 1, 1], [], []>} : vector<32x64xbf16>, vector<64x2048xbf16>, vector<32x2048xf32> -> vector<32x2048xf32>
    %c0_62 = arith.constant 0 : index
    %c0_63 = arith.constant 0 : index
    %c0_64 = arith.constant 0 : index
    %135 = vector.load %arg15[%c0_62, %c0_63, %c0_64] : memref<2x1x2048xf32, #tpu.memory_space<vmem>>, vector<1x1x2048xf32>
    %136 = vector.shape_cast %135 : vector<1x1x2048xf32> to vector<1x2048xf32>
    %137 = vector.broadcast %136 : vector<1x2048xf32> to vector<32x2048xf32>
    %138 = arith.addf %134, %137 : vector<32x2048xf32>
    %cst_65 = arith.constant 0.000000e+00 : f32
    %139 = vector.broadcast %cst_65 : f32 to vector<32x2048xf32>
    %140 = arith.maximumf %138, %139 : vector<32x2048xf32>
    %141 = arith.truncf %140 : vector<32x2048xf32> to vector<32x2048xbf16>
    %c0_66 = arith.constant 0 : index
    %c0_67 = arith.constant 0 : index
    %c0_68 = arith.constant 0 : index
    %142 = vector.load %arg16[%c0_66, %c0_67, %c0_68] : memref<2x2048x64xbf16, #tpu.memory_space<vmem>>, vector<1x2048x64xbf16>
    %143 = vector.shape_cast %142 : vector<1x2048x64xbf16> to vector<2048x64xbf16>
    %cst_69 = arith.constant dense<0.000000e+00> : vector<32x64xf32>
    %144 = tpu.matmul %141, %143, %cst_69 {dimension_numbers = #tpu.dot_dimension_numbers<[1], [0], [0], [1], [0, 0, 1, 1], [], []>} : vector<32x2048xbf16>, vector<2048x64xbf16>, vector<32x64xf32> -> vector<32x64xf32>
    %c0_70 = arith.constant 0 : index
    %c0_71 = arith.constant 0 : index
    %c0_72 = arith.constant 0 : index
    %145 = vector.load %arg17[%c0_70, %c0_71, %c0_72] : memref<2x1x64xf32, #tpu.memory_space<vmem>>, vector<1x1x64xf32>
    %146 = vector.shape_cast %145 : vector<1x1x64xf32> to vector<1x64xf32>
    %147 = vector.broadcast %146 : vector<1x64xf32> to vector<32x64xf32>
    %148 = arith.addf %144, %147 : vector<32x64xf32>
    %149 = arith.addf %130, %148 : vector<32x64xf32>
    %c0_73 = arith.constant 0 : index
    %c0_74 = arith.constant 0 : index
    %c0_75 = arith.constant 0 : index
    %150 = vector.load %arg18[%c0_73, %c0_74, %c0_75] : memref<2x1x64xf32, #tpu.memory_space<vmem>>, vector<1x1x64xf32>
    %151 = vector.shape_cast %150 : vector<1x1x64xf32> to vector<1x64xf32>
    %c0_76 = arith.constant 0 : index
    %c0_77 = arith.constant 0 : index
    %c0_78 = arith.constant 0 : index
    %152 = vector.load %arg19[%c0_76, %c0_77, %c0_78] : memref<2x1x64xf32, #tpu.memory_space<vmem>>, vector<1x1x64xf32>
    %153 = vector.shape_cast %152 : vector<1x1x64xf32> to vector<1x64xf32>
    %cst_79 = arith.constant dense<0.000000e+00> : vector<32xf32>
    %154 = vector.multi_reduction <add>, %149, %cst_79 [1] : vector<32x64xf32> to vector<32xf32>
    %155 = vector.shape_cast %154 : vector<32xf32> to vector<32x1xf32>
    %cst_80 = arith.constant 6.400000e+01 : f32
    %156 = vector.broadcast %cst_80 : f32 to vector<32x1xf32>
    %157 = arith.divf %155, %156 : vector<32x1xf32>
    %158 = vector.broadcast %157 : vector<32x1xf32> to vector<32x64xf32>
    %159 = arith.subf %149, %158 : vector<32x64xf32>
    %160 = arith.mulf %159, %159 : vector<32x64xf32>
    %cst_81 = arith.constant dense<0.000000e+00> : vector<32xf32>
    %161 = vector.multi_reduction <add>, %160, %cst_81 [1] : vector<32x64xf32> to vector<32xf32>
    %162 = vector.shape_cast %161 : vector<32xf32> to vector<32x1xf32>
    %cst_82 = arith.constant 6.400000e+01 : f32
    %163 = vector.broadcast %cst_82 : f32 to vector<32x1xf32>
    %164 = arith.divf %162, %163 : vector<32x1xf32>
    %165 = vector.broadcast %157 : vector<32x1xf32> to vector<32x64xf32>
    %166 = arith.subf %149, %165 : vector<32x64xf32>
    %cst_83 = arith.constant 9.99999974E-6 : f32
    %167 = vector.broadcast %cst_83 : f32 to vector<32x1xf32>
    %168 = arith.addf %164, %167 : vector<32x1xf32>
    %169 = math.rsqrt %168 : vector<32x1xf32>
    %170 = vector.broadcast %169 : vector<32x1xf32> to vector<32x64xf32>
    %171 = arith.mulf %166, %170 : vector<32x64xf32>
    %172 = vector.broadcast %151 : vector<1x64xf32> to vector<32x64xf32>
    %173 = arith.mulf %171, %172 : vector<32x64xf32>
    %174 = vector.broadcast %153 : vector<1x64xf32> to vector<32x64xf32>
    %175 = arith.addf %173, %174 : vector<32x64xf32>
    %176 = arith.truncf %175 : vector<32x64xf32> to vector<32x64xbf16>
    %c1 = arith.constant 1 : index
    %c0_84 = arith.constant 0 : index
    %c0_85 = arith.constant 0 : index
    %177 = vector.load %arg8[%c1, %c0_84, %c0_85] : memref<2x64x192xbf16, #tpu.memory_space<vmem>>, vector<1x64x192xbf16>
    %178 = vector.shape_cast %177 : vector<1x64x192xbf16> to vector<64x192xbf16>
    %cst_86 = arith.constant dense<0.000000e+00> : vector<32x192xf32>
    %179 = tpu.matmul %176, %178, %cst_86 {dimension_numbers = #tpu.dot_dimension_numbers<[1], [0], [0], [1], [0, 0, 1, 1], [], []>} : vector<32x64xbf16>, vector<64x192xbf16>, vector<32x192xf32> -> vector<32x192xf32>
    %c1_87 = arith.constant 1 : index
    %c0_88 = arith.constant 0 : index
    %c0_89 = arith.constant 0 : index
    %180 = vector.load %arg9[%c1_87, %c0_88, %c0_89] : memref<2x1x192xf32, #tpu.memory_space<vmem>>, vector<1x1x192xf32>
    %181 = vector.shape_cast %180 : vector<1x1x192xf32> to vector<1x192xf32>
    %182 = vector.broadcast %181 : vector<1x192xf32> to vector<32x192xf32>
    %183 = arith.addf %179, %182 : vector<32x192xf32>
    %184 = vector.extract_strided_slice %183 {offsets = [0, 0], sizes = [32, 16], strides = [1, 1]} : vector<32x192xf32> to vector<32x16xf32>
    %185 = vector.extract_strided_slice %183 {offsets = [0, 64], sizes = [32, 16], strides = [1, 1]} : vector<32x192xf32> to vector<32x16xf32>
    %186 = vector.extract_strided_slice %183 {offsets = [0, 128], sizes = [32, 16], strides = [1, 1]} : vector<32x192xf32> to vector<32x16xf32>
    %cst_90 = arith.constant dense<0.000000e+00> : vector<32x32xf32>
    %187 = tpu.matmul %184, %185, %cst_90 {dimension_numbers = #tpu.dot_dimension_numbers<[1], [1], [0], [0], [0, 0, 1, 0], [], []>} : vector<32x16xf32>, vector<32x16xf32>, vector<32x32xf32> -> vector<32x32xf32>
    %cst_91 = arith.constant 2.500000e-01 : f32
    %188 = vector.broadcast %cst_91 : f32 to vector<32x32xf32>
    %189 = arith.mulf %187, %188 : vector<32x32xf32>
    %190 = arith.addf %189, %14 : vector<32x32xf32>
    %cst_92 = arith.constant dense<0xFF800000> : vector<32xf32>
    %191 = vector.multi_reduction <maximumf>, %190, %cst_92 [1] : vector<32x32xf32> to vector<32xf32>
    %192 = vector.shape_cast %191 : vector<32xf32> to vector<32x1xf32>
    %193 = vector.broadcast %192 : vector<32x1xf32> to vector<32x32xf32>
    %194 = arith.subf %190, %193 : vector<32x32xf32>
    %195 = math.exp %194 : vector<32x32xf32>
    %cst_93 = arith.constant dense<0.000000e+00> : vector<32xf32>
    %196 = vector.multi_reduction <add>, %195, %cst_93 [1] : vector<32x32xf32> to vector<32xf32>
    %197 = vector.shape_cast %196 : vector<32xf32> to vector<32x1xf32>
    %198 = tpu.reciprocal %197 {approx = true} : vector<32x1xf32> -> vector<32x1xf32>
    %199 = vector.broadcast %198 : vector<32x1xf32> to vector<32x32xf32>
    %200 = arith.mulf %195, %199 : vector<32x32xf32>
    %cst_94 = arith.constant dense<0.000000e+00> : vector<32x16xf32>
    %201 = tpu.matmul %200, %186, %cst_94 {dimension_numbers = #tpu.dot_dimension_numbers<[1], [0], [0], [1], [0, 0, 1, 1], [], []>} : vector<32x32xf32>, vector<32x16xf32>, vector<32x16xf32> -> vector<32x16xf32>
    %202 = vector.extract_strided_slice %183 {offsets = [0, 16], sizes = [32, 16], strides = [1, 1]} : vector<32x192xf32> to vector<32x16xf32>
    %203 = vector.extract_strided_slice %183 {offsets = [0, 80], sizes = [32, 16], strides = [1, 1]} : vector<32x192xf32> to vector<32x16xf32>
    %204 = vector.extract_strided_slice %183 {offsets = [0, 144], sizes = [32, 16], strides = [1, 1]} : vector<32x192xf32> to vector<32x16xf32>
    %cst_95 = arith.constant dense<0.000000e+00> : vector<32x32xf32>
    %205 = tpu.matmul %202, %203, %cst_95 {dimension_numbers = #tpu.dot_dimension_numbers<[1], [1], [0], [0], [0, 0, 1, 0], [], []>} : vector<32x16xf32>, vector<32x16xf32>, vector<32x32xf32> -> vector<32x32xf32>
    %cst_96 = arith.constant 2.500000e-01 : f32
    %206 = vector.broadcast %cst_96 : f32 to vector<32x32xf32>
    %207 = arith.mulf %205, %206 : vector<32x32xf32>
    %208 = arith.addf %207, %14 : vector<32x32xf32>
    %cst_97 = arith.constant dense<0xFF800000> : vector<32xf32>
    %209 = vector.multi_reduction <maximumf>, %208, %cst_97 [1] : vector<32x32xf32> to vector<32xf32>
    %210 = vector.shape_cast %209 : vector<32xf32> to vector<32x1xf32>
    %211 = vector.broadcast %210 : vector<32x1xf32> to vector<32x32xf32>
    %212 = arith.subf %208, %211 : vector<32x32xf32>
    %213 = math.exp %212 : vector<32x32xf32>
    %cst_98 = arith.constant dense<0.000000e+00> : vector<32xf32>
    %214 = vector.multi_reduction <add>, %213, %cst_98 [1] : vector<32x32xf32> to vector<32xf32>
    %215 = vector.shape_cast %214 : vector<32xf32> to vector<32x1xf32>
    %216 = tpu.reciprocal %215 {approx = true} : vector<32x1xf32> -> vector<32x1xf32>
    %217 = vector.broadcast %216 : vector<32x1xf32> to vector<32x32xf32>
    %218 = arith.mulf %213, %217 : vector<32x32xf32>
    %cst_99 = arith.constant dense<0.000000e+00> : vector<32x16xf32>
    %219 = tpu.matmul %218, %204, %cst_99 {dimension_numbers = #tpu.dot_dimension_numbers<[1], [0], [0], [1], [0, 0, 1, 1], [], []>} : vector<32x32xf32>, vector<32x16xf32>, vector<32x16xf32> -> vector<32x16xf32>
    %220 = vector.extract_strided_slice %183 {offsets = [0, 32], sizes = [32, 16], strides = [1, 1]} : vector<32x192xf32> to vector<32x16xf32>
    %221 = vector.extract_strided_slice %183 {offsets = [0, 96], sizes = [32, 16], strides = [1, 1]} : vector<32x192xf32> to vector<32x16xf32>
    %222 = vector.extract_strided_slice %183 {offsets = [0, 160], sizes = [32, 16], strides = [1, 1]} : vector<32x192xf32> to vector<32x16xf32>
    %cst_100 = arith.constant dense<0.000000e+00> : vector<32x32xf32>
    %223 = tpu.matmul %220, %221, %cst_100 {dimension_numbers = #tpu.dot_dimension_numbers<[1], [1], [0], [0], [0, 0, 1, 0], [], []>} : vector<32x16xf32>, vector<32x16xf32>, vector<32x32xf32> -> vector<32x32xf32>
    %cst_101 = arith.constant 2.500000e-01 : f32
    %224 = vector.broadcast %cst_101 : f32 to vector<32x32xf32>
    %225 = arith.mulf %223, %224 : vector<32x32xf32>
    %226 = arith.addf %225, %14 : vector<32x32xf32>
    %cst_102 = arith.constant dense<0xFF800000> : vector<32xf32>
    %227 = vector.multi_reduction <maximumf>, %226, %cst_102 [1] : vector<32x32xf32> to vector<32xf32>
    %228 = vector.shape_cast %227 : vector<32xf32> to vector<32x1xf32>
    %229 = vector.broadcast %228 : vector<32x1xf32> to vector<32x32xf32>
    %230 = arith.subf %226, %229 : vector<32x32xf32>
    %231 = math.exp %230 : vector<32x32xf32>
    %cst_103 = arith.constant dense<0.000000e+00> : vector<32xf32>
    %232 = vector.multi_reduction <add>, %231, %cst_103 [1] : vector<32x32xf32> to vector<32xf32>
    %233 = vector.shape_cast %232 : vector<32xf32> to vector<32x1xf32>
    %234 = tpu.reciprocal %233 {approx = true} : vector<32x1xf32> -> vector<32x1xf32>
    %235 = vector.broadcast %234 : vector<32x1xf32> to vector<32x32xf32>
    %236 = arith.mulf %231, %235 : vector<32x32xf32>
    %cst_104 = arith.constant dense<0.000000e+00> : vector<32x16xf32>
    %237 = tpu.matmul %236, %222, %cst_104 {dimension_numbers = #tpu.dot_dimension_numbers<[1], [0], [0], [1], [0, 0, 1, 1], [], []>} : vector<32x32xf32>, vector<32x16xf32>, vector<32x16xf32> -> vector<32x16xf32>
    %238 = vector.extract_strided_slice %183 {offsets = [0, 48], sizes = [32, 16], strides = [1, 1]} : vector<32x192xf32> to vector<32x16xf32>
    %239 = vector.extract_strided_slice %183 {offsets = [0, 112], sizes = [32, 16], strides = [1, 1]} : vector<32x192xf32> to vector<32x16xf32>
    %240 = vector.extract_strided_slice %183 {offsets = [0, 176], sizes = [32, 16], strides = [1, 1]} : vector<32x192xf32> to vector<32x16xf32>
    %cst_105 = arith.constant dense<0.000000e+00> : vector<32x32xf32>
    %241 = tpu.matmul %238, %239, %cst_105 {dimension_numbers = #tpu.dot_dimension_numbers<[1], [1], [0], [0], [0, 0, 1, 0], [], []>} : vector<32x16xf32>, vector<32x16xf32>, vector<32x32xf32> -> vector<32x32xf32>
    %cst_106 = arith.constant 2.500000e-01 : f32
    %242 = vector.broadcast %cst_106 : f32 to vector<32x32xf32>
    %243 = arith.mulf %241, %242 : vector<32x32xf32>
    %244 = arith.addf %243, %14 : vector<32x32xf32>
    %cst_107 = arith.constant dense<0xFF800000> : vector<32xf32>
    %245 = vector.multi_reduction <maximumf>, %244, %cst_107 [1] : vector<32x32xf32> to vector<32xf32>
    %246 = vector.shape_cast %245 : vector<32xf32> to vector<32x1xf32>
    %247 = vector.broadcast %246 : vector<32x1xf32> to vector<32x32xf32>
    %248 = arith.subf %244, %247 : vector<32x32xf32>
    %249 = math.exp %248 : vector<32x32xf32>
    %cst_108 = arith.constant dense<0.000000e+00> : vector<32xf32>
    %250 = vector.multi_reduction <add>, %249, %cst_108 [1] : vector<32x32xf32> to vector<32xf32>
    %251 = vector.shape_cast %250 : vector<32xf32> to vector<32x1xf32>
    %252 = tpu.reciprocal %251 {approx = true} : vector<32x1xf32> -> vector<32x1xf32>
    %253 = vector.broadcast %252 : vector<32x1xf32> to vector<32x32xf32>
    %254 = arith.mulf %249, %253 : vector<32x32xf32>
    %cst_109 = arith.constant dense<0.000000e+00> : vector<32x16xf32>
    %255 = tpu.matmul %254, %240, %cst_109 {dimension_numbers = #tpu.dot_dimension_numbers<[1], [0], [0], [1], [0, 0, 1, 1], [], []>} : vector<32x32xf32>, vector<32x16xf32>, vector<32x16xf32> -> vector<32x16xf32>
    %256 = tpu.concatenate %201, %219, %237, %255 in 1 : vector<32x16xf32>, vector<32x16xf32>, vector<32x16xf32>, vector<32x16xf32> -> vector<32x64xf32>
    %257 = arith.truncf %256 : vector<32x64xf32> to vector<32x64xbf16>
    %c1_110 = arith.constant 1 : index
    %c0_111 = arith.constant 0 : index
    %c0_112 = arith.constant 0 : index
    %258 = vector.load %arg10[%c1_110, %c0_111, %c0_112] : memref<2x64x64xbf16, #tpu.memory_space<vmem>>, vector<1x64x64xbf16>
    %259 = vector.shape_cast %258 : vector<1x64x64xbf16> to vector<64x64xbf16>
    %cst_113 = arith.constant dense<0.000000e+00> : vector<32x64xf32>
    %260 = tpu.matmul %257, %259, %cst_113 {dimension_numbers = #tpu.dot_dimension_numbers<[1], [0], [0], [1], [0, 0, 1, 1], [], []>} : vector<32x64xbf16>, vector<64x64xbf16>, vector<32x64xf32> -> vector<32x64xf32>
    %c1_114 = arith.constant 1 : index
    %c0_115 = arith.constant 0 : index
    %c0_116 = arith.constant 0 : index
    %261 = vector.load %arg11[%c1_114, %c0_115, %c0_116] : memref<2x1x64xf32, #tpu.memory_space<vmem>>, vector<1x1x64xf32>
    %262 = vector.shape_cast %261 : vector<1x1x64xf32> to vector<1x64xf32>
    %263 = vector.broadcast %262 : vector<1x64xf32> to vector<32x64xf32>
    %264 = arith.addf %260, %263 : vector<32x64xf32>
    %265 = arith.addf %175, %264 : vector<32x64xf32>
    %c1_117 = arith.constant 1 : index
    %c0_118 = arith.constant 0 : index
    %c0_119 = arith.constant 0 : index
    %266 = vector.load %arg12[%c1_117, %c0_118, %c0_119] : memref<2x1x64xf32, #tpu.memory_space<vmem>>, vector<1x1x64xf32>
    %267 = vector.shape_cast %266 : vector<1x1x64xf32> to vector<1x64xf32>
    %c1_120 = arith.constant 1 : index
    %c0_121 = arith.constant 0 : index
    %c0_122 = arith.constant 0 : index
    %268 = vector.load %arg13[%c1_120, %c0_121, %c0_122] : memref<2x1x64xf32, #tpu.memory_space<vmem>>, vector<1x1x64xf32>
    %269 = vector.shape_cast %268 : vector<1x1x64xf32> to vector<1x64xf32>
    %cst_123 = arith.constant dense<0.000000e+00> : vector<32xf32>
    %270 = vector.multi_reduction <add>, %265, %cst_123 [1] : vector<32x64xf32> to vector<32xf32>
    %271 = vector.shape_cast %270 : vector<32xf32> to vector<32x1xf32>
    %cst_124 = arith.constant 6.400000e+01 : f32
    %272 = vector.broadcast %cst_124 : f32 to vector<32x1xf32>
    %273 = arith.divf %271, %272 : vector<32x1xf32>
    %274 = vector.broadcast %273 : vector<32x1xf32> to vector<32x64xf32>
    %275 = arith.subf %265, %274 : vector<32x64xf32>
    %276 = arith.mulf %275, %275 : vector<32x64xf32>
    %cst_125 = arith.constant dense<0.000000e+00> : vector<32xf32>
    %277 = vector.multi_reduction <add>, %276, %cst_125 [1] : vector<32x64xf32> to vector<32xf32>
    %278 = vector.shape_cast %277 : vector<32xf32> to vector<32x1xf32>
    %cst_126 = arith.constant 6.400000e+01 : f32
    %279 = vector.broadcast %cst_126 : f32 to vector<32x1xf32>
    %280 = arith.divf %278, %279 : vector<32x1xf32>
    %281 = vector.broadcast %273 : vector<32x1xf32> to vector<32x64xf32>
    %282 = arith.subf %265, %281 : vector<32x64xf32>
    %cst_127 = arith.constant 9.99999974E-6 : f32
    %283 = vector.broadcast %cst_127 : f32 to vector<32x1xf32>
    %284 = arith.addf %280, %283 : vector<32x1xf32>
    %285 = math.rsqrt %284 : vector<32x1xf32>
    %286 = vector.broadcast %285 : vector<32x1xf32> to vector<32x64xf32>
    %287 = arith.mulf %282, %286 : vector<32x64xf32>
    %288 = vector.broadcast %267 : vector<1x64xf32> to vector<32x64xf32>
    %289 = arith.mulf %287, %288 : vector<32x64xf32>
    %290 = vector.broadcast %269 : vector<1x64xf32> to vector<32x64xf32>
    %291 = arith.addf %289, %290 : vector<32x64xf32>
    %292 = arith.truncf %291 : vector<32x64xf32> to vector<32x64xbf16>
    %c1_128 = arith.constant 1 : index
    %c0_129 = arith.constant 0 : index
    %c0_130 = arith.constant 0 : index
    %293 = vector.load %arg14[%c1_128, %c0_129, %c0_130] : memref<2x64x2048xbf16, #tpu.memory_space<vmem>>, vector<1x64x2048xbf16>
    %294 = vector.shape_cast %293 : vector<1x64x2048xbf16> to vector<64x2048xbf16>
    %cst_131 = arith.constant dense<0.000000e+00> : vector<32x2048xf32>
    %295 = tpu.matmul %292, %294, %cst_131 {dimension_numbers = #tpu.dot_dimension_numbers<[1], [0], [0], [1], [0, 0, 1, 1], [], []>} : vector<32x64xbf16>, vector<64x2048xbf16>, vector<32x2048xf32> -> vector<32x2048xf32>
    %c1_132 = arith.constant 1 : index
    %c0_133 = arith.constant 0 : index
    %c0_134 = arith.constant 0 : index
    %296 = vector.load %arg15[%c1_132, %c0_133, %c0_134] : memref<2x1x2048xf32, #tpu.memory_space<vmem>>, vector<1x1x2048xf32>
    %297 = vector.shape_cast %296 : vector<1x1x2048xf32> to vector<1x2048xf32>
    %298 = vector.broadcast %297 : vector<1x2048xf32> to vector<32x2048xf32>
    %299 = arith.addf %295, %298 : vector<32x2048xf32>
    %cst_135 = arith.constant 0.000000e+00 : f32
    %300 = vector.broadcast %cst_135 : f32 to vector<32x2048xf32>
    %301 = arith.maximumf %299, %300 : vector<32x2048xf32>
    %302 = arith.truncf %301 : vector<32x2048xf32> to vector<32x2048xbf16>
    %c1_136 = arith.constant 1 : index
    %c0_137 = arith.constant 0 : index
    %c0_138 = arith.constant 0 : index
    %303 = vector.load %arg16[%c1_136, %c0_137, %c0_138] : memref<2x2048x64xbf16, #tpu.memory_space<vmem>>, vector<1x2048x64xbf16>
    %304 = vector.shape_cast %303 : vector<1x2048x64xbf16> to vector<2048x64xbf16>
    %cst_139 = arith.constant dense<0.000000e+00> : vector<32x64xf32>
    %305 = tpu.matmul %302, %304, %cst_139 {dimension_numbers = #tpu.dot_dimension_numbers<[1], [0], [0], [1], [0, 0, 1, 1], [], []>} : vector<32x2048xbf16>, vector<2048x64xbf16>, vector<32x64xf32> -> vector<32x64xf32>
    %c1_140 = arith.constant 1 : index
    %c0_141 = arith.constant 0 : index
    %c0_142 = arith.constant 0 : index
    %306 = vector.load %arg17[%c1_140, %c0_141, %c0_142] : memref<2x1x64xf32, #tpu.memory_space<vmem>>, vector<1x1x64xf32>
    %307 = vector.shape_cast %306 : vector<1x1x64xf32> to vector<1x64xf32>
    %308 = vector.broadcast %307 : vector<1x64xf32> to vector<32x64xf32>
    %309 = arith.addf %305, %308 : vector<32x64xf32>
    %310 = arith.addf %291, %309 : vector<32x64xf32>
    %c1_143 = arith.constant 1 : index
    %c0_144 = arith.constant 0 : index
    %c0_145 = arith.constant 0 : index
    %311 = vector.load %arg18[%c1_143, %c0_144, %c0_145] : memref<2x1x64xf32, #tpu.memory_space<vmem>>, vector<1x1x64xf32>
    %312 = vector.shape_cast %311 : vector<1x1x64xf32> to vector<1x64xf32>
    %c1_146 = arith.constant 1 : index
    %c0_147 = arith.constant 0 : index
    %c0_148 = arith.constant 0 : index
    %313 = vector.load %arg19[%c1_146, %c0_147, %c0_148] : memref<2x1x64xf32, #tpu.memory_space<vmem>>, vector<1x1x64xf32>
    %314 = vector.shape_cast %313 : vector<1x1x64xf32> to vector<1x64xf32>
    %cst_149 = arith.constant dense<0.000000e+00> : vector<32xf32>
    %315 = vector.multi_reduction <add>, %310, %cst_149 [1] : vector<32x64xf32> to vector<32xf32>
    %316 = vector.shape_cast %315 : vector<32xf32> to vector<32x1xf32>
    %cst_150 = arith.constant 6.400000e+01 : f32
    %317 = vector.broadcast %cst_150 : f32 to vector<32x1xf32>
    %318 = arith.divf %316, %317 : vector<32x1xf32>
    %319 = vector.broadcast %318 : vector<32x1xf32> to vector<32x64xf32>
    %320 = arith.subf %310, %319 : vector<32x64xf32>
    %321 = arith.mulf %320, %320 : vector<32x64xf32>
    %cst_151 = arith.constant dense<0.000000e+00> : vector<32xf32>
    %322 = vector.multi_reduction <add>, %321, %cst_151 [1] : vector<32x64xf32> to vector<32xf32>
    %323 = vector.shape_cast %322 : vector<32xf32> to vector<32x1xf32>
    %cst_152 = arith.constant 6.400000e+01 : f32
    %324 = vector.broadcast %cst_152 : f32 to vector<32x1xf32>
    %325 = arith.divf %323, %324 : vector<32x1xf32>
    %326 = vector.broadcast %318 : vector<32x1xf32> to vector<32x64xf32>
    %327 = arith.subf %310, %326 : vector<32x64xf32>
    %cst_153 = arith.constant 9.99999974E-6 : f32
    %328 = vector.broadcast %cst_153 : f32 to vector<32x1xf32>
    %329 = arith.addf %325, %328 : vector<32x1xf32>
    %330 = math.rsqrt %329 : vector<32x1xf32>
    %331 = vector.broadcast %330 : vector<32x1xf32> to vector<32x64xf32>
    %332 = arith.mulf %327, %331 : vector<32x64xf32>
    %333 = vector.broadcast %312 : vector<1x64xf32> to vector<32x64xf32>
    %334 = arith.mulf %332, %333 : vector<32x64xf32>
    %335 = vector.broadcast %314 : vector<1x64xf32> to vector<32x64xf32>
    %336 = arith.addf %334, %335 : vector<32x64xf32>
    %c0_154 = arith.constant 0 : index
    %c0_155 = arith.constant 0 : index
    %337 = vector.load %arg4[%c0_154, %c0_155] : memref<2x32xf32, #tpu.memory_space<vmem>>, vector<2x32xf32>
    %cst_156 = arith.constant dense<0.000000e+00> : vector<2x64xf32>
    %338 = tpu.matmul %337, %336, %cst_156 {dimension_numbers = #tpu.dot_dimension_numbers<[1], [0], [0], [1], [0, 0, 1, 1], [], []>} : vector<2x32xf32>, vector<32x64xf32>, vector<2x64xf32> -> vector<2x64xf32>
    %c0_157 = arith.constant 0 : index
    %c0_158 = arith.constant 0 : index
    %339 = vector.load %arg20[%c0_157, %c0_158] : memref<64x128xf32, #tpu.memory_space<vmem>>, vector<64x128xf32>
    %cst_159 = arith.constant dense<0.000000e+00> : vector<2x128xf32>
    %340 = tpu.matmul %338, %339, %cst_159 {dimension_numbers = #tpu.dot_dimension_numbers<[1], [0], [0], [1], [0, 0, 1, 1], [], []>} : vector<2x64xf32>, vector<64x128xf32>, vector<2x128xf32> -> vector<2x128xf32>
    %c0_160 = arith.constant 0 : index
    %c0_161 = arith.constant 0 : index
    %341 = vector.load %arg21[%c0_160, %c0_161] : memref<1x128xf32, #tpu.memory_space<vmem>>, vector<1x128xf32>
    %342 = vector.broadcast %341 : vector<1x128xf32> to vector<2x128xf32>
    %343 = arith.addf %340, %342 : vector<2x128xf32>
    %c0_162 = arith.constant 0 : index
    %c0_163 = arith.constant 0 : index
    %344 = vector.load %arg22[%c0_162, %c0_163] : memref<2x128xf32, #tpu.memory_space<vmem>>, vector<2x128xf32>
    tpu.vector_store %arg22[%c0_162, %c0_163], %343 {strides = array<i32>} : memref<2x128xf32, #tpu.memory_space<vmem>>, vector<2x128xf32>,
    return
  }
  func.func @transform_0(%arg0: i32) -> (i32, i32) {
    %c0_i32 = arith.constant 0 : i32
    %c0_i32_0 = arith.constant 0 : i32
    return %arg0, %c0_i32 : i32, i32
  }
  func.func @transform_1(%arg0: i32) -> (i32, i32) {
    %c0_i32 = arith.constant 0 : i32
    %c0_i32_0 = arith.constant 0 : i32
    %c0_i32_1 = arith.constant 0 : i32
    return %c0_i32, %c0_i32_0 : i32, i32
  }
  func.func @transform_2(%arg0: i32) -> (i32, i32) {
    %c0_i32 = arith.constant 0 : i32
    %c0_i32_0 = arith.constant 0 : i32
    %c0_i32_1 = arith.constant 0 : i32
    return %c0_i32, %c0_i32_0 : i32, i32
  }
  func.func @transform_3(%arg0: i32) -> (i32, i32) {
    %c0_i32 = arith.constant 0 : i32
    %c0_i32_0 = arith.constant 0 : i32
    %c0_i32_1 = arith.constant 0 : i32
    return %c0_i32, %c0_i32_0 : i32, i32
  }
  func.func @transform_4(%arg0: i32) -> (i32, i32) {
    %c0_i32 = arith.constant 0 : i32
    %c0_i32_0 = arith.constant 0 : i32
    %c0_i32_1 = arith.constant 0 : i32
    return %c0_i32, %c0_i32_0 : i32, i32
  }
  func.func @transform_5(%arg0: i32) -> (i32, i32) {
    %c0_i32 = arith.constant 0 : i32
    %c0_i32_0 = arith.constant 0 : i32
    %c0_i32_1 = arith.constant 0 : i32
    return %c0_i32, %c0_i32_0 : i32, i32
  }
  func.func @transform_6(%arg0: i32) -> (i32, i32) {
    %c0_i32 = arith.constant 0 : i32
    %c0_i32_0 = arith.constant 0 : i32
    %c0_i32_1 = arith.constant 0 : i32
    return %c0_i32, %c0_i32_0 : i32, i32
  }
  func.func @transform_7(%arg0: i32) -> (i32, i32, i32) {
    %c0_i32 = arith.constant 0 : i32
    %c0_i32_0 = arith.constant 0 : i32
    %c0_i32_1 = arith.constant 0 : i32
    %c0_i32_2 = arith.constant 0 : i32
    return %c0_i32, %c0_i32_0, %c0_i32_1 : i32, i32, i32
  }
  func.func @transform_8(%arg0: i32) -> (i32, i32, i32) {
    %c0_i32 = arith.constant 0 : i32
    %c0_i32_0 = arith.constant 0 : i32
    %c0_i32_1 = arith.constant 0 : i32
    %c0_i32_2 = arith.constant 0 : i32
    return %c0_i32, %c0_i32_0, %c0_i32_1 : i32, i32, i32
  }
  func.func @transform_9(%arg0: i32) -> (i32, i32, i32) {
    %c0_i32 = arith.constant 0 : i32
    %c0_i32_0 = arith.constant 0 : i32
    %c0_i32_1 = arith.constant 0 : i32
    %c0_i32_2 = arith.constant 0 : i32
    return %c0_i32, %c0_i32_0, %c0_i32_1 : i32, i32, i32
  }
  func.func @transform_10(%arg0: i32) -> (i32, i32, i32) {
    %c0_i32 = arith.constant 0 : i32
    %c0_i32_0 = arith.constant 0 : i32
    %c0_i32_1 = arith.constant 0 : i32
    %c0_i32_2 = arith.constant 0 : i32
    return %c0_i32, %c0_i32_0, %c0_i32_1 : i32, i32, i32
  }
  func.func @transform_11(%arg0: i32) -> (i32, i32, i32) {
    %c0_i32 = arith.constant 0 : i32
    %c0_i32_0 = arith.constant 0 : i32
    %c0_i32_1 = arith.constant 0 : i32
    %c0_i32_2 = arith.constant 0 : i32
    return %c0_i32, %c0_i32_0, %c0_i32_1 : i32, i32, i32
  }
  func.func @transform_12(%arg0: i32) -> (i32, i32, i32) {
    %c0_i32 = arith.constant 0 : i32
    %c0_i32_0 = arith.constant 0 : i32
    %c0_i32_1 = arith.constant 0 : i32
    %c0_i32_2 = arith.constant 0 : i32
    return %c0_i32, %c0_i32_0, %c0_i32_1 : i32, i32, i32
  }
  func.func @transform_13(%arg0: i32) -> (i32, i32, i32) {
    %c0_i32 = arith.constant 0 : i32
    %c0_i32_0 = arith.constant 0 : i32
    %c0_i32_1 = arith.constant 0 : i32
    %c0_i32_2 = arith.constant 0 : i32
    return %c0_i32, %c0_i32_0, %c0_i32_1 : i32, i32, i32
  }
  func.func @transform_14(%arg0: i32) -> (i32, i32, i32) {
    %c0_i32 = arith.constant 0 : i32
    %c0_i32_0 = arith.constant 0 : i32
    %c0_i32_1 = arith.constant 0 : i32
    %c0_i32_2 = arith.constant 0 : i32
    return %c0_i32, %c0_i32_0, %c0_i32_1 : i32, i32, i32
  }
  func.func @transform_15(%arg0: i32) -> (i32, i32, i32) {
    %c0_i32 = arith.constant 0 : i32
    %c0_i32_0 = arith.constant 0 : i32
    %c0_i32_1 = arith.constant 0 : i32
    %c0_i32_2 = arith.constant 0 : i32
    return %c0_i32, %c0_i32_0, %c0_i32_1 : i32, i32, i32
  }
  func.func @transform_16(%arg0: i32) -> (i32, i32, i32) {
    %c0_i32 = arith.constant 0 : i32
    %c0_i32_0 = arith.constant 0 : i32
    %c0_i32_1 = arith.constant 0 : i32
    %c0_i32_2 = arith.constant 0 : i32
    return %c0_i32, %c0_i32_0, %c0_i32_1 : i32, i32, i32
  }
  func.func @transform_17(%arg0: i32) -> (i32, i32, i32) {
    %c0_i32 = arith.constant 0 : i32
    %c0_i32_0 = arith.constant 0 : i32
    %c0_i32_1 = arith.constant 0 : i32
    %c0_i32_2 = arith.constant 0 : i32
    return %c0_i32, %c0_i32_0, %c0_i32_1 : i32, i32, i32
  }
  func.func @transform_18(%arg0: i32) -> (i32, i32, i32) {
    %c0_i32 = arith.constant 0 : i32
    %c0_i32_0 = arith.constant 0 : i32
    %c0_i32_1 = arith.constant 0 : i32
    %c0_i32_2 = arith.constant 0 : i32
    return %c0_i32, %c0_i32_0, %c0_i32_1 : i32, i32, i32
  }
  func.func @transform_19(%arg0: i32) -> (i32, i32) {
    %c0_i32 = arith.constant 0 : i32
    %c0_i32_0 = arith.constant 0 : i32
    %c0_i32_1 = arith.constant 0 : i32
    return %c0_i32, %c0_i32_0 : i32, i32
  }
  func.func @transform_20(%arg0: i32) -> (i32, i32) {
    %c0_i32 = arith.constant 0 : i32
    %c0_i32_0 = arith.constant 0 : i32
    %c0_i32_1 = arith.constant 0 : i32
    return %c0_i32, %c0_i32_0 : i32, i32
  }
  func.func @transform_21(%arg0: i32) -> (i32, i32) {
    %c0_i32 = arith.constant 0 : i32
    %c0_i32_0 = arith.constant 0 : i32
    return %arg0, %c0_i32 : i32, i32
  }
}

</mosaic_0001>

<llo_original>
// kernel: tpu_custom_call.1
$region0: #{tpu_custom_call.1}
  #allocation0 [shape = 'u32[]', space=smem, size = 0x4, offset = 0x4, fixed_abs, tag = 'smem constant byte address 0x4 - core index']
  #allocation1 [shape = 'u32[144,128]{1,0:T(1,128)}', space=vmem, size = 0x12000, scoped, tag = 'internal scratch']
  %s0 = inlined_call_operand.vmem [shape: f32[32,9], index: 0, kind: input, shape index: {}]
  %s1 = inlined_call_operand.vmem [shape: f32[32,1], index: 1, kind: input, shape index: {}]
  %s2 = inlined_call_operand.vmem [shape: f32[32,32], index: 2, kind: input, shape index: {}]
  %s3 = inlined_call_operand.vmem [shape: f32[2,32], index: 3, kind: input, shape index: {}]
  %s4 = inlined_call_operand.vmem [shape: f32[9,64], index: 4, kind: input, shape index: {}]
  %s5 = inlined_call_operand.vmem [shape: f32[1,64], index: 5, kind: input, shape index: {}]
  %s6 = inlined_call_operand.vmem [shape: f32[1,64], index: 6, kind: input, shape index: {}]
  %s7 = inlined_call_operand.vmem [shape: bf16[2,64,192], index: 7, kind: input, shape index: {}]
  %s8 = inlined_call_operand.vmem [shape: f32[2,1,192], index: 8, kind: input, shape index: {}]
  %s9 = inlined_call_operand.vmem [shape: bf16[2,64,64], index: 9, kind: input, shape index: {}]
  %s10 = inlined_call_operand.vmem [shape: f32[2,1,64], index: 10, kind: input, shape index: {}]
  %s11 = inlined_call_operand.vmem [shape: f32[2,1,64], index: 11, kind: input, shape index: {}]
  %s12 = inlined_call_operand.vmem [shape: f32[2,1,64], index: 12, kind: input, shape index: {}]
  %s13 = inlined_call_operand.vmem [shape: bf16[2,64,2048], index: 13, kind: input, shape index: {}]
  %s14 = inlined_call_operand.vmem [shape: f32[2,1,2048], index: 14, kind: input, shape index: {}]
  %s15 = inlined_call_operand.vmem [shape: bf16[2,2048,64], index: 15, kind: input, shape index: {}]
  %s16 = inlined_call_operand.vmem [shape: f32[2,1,64], index: 16, kind: input, shape index: {}]
  %s17 = inlined_call_operand.vmem [shape: f32[2,1,64], index: 17, kind: input, shape index: {}]
  %s18 = inlined_call_operand.vmem [shape: f32[2,1,64], index: 18, kind: input, shape index: {}]
  %s19 = inlined_call_operand.vmem [shape: f32[64,128], index: 19, kind: input, shape index: {}]
  %s20 = inlined_call_operand.vmem [shape: f32[1,128], index: 20, kind: input, shape index: {}]
  %s21 = inlined_call_operand.hbm [shape: f32[2,128], index: 21, kind: output, shape index: {}]
  %s22 = sld [smem:[#allocation0]]
  $region94: #{tpu_custom_call.1} parent=0
    _
  %s24 = ssub.s32 1, %s22
  %s25 = scalar_select 0, %s24, %s22
  $region1: #{tpu_custom_call.1} parent=0
    #allocation2 [shape = 'u8[1024]{0}', space=vmem, size = 0x400, scoped, tag = 'output window, operand 0, single buffered']
    #allocation3 [shape = 's32[1]{0}', space=sflag, size = 0x4, scoped, tag = 'scoped memory for tpu_custom_call.1']
    %26 = vsyncpa [#allocation3], 0
    // Predicated region
    $region2: #{tpu_custom_call.1} parent=1 // pred_check
      _
    $region3: #{tpu_custom_call.1} parent=1 // pred_check_branch
      %28 = sbr.rel (0) target = $region5
    $region4: #{tpu_custom_call.1} parent=1 // pred_region
      _
    $region5: #{tpu_custom_call.1} parent=1 // pred_fallthru
      _
    // Predicated region
    $region6: #{tpu_custom_call.1} parent=1 // pred_check
      _
    $region7: #{tpu_custom_call.1} parent=1 // pred_check_branch
      %30 = sbr.rel (0) target = $region9
    $region8: #{tpu_custom_call.1} parent=1 // pred_region
      _
    $region9: #{tpu_custom_call.1} parent=1 // pred_fallthru
      _
    // Predicated region
    $region10: #{tpu_custom_call.1} parent=1 // pred_check
      _
    $region11: #{tpu_custom_call.1} parent=1 // pred_check_branch
      %32 = sbr.rel (0) target = $region13
    $region12: #{tpu_custom_call.1} parent=1 // pred_region
      _
    $region13: #{tpu_custom_call.1} parent=1 // pred_fallthru
      _
    // Predicated region
    $region14: #{tpu_custom_call.1} parent=1 // pred_check
      _
    $region15: #{tpu_custom_call.1} parent=1 // pred_check_branch
      %34 = sbr.rel (0) target = $region17
    $region16: #{tpu_custom_call.1} parent=1 // pred_region
      _
    $region17: #{tpu_custom_call.1} parent=1 // pred_fallthru
      _
    // Predicated region
    $region18: #{tpu_custom_call.1} parent=1 // pred_check
      _
    $region19: #{tpu_custom_call.1} parent=1 // pred_check_branch
      %36 = sbr.rel (0) target = $region21
    $region20: #{tpu_custom_call.1} parent=1 // pred_region
      _
    $region21: #{tpu_custom_call.1} parent=1 // pred_fallthru
      _
    // Predicated region
    $region22: #{tpu_custom_call.1} parent=1 // pred_check
      _
    $region23: #{tpu_custom_call.1} parent=1 // pred_check_branch
      %38 = sbr.rel (0) target = $region25
    $region24: #{tpu_custom_call.1} parent=1 // pred_region
      _
    $region25: #{tpu_custom_call.1} parent=1 // pred_fallthru
      _
    // Predicated region
    $region26: #{tpu_custom_call.1} parent=1 // pred_check
      _
    $region27: #{tpu_custom_call.1} parent=1 // pred_check_branch
      %40 = sbr.rel (0) target = $region29
    $region28: #{tpu_custom_call.1} parent=1 // pred_region
      _
    $region29: #{tpu_custom_call.1} parent=1 // pred_fallthru
      _
    // Predicated region
    $region30: #{tpu_custom_call.1} parent=1 // pred_check
      _
    $region31: #{tpu_custom_call.1} parent=1 // pred_check_branch
      %42 = sbr.rel (0) target = $region33
    $region32: #{tpu_custom_call.1} parent=1 // pred_region
      _
    $region33: #{tpu_custom_call.1} parent=1 // pred_fallthru
      _
    // Predicated region
    $region34: #{tpu_custom_call.1} parent=1 // pred_check
      _
    $region35: #{tpu_custom_call.1} parent=1 // pred_check_branch
      %44 = sbr.rel (0) target = $region37
    $region36: #{tpu_custom_call.1} parent=1 // pred_region
      _
    $region37: #{tpu_custom_call.1} parent=1 // pred_fallthru
      _
    // Predicated region
    $region38: #{tpu_custom_call.1} parent=1 // pred_check
      _
    $region39: #{tpu_custom_call.1} parent=1 // pred_check_branch
      %46 = sbr.rel (0) target = $region41
    $region40: #{tpu_custom_call.1} parent=1 // pred_region
      _
    $region41: #{tpu_custom_call.1} parent=1 // pred_fallthru
      _
    // Predicated region
    $region42: #{tpu_custom_call.1} parent=1 // pred_check
      _
    $region43: #{tpu_custom_call.1} parent=1 // pred_check_branch
      %48 = sbr.rel (0) target = $region45
    $region44: #{tpu_custom_call.1} parent=1 // pred_region
      _
    $region45: #{tpu_custom_call.1} parent=1 // pred_fallthru
      _
    // Predicated region
    $region46: #{tpu_custom_call.1} parent=1 // pred_check
      _
    $region47: #{tpu_custom_call.1} parent=1 // pred_check_branch
      %50 = sbr.rel (0) target = $region49
    $region48: #{tpu_custom_call.1} parent=1 // pred_region
      _
    $region49: #{tpu_custom_call.1} parent=1 // pred_fallthru
      _
    // Predicated region
    $region50: #{tpu_custom_call.1} parent=1 // pred_check
      _
    $region51: #{tpu_custom_call.1} parent=1 // pred_check_branch
      %52 = sbr.rel (0) target = $region53
    $region52: #{tpu_custom_call.1} parent=1 // pred_region
      _
    $region53: #{tpu_custom_call.1} parent=1 // pred_fallthru
      _
    // Predicated region
    $region54: #{tpu_custom_call.1} parent=1 // pred_check
      _
    $region55: #{tpu_custom_call.1} parent=1 // pred_check_branch
      %54 = sbr.rel (0) target = $region57
    $region56: #{tpu_custom_call.1} parent=1 // pred_region
      _
    $region57: #{tpu_custom_call.1} parent=1 // pred_fallthru
      _
    // Predicated region
    $region58: #{tpu_custom_call.1} parent=1 // pred_check
      _
    $region59: #{tpu_custom_call.1} parent=1 // pred_check_branch
      %56 = sbr.rel (0) target = $region61
    $region60: #{tpu_custom_call.1} parent=1 // pred_region
      _
    $region61: #{tpu_custom_call.1} parent=1 // pred_fallthru
      _
    // Predicated region
    $region62: #{tpu_custom_call.1} parent=1 // pred_check
      _
    $region63: #{tpu_custom_call.1} parent=1 // pred_check_branch
      %58 = sbr.rel (0) target = $region65
    $region64: #{tpu_custom_call.1} parent=1 // pred_region
      _
    $region65: #{tpu_custom_call.1} parent=1 // pred_fallthru
      _
    // Predicated region
    $region66: #{tpu_custom_call.1} parent=1 // pred_check
      _
    $region67: #{tpu_custom_call.1} parent=1 // pred_check_branch
      %60 = sbr.rel (0) target = $region69
    $region68: #{tpu_custom_call.1} parent=1 // pred_region
      _
    $region69: #{tpu_custom_call.1} parent=1 // pred_fallthru
      _
    // Predicated region
    $region70: #{tpu_custom_call.1} parent=1 // pred_check
      _
    $region71: #{tpu_custom_call.1} parent=1 // pred_check_branch
      %62 = sbr.rel (0) target = $region73
    $region72: #{tpu_custom_call.1} parent=1 // pred_region
      _
    $region73: #{tpu_custom_call.1} parent=1 // pred_fallthru
      _
    // Predicated region
    $region74: #{tpu_custom_call.1} parent=1 // pred_check
      _
    $region75: #{tpu_custom_call.1} parent=1 // pred_check_branch
      %64 = sbr.rel (0) target = $region77
    $region76: #{tpu_custom_call.1} parent=1 // pred_region
      _
    $region77: #{tpu_custom_call.1} parent=1 // pred_fallthru
      _
    // Predicated region
    $region78: #{tpu_custom_call.1} parent=1 // pred_check
      _
    $region79: #{tpu_custom_call.1} parent=1 // pred_check_branch
      %66 = sbr.rel (0) target = $region81
    $region80: #{tpu_custom_call.1} parent=1 // pred_region
      _
    $region81: #{tpu_custom_call.1} parent=1 // pred_fallthru
      _
    // Predicated region
    $region82: #{tpu_custom_call.1} parent=1 // pred_check
      _
    $region83: #{tpu_custom_call.1} parent=1 // pred_check_branch
      %68 = sbr.rel (0) target = $region85
    $region84: #{tpu_custom_call.1} parent=1 // pred_region
      _
    $region85: #{tpu_custom_call.1} parent=1 // pred_fallthru
      _
    %v70 = vld [vmem:[%s0] sm:$0xff]
    %v71 = vld [vmem:[%s0 + $0x8] sm:$0xff]
    %v72 = vld [vmem:[%s0 + $0x10] sm:$0xff]
    %v73 = vld [vmem:[%s0 + $0x18] sm:$0xff]
    %v74 = vld [vmem:[%s4] sm:$0xff]
    %v75 = vld [vmem:[%s4 + $0x8] sm:$0x1]
    %v76 = vld [vmem:[%s5] sm:$0x1]
    %v78 = vlaneseq
    %v79 = vshrl.u32 %v78, 7
    %v80 = vsub.s32 0, %v79
    %v81 = vrot.slane %v76, %v80
    %vm83 = vcmask 72704
    %v85 = vsel %vm83, %v70, 0
    %v88 = vsel %vm83, %v71, 0
    %v91 = vsel %vm83, %v72, 0
    %v94 = vsel %vm83, %v73, 0
    %vm96 = vcmask 1040384
    %v98 = vsel %vm96, %v75, 0
    %100 = vmatprep.subr.mxu0 0.0
    %101 = vmatpush1.msra.mxu0 %v74
    %102 = vmatprep.subr.mxu0 0.0
    %103 = vmatpush1.msra.mxu0 %v98
    %104 = vmatprep.subr.mxu0 0.0
    %105 = vmatpush1.msra.mxu0 0.0
    %106 = vmatprep.subr.mxu0 0.0
    %107 = vmatpush1.msra.mxu0 0.0
    %108 = vmatprep.subr.mxu0 0.0
    %109 = vmatpush1.msra.mxu0 0.0
    %110 = vmatprep.subr.mxu0 0.0
    %111 = vmatpush1.msra.mxu0 0.0
    %112 = vmatprep.subr.mxu0 0.0
    %113 = vmatpush1.msra.mxu0 0.0
    %114 = vmatprep.subr.mxu0 0.0
    %115 = vmatpush1.msra.mxu0 0.0
    %116 = vmatprep.subr.mxu0 0.0
    %117 = vmatpush1.msra.mxu0 0.0
    %118 = vmatprep.subr.mxu0 0.0
    %119 = vmatpush1.msra.mxu0 0.0
    %120 = vmatprep.subr.mxu0 0.0
    %121 = vmatpush1.msra.mxu0 0.0
    %122 = vmatprep.subr.mxu0 0.0
    %123 = vmatpush1.msra.mxu0 0.0
    %124 = vmatprep.subr.mxu0 0.0
    %125 = vmatpush1.msra.mxu0 0.0
    %126 = vmatprep.subr.mxu0 0.0
    %127 = vmatpush1.msra.mxu0 0.0
    %128 = vmatprep.subr.mxu0 0.0
    %129 = vmatpush1.msra.mxu0 0.0
    %130 = vmatprep.subr.mxu0 0.0
    %131 = vmatpush1.msra.mxu0 0.0
    %132 = vmatprep.subr.mxu0 0.0
    %133 = vmatpush1.msra.mxu0 0.0
    %134 = vmatprep.subr.mxu0 0.0
    %135 = vmatpush1.msra.mxu0 0.0
    %136 = vmatprep.subr.mxu0 0.0
    %137 = vmatpush1.msra.mxu0 0.0
    %138 = vmatprep.subr.mxu0 0.0
    %139 = vmatpush1.msra.mxu0 0.0
    %140 = vmatprep.subr.mxu0 0.0
    %141 = vmatpush1.msra.mxu0 0.0
    %142 = vmatprep.subr.mxu0 0.0
    %143 = vmatpush1.msra.mxu0 0.0
    %144 = vmatprep.subr.mxu0 0.0
    %145 = vmatpush1.msra.mxu0 0.0
    %146 = vmatprep.subr.mxu0 0.0
    %147 = vmatpush1.msra.mxu0 0.0
    %148 = vmatprep.subr.mxu0 0.0
    %149 = vmatpush1.msra.mxu0 0.0
    %150 = vmatprep.subr.mxu0 0.0
    %151 = vmatpush1.msra.mxu0 0.0
    %152 = vmatprep.subr.mxu0 0.0
    %153 = vmatpush1.msra.mxu0 0.0
    %154 = vmatprep.subr.mxu0 0.0
    %155 = vmatpush1.msra.mxu0 0.0
    %156 = vmatprep.subr.mxu0 0.0
    %157 = vmatpush1.msra.mxu0 0.0
    %158 = vmatprep.subr.mxu0 0.0
    %159 = vmatpush1.msra.mxu0 0.0
    %160 = vmatprep.subr.mxu0 0.0
    %161 = vmatpush1.msra.mxu0 0.0
    %162 = vmatprep.subr.mxu0 0.0
    %163 = vmatpush1.msra.mxu0 0.0
    %164 = vmatprep.mubr.f32.mxu0 0.0
    %165 = vmatmul.mubr.f32.gmra.mrb[0].mxu0 %v85
    %v166 = vpop.f32.mrb[0].mxu0
    %v167 = vadd.f32 %v81, %v166
    %v168 = vpop.f32.mrb[0].mxu0
    %169 = vmatprep.mubr.f32.mxu0 0.0
    %170 = vmatmul.mubr.f32.gmra.mrb[0].mxu0 %v88
    %v171 = vpop.f32.mrb[0].mxu0
    %v172 = vadd.f32 %v81, %v171
    %v173 = vpop.f32.mrb[0].mxu0
    %174 = vmatprep.mubr.f32.mxu0 0.0
    %175 = vmatmul.mubr.f32.gmra.mrb[0].mxu0 %v91
    %v176 = vpop.f32.mrb[0].mxu0
    %v177 = vadd.f32 %v81, %v176
    %v178 = vpop.f32.mrb[0].mxu0
    %179 = vmatprep.mubr.f32.mxu0 0.0
    %180 = vmatmul.mubr.f32.gmra.mrb[0].mxu0 %v94
    %v181 = vpop.f32.mrb[0].mxu0
    %v182 = vadd.f32 %v81, %v181
    %v183 = vpop.f32.mrb[0].mxu0
    %184 = vdwg.mxu0
    %v185 = vld [vmem:[%s1] sm:$0xff]
    %v186 = vld [vmem:[%s1 + $0x8] sm:$0xff]
    %v187 = vld [vmem:[%s1 + $0x10] sm:$0xff]
    %v188 = vld [vmem:[%s1 + $0x18] sm:$0xff]
    %v189 = vld [vmem:[%s6] sm:$0x1]
    %v190 = vsub.f32 %v189, %v76
    %192 = vset.pattern.permute.xlu0 0
    %193 = vperm.xlu0 %192, %v185
    %v194 = vpop.permute.xlu0 %193
    %197 = vset.pattern.permute.xlu0 0
    %198 = vperm.xlu0 %197, %v186
    %v199 = vpop.permute.xlu0 %198
    %202 = vset.pattern.permute.xlu0 0
    %203 = vperm.xlu0 %202, %v187
    %v204 = vpop.permute.xlu0 %203
    %207 = vset.pattern.permute.xlu0 0
    %208 = vperm.xlu0 %207, %v188
    %v209 = vpop.permute.xlu0 %208
    %v212 = vlaneseq
    %v213 = vshrl.u32 %v212, 7
    %v214 = vsub.s32 0, %v213
    %v215 = vrot.slane %v190, %v214
    %v217 = vmul.f32 %v194, %v215
    %v218 = vmul.f32 %v199, %v215
    %v219 = vmul.f32 %v204, %v215
    %v220 = vmul.f32 %v209, %v215
    %v221 = vadd.f32 %v167, %v217
    %v222 = vadd.f32 %v172, %v218
    %v223 = vadd.f32 %v177, %v219
    %v224 = vadd.f32 %v182, %v220
    %v225 = vld [vmem:[%s2] sm:$0xff]
    %v226 = vld [vmem:[%s2 + $0x8] sm:$0xff]
    %v227 = vld [vmem:[%s2 + $0x10] sm:$0xff]
    %v228 = vld [vmem:[%s2 + $0x18] sm:$0xff]
    %v229 = vpack.c.bf16 %v222, %v221
    %v230 = vpack.c.bf16 %v224, %v223
    %v231 = vld [vmem:[%s7] sm:$0xff]
    %v232 = vld [vmem:[%s7 + $0x8] sm:$0xff]
    %v233 = vld [vmem:[%s7 + $0x10] sm:$0xff]
    %v234 = vld [vmem:[%s7 + $0x18] sm:$0xff]
    %v235 = vld [vmem:[%s7 + $0x20] sm:$0xff]
    %v236 = vld [vmem:[%s7 + $0x28] sm:$0xff]
    %v237 = vld [vmem:[%s7 + $0x30] sm:$0xff]
    %v238 = vld [vmem:[%s7 + $0x38] sm:$0xff]
    %v239 = vld [vmem:[%s8] sm:$0x3]
    %v241 = vlaneseq
    %v242 = vshrl.u32 %v241, 7
    %v243 = vsub.s32 0, %v242
    %v244 = vrot.slane %v239, %v243
    %v245 = vlaneseq
    %v246 = vshrl.u32 %v245, 7
    %v247 = vsub.s32 1, %v246
    %v248 = vrot.slane %v239, %v247
    %v259 = vunpack.c.l.b16 %v231
    %v260 = vunpack.c.h.b16 %v231
    %v261 = vunpack.c.l.b16 %v232
    %v262 = vunpack.c.h.b16 %v232
    %v263 = vunpack.c.l.b16 %v233
    %v264 = vunpack.c.h.b16 %v233
    %v265 = vunpack.c.l.b16 %v234
    %v266 = vunpack.c.h.b16 %v234
    %v267 = vunpack.c.l.b16 %v235
    %v268 = vunpack.c.h.b16 %v235
    %v269 = vunpack.c.l.b16 %v236
    %v270 = vunpack.c.h.b16 %v236
    %v271 = vunpack.c.l.b16 %v237
    %v272 = vunpack.c.h.b16 %v237
    %v273 = vunpack.c.l.b16 %v238
    %v274 = vunpack.c.h.b16 %v238
    %v275 = vpack.c.b16 %v261, %v259
    %v276 = vpack.c.b16 %v262, %v260
    %v277 = vpack.c.b16 %v265, %v263
    %v278 = vpack.c.b16 %v266, %v264
    %v279 = vpack.c.b16 %v269, %v267
    %v280 = vpack.c.b16 %v270, %v268
    %v281 = vpack.c.b16 %v273, %v271
    %v282 = vpack.c.b16 %v274, %v272
    %vm291 = vcmask 523264
    %v293 = vsel %vm291, %v229, 0
    %v296 = vsel %vm291, %v230, 0
    %298 = vmatprep.subr.bf16.mxu0 %v276
    %299 = vmatpush1.bf16.msra.mxu0 %v275
    %300 = vmatprep.subr.bf16.mxu0 %v278
    %301 = vmatpush1.bf16.msra.mxu0 %v277
    %302 = vmatprep.subr.bf16.mxu0 %v280
    %303 = vmatpush1.bf16.msra.mxu0 %v279
    %304 = vmatprep.subr.bf16.mxu0 %v282
    %305 = vmatpush1.bf16.msra.mxu0 %v281
    %306 = vmatprep.subr.bf16.mxu0 0
    %307 = vmatpush1.bf16.msra.mxu0 0
    %308 = vmatprep.subr.bf16.mxu0 0
    %309 = vmatpush1.bf16.msra.mxu0 0
    %310 = vmatprep.subr.bf16.mxu0 0
    %311 = vmatpush1.bf16.msra.mxu0 0
    %312 = vmatprep.subr.bf16.mxu0 0
    %313 = vmatpush1.bf16.msra.mxu0 0
    %314 = vmatprep.subr.bf16.mxu0 0
    %315 = vmatpush1.bf16.msra.mxu0 0
    %316 = vmatprep.subr.bf16.mxu0 0
    %317 = vmatpush1.bf16.msra.mxu0 0
    %318 = vmatprep.subr.bf16.mxu0 0
    %319 = vmatpush1.bf16.msra.mxu0 0
    %320 = vmatprep.subr.bf16.mxu0 0
    %321 = vmatpush1.bf16.msra.mxu0 0
    %322 = vmatprep.subr.bf16.mxu0 0
    %323 = vmatpush1.bf16.msra.mxu0 0
    %324 = vmatprep.subr.bf16.mxu0 0
    %325 = vmatpush1.bf16.msra.mxu0 0
    %326 = vmatprep.subr.bf16.mxu0 0
    %327 = vmatpush1.bf16.msra.mxu0 0
    %328 = vmatprep.subr.bf16.mxu0 0
    %329 = vmatpush1.bf16.msra.mxu0 0
    %330 = vmatprep.mubr.bf16.mxu0 0
    %331 = vmatmul.mubr.bf16.gmra.mrb[0].mxu0 %v293
    %v332 = vpop.f32.mrb[0].mxu0
    %v333 = vadd.f32 %v244, %v332
    %v334 = vpop.f32.mrb[0].mxu0
    %v335 = vadd.f32 %v248, %v334
    %v336 = vpop.f32.mrb[0].mxu0
    %v337 = vadd.f32 %v244, %v336
    %v338 = vpop.f32.mrb[0].mxu0
    %v339 = vadd.f32 %v248, %v338
    %340 = vmatprep.mubr.bf16.mxu0 0
    %341 = vmatmul.mubr.bf16.gmra.mrb[0].mxu0 %v296
    %v342 = vpop.f32.mrb[0].mxu0
    %v343 = vadd.f32 %v244, %v342
    %v344 = vpop.f32.mrb[0].mxu0
    %v345 = vadd.f32 %v248, %v344
    %v346 = vpop.f32.mrb[0].mxu0
    %v347 = vadd.f32 %v244, %v346
    %v348 = vpop.f32.mrb[0].mxu0
    %v349 = vadd.f32 %v248, %v348
    %350 = vdwg.mxu0
    %355 = vrot.lane.b32.xlu0 %v333, 64
    %v356 = vpop.permute.xlu0 %355
    %357 = vrot.lane.b32.xlu0 %v337, 64
    %v358 = vpop.permute.xlu0 %357
    %359 = vrot.lane.b32.xlu0 %v343, 64
    %v360 = vpop.permute.xlu0 %359
    %361 = vrot.lane.b32.xlu0 %v347, 64
    %v362 = vpop.permute.xlu0 %361
    %vm363 = vcmask 130048
    %v364 = vsel %vm363, %v333, 0
    %v366 = vsel %vm363, %v337, 0
    %v368 = vsel %vm363, %v343, 0
    %v370 = vsel %vm363, %v347, 0
    %v372 = vsel %vm363, %v356, 0
    %v374 = vsel %vm363, %v358, 0
    %v376 = vsel %vm363, %v360, 0
    %v378 = vsel %vm363, %v362, 0
    %380 = vmatprep.subr.mxu0 0.0
    %381 = vmatpush1.xpose.msra.mxu0 %v372
    %382 = vmatprep.subr.mxu0 0.0
    %383 = vmatpush1.xpose.msra.mxu0 %v374
    %384 = vmatprep.subr.mxu0 0.0
    %385 = vmatpush1.xpose.msra.mxu0 %v376
    %386 = vmatprep.subr.mxu0 0.0
    %387 = vmatpush1.xpose.msra.mxu0 %v378
    %388 = vmatprep.subr.mxu0 0.0
    %389 = vmatpush1.xpose.msra.mxu0 0.0
    %390 = vmatprep.subr.mxu0 0.0
    %391 = vmatpush1.xpose.msra.mxu0 0.0
    %392 = vmatprep.subr.mxu0 0.0
    %393 = vmatpush1.xpose.msra.mxu0 0.0
    %394 = vmatprep.subr.mxu0 0.0
    %395 = vmatpush1.xpose.msra.mxu0 0.0
    %396 = vmatprep.subr.mxu0 0.0
    %397 = vmatpush1.xpose.msra.mxu0 0.0
    %398 = vmatprep.subr.mxu0 0.0
    %399 = vmatpush1.xpose.msra.mxu0 0.0
    %400 = vmatprep.subr.mxu0 0.0
    %401 = vmatpush1.xpose.msra.mxu0 0.0
    %402 = vmatprep.subr.mxu0 0.0
    %403 = vmatpush1.xpose.msra.mxu0 0.0
    %404 = vmatprep.subr.mxu0 0.0
    %405 = vmatpush1.xpose.msra.mxu0 0.0
    %406 = vmatprep.subr.mxu0 0.0
    %407 = vmatpush1.xpose.msra.mxu0 0.0
    %408 = vmatprep.subr.mxu0 0.0
    %409 = vmatpush1.xpose.msra.mxu0 0.0
    %410 = vmatprep.subr.mxu0 0.0
    %411 = vmatpush1.xpose.msra.mxu0 0.0
    %412 = vmatprep.subr.mxu0 0.0
    %413 = vmatpush1.xpose.msra.mxu0 0.0
    %414 = vmatprep.subr.mxu0 0.0
    %415 = vmatpush1.xpose.msra.mxu0 0.0
    %416 = vmatprep.subr.mxu0 0.0
    %417 = vmatpush1.xpose.msra.mxu0 0.0
    %418 = vmatprep.subr.mxu0 0.0
    %419 = vmatpush1.xpose.msra.mxu0 0.0
    %420 = vmatprep.subr.mxu0 0.0
    %421 = vmatpush1.xpose.msra.mxu0 0.0
    %422 = vmatprep.subr.mxu0 0.0
    %423 = vmatpush1.xpose.msra.mxu0 0.0
    %424 = vmatprep.subr.mxu0 0.0
    %425 = vmatpush1.xpose.msra.mxu0 0.0
    %426 = vmatprep.subr.mxu0 0.0
    %427 = vmatpush1.xpose.msra.mxu0 0.0
    %428 = vmatprep.subr.mxu0 0.0
    %429 = vmatpush1.xpose.msra.mxu0 0.0
    %430 = vmatprep.subr.mxu0 0.0
    %431 = vmatpush1.xpose.msra.mxu0 0.0
    %432 = vmatprep.subr.mxu0 0.0
    %433 = vmatpush1.xpose.msra.mxu0 0.0
    %434 = vmatprep.subr.mxu0 0.0
    %435 = vmatpush1.xpose.msra.mxu0 0.0
    %436 = vmatprep.subr.mxu0 0.0
    %437 = vmatpush1.xpose.msra.mxu0 0.0
    %438 = vmatprep.subr.mxu0 0.0
    %439 = vmatpush1.xpose.msra.mxu0 0.0
    %440 = vmatprep.subr.mxu0 0.0
    %441 = vmatpush1.xpose.msra.mxu0 0.0
    %442 = vmatprep.subr.mxu0 0.0
    %443 = vmatpush1.xpose.msra.mxu0 0.0
    %444 = vmatprep.mubr.f32.mxu0 0.0
    %445 = vmatmul.mubr.f32.gmra.mrb[0].mxu0 %v364
    %v446 = vpop.f32.mrb[0].mxu0
    %v447 = vadd.f32 0.0, %v446
    %v448 = vpop.f32.mrb[0].mxu0
    %449 = vmatprep.mubr.f32.mxu0 0.0
    %450 = vmatmul.mubr.f32.gmra.mrb[0].mxu0 %v366
    %v451 = vpop.f32.mrb[0].mxu0
    %v452 = vadd.f32 0.0, %v451
    %v453 = vpop.f32.mrb[0].mxu0
    %454 = vmatprep.mubr.f32.mxu0 0.0
    %455 = vmatmul.mubr.f32.gmra.mrb[0].mxu0 %v368
    %v456 = vpop.f32.mrb[0].mxu0
    %v457 = vadd.f32 0.0, %v456
    %v458 = vpop.f32.mrb[0].mxu0
    %459 = vmatprep.mubr.f32.mxu0 0.0
    %460 = vmatmul.mubr.f32.gmra.mrb[0].mxu0 %v370
    %v461 = vpop.f32.mrb[0].mxu0
    %v462 = vadd.f32 0.0, %v461
    %v463 = vpop.f32.mrb[0].mxu0
    %464 = vdwg.mxu0
    %v465 = vmul.f32 %v447, 0.25
    %v466 = vmul.f32 %v452, 0.25
    %v467 = vmul.f32 %v457, 0.25
    %v468 = vmul.f32 %v462, 0.25
    %v469 = vadd.f32 %v465, %v225
    %v470 = vadd.f32 %v466, %v226
    %v471 = vadd.f32 %v467, %v227
    %v472 = vadd.f32 %v468, %v228
    %vm473 = vcmask 261120
    %v474 = vsel %vm473, %v469, -inf
    %475 = vmax.xlane.f32.xlu0 %v474
    %v476 = vpop.xlane.xlu0 %475
    %v477 = vsel %vm473, %v470, -inf
    %478 = vmax.xlane.f32.xlu0 %v477
    %v479 = vpop.xlane.xlu0 %478
    %v480 = vsel %vm473, %v471, -inf
    %481 = vmax.xlane.f32.xlu0 %v480
    %v482 = vpop.xlane.xlu0 %481
    %v483 = vsel %vm473, %v472, -inf
    %484 = vmax.xlane.f32.xlu0 %v483
    %v485 = vpop.xlane.xlu0 %484
    %v486 = vsub.f32 %v469, %v476
    %v487 = vsub.f32 %v470, %v479
    %v488 = vsub.f32 %v471, %v482
    %v489 = vsub.f32 %v472, %v485
    %v490 = vmul.f32 %v486, 1.442695
    %v491 = vpow.pop %v490
    %v492 = vmul.f32 %v487, 1.442695
    %v493 = vpow.pop %v492
    %v494 = vmul.f32 %v488, 1.442695
    %v495 = vpow.pop %v494
    %v496 = vmul.f32 %v489, 1.442695
    %v497 = vpow.pop %v496
    %v498 = vsel %vm473, %v491, 0.0
    %499 = vadd.xlane.f32.xlu0 %v498
    %v500 = vpop.xlane.xlu0 %499
    %v501 = vsel %vm473, %v493, 0.0
    %502 = vadd.xlane.f32.xlu0 %v501
    %v503 = vpop.xlane.xlu0 %502
    %v504 = vsel %vm473, %v495, 0.0
    %505 = vadd.xlane.f32.xlu0 %v504
    %v506 = vpop.xlane.xlu0 %505
    %v507 = vsel %vm473, %v497, 0.0
    %508 = vadd.xlane.f32.xlu0 %v507
    %v509 = vpop.xlane.xlu0 %508
    %v510 = vrcp.pop %v500
    %v511 = vrcp.pop %v503
    %v512 = vrcp.pop %v506
    %v513 = vrcp.pop %v509
    %v514 = vmul.f32 %v491, %v510
    %v515 = vmul.f32 %v493, %v511
    %v516 = vmul.f32 %v495, %v512
    %v517 = vmul.f32 %v497, %v513
    %v519 = vsel %vm473, %v514, 0
    %v522 = vsel %vm473, %v515, 0
    %v525 = vsel %vm473, %v516, 0
    %v528 = vsel %vm473, %v517, 0
    %530 = vmatprep.subr.mxu0 0.0
    %531 = vmatpush1.msra.mxu0 %v335
    %532 = vmatprep.subr.mxu0 0.0
    %533 = vmatpush1.msra.mxu0 %v339
    %534 = vmatprep.subr.mxu0 0.0
    %535 = vmatpush1.msra.mxu0 %v345
    %536 = vmatprep.subr.mxu0 0.0
    %537 = vmatpush1.msra.mxu0 %v349
    %538 = vmatprep.subr.mxu0 0.0
    %539 = vmatpush1.msra.mxu0 0.0
    %540 = vmatprep.subr.mxu0 0.0
    %541 = vmatpush1.msra.mxu0 0.0
    %542 = vmatprep.subr.mxu0 0.0
    %543 = vmatpush1.msra.mxu0 0.0
    %544 = vmatprep.subr.mxu0 0.0
    %545 = vmatpush1.msra.mxu0 0.0
    %546 = vmatprep.subr.mxu0 0.0
    %547 = vmatpush1.msra.mxu0 0.0
    %548 = vmatprep.subr.mxu0 0.0
    %549 = vmatpush1.msra.mxu0 0.0
    %550 = vmatprep.subr.mxu0 0.0
    %551 = vmatpush1.msra.mxu0 0.0
    %552 = vmatprep.subr.mxu0 0.0
    %553 = vmatpush1.msra.mxu0 0.0
    %554 = vmatprep.subr.mxu0 0.0
    %555 = vmatpush1.msra.mxu0 0.0
    %556 = vmatprep.subr.mxu0 0.0
    %557 = vmatpush1.msra.mxu0 0.0
    %558 = vmatprep.subr.mxu0 0.0
    %559 = vmatpush1.msra.mxu0 0.0
    %560 = vmatprep.subr.mxu0 0.0
    %561 = vmatpush1.msra.mxu0 0.0
    %562 = vmatprep.subr.mxu0 0.0
    %563 = vmatpush1.msra.mxu0 0.0
    %564 = vmatprep.subr.mxu0 0.0
    %565 = vmatpush1.msra.mxu0 0.0
    %566 = vmatprep.subr.mxu0 0.0
    %567 = vmatpush1.msra.mxu0 0.0
    %568 = vmatprep.subr.mxu0 0.0
    %569 = vmatpush1.msra.mxu0 0.0
    %570 = vmatprep.subr.mxu0 0.0
    %571 = vmatpush1.msra.mxu0 0.0
    %572 = vmatprep.subr.mxu0 0.0
    %573 = vmatpush1.msra.mxu0 0.0
    %574 = vmatprep.subr.mxu0 0.0
    %575 = vmatpush1.msra.mxu0 0.0
    %576 = vmatprep.subr.mxu0 0.0
    %577 = vmatpush1.msra.mxu0 0.0
    %578 = vmatprep.subr.mxu0 0.0
    %579 = vmatpush1.msra.mxu0 0.0
    %580 = vmatprep.subr.mxu0 0.0
    %581 = vmatpush1.msra.mxu0 0.0
    %582 = vmatprep.subr.mxu0 0.0
    %583 = vmatpush1.msra.mxu0 0.0
    %584 = vmatprep.subr.mxu0 0.0
    %585 = vmatpush1.msra.mxu0 0.0
    %586 = vmatprep.subr.mxu0 0.0
    %587 = vmatpush1.msra.mxu0 0.0
    %588 = vmatprep.subr.mxu0 0.0
    %589 = vmatpush1.msra.mxu0 0.0
    %590 = vmatprep.subr.mxu0 0.0
    %591 = vmatpush1.msra.mxu0 0.0
    %592 = vmatprep.subr.mxu0 0.0
    %593 = vmatpush1.msra.mxu0 0.0
    %594 = vmatprep.mubr.f32.mxu0 0.0
    %595 = vmatmul.mubr.f32.gmra.mrb[0].mxu0 %v519
    %v596 = vpop.f32.mrb[0].mxu0
    %v597 = vadd.f32 0.0, %v596
    %v598 = vpop.f32.mrb[0].mxu0
    %599 = vmatprep.mubr.f32.mxu0 0.0
    %600 = vmatmul.mubr.f32.gmra.mrb[0].mxu0 %v522
    %v601 = vpop.f32.mrb[0].mxu0
    %v602 = vadd.f32 0.0, %v601
    %v603 = vpop.f32.mrb[0].mxu0
    %604 = vmatprep.mubr.f32.mxu0 0.0
    %605 = vmatmul.mubr.f32.gmra.mrb[0].mxu0 %v525
    %v606 = vpop.f32.mrb[0].mxu0
    %v607 = vadd.f32 0.0, %v606
    %v608 = vpop.f32.mrb[0].mxu0
    %609 = vmatprep.mubr.f32.mxu0 0.0
    %610 = vmatmul.mubr.f32.gmra.mrb[0].mxu0 %v528
    %v611 = vpop.f32.mrb[0].mxu0
    %v612 = vadd.f32 0.0, %v611
    %v613 = vpop.f32.mrb[0].mxu0
    %614 = vdwg.mxu0
    %615 = vrot.lane.b32.xlu0 %v333, 112
    %v616 = vpop.permute.xlu0 %615
    %617 = vrot.lane.b32.xlu0 %v337, 112
    %v618 = vpop.permute.xlu0 %617
    %619 = vrot.lane.b32.xlu0 %v343, 112
    %v620 = vpop.permute.xlu0 %619
    %621 = vrot.lane.b32.xlu0 %v347, 112
    %v622 = vpop.permute.xlu0 %621
    %623 = vrot.lane.b32.xlu0 %v333, 48
    %v624 = vpop.permute.xlu0 %623
    %625 = vrot.lane.b32.xlu0 %v337, 48
    %v626 = vpop.permute.xlu0 %625
    %627 = vrot.lane.b32.xlu0 %v343, 48
    %v628 = vpop.permute.xlu0 %627
    %629 = vrot.lane.b32.xlu0 %v347, 48
    %v630 = vpop.permute.xlu0 %629
    %v631 = vsel %vm363, %v616, 0
    %v633 = vsel %vm363, %v618, 0
    %v635 = vsel %vm363, %v620, 0
    %v637 = vsel %vm363, %v622, 0
    %v639 = vsel %vm363, %v624, 0
    %v641 = vsel %vm363, %v626, 0
    %v643 = vsel %vm363, %v628, 0
    %v645 = vsel %vm363, %v630, 0
    %647 = vmatprep.subr.mxu0 0.0
    %648 = vmatpush1.xpose.msra.mxu0 %v639
    %649 = vmatprep.subr.mxu0 0.0
    %650 = vmatpush1.xpose.msra.mxu0 %v641
    %651 = vmatprep.subr.mxu0 0.0
    %652 = vmatpush1.xpose.msra.mxu0 %v643
    %653 = vmatprep.subr.mxu0 0.0
    %654 = vmatpush1.xpose.msra.mxu0 %v645
    %655 = vmatprep.subr.mxu0 0.0
    %656 = vmatpush1.xpose.msra.mxu0 0.0
    %657 = vmatprep.subr.mxu0 0.0
    %658 = vmatpush1.xpose.msra.mxu0 0.0
    %659 = vmatprep.subr.mxu0 0.0
    %660 = vmatpush1.xpose.msra.mxu0 0.0
    %661 = vmatprep.subr.mxu0 0.0
    %662 = vmatpush1.xpose.msra.mxu0 0.0
    %663 = vmatprep.subr.mxu0 0.0
    %664 = vmatpush1.xpose.msra.mxu0 0.0
    %665 = vmatprep.subr.mxu0 0.0
    %666 = vmatpush1.xpose.msra.mxu0 0.0
    %667 = vmatprep.subr.mxu0 0.0
    %668 = vmatpush1.xpose.msra.mxu0 0.0
    %669 = vmatprep.subr.mxu0 0.0
    %670 = vmatpush1.xpose.msra.mxu0 0.0
    %671 = vmatprep.subr.mxu0 0.0
    %672 = vmatpush1.xpose.msra.mxu0 0.0
    %673 = vmatprep.subr.mxu0 0.0
    %674 = vmatpush1.xpose.msra.mxu0 0.0
    %675 = vmatprep.subr.mxu0 0.0
    %676 = vmatpush1.xpose.msra.mxu0 0.0
    %677 = vmatprep.subr.mxu0 0.0
    %678 = vmatpush1.xpose.msra.mxu0 0.0
    %679 = vmatprep.subr.mxu0 0.0
    %680 = vmatpush1.xpose.msra.mxu0 0.0
    %681 = vmatprep.subr.mxu0 0.0
    %682 = vmatpush1.xpose.msra.mxu0 0.0
    %683 = vmatprep.subr.mxu0 0.0
    %684 = vmatpush1.xpose.msra.mxu0 0.0
    %685 = vmatprep.subr.mxu0 0.0
    %686 = vmatpush1.xpose.msra.mxu0 0.0
    %687 = vmatprep.subr.mxu0 0.0
    %688 = vmatpush1.xpose.msra.mxu0 0.0
    %689 = vmatprep.subr.mxu0 0.0
    %690 = vmatpush1.xpose.msra.mxu0 0.0
    %691 = vmatprep.subr.mxu0 0.0
    %692 = vmatpush1.xpose.msra.mxu0 0.0
    %693 = vmatprep.subr.mxu0 0.0
    %694 = vmatpush1.xpose.msra.mxu0 0.0
    %695 = vmatprep.subr.mxu0 0.0
    %696 = vmatpush1.xpose.msra.mxu0 0.0
    %697 = vmatprep.subr.mxu0 0.0
    %698 = vmatpush1.xpose.msra.mxu0 0.0
    %699 = vmatprep.subr.mxu0 0.0
    %700 = vmatpush1.xpose.msra.mxu0 0.0
    %701 = vmatprep.subr.mxu0 0.0
    %702 = vmatpush1.xpose.msra.mxu0 0.0
    %703 = vmatprep.subr.mxu0 0.0
    %704 = vmatpush1.xpose.msra.mxu0 0.0
    %705 = vmatprep.subr.mxu0 0.0
    %706 = vmatpush1.xpose.msra.mxu0 0.0
    %707 = vmatprep.subr.mxu0 0.0
    %708 = vmatpush1.xpose.msra.mxu0 0.0
    %709 = vmatprep.subr.mxu0 0.0
    %710 = vmatpush1.xpose.msra.mxu0 0.0
    %711 = vmatprep.mubr.f32.mxu0 0.0
    %712 = vmatmul.mubr.f32.gmra.mrb[0].mxu0 %v631
    %v713 = vpop.f32.mrb[0].mxu0
    %v714 = vadd.f32 0.0, %v713
    %v715 = vpop.f32.mrb[0].mxu0
    %716 = vmatprep.mubr.f32.mxu0 0.0
    %717 = vmatmul.mubr.f32.gmra.mrb[0].mxu0 %v633
    %v718 = vpop.f32.mrb[0].mxu0
    %v719 = vadd.f32 0.0, %v718
    %v720 = vpop.f32.mrb[0].mxu0
    %721 = vmatprep.mubr.f32.mxu0 0.0
    %722 = vmatmul.mubr.f32.gmra.mrb[0].mxu0 %v635
    %v723 = vpop.f32.mrb[0].mxu0
    %v724 = vadd.f32 0.0, %v723
    %v725 = vpop.f32.mrb[0].mxu0
    %726 = vmatprep.mubr.f32.mxu0 0.0
    %727 = vmatmul.mubr.f32.gmra.mrb[0].mxu0 %v637
    %v728 = vpop.f32.mrb[0].mxu0
    %v729 = vadd.f32 0.0, %v728
    %v730 = vpop.f32.mrb[0].mxu0
    %731 = vdwg.mxu0
    %v732 = vmul.f32 %v714, 0.25
    %v733 = vmul.f32 %v719, 0.25
    %v734 = vmul.f32 %v724, 0.25
    %v735 = vmul.f32 %v729, 0.25
    %v736 = vadd.f32 %v732, %v225
    %v737 = vadd.f32 %v733, %v226
    %v738 = vadd.f32 %v734, %v227
    %v739 = vadd.f32 %v735, %v228
    %v740 = vsel %vm473, %v736, -inf
    %741 = vmax.xlane.f32.xlu0 %v740
    %v742 = vpop.xlane.xlu0 %741
    %v743 = vsel %vm473, %v737, -inf
    %744 = vmax.xlane.f32.xlu0 %v743
    %v745 = vpop.xlane.xlu0 %744
    %v746 = vsel %vm473, %v738, -inf
    %747 = vmax.xlane.f32.xlu0 %v746
    %v748 = vpop.xlane.xlu0 %747
    %v749 = vsel %vm473, %v739, -inf
    %750 = vmax.xlane.f32.xlu0 %v749
    %v751 = vpop.xlane.xlu0 %750
    %v752 = vsub.f32 %v736, %v742
    %v753 = vsub.f32 %v737, %v745
    %v754 = vsub.f32 %v738, %v748
    %v755 = vsub.f32 %v739, %v751
    %v756 = vmul.f32 %v752, 1.442695
    %v757 = vpow.pop %v756
    %v758 = vmul.f32 %v753, 1.442695
    %v759 = vpow.pop %v758
    %v760 = vmul.f32 %v754, 1.442695
    %v761 = vpow.pop %v760
    %v762 = vmul.f32 %v755, 1.442695
    %v763 = vpow.pop %v762
    %v764 = vsel %vm473, %v757, 0.0
    %765 = vadd.xlane.f32.xlu0 %v764
    %v766 = vpop.xlane.xlu0 %765
    %v767 = vsel %vm473, %v759, 0.0
    %768 = vadd.xlane.f32.xlu0 %v767
    %v769 = vpop.xlane.xlu0 %768
    %v770 = vsel %vm473, %v761, 0.0
    %771 = vadd.xlane.f32.xlu0 %v770
    %v772 = vpop.xlane.xlu0 %771
    %v773 = vsel %vm473, %v763, 0.0
    %774 = vadd.xlane.f32.xlu0 %v773
    %v775 = vpop.xlane.xlu0 %774
    %v776 = vrcp.pop %v766
    %v777 = vrcp.pop %v769
    %v778 = vrcp.pop %v772
    %v779 = vrcp.pop %v775
    %v780 = vmul.f32 %v757, %v776
    %v781 = vmul.f32 %v759, %v777
    %v782 = vmul.f32 %v761, %v778
    %v783 = vmul.f32 %v763, %v779
    %788 = vrot.lane.b32.xlu0 %v335, 112
    %v789 = vpop.permute.xlu0 %788
    %790 = vrot.lane.b32.xlu0 %v339, 112
    %v791 = vpop.permute.xlu0 %790
    %792 = vrot.lane.b32.xlu0 %v345, 112
    %v793 = vpop.permute.xlu0 %792
    %794 = vrot.lane.b32.xlu0 %v349, 112
    %v795 = vpop.permute.xlu0 %794
    %v801 = vsel %vm473, %v780, 0
    %v804 = vsel %vm473, %v781, 0
    %v807 = vsel %vm473, %v782, 0
    %v810 = vsel %vm473, %v783, 0
    %812 = vmatprep.subr.mxu0 0.0
    %813 = vmatpush1.msra.mxu0 %v789
    %814 = vmatprep.subr.mxu0 0.0
    %815 = vmatpush1.msra.mxu0 %v791
    %816 = vmatprep.subr.mxu0 0.0
    %817 = vmatpush1.msra.mxu0 %v793
    %818 = vmatprep.subr.mxu0 0.0
    %819 = vmatpush1.msra.mxu0 %v795
    %820 = vmatprep.subr.mxu0 0.0
    %821 = vmatpush1.msra.mxu0 0.0
    %822 = vmatprep.subr.mxu0 0.0
    %823 = vmatpush1.msra.mxu0 0.0
    %824 = vmatprep.subr.mxu0 0.0
    %825 = vmatpush1.msra.mxu0 0.0
    %826 = vmatprep.subr.mxu0 0.0
    %827 = vmatpush1.msra.mxu0 0.0
    %828 = vmatprep.subr.mxu0 0.0
    %829 = vmatpush1.msra.mxu0 0.0
    %830 = vmatprep.subr.mxu0 0.0
    %831 = vmatpush1.msra.mxu0 0.0
    %832 = vmatprep.subr.mxu0 0.0
    %833 = vmatpush1.msra.mxu0 0.0
    %834 = vmatprep.subr.mxu0 0.0
    %835 = vmatpush1.msra.mxu0 0.0
    %836 = vmatprep.subr.mxu0 0.0
    %837 = vmatpush1.msra.mxu0 0.0
    %838 = vmatprep.subr.mxu0 0.0
    %839 = vmatpush1.msra.mxu0 0.0
    %840 = vmatprep.subr.mxu0 0.0
    %841 = vmatpush1.msra.mxu0 0.0
    %842 = vmatprep.subr.mxu0 0.0
    %843 = vmatpush1.msra.mxu0 0.0
    %844 = vmatprep.subr.mxu0 0.0
    %845 = vmatpush1.msra.mxu0 0.0
    %846 = vmatprep.subr.mxu0 0.0
    %847 = vmatpush1.msra.mxu0 0.0
    %848 = vmatprep.subr.mxu0 0.0
    %849 = vmatpush1.msra.mxu0 0.0
    %850 = vmatprep.subr.mxu0 0.0
    %851 = vmatpush1.msra.mxu0 0.0
    %852 = vmatprep.subr.mxu0 0.0
    %853 = vmatpush1.msra.mxu0 0.0
    %854 = vmatprep.subr.mxu0 0.0
    %855 = vmatpush1.msra.mxu0 0.0
    %856 = vmatprep.subr.mxu0 0.0
    %857 = vmatpush1.msra.mxu0 0.0
    %858 = vmatprep.subr.mxu0 0.0
    %859 = vmatpush1.msra.mxu0 0.0
    %860 = vmatprep.subr.mxu0 0.0
    %861 = vmatpush1.msra.mxu0 0.0
    %862 = vmatprep.subr.mxu0 0.0
    %863 = vmatpush1.msra.mxu0 0.0
    %864 = vmatprep.subr.mxu0 0.0
    %865 = vmatpush1.msra.mxu0 0.0
    %866 = vmatprep.subr.mxu0 0.0
    %867 = vmatpush1.msra.mxu0 0.0
    %868 = vmatprep.subr.mxu0 0.0
    %869 = vmatpush1.msra.mxu0 0.0
    %870 = vmatprep.subr.mxu0 0.0
    %871 = vmatpush1.msra.mxu0 0.0
    %872 = vmatprep.subr.mxu0 0.0
    %873 = vmatpush1.msra.mxu0 0.0
    %874 = vmatprep.subr.mxu0 0.0
    %875 = vmatpush1.msra.mxu0 0.0
    %876 = vmatprep.mubr.f32.mxu0 0.0
    %877 = vmatmul.mubr.f32.gmra.mrb[0].mxu0 %v801
    %v878 = vpop.f32.mrb[0].mxu0
    %v879 = vadd.f32 0.0, %v878
    %v880 = vpop.f32.mrb[0].mxu0
    %881 = vmatprep.mubr.f32.mxu0 0.0
    %882 = vmatmul.mubr.f32.gmra.mrb[0].mxu0 %v804
    %v883 = vpop.f32.mrb[0].mxu0
    %v884 = vadd.f32 0.0, %v883
    %v885 = vpop.f32.mrb[0].mxu0
    %886 = vmatprep.mubr.f32.mxu0 0.0
    %887 = vmatmul.mubr.f32.gmra.mrb[0].mxu0 %v807
    %v888 = vpop.f32.mrb[0].mxu0
    %v889 = vadd.f32 0.0, %v888
    %v890 = vpop.f32.mrb[0].mxu0
    %891 = vmatprep.mubr.f32.mxu0 0.0
    %892 = vmatmul.mubr.f32.gmra.mrb[0].mxu0 %v810
    %v893 = vpop.f32.mrb[0].mxu0
    %v894 = vadd.f32 0.0, %v893
    %v895 = vpop.f32.mrb[0].mxu0
    %896 = vdwg.mxu0
    %897 = vrot.lane.b32.xlu0 %v333, 96
    %v898 = vpop.permute.xlu0 %897
    %899 = vrot.lane.b32.xlu0 %v337, 96
    %v900 = vpop.permute.xlu0 %899
    %901 = vrot.lane.b32.xlu0 %v343, 96
    %v902 = vpop.permute.xlu0 %901
    %903 = vrot.lane.b32.xlu0 %v347, 96
    %v904 = vpop.permute.xlu0 %903
    %905 = vrot.lane.b32.xlu0 %v333, 32
    %v906 = vpop.permute.xlu0 %905
    %907 = vrot.lane.b32.xlu0 %v337, 32
    %v908 = vpop.permute.xlu0 %907
    %909 = vrot.lane.b32.xlu0 %v343, 32
    %v910 = vpop.permute.xlu0 %909
    %911 = vrot.lane.b32.xlu0 %v347, 32
    %v912 = vpop.permute.xlu0 %911
    %v913 = vsel %vm363, %v898, 0
    %v915 = vsel %vm363, %v900, 0
    %v917 = vsel %vm363, %v902, 0
    %v919 = vsel %vm363, %v904, 0
    %v921 = vsel %vm363, %v906, 0
    %v923 = vsel %vm363, %v908, 0
    %v925 = vsel %vm363, %v910, 0
    %v927 = vsel %vm363, %v912, 0
    %929 = vmatprep.subr.mxu0 0.0
    %930 = vmatpush1.xpose.msra.mxu0 %v921
    %931 = vmatprep.subr.mxu0 0.0
    %932 = vmatpush1.xpose.msra.mxu0 %v923
    %933 = vmatprep.subr.mxu0 0.0
    %934 = vmatpush1.xpose.msra.mxu0 %v925
    %935 = vmatprep.subr.mxu0 0.0
    %936 = vmatpush1.xpose.msra.mxu0 %v927
    %937 = vmatprep.subr.mxu0 0.0
    %938 = vmatpush1.xpose.msra.mxu0 0.0
    %939 = vmatprep.subr.mxu0 0.0
    %940 = vmatpush1.xpose.msra.mxu0 0.0
    %941 = vmatprep.subr.mxu0 0.0
    %942 = vmatpush1.xpose.msra.mxu0 0.0
    %943 = vmatprep.subr.mxu0 0.0
    %944 = vmatpush1.xpose.msra.mxu0 0.0
    %945 = vmatprep.subr.mxu0 0.0
    %946 = vmatpush1.xpose.msra.mxu0 0.0
    %947 = vmatprep.subr.mxu0 0.0
    %948 = vmatpush1.xpose.msra.mxu0 0.0
    %949 = vmatprep.subr.mxu0 0.0
    %950 = vmatpush1.xpose.msra.mxu0 0.0
    %951 = vmatprep.subr.mxu0 0.0
    %952 = vmatpush1.xpose.msra.mxu0 0.0
    %953 = vmatprep.subr.mxu0 0.0
    %954 = vmatpush1.xpose.msra.mxu0 0.0
    %955 = vmatprep.subr.mxu0 0.0
    %956 = vmatpush1.xpose.msra.mxu0 0.0
    %957 = vmatprep.subr.mxu0 0.0
    %958 = vmatpush1.xpose.msra.mxu0 0.0
    %959 = vmatprep.subr.mxu0 0.0
    %960 = vmatpush1.xpose.msra.mxu0 0.0
    %961 = vmatprep.subr.mxu0 0.0
    %962 = vmatpush1.xpose.msra.mxu0 0.0
    %963 = vmatprep.subr.mxu0 0.0
    %964 = vmatpush1.xpose.msra.mxu0 0.0
    %965 = vmatprep.subr.mxu0 0.0
    %966 = vmatpush1.xpose.msra.mxu0 0.0
    %967 = vmatprep.subr.mxu0 0.0
    %968 = vmatpush1.xpose.msra.mxu0 0.0
    %969 = vmatprep.subr.mxu0 0.0
    %970 = vmatpush1.xpose.msra.mxu0 0.0
    %971 = vmatprep.subr.mxu0 0.0
    %972 = vmatpush1.xpose.msra.mxu0 0.0
    %973 = vmatprep.subr.mxu0 0.0
    %974 = vmatpush1.xpose.msra.mxu0 0.0
    %975 = vmatprep.subr.mxu0 0.0
    %976 = vmatpush1.xpose.msra.mxu0 0.0
    %977 = vmatprep.subr.mxu0 0.0
    %978 = vmatpush1.xpose.msra.mxu0 0.0
    %979 = vmatprep.subr.mxu0 0.0
    %980 = vmatpush1.xpose.msra.mxu0 0.0
    %981 = vmatprep.subr.mxu0 0.0
    %982 = vmatpush1.xpose.msra.mxu0 0.0
    %983 = vmatprep.subr.mxu0 0.0
    %984 = vmatpush1.xpose.msra.mxu0 0.0
    %985 = vmatprep.subr.mxu0 0.0
    %986 = vmatpush1.xpose.msra.mxu0 0.0
    %987 = vmatprep.subr.mxu0 0.0
    %988 = vmatpush1.xpose.msra.mxu0 0.0
    %989 = vmatprep.subr.mxu0 0.0
    %990 = vmatpush1.xpose.msra.mxu0 0.0
    %991 = vmatprep.subr.mxu0 0.0
    %992 = vmatpush1.xpose.msra.mxu0 0.0
    %993 = vmatprep.mubr.f32.mxu0 0.0
    %994 = vmatmul.mubr.f32.gmra.mrb[0].mxu0 %v913
    %v995 = vpop.f32.mrb[0].mxu0
    %v996 = vadd.f32 0.0, %v995
    %v997 = vpop.f32.mrb[0].mxu0
    %998 = vmatprep.mubr.f32.mxu0 0.0
    %999 = vmatmul.mubr.f32.gmra.mrb[0].mxu0 %v915
    %v1000 = vpop.f32.mrb[0].mxu0
    %v1001 = vadd.f32 0.0, %v1000
    %v1002 = vpop.f32.mrb[0].mxu0
    %1003 = vmatprep.mubr.f32.mxu0 0.0
    %1004 = vmatmul.mubr.f32.gmra.mrb[0].mxu0 %v917
    %v1005 = vpop.f32.mrb[0].mxu0
    %v1006 = vadd.f32 0.0, %v1005
    %v1007 = vpop.f32.mrb[0].mxu0
    %1008 = vmatprep.mubr.f32.mxu0 0.0
    %1009 = vmatmul.mubr.f32.gmra.mrb[0].mxu0 %v919
    %v1010 = vpop.f32.mrb[0].mxu0
    %v1011 = vadd.f32 0.0, %v1010
    %v1012 = vpop.f32.mrb[0].mxu0
    %1013 = vdwg.mxu0
    %v1014 = vmul.f32 %v996, 0.25
    %v1015 = vmul.f32 %v1001, 0.25
    %v1016 = vmul.f32 %v1006, 0.25
    %v1017 = vmul.f32 %v1011, 0.25
    %v1018 = vadd.f32 %v1014, %v225
    %v1019 = vadd.f32 %v1015, %v226
    %v1020 = vadd.f32 %v1016, %v227
    %v1021 = vadd.f32 %v1017, %v228
    %v1022 = vsel %vm473, %v1018, -inf
    %1023 = vmax.xlane.f32.xlu0 %v1022
    %v1024 = vpop.xlane.xlu0 %1023
    %v1025 = vsel %vm473, %v1019, -inf
    %1026 = vmax.xlane.f32.xlu0 %v1025
    %v1027 = vpop.xlane.xlu0 %1026
    %v1028 = vsel %vm473, %v1020, -inf
    %1029 = vmax.xlane.f32.xlu0 %v1028
    %v1030 = vpop.xlane.xlu0 %1029
    %v1031 = vsel %vm473, %v1021, -inf
    %1032 = vmax.xlane.f32.xlu0 %v1031
    %v1033 = vpop.xlane.xlu0 %1032
    %v1034 = vsub.f32 %v1018, %v1024
    %v1035 = vsub.f32 %v1019, %v1027
    %v1036 = vsub.f32 %v1020, %v1030
    %v1037 = vsub.f32 %v1021, %v1033
    %v1038 = vmul.f32 %v1034, 1.442695
    %v1039 = vpow.pop %v1038
    %v1040 = vmul.f32 %v1035, 1.442695
    %v1041 = vpow.pop %v1040
    %v1042 = vmul.f32 %v1036, 1.442695
    %v1043 = vpow.pop %v1042
    %v1044 = vmul.f32 %v1037, 1.442695
    %v1045 = vpow.pop %v1044
    %v1046 = vsel %vm473, %v1039, 0.0
    %1047 = vadd.xlane.f32.xlu0 %v1046
    %v1048 = vpop.xlane.xlu0 %1047
    %v1049 = vsel %vm473, %v1041, 0.0
    %1050 = vadd.xlane.f32.xlu0 %v1049
    %v1051 = vpop.xlane.xlu0 %1050
    %v1052 = vsel %vm473, %v1043, 0.0
    %1053 = vadd.xlane.f32.xlu0 %v1052
    %v1054 = vpop.xlane.xlu0 %1053
    %v1055 = vsel %vm473, %v1045, 0.0
    %1056 = vadd.xlane.f32.xlu0 %v1055
    %v1057 = vpop.xlane.xlu0 %1056
    %v1058 = vrcp.pop %v1048
    %v1059 = vrcp.pop %v1051
    %v1060 = vrcp.pop %v1054
    %v1061 = vrcp.pop %v1057
    %v1062 = vmul.f32 %v1039, %v1058
    %v1063 = vmul.f32 %v1041, %v1059
    %v1064 = vmul.f32 %v1043, %v1060
    %v1065 = vmul.f32 %v1045, %v1061
    %1066 = vrot.lane.b32.xlu0 %v335, 96
    %v1067 = vpop.permute.xlu0 %1066
    %1068 = vrot.lane.b32.xlu0 %v339, 96
    %v1069 = vpop.permute.xlu0 %1068
    %1070 = vrot.lane.b32.xlu0 %v345, 96
    %v1071 = vpop.permute.xlu0 %1070
    %1072 = vrot.lane.b32.xlu0 %v349, 96
    %v1073 = vpop.permute.xlu0 %1072
    %v1079 = vsel %vm473, %v1062, 0
    %v1082 = vsel %vm473, %v1063, 0
    %v1085 = vsel %vm473, %v1064, 0
    %v1088 = vsel %vm473, %v1065, 0
    %1090 = vmatprep.subr.mxu0 0.0
    %1091 = vmatpush1.msra.mxu0 %v1067
    %1092 = vmatprep.subr.mxu0 0.0
    %1093 = vmatpush1.msra.mxu0 %v1069
    %1094 = vmatprep.subr.mxu0 0.0
    %1095 = vmatpush1.msra.mxu0 %v1071
    %1096 = vmatprep.subr.mxu0 0.0
    %1097 = vmatpush1.msra.mxu0 %v1073
    %1098 = vmatprep.subr.mxu0 0.0
    %1099 = vmatpush1.msra.mxu0 0.0
    %1100 = vmatprep.subr.mxu0 0.0
    %1101 = vmatpush1.msra.mxu0 0.0
    %1102 = vmatprep.subr.mxu0 0.0
    %1103 = vmatpush1.msra.mxu0 0.0
    %1104 = vmatprep.subr.mxu0 0.0
    %1105 = vmatpush1.msra.mxu0 0.0
    %1106 = vmatprep.subr.mxu0 0.0
    %1107 = vmatpush1.msra.mxu0 0.0
    %1108 = vmatprep.subr.mxu0 0.0
    %1109 = vmatpush1.msra.mxu0 0.0
    %1110 = vmatprep.subr.mxu0 0.0
    %1111 = vmatpush1.msra.mxu0 0.0
    %1112 = vmatprep.subr.mxu0 0.0
    %1113 = vmatpush1.msra.mxu0 0.0
    %1114 = vmatprep.subr.mxu0 0.0
    %1115 = vmatpush1.msra.mxu0 0.0
    %1116 = vmatprep.subr.mxu0 0.0
    %1117 = vmatpush1.msra.mxu0 0.0
    %1118 = vmatprep.subr.mxu0 0.0
    %1119 = vmatpush1.msra.mxu0 0.0
    %1120 = vmatprep.subr.mxu0 0.0
    %1121 = vmatpush1.msra.mxu0 0.0
    %1122 = vmatprep.subr.mxu0 0.0
    %1123 = vmatpush1.msra.mxu0 0.0
    %1124 = vmatprep.subr.mxu0 0.0
    %1125 = vmatpush1.msra.mxu0 0.0
    %1126 = vmatprep.subr.mxu0 0.0
    %1127 = vmatpush1.msra.mxu0 0.0
    %1128 = vmatprep.subr.mxu0 0.0
    %1129 = vmatpush1.msra.mxu0 0.0
    %1130 = vmatprep.subr.mxu0 0.0
    %1131 = vmatpush1.msra.mxu0 0.0
    %1132 = vmatprep.subr.mxu0 0.0
    %1133 = vmatpush1.msra.mxu0 0.0
    %1134 = vmatprep.subr.mxu0 0.0
    %1135 = vmatpush1.msra.mxu0 0.0
    %1136 = vmatprep.subr.mxu0 0.0
    %1137 = vmatpush1.msra.mxu0 0.0
    %1138 = vmatprep.subr.mxu0 0.0
    %1139 = vmatpush1.msra.mxu0 0.0
    %1140 = vmatprep.subr.mxu0 0.0
    %1141 = vmatpush1.msra.mxu0 0.0
    %1142 = vmatprep.subr.mxu0 0.0
    %1143 = vmatpush1.msra.mxu0 0.0
    %1144 = vmatprep.subr.mxu0 0.0
    %1145 = vmatpush1.msra.mxu0 0.0
    %1146 = vmatprep.subr.mxu0 0.0
    %1147 = vmatpush1.msra.mxu0 0.0
    %1148 = vmatprep.subr.mxu0 0.0
    %1149 = vmatpush1.msra.mxu0 0.0
    %1150 = vmatprep.subr.mxu0 0.0
    %1151 = vmatpush1.msra.mxu0 0.0
    %1152 = vmatprep.subr.mxu0 0.0
    %1153 = vmatpush1.msra.mxu0 0.0
    %1154 = vmatprep.mubr.f32.mxu0 0.0
    %1155 = vmatmul.mubr.f32.gmra.mrb[0].mxu0 %v1079
    %v1156 = vpop.f32.mrb[0].mxu0
    %v1157 = vadd.f32 0.0, %v1156
    %v1158 = vpop.f32.mrb[0].mxu0
    %1159 = vmatprep.mubr.f32.mxu0 0.0
    %1160 = vmatmul.mubr.f32.gmra.mrb[0].mxu0 %v1082
    %v1161 = vpop.f32.mrb[0].mxu0
    %v1162 = vadd.f32 0.0, %v1161
    %v1163 = vpop.f32.mrb[0].mxu0
    %1164 = vmatprep.mubr.f32.mxu0 0.0
    %1165 = vmatmul.mubr.f32.gmra.mrb[0].mxu0 %v1085
    %v1166 = vpop.f32.mrb[0].mxu0
    %v1167 = vadd.f32 0.0, %v1166
    %v1168 = vpop.f32.mrb[0].mxu0
    %1169 = vmatprep.mubr.f32.mxu0 0.0
    %1170 = vmatmul.mubr.f32.gmra.mrb[0].mxu0 %v1088
    %v1171 = vpop.f32.mrb[0].mxu0
    %v1172 = vadd.f32 0.0, %v1171
    %v1173 = vpop.f32.mrb[0].mxu0
    %1174 = vdwg.mxu0
    %1175 = vrot.lane.b32.xlu0 %v333, 80
    %v1176 = vpop.permute.xlu0 %1175
    %1177 = vrot.lane.b32.xlu0 %v337, 80
    %v1178 = vpop.permute.xlu0 %1177
    %1179 = vrot.lane.b32.xlu0 %v343, 80
    %v1180 = vpop.permute.xlu0 %1179
    %1181 = vrot.lane.b32.xlu0 %v347, 80
    %v1182 = vpop.permute.xlu0 %1181
    %1183 = vrot.lane.b32.xlu0 %v333, 16
    %v1184 = vpop.permute.xlu0 %1183
    %1185 = vrot.lane.b32.xlu0 %v337, 16
    %v1186 = vpop.permute.xlu0 %1185
    %1187 = vrot.lane.b32.xlu0 %v343, 16
    %v1188 = vpop.permute.xlu0 %1187
    %1189 = vrot.lane.b32.xlu0 %v347, 16
    %v1190 = vpop.permute.xlu0 %1189
    %v1191 = vsel %vm363, %v1176, 0
    %v1193 = vsel %vm363, %v1178, 0
    %v1195 = vsel %vm363, %v1180, 0
    %v1197 = vsel %vm363, %v1182, 0
    %v1199 = vsel %vm363, %v1184, 0
    %v1201 = vsel %vm363, %v1186, 0
    %v1203 = vsel %vm363, %v1188, 0
    %v1205 = vsel %vm363, %v1190, 0
    %1207 = vmatprep.subr.mxu0 0.0
    %1208 = vmatpush1.xpose.msra.mxu0 %v1199
    %1209 = vmatprep.subr.mxu0 0.0
    %1210 = vmatpush1.xpose.msra.mxu0 %v1201
    %1211 = vmatprep.subr.mxu0 0.0
    %1212 = vmatpush1.xpose.msra.mxu0 %v1203
    %1213 = vmatprep.subr.mxu0 0.0
    %1214 = vmatpush1.xpose.msra.mxu0 %v1205
    %1215 = vmatprep.subr.mxu0 0.0
    %1216 = vmatpush1.xpose.msra.mxu0 0.0
    %1217 = vmatprep.subr.mxu0 0.0
    %1218 = vmatpush1.xpose.msra.mxu0 0.0
    %1219 = vmatprep.subr.mxu0 0.0
    %1220 = vmatpush1.xpose.msra.mxu0 0.0
    %1221 = vmatprep.subr.mxu0 0.0
    %1222 = vmatpush1.xpose.msra.mxu0 0.0
    %1223 = vmatprep.subr.mxu0 0.0
    %1224 = vmatpush1.xpose.msra.mxu0 0.0
    %1225 = vmatprep.subr.mxu0 0.0
    %1226 = vmatpush1.xpose.msra.mxu0 0.0
    %1227 = vmatprep.subr.mxu0 0.0
    %1228 = vmatpush1.xpose.msra.mxu0 0.0
    %1229 = vmatprep.subr.mxu0 0.0
    %1230 = vmatpush1.xpose.msra.mxu0 0.0
    %1231 = vmatprep.subr.mxu0 0.0
    %1232 = vmatpush1.xpose.msra.mxu0 0.0
    %1233 = vmatprep.subr.mxu0 0.0
    %1234 = vmatpush1.xpose.msra.mxu0 0.0
    %1235 = vmatprep.subr.mxu0 0.0
    %1236 = vmatpush1.xpose.msra.mxu0 0.0
    %1237 = vmatprep.subr.mxu0 0.0
    %1238 = vmatpush1.xpose.msra.mxu0 0.0
    %1239 = vmatprep.subr.mxu0 0.0
    %1240 = vmatpush1.xpose.msra.mxu0 0.0
    %1241 = vmatprep.subr.mxu0 0.0
    %1242 = vmatpush1.xpose.msra.mxu0 0.0
    %1243 = vmatprep.subr.mxu0 0.0
    %1244 = vmatpush1.xpose.msra.mxu0 0.0
    %1245 = vmatprep.subr.mxu0 0.0
    %1246 = vmatpush1.xpose.msra.mxu0 0.0
    %1247 = vmatprep.subr.mxu0 0.0
    %1248 = vmatpush1.xpose.msra.mxu0 0.0
    %1249 = vmatprep.subr.mxu0 0.0
    %1250 = vmatpush1.xpose.msra.mxu0 0.0
    %1251 = vmatprep.subr.mxu0 0.0
    %1252 = vmatpush1.xpose.msra.mxu0 0.0
    %1253 = vmatprep.subr.mxu0 0.0
    %1254 = vmatpush1.xpose.msra.mxu0 0.0
    %1255 = vmatprep.subr.mxu0 0.0
    %1256 = vmatpush1.xpose.msra.mxu0 0.0
    %1257 = vmatprep.subr.mxu0 0.0
    %1258 = vmatpush1.xpose.msra.mxu0 0.0
    %1259 = vmatprep.subr.mxu0 0.0
    %1260 = vmatpush1.xpose.msra.mxu0 0.0
    %1261 = vmatprep.subr.mxu0 0.0
    %1262 = vmatpush1.xpose.msra.mxu0 0.0
    %1263 = vmatprep.subr.mxu0 0.0
    %1264 = vmatpush1.xpose.msra.mxu0 0.0
    %1265 = vmatprep.subr.mxu0 0.0
    %1266 = vmatpush1.xpose.msra.mxu0 0.0
    %1267 = vmatprep.subr.mxu0 0.0
    %1268 = vmatpush1.xpose.msra.mxu0 0.0
    %1269 = vmatprep.subr.mxu0 0.0
    %1270 = vmatpush1.xpose.msra.mxu0 0.0
    %1271 = vmatprep.mubr.f32.mxu0 0.0
    %1272 = vmatmul.mubr.f32.gmra.mrb[0].mxu0 %v1191
    %v1273 = vpop.f32.mrb[0].mxu0
    %v1274 = vadd.f32 0.0, %v1273
    %v1275 = vpop.f32.mrb[0].mxu0
    %1276 = vmatprep.mubr.f32.mxu0 0.0
    %1277 = vmatmul.mubr.f32.gmra.mrb[0].mxu0 %v1193
    %v1278 = vpop.f32.mrb[0].mxu0
    %v1279 = vadd.f32 0.0, %v1278
    %v1280 = vpop.f32.mrb[0].mxu0
    %1281 = vmatprep.mubr.f32.mxu0 0.0
    %1282 = vmatmul.mubr.f32.gmra.mrb[0].mxu0 %v1195
    %v1283 = vpop.f32.mrb[0].mxu0
    %v1284 = vadd.f32 0.0, %v1283
    %v1285 = vpop.f32.mrb[0].mxu0
    %1286 = vmatprep.mubr.f32.mxu0 0.0
    %1287 = vmatmul.mubr.f32.gmra.mrb[0].mxu0 %v1197
    %v1288 = vpop.f32.mrb[0].mxu0
    %v1289 = vadd.f32 0.0, %v1288
    %v1290 = vpop.f32.mrb[0].mxu0
    %1291 = vdwg.mxu0
    %v1292 = vmul.f32 %v1274, 0.25
    %v1293 = vmul.f32 %v1279, 0.25
    %v1294 = vmul.f32 %v1284, 0.25
    %v1295 = vmul.f32 %v1289, 0.25
    %v1296 = vadd.f32 %v1292, %v225
    %v1297 = vadd.f32 %v1293, %v226
    %v1298 = vadd.f32 %v1294, %v227
    %v1299 = vadd.f32 %v1295, %v228
    %v1300 = vsel %vm473, %v1296, -inf
    %1301 = vmax.xlane.f32.xlu0 %v1300
    %v1302 = vpop.xlane.xlu0 %1301
    %v1303 = vsel %vm473, %v1297, -inf
    %1304 = vmax.xlane.f32.xlu0 %v1303
    %v1305 = vpop.xlane.xlu0 %1304
    %v1306 = vsel %vm473, %v1298, -inf
    %1307 = vmax.xlane.f32.xlu0 %v1306
    %v1308 = vpop.xlane.xlu0 %1307
    %v1309 = vsel %vm473, %v1299, -inf
    %1310 = vmax.xlane.f32.xlu0 %v1309
    %v1311 = vpop.xlane.xlu0 %1310
    %v1312 = vsub.f32 %v1296, %v1302
    %v1313 = vsub.f32 %v1297, %v1305
    %v1314 = vsub.f32 %v1298, %v1308
    %v1315 = vsub.f32 %v1299, %v1311
    %v1316 = vmul.f32 %v1312, 1.442695
    %v1317 = vpow.pop %v1316
    %v1318 = vmul.f32 %v1313, 1.442695
    %v1319 = vpow.pop %v1318
    %v1320 = vmul.f32 %v1314, 1.442695
    %v1321 = vpow.pop %v1320
    %v1322 = vmul.f32 %v1315, 1.442695
    %v1323 = vpow.pop %v1322
    %v1324 = vsel %vm473, %v1317, 0.0
    %1325 = vadd.xlane.f32.xlu0 %v1324
    %v1326 = vpop.xlane.xlu0 %1325
    %v1327 = vsel %vm473, %v1319, 0.0
    %1328 = vadd.xlane.f32.xlu0 %v1327
    %v1329 = vpop.xlane.xlu0 %1328
    %v1330 = vsel %vm473, %v1321, 0.0
    %1331 = vadd.xlane.f32.xlu0 %v1330
    %v1332 = vpop.xlane.xlu0 %1331
    %v1333 = vsel %vm473, %v1323, 0.0
    %1334 = vadd.xlane.f32.xlu0 %v1333
    %v1335 = vpop.xlane.xlu0 %1334
    %v1336 = vrcp.pop %v1326
    %v1337 = vrcp.pop %v1329
    %v1338 = vrcp.pop %v1332
    %v1339 = vrcp.pop %v1335
    %v1340 = vmul.f32 %v1317, %v1336
    %v1341 = vmul.f32 %v1319, %v1337
    %v1342 = vmul.f32 %v1321, %v1338
    %v1343 = vmul.f32 %v1323, %v1339
    %1344 = vrot.lane.b32.xlu0 %v335, 80
    %v1345 = vpop.permute.xlu0 %1344
    %1346 = vrot.lane.b32.xlu0 %v339, 80
    %v1347 = vpop.permute.xlu0 %1346
    %1348 = vrot.lane.b32.xlu0 %v345, 80
    %v1349 = vpop.permute.xlu0 %1348
    %1350 = vrot.lane.b32.xlu0 %v349, 80
    %v1351 = vpop.permute.xlu0 %1350
    %v1357 = vsel %vm473, %v1340, 0
    %v1360 = vsel %vm473, %v1341, 0
    %v1363 = vsel %vm473, %v1342, 0
    %v1366 = vsel %vm473, %v1343, 0
    %1368 = vmatprep.subr.mxu0 0.0
    %1369 = vmatpush1.msra.mxu0 %v1345
    %1370 = vmatprep.subr.mxu0 0.0
    %1371 = vmatpush1.msra.mxu0 %v1347
    %1372 = vmatprep.subr.mxu0 0.0
    %1373 = vmatpush1.msra.mxu0 %v1349
    %1374 = vmatprep.subr.mxu0 0.0
    %1375 = vmatpush1.msra.mxu0 %v1351
    %1376 = vmatprep.subr.mxu0 0.0
    %1377 = vmatpush1.msra.mxu0 0.0
    %1378 = vmatprep.subr.mxu0 0.0
    %1379 = vmatpush1.msra.mxu0 0.0
    %1380 = vmatprep.subr.mxu0 0.0
    %1381 = vmatpush1.msra.mxu0 0.0
    %1382 = vmatprep.subr.mxu0 0.0
    %1383 = vmatpush1.msra.mxu0 0.0
    %1384 = vmatprep.subr.mxu0 0.0
    %1385 = vmatpush1.msra.mxu0 0.0
    %1386 = vmatprep.subr.mxu0 0.0
    %1387 = vmatpush1.msra.mxu0 0.0
    %1388 = vmatprep.subr.mxu0 0.0
    %1389 = vmatpush1.msra.mxu0 0.0
    %1390 = vmatprep.subr.mxu0 0.0
    %1391 = vmatpush1.msra.mxu0 0.0
    %1392 = vmatprep.subr.mxu0 0.0
    %1393 = vmatpush1.msra.mxu0 0.0
    %1394 = vmatprep.subr.mxu0 0.0
    %1395 = vmatpush1.msra.mxu0 0.0
    %1396 = vmatprep.subr.mxu0 0.0
    %1397 = vmatpush1.msra.mxu0 0.0
    %1398 = vmatprep.subr.mxu0 0.0
    %1399 = vmatpush1.msra.mxu0 0.0
    %1400 = vmatprep.subr.mxu0 0.0
    %1401 = vmatpush1.msra.mxu0 0.0
    %1402 = vmatprep.subr.mxu0 0.0
    %1403 = vmatpush1.msra.mxu0 0.0
    %1404 = vmatprep.subr.mxu0 0.0
    %1405 = vmatpush1.msra.mxu0 0.0
    %1406 = vmatprep.subr.mxu0 0.0
    %1407 = vmatpush1.msra.mxu0 0.0
    %1408 = vmatprep.subr.mxu0 0.0
    %1409 = vmatpush1.msra.mxu0 0.0
    %1410 = vmatprep.subr.mxu0 0.0
    %1411 = vmatpush1.msra.mxu0 0.0
    %1412 = vmatprep.subr.mxu0 0.0
    %1413 = vmatpush1.msra.mxu0 0.0
    %1414 = vmatprep.subr.mxu0 0.0
    %1415 = vmatpush1.msra.mxu0 0.0
    %1416 = vmatprep.subr.mxu0 0.0
    %1417 = vmatpush1.msra.mxu0 0.0
    %1418 = vmatprep.subr.mxu0 0.0
    %1419 = vmatpush1.msra.mxu0 0.0
    %1420 = vmatprep.subr.mxu0 0.0
    %1421 = vmatpush1.msra.mxu0 0.0
    %1422 = vmatprep.subr.mxu0 0.0
    %1423 = vmatpush1.msra.mxu0 0.0
    %1424 = vmatprep.subr.mxu0 0.0
    %1425 = vmatpush1.msra.mxu0 0.0
    %1426 = vmatprep.subr.mxu0 0.0
    %1427 = vmatpush1.msra.mxu0 0.0
    %1428 = vmatprep.subr.mxu0 0.0
    %1429 = vmatpush1.msra.mxu0 0.0
    %1430 = vmatprep.subr.mxu0 0.0
    %1431 = vmatpush1.msra.mxu0 0.0
    %1432 = vmatprep.mubr.f32.mxu0 0.0
    %1433 = vmatmul.mubr.f32.gmra.mrb[0].mxu0 %v1357
    %v1434 = vpop.f32.mrb[0].mxu0
    %v1435 = vadd.f32 0.0, %v1434
    %v1436 = vpop.f32.mrb[0].mxu0
    %1437 = vmatprep.mubr.f32.mxu0 0.0
    %1438 = vmatmul.mubr.f32.gmra.mrb[0].mxu0 %v1360
    %v1439 = vpop.f32.mrb[0].mxu0
    %v1440 = vadd.f32 0.0, %v1439
    %v1441 = vpop.f32.mrb[0].mxu0
    %1442 = vmatprep.mubr.f32.mxu0 0.0
    %1443 = vmatmul.mubr.f32.gmra.mrb[0].mxu0 %v1363
    %v1444 = vpop.f32.mrb[0].mxu0
    %v1445 = vadd.f32 0.0, %v1444
    %v1446 = vpop.f32.mrb[0].mxu0
    %1447 = vmatprep.mubr.f32.mxu0 0.0
    %1448 = vmatmul.mubr.f32.gmra.mrb[0].mxu0 %v1366
    %v1449 = vpop.f32.mrb[0].mxu0
    %v1450 = vadd.f32 0.0, %v1449
    %v1451 = vpop.f32.mrb[0].mxu0
    %1452 = vdwg.mxu0
    %1457 = vrot.lane.b32.xlu0 %v879, 16
    %v1458 = vpop.permute.xlu0 %1457
    %1459 = vrot.lane.b32.xlu0 %v884, 16
    %v1460 = vpop.permute.xlu0 %1459
    %1461 = vrot.lane.b32.xlu0 %v889, 16
    %v1462 = vpop.permute.xlu0 %1461
    %1463 = vrot.lane.b32.xlu0 %v894, 16
    %v1464 = vpop.permute.xlu0 %1463
    %1473 = vrot.lane.b32.xlu0 %v1157, 32
    %v1474 = vpop.permute.xlu0 %1473
    %1475 = vrot.lane.b32.xlu0 %v1162, 32
    %v1476 = vpop.permute.xlu0 %1475
    %1477 = vrot.lane.b32.xlu0 %v1167, 32
    %v1478 = vpop.permute.xlu0 %1477
    %1479 = vrot.lane.b32.xlu0 %v1172, 32
    %v1480 = vpop.permute.xlu0 %1479
    %1489 = vrot.lane.b32.xlu0 %v1435, 48
    %v1490 = vpop.permute.xlu0 %1489
    %1491 = vrot.lane.b32.xlu0 %v1440, 48
    %v1492 = vpop.permute.xlu0 %1491
    %1493 = vrot.lane.b32.xlu0 %v1445, 48
    %v1494 = vpop.permute.xlu0 %1493
    %1495 = vrot.lane.b32.xlu0 %v1450, 48
    %v1496 = vpop.permute.xlu0 %1495
    %v1501 = vsel %vm363, %v597, %v1458
    %v1502 = vsel %vm363, %v602, %v1460
    %v1503 = vsel %vm363, %v607, %v1462
    %v1504 = vsel %vm363, %v612, %v1464
    %v1505 = vsel %vm473, %v1501, %v1474
    %v1506 = vsel %vm473, %v1502, %v1476
    %v1507 = vsel %vm473, %v1503, %v1478
    %v1508 = vsel %vm473, %v1504, %v1480
    %vm1509 = vcmask 392192
    %v1510 = vsel %vm1509, %v1505, %v1490
    %v1511 = vsel %vm1509, %v1506, %v1492
    %v1512 = vsel %vm1509, %v1507, %v1494
    %v1513 = vsel %vm1509, %v1508, %v1496
    %v1514 = vpack.c.bf16 %v1511, %v1510
    %v1515 = vpack.c.bf16 %v1513, %v1512
    %v1516 = vld [vmem:[%s9] sm:$0xf]
    %v1517 = vld [vmem:[%s9 + $0x4] sm:$0xf]
    %v1518 = vld [vmem:[%s9 + $0x8] sm:$0xf]
    %v1519 = vld [vmem:[%s9 + $0xc] sm:$0xf]
    %v1520 = vld [vmem:[%s9 + $0x10] sm:$0xf]
    %v1521 = vld [vmem:[%s9 + $0x14] sm:$0xf]
    %v1522 = vld [vmem:[%s9 + $0x18] sm:$0xf]
    %v1523 = vld [vmem:[%s9 + $0x1c] sm:$0xf]
    %v1524 = vld [vmem:[%s10] sm:$0x1]
    %v1526 = vlaneseq
    %v1527 = vshrl.u32 %v1526, 7
    %v1528 = vsub.s32 0, %v1527
    %v1529 = vrot.slane %v1524, %v1528
    %v1539 = vunpack.c.l.b16 %v1516
    %v1540 = vunpack.c.l.b16 %v1517
    %v1541 = vunpack.c.l.b16 %v1518
    %v1542 = vunpack.c.l.b16 %v1519
    %v1543 = vunpack.c.l.b16 %v1520
    %v1544 = vunpack.c.l.b16 %v1521
    %v1545 = vunpack.c.l.b16 %v1522
    %v1546 = vunpack.c.l.b16 %v1523
    %v1547 = vpack.c.b16 %v1540, %v1539
    %v1548 = vpack.c.b16 %v1542, %v1541
    %v1549 = vpack.c.b16 %v1544, %v1543
    %v1550 = vpack.c.b16 %v1546, %v1545
    %v1556 = vsel %vm291, %v1514, 0
    %v1559 = vsel %vm291, %v1515, 0
    %1561 = vmatprep.subr.bf16.mxu0 0
    %1562 = vmatpush1.bf16.msra.mxu0 %v1547
    %1563 = vmatprep.subr.bf16.mxu0 0
    %1564 = vmatpush1.bf16.msra.mxu0 %v1548
    %1565 = vmatprep.subr.bf16.mxu0 0
    %1566 = vmatpush1.bf16.msra.mxu0 %v1549
    %1567 = vmatprep.subr.bf16.mxu0 0
    %1568 = vmatpush1.bf16.msra.mxu0 %v1550
    %1569 = vmatprep.subr.bf16.mxu0 0
    %1570 = vmatpush1.bf16.msra.mxu0 0
    %1571 = vmatprep.subr.bf16.mxu0 0
    %1572 = vmatpush1.bf16.msra.mxu0 0
    %1573 = vmatprep.subr.bf16.mxu0 0
    %1574 = vmatpush1.bf16.msra.mxu0 0
    %1575 = vmatprep.subr.bf16.mxu0 0
    %1576 = vmatpush1.bf16.msra.mxu0 0
    %1577 = vmatprep.subr.bf16.mxu0 0
    %1578 = vmatpush1.bf16.msra.mxu0 0
    %1579 = vmatprep.subr.bf16.mxu0 0
    %1580 = vmatpush1.bf16.msra.mxu0 0
    %1581 = vmatprep.subr.bf16.mxu0 0
    %1582 = vmatpush1.bf16.msra.mxu0 0
    %1583 = vmatprep.subr.bf16.mxu0 0
    %1584 = vmatpush1.bf16.msra.mxu0 0
    %1585 = vmatprep.subr.bf16.mxu0 0
    %1586 = vmatpush1.bf16.msra.mxu0 0
    %1587 = vmatprep.subr.bf16.mxu0 0
    %1588 = vmatpush1.bf16.msra.mxu0 0
    %1589 = vmatprep.subr.bf16.mxu0 0
    %1590 = vmatpush1.bf16.msra.mxu0 0
    %1591 = vmatprep.subr.bf16.mxu0 0
    %1592 = vmatpush1.bf16.msra.mxu0 0
    %1593 = vmatprep.mubr.bf16.mxu0 0
    %1594 = vmatmul.mubr.bf16.gmra.mrb[0].mxu0 %v1556
    %v1595 = vpop.f32.mrb[0].mxu0
    %v1596 = vadd.f32 %v1529, %v1595
    %v1597 = vpop.f32.mrb[0].mxu0
    %v1598 = vpop.f32.mrb[0].mxu0
    %v1599 = vadd.f32 %v1529, %v1598
    %v1600 = vpop.f32.mrb[0].mxu0
    %1601 = vmatprep.mubr.bf16.mxu0 0
    %1602 = vmatmul.mubr.bf16.gmra.mrb[0].mxu0 %v1559
    %v1603 = vpop.f32.mrb[0].mxu0
    %v1604 = vadd.f32 %v1529, %v1603
    %v1605 = vpop.f32.mrb[0].mxu0
    %v1606 = vpop.f32.mrb[0].mxu0
    %v1607 = vadd.f32 %v1529, %v1606
    %v1608 = vpop.f32.mrb[0].mxu0
    %1609 = vdwg.mxu0
    %v1610 = vadd.f32 %v221, %v1596
    %v1611 = vadd.f32 %v222, %v1599
    %v1612 = vadd.f32 %v223, %v1604
    %v1613 = vadd.f32 %v224, %v1607
    %v1614 = vld [vmem:[%s11] sm:$0x1]
    %v1615 = vld [vmem:[%s12] sm:$0x1]
    %v1616 = vsel %vm291, %v1610, 0.0
    %1617 = vadd.xlane.f32.xlu0 %v1616
    %v1618 = vpop.xlane.xlu0 %1617
    %v1619 = vsel %vm291, %v1611, 0.0
    %1620 = vadd.xlane.f32.xlu0 %v1619
    %v1621 = vpop.xlane.xlu0 %1620
    %v1622 = vsel %vm291, %v1612, 0.0
    %1623 = vadd.xlane.f32.xlu0 %v1622
    %v1624 = vpop.xlane.xlu0 %1623
    %v1625 = vsel %vm291, %v1613, 0.0
    %1626 = vadd.xlane.f32.xlu0 %v1625
    %v1627 = vpop.xlane.xlu0 %1626
    %v1628 = vrcp.pop 64.0
    %v1629 = vmul.f32 %v1618, %v1628
    %v1630 = vmul.f32 %v1621, %v1628
    %v1631 = vmul.f32 %v1624, %v1628
    %v1632 = vmul.f32 %v1627, %v1628
    %v1633 = vsub.f32 %v1610, %v1629
    %v1634 = vsub.f32 %v1611, %v1630
    %v1635 = vsub.f32 %v1612, %v1631
    %v1636 = vsub.f32 %v1613, %v1632
    %v1637 = vmul.f32 %v1633, %v1633
    %v1638 = vmul.f32 %v1634, %v1634
    %v1639 = vmul.f32 %v1635, %v1635
    %v1640 = vmul.f32 %v1636, %v1636
    %v1641 = vsel %vm291, %v1637, 0.0
    %1642 = vadd.xlane.f32.xlu0 %v1641
    %v1643 = vpop.xlane.xlu0 %1642
    %v1644 = vsel %vm291, %v1638, 0.0
    %1645 = vadd.xlane.f32.xlu0 %v1644
    %v1646 = vpop.xlane.xlu0 %1645
    %v1647 = vsel %vm291, %v1639, 0.0
    %1648 = vadd.xlane.f32.xlu0 %v1647
    %v1649 = vpop.xlane.xlu0 %1648
    %v1650 = vsel %vm291, %v1640, 0.0
    %1651 = vadd.xlane.f32.xlu0 %v1650
    %v1652 = vpop.xlane.xlu0 %1651
    %v1653 = vmul.f32 %v1643, %v1628
    %v1654 = vmul.f32 %v1646, %v1628
    %v1655 = vmul.f32 %v1649, %v1628
    %v1656 = vmul.f32 %v1652, %v1628
    %v1657 = vadd.f32 %v1653, 1e-05
    %v1658 = vadd.f32 %v1654, 1e-05
    %v1659 = vadd.f32 %v1655, 1e-05
    %v1660 = vadd.f32 %v1656, 1e-05
    %v1661 = vrsqrt.pop %v1657
    %v1662 = vrsqrt.pop %v1658
    %v1663 = vrsqrt.pop %v1659
    %v1664 = vrsqrt.pop %v1660
    %v1665 = vmul.f32 %v1633, %v1661
    %v1666 = vmul.f32 %v1634, %v1662
    %v1667 = vmul.f32 %v1635, %v1663
    %v1668 = vmul.f32 %v1636, %v1664
    %v1670 = vlaneseq
    %v1671 = vshrl.u32 %v1670, 7
    %v1672 = vsub.s32 0, %v1671
    %v1673 = vrot.slane %v1614, %v1672
    %v1675 = vmul.f32 %v1665, %v1673
    %v1676 = vmul.f32 %v1666, %v1673
    %v1677 = vmul.f32 %v1667, %v1673
    %v1678 = vmul.f32 %v1668, %v1673
    %v1680 = vlaneseq
    %v1681 = vshrl.u32 %v1680, 7
    %v1682 = vsub.s32 0, %v1681
    %v1683 = vrot.slane %v1615, %v1682
    %v1685 = vadd.f32 %v1675, %v1683
    %v1686 = vadd.f32 %v1676, %v1683
    %v1687 = vadd.f32 %v1677, %v1683
    %v1688 = vadd.f32 %v1678, %v1683
    %v1689 = vpack.c.bf16 %v1686, %v1685
    %v1690 = vpack.c.bf16 %v1688, %v1687
    %v1691 = vld [vmem:[%s13] sm:$0xff]
    %v1692 = vld [vmem:[%s13 + $0x8] sm:$0xff]
    %v1693 = vld [vmem:[%s13 + $0x10] sm:$0xff]
    %v1694 = vld [vmem:[%s13 + $0x18] sm:$0xff]
    %v1695 = vld [vmem:[%s13 + $0x20] sm:$0xff]
    %v1696 = vld [vmem:[%s13 + $0x28] sm:$0xff]
    %v1697 = vld [vmem:[%s13 + $0x30] sm:$0xff]
    %v1698 = vld [vmem:[%s13 + $0x38] sm:$0xff]
    %v1699 = vld [vmem:[%s13 + $0x40] sm:$0xff]
    %v1700 = vld [vmem:[%s13 + $0x48] sm:$0xff]
    %v1701 = vld [vmem:[%s13 + $0x50] sm:$0xff]
    %v1702 = vld [vmem:[%s13 + $0x58] sm:$0xff]
    %v1703 = vld [vmem:[%s13 + $0x60] sm:$0xff]
    %v1704 = vld [vmem:[%s13 + $0x68] sm:$0xff]
    %v1705 = vld [vmem:[%s13 + $0x70] sm:$0xff]
    %v1706 = vld [vmem:[%s13 + $0x78] sm:$0xff]
    %v1707 = vld [vmem:[%s13 + $0x80] sm:$0xff]
    %v1708 = vld [vmem:[%s13 + $0x88] sm:$0xff]
    %v1709 = vld [vmem:[%s13 + $0x90] sm:$0xff]
    %v1710 = vld [vmem:[%s13 + $0x98] sm:$0xff]
    %v1711 = vld [vmem:[%s13 + $0xa0] sm:$0xff]
    %v1712 = vld [vmem:[%s13 + $0xa8] sm:$0xff]
    %v1713 = vld [vmem:[%s13 + $0xb0] sm:$0xff]
    %v1714 = vld [vmem:[%s13 + $0xb8] sm:$0xff]
    %v1715 = vld [vmem:[%s13 + $0xc0] sm:$0xff]
    %v1716 = vld [vmem:[%s13 + $0xc8] sm:$0xff]
    %v1717 = vld [vmem:[%s13 + $0xd0] sm:$0xff]
    %v1718 = vld [vmem:[%s13 + $0xd8] sm:$0xff]
    %v1719 = vld [vmem:[%s13 + $0xe0] sm:$0xff]
    %v1720 = vld [vmem:[%s13 + $0xe8] sm:$0xff]
    %v1721 = vld [vmem:[%s13 + $0xf0] sm:$0xff]
    %v1722 = vld [vmem:[%s13 + $0xf8] sm:$0xff]
    %v1723 = vld [vmem:[%s13 + $0x100] sm:$0xff]
    %v1724 = vld [vmem:[%s13 + $0x108] sm:$0xff]
    %v1725 = vld [vmem:[%s13 + $0x110] sm:$0xff]
    %v1726 = vld [vmem:[%s13 + $0x118] sm:$0xff]
    %v1727 = vld [vmem:[%s13 + $0x120] sm:$0xff]
    %v1728 = vld [vmem:[%s13 + $0x128] sm:$0xff]
    %v1729 = vld [vmem:[%s13 + $0x130] sm:$0xff]
    %v1730 = vld [vmem:[%s13 + $0x138] sm:$0xff]
    %v1731 = vld [vmem:[%s13 + $0x140] sm:$0xff]
    %v1732 = vld [vmem:[%s13 + $0x148] sm:$0xff]
    %v1733 = vld [vmem:[%s13 + $0x150] sm:$0xff]
    %v1734 = vld [vmem:[%s13 + $0x158] sm:$0xff]
    %v1735 = vld [vmem:[%s13 + $0x160] sm:$0xff]
    %v1736 = vld [vmem:[%s13 + $0x168] sm:$0xff]
    %v1737 = vld [vmem:[%s13 + $0x170] sm:$0xff]
    %v1738 = vld [vmem:[%s13 + $0x178] sm:$0xff]
    %v1739 = vld [vmem:[%s13 + $0x180] sm:$0xff]
    %v1740 = vld [vmem:[%s13 + $0x188] sm:$0xff]
    %v1741 = vld [vmem:[%s13 + $0x190] sm:$0xff]
    %v1742 = vld [vmem:[%s13 + $0x198] sm:$0xff]
    %v1743 = vld [vmem:[%s13 + $0x1a0] sm:$0xff]
    %v1744 = vld [vmem:[%s13 + $0x1a8] sm:$0xff]
    %v1745 = vld [vmem:[%s13 + $0x1b0] sm:$0xff]
    %v1746 = vld [vmem:[%s13 + $0x1b8] sm:$0xff]
    %v1747 = vld [vmem:[%s13 + $0x1c0] sm:$0xff]
    %v1748 = vld [vmem:[%s13 + $0x1c8] sm:$0xff]
    %v1749 = vld [vmem:[%s13 + $0x1d0] sm:$0xff]
    %v1750 = vld [vmem:[%s13 + $0x1d8] sm:$0xff]
    %v1751 = vld [vmem:[%s13 + $0x1e0] sm:$0xff]
    %v1752 = vld [vmem:[%s13 + $0x1e8] sm:$0xff]
    %v1753 = vld [vmem:[%s13 + $0x1f0] sm:$0xff]
    %v1754 = vld [vmem:[%s13 + $0x1f8] sm:$0xff]
    %v1755 = vld [vmem:[%s14] sm:$0xff]
    %v1756 = vld [vmem:[%s14 + $0x8] sm:$0xff]
    %v1759 = vlaneseq
    %v1760 = vshrl.u32 %v1759, 7
    %v1761 = vsub.s32 0, %v1760
    %v1762 = vrot.slane %v1755, %v1761
    %v1763 = vlaneseq
    %v1764 = vshrl.u32 %v1763, 7
    %v1765 = vsub.s32 1, %v1764
    %v1766 = vrot.slane %v1755, %v1765
    %v1767 = vlaneseq
    %v1768 = vshrl.u32 %v1767, 7
    %v1769 = vsub.s32 2, %v1768
    %v1770 = vrot.slane %v1755, %v1769
    %v1771 = vlaneseq
    %v1772 = vshrl.u32 %v1771, 7
    %v1773 = vsub.s32 3, %v1772
    %v1774 = vrot.slane %v1755, %v1773
    %v1775 = vlaneseq
    %v1776 = vshrl.u32 %v1775, 7
    %v1777 = vsub.s32 4, %v1776
    %v1778 = vrot.slane %v1755, %v1777
    %v1779 = vlaneseq
    %v1780 = vshrl.u32 %v1779, 7
    %v1781 = vsub.s32 5, %v1780
    %v1782 = vrot.slane %v1755, %v1781
    %v1783 = vlaneseq
    %v1784 = vshrl.u32 %v1783, 7
    %v1785 = vsub.s32 6, %v1784
    %v1786 = vrot.slane %v1755, %v1785
    %v1787 = vlaneseq
    %v1788 = vshrl.u32 %v1787, 7
    %v1789 = vsub.s32 7, %v1788
    %v1790 = vrot.slane %v1755, %v1789
    %v1791 = vlaneseq
    %v1792 = vshrl.u32 %v1791, 7
    %v1793 = vsub.s32 0, %v1792
    %v1794 = vrot.slane %v1756, %v1793
    %v1795 = vlaneseq
    %v1796 = vshrl.u32 %v1795, 7
    %v1797 = vsub.s32 1, %v1796
    %v1798 = vrot.slane %v1756, %v1797
    %v1799 = vlaneseq
    %v1800 = vshrl.u32 %v1799, 7
    %v1801 = vsub.s32 2, %v1800
    %v1802 = vrot.slane %v1756, %v1801
    %v1803 = vlaneseq
    %v1804 = vshrl.u32 %v1803, 7
    %v1805 = vsub.s32 3, %v1804
    %v1806 = vrot.slane %v1756, %v1805
    %v1807 = vlaneseq
    %v1808 = vshrl.u32 %v1807, 7
    %v1809 = vsub.s32 4, %v1808
    %v1810 = vrot.slane %v1756, %v1809
    %v1811 = vlaneseq
    %v1812 = vshrl.u32 %v1811, 7
    %v1813 = vsub.s32 5, %v1812
    %v1814 = vrot.slane %v1756, %v1813
    %v1815 = vlaneseq
    %v1816 = vshrl.u32 %v1815, 7
    %v1817 = vsub.s32 6, %v1816
    %v1818 = vrot.slane %v1756, %v1817
    %v1819 = vlaneseq
    %v1820 = vshrl.u32 %v1819, 7
    %v1821 = vsub.s32 7, %v1820
    %v1822 = vrot.slane %v1756, %v1821
    %v1903 = vunpack.c.l.b16 %v1691
    %v1904 = vunpack.c.h.b16 %v1691
    %v1905 = vunpack.c.l.b16 %v1692
    %v1906 = vunpack.c.h.b16 %v1692
    %v1907 = vunpack.c.l.b16 %v1693
    %v1908 = vunpack.c.h.b16 %v1693
    %v1909 = vunpack.c.l.b16 %v1694
    %v1910 = vunpack.c.h.b16 %v1694
    %v1911 = vunpack.c.l.b16 %v1695
    %v1912 = vunpack.c.h.b16 %v1695
    %v1913 = vunpack.c.l.b16 %v1696
    %v1914 = vunpack.c.h.b16 %v1696
    %v1915 = vunpack.c.l.b16 %v1697
    %v1916 = vunpack.c.h.b16 %v1697
    %v1917 = vunpack.c.l.b16 %v1698
    %v1918 = vunpack.c.h.b16 %v1698
    %v1919 = vunpack.c.l.b16 %v1699
    %v1920 = vunpack.c.h.b16 %v1699
    %v1921 = vunpack.c.l.b16 %v1700
    %v1922 = vunpack.c.h.b16 %v1700
    %v1923 = vunpack.c.l.b16 %v1701
    %v1924 = vunpack.c.h.b16 %v1701
    %v1925 = vunpack.c.l.b16 %v1702
    %v1926 = vunpack.c.h.b16 %v1702
    %v1927 = vunpack.c.l.b16 %v1703
    %v1928 = vunpack.c.h.b16 %v1703
    %v1929 = vunpack.c.l.b16 %v1704
    %v1930 = vunpack.c.h.b16 %v1704
    %v1931 = vunpack.c.l.b16 %v1705
    %v1932 = vunpack.c.h.b16 %v1705
    %v1933 = vunpack.c.l.b16 %v1706
    %v1934 = vunpack.c.h.b16 %v1706
    %v1935 = vunpack.c.l.b16 %v1707
    %v1936 = vunpack.c.h.b16 %v1707
    %v1937 = vunpack.c.l.b16 %v1708
    %v1938 = vunpack.c.h.b16 %v1708
    %v1939 = vunpack.c.l.b16 %v1709
    %v1940 = vunpack.c.h.b16 %v1709
    %v1941 = vunpack.c.l.b16 %v1710
    %v1942 = vunpack.c.h.b16 %v1710
    %v1943 = vunpack.c.l.b16 %v1711
    %v1944 = vunpack.c.h.b16 %v1711
    %v1945 = vunpack.c.l.b16 %v1712
    %v1946 = vunpack.c.h.b16 %v1712
    %v1947 = vunpack.c.l.b16 %v1713
    %v1948 = vunpack.c.h.b16 %v1713
    %v1949 = vunpack.c.l.b16 %v1714
    %v1950 = vunpack.c.h.b16 %v1714
    %v1951 = vunpack.c.l.b16 %v1715
    %v1952 = vunpack.c.h.b16 %v1715
    %v1953 = vunpack.c.l.b16 %v1716
    %v1954 = vunpack.c.h.b16 %v1716
    %v1955 = vunpack.c.l.b16 %v1717
    %v1956 = vunpack.c.h.b16 %v1717
    %v1957 = vunpack.c.l.b16 %v1718
    %v1958 = vunpack.c.h.b16 %v1718
    %v1959 = vunpack.c.l.b16 %v1719
    %v1960 = vunpack.c.h.b16 %v1719
    %v1961 = vunpack.c.l.b16 %v1720
    %v1962 = vunpack.c.h.b16 %v1720
    %v1963 = vunpack.c.l.b16 %v1721
    %v1964 = vunpack.c.h.b16 %v1721
    %v1965 = vunpack.c.l.b16 %v1722
    %v1966 = vunpack.c.h.b16 %v1722
    %v1967 = vunpack.c.l.b16 %v1723
    %v1968 = vunpack.c.h.b16 %v1723
    %v1969 = vunpack.c.l.b16 %v1724
    %v1970 = vunpack.c.h.b16 %v1724
    %v1971 = vunpack.c.l.b16 %v1725
    %v1972 = vunpack.c.h.b16 %v1725
    %v1973 = vunpack.c.l.b16 %v1726
    %v1974 = vunpack.c.h.b16 %v1726
    %v1975 = vunpack.c.l.b16 %v1727
    %v1976 = vunpack.c.h.b16 %v1727
    %v1977 = vunpack.c.l.b16 %v1728
    %v1978 = vunpack.c.h.b16 %v1728
    %v1979 = vunpack.c.l.b16 %v1729
    %v1980 = vunpack.c.h.b16 %v1729
    %v1981 = vunpack.c.l.b16 %v1730
    %v1982 = vunpack.c.h.b16 %v1730
    %v1983 = vunpack.c.l.b16 %v1731
    %v1984 = vunpack.c.h.b16 %v1731
    %v1985 = vunpack.c.l.b16 %v1732
    %v1986 = vunpack.c.h.b16 %v1732
    %v1987 = vunpack.c.l.b16 %v1733
    %v1988 = vunpack.c.h.b16 %v1733
    %v1989 = vunpack.c.l.b16 %v1734
    %v1990 = vunpack.c.h.b16 %v1734
    %v1991 = vunpack.c.l.b16 %v1735
    %v1992 = vunpack.c.h.b16 %v1735
    %v1993 = vunpack.c.l.b16 %v1736
    %v1994 = vunpack.c.h.b16 %v1736
    %v1995 = vunpack.c.l.b16 %v1737
    %v1996 = vunpack.c.h.b16 %v1737
    %v1997 = vunpack.c.l.b16 %v1738
    %v1998 = vunpack.c.h.b16 %v1738
    %v1999 = vunpack.c.l.b16 %v1739
    %v2000 = vunpack.c.h.b16 %v1739
    %v2001 = vunpack.c.l.b16 %v1740
    %v2002 = vunpack.c.h.b16 %v1740
    %v2003 = vunpack.c.l.b16 %v1741
    %v2004 = vunpack.c.h.b16 %v1741
    %v2005 = vunpack.c.l.b16 %v1742
    %v2006 = vunpack.c.h.b16 %v1742
    %v2007 = vunpack.c.l.b16 %v1743
    %v2008 = vunpack.c.h.b16 %v1743
    %v2009 = vunpack.c.l.b16 %v1744
    %v2010 = vunpack.c.h.b16 %v1744
    %v2011 = vunpack.c.l.b16 %v1745
    %v2012 = vunpack.c.h.b16 %v1745
    %v2013 = vunpack.c.l.b16 %v1746
    %v2014 = vunpack.c.h.b16 %v1746
    %v2015 = vunpack.c.l.b16 %v1747
    %v2016 = vunpack.c.h.b16 %v1747
    %v2017 = vunpack.c.l.b16 %v1748
    %v2018 = vunpack.c.h.b16 %v1748
    %v2019 = vunpack.c.l.b16 %v1749
    %v2020 = vunpack.c.h.b16 %v1749
    %v2021 = vunpack.c.l.b16 %v1750
    %v2022 = vunpack.c.h.b16 %v1750
    %v2023 = vunpack.c.l.b16 %v1751
    %v2024 = vunpack.c.h.b16 %v1751
    %v2025 = vunpack.c.l.b16 %v1752
    %v2026 = vunpack.c.h.b16 %v1752
    %v2027 = vunpack.c.l.b16 %v1753
    %v2028 = vunpack.c.h.b16 %v1753
    %v2029 = vunpack.c.l.b16 %v1754
    %v2030 = vunpack.c.h.b16 %v1754
    %v2031 = vpack.c.b16 %v1919, %v1903
    %v2032 = vpack.c.b16 %v1920, %v1904
    %v2033 = vpack.c.b16 %v1921, %v1905
    %v2034 = vpack.c.b16 %v1922, %v1906
    %v2035 = vpack.c.b16 %v1923, %v1907
    %v2036 = vpack.c.b16 %v1924, %v1908
    %v2037 = vpack.c.b16 %v1925, %v1909
    %v2038 = vpack.c.b16 %v1926, %v1910
    %v2039 = vpack.c.b16 %v1927, %v1911
    %v2040 = vpack.c.b16 %v1928, %v1912
    %v2041 = vpack.c.b16 %v1929, %v1913
    %v2042 = vpack.c.b16 %v1930, %v1914
    %v2043 = vpack.c.b16 %v1931, %v1915
    %v2044 = vpack.c.b16 %v1932, %v1916
    %v2045 = vpack.c.b16 %v1933, %v1917
    %v2046 = vpack.c.b16 %v1934, %v1918
    %v2047 = vpack.c.b16 %v1951, %v1935
    %v2048 = vpack.c.b16 %v1952, %v1936
    %v2049 = vpack.c.b16 %v1953, %v1937
    %v2050 = vpack.c.b16 %v1954, %v1938
    %v2051 = vpack.c.b16 %v1955, %v1939
    %v2052 = vpack.c.b16 %v1956, %v1940
    %v2053 = vpack.c.b16 %v1957, %v1941
    %v2054 = vpack.c.b16 %v1958, %v1942
    %v2055 = vpack.c.b16 %v1959, %v1943
    %v2056 = vpack.c.b16 %v1960, %v1944
    %v2057 = vpack.c.b16 %v1961, %v1945
    %v2058 = vpack.c.b16 %v1962, %v1946
    %v2059 = vpack.c.b16 %v1963, %v1947
    %v2060 = vpack.c.b16 %v1964, %v1948
    %v2061 = vpack.c.b16 %v1965, %v1949
    %v2062 = vpack.c.b16 %v1966, %v1950
    %v2063 = vpack.c.b16 %v1983, %v1967
    %v2064 = vpack.c.b16 %v1984, %v1968
    %v2065 = vpack.c.b16 %v1985, %v1969
    %v2066 = vpack.c.b16 %v1986, %v1970
    %v2067 = vpack.c.b16 %v1987, %v1971
    %v2068 = vpack.c.b16 %v1988, %v1972
    %v2069 = vpack.c.b16 %v1989, %v1973
    %v2070 = vpack.c.b16 %v1990, %v1974
    %v2071 = vpack.c.b16 %v1991, %v1975
    %v2072 = vpack.c.b16 %v1992, %v1976
    %v2073 = vpack.c.b16 %v1993, %v1977
    %v2074 = vpack.c.b16 %v1994, %v1978
    %v2075 = vpack.c.b16 %v1995, %v1979
    %v2076 = vpack.c.b16 %v1996, %v1980
    %v2077 = vpack.c.b16 %v1997, %v1981
    %v2078 = vpack.c.b16 %v1998, %v1982
    %v2079 = vpack.c.b16 %v2015, %v1999
    %v2080 = vpack.c.b16 %v2016, %v2000
    %v2081 = vpack.c.b16 %v2017, %v2001
    %v2082 = vpack.c.b16 %v2018, %v2002
    %v2083 = vpack.c.b16 %v2019, %v2003
    %v2084 = vpack.c.b16 %v2020, %v2004
    %v2085 = vpack.c.b16 %v2021, %v2005
    %v2086 = vpack.c.b16 %v2022, %v2006
    %v2087 = vpack.c.b16 %v2023, %v2007
    %v2088 = vpack.c.b16 %v2024, %v2008
    %v2089 = vpack.c.b16 %v2025, %v2009
    %v2090 = vpack.c.b16 %v2026, %v2010
    %v2091 = vpack.c.b16 %v2027, %v2011
    %v2092 = vpack.c.b16 %v2028, %v2012
    %v2093 = vpack.c.b16 %v2029, %v2013
    %v2094 = vpack.c.b16 %v2030, %v2014
    %v2160 = vsel %vm291, %v1689, 0
    %v2163 = vsel %vm291, %v1690, 0
    %2165 = vmatprep.subr.bf16.mxu0 %v2032
    %2166 = vmatpush1.bf16.msra.mxu0 %v2031
    %2167 = vmatprep.subr.bf16.mxu0 %v2048
    %2168 = vmatpush1.bf16.msra.mxu0 %v2047
    %2169 = vmatprep.subr.bf16.mxu0 %v2064
    %2170 = vmatpush1.bf16.msra.mxu0 %v2063
    %2171 = vmatprep.subr.bf16.mxu0 %v2080
    %2172 = vmatpush1.bf16.msra.mxu0 %v2079
    %2173 = vmatprep.subr.bf16.mxu0 0
    %2174 = vmatpush1.bf16.msra.mxu0 0
    %2175 = vmatprep.subr.bf16.mxu0 0
    %2176 = vmatpush1.bf16.msra.mxu0 0
    %2177 = vmatprep.subr.bf16.mxu0 0
    %2178 = vmatpush1.bf16.msra.mxu0 0
    %2179 = vmatprep.subr.bf16.mxu0 0
    %2180 = vmatpush1.bf16.msra.mxu0 0
    %2181 = vmatprep.subr.bf16.mxu0 0
    %2182 = vmatpush1.bf16.msra.mxu0 0
    %2183 = vmatprep.subr.bf16.mxu0 0
    %2184 = vmatpush1.bf16.msra.mxu0 0
    %2185 = vmatprep.subr.bf16.mxu0 0
    %2186 = vmatpush1.bf16.msra.mxu0 0
    %2187 = vmatprep.subr.bf16.mxu0 0
    %2188 = vmatpush1.bf16.msra.mxu0 0
    %2189 = vmatprep.subr.bf16.mxu0 0
    %2190 = vmatpush1.bf16.msra.mxu0 0
    %2191 = vmatprep.subr.bf16.mxu0 0
    %2192 = vmatpush1.bf16.msra.mxu0 0
    %2193 = vmatprep.subr.bf16.mxu0 0
    %2194 = vmatpush1.bf16.msra.mxu0 0
    %2195 = vmatprep.subr.bf16.mxu0 0
    %2196 = vmatpush1.bf16.msra.mxu0 0
    %2197 = vmatprep.mubr.bf16.mxu0 0
    %2198 = vmatmul.mubr.bf16.gmra.mrb[0].mxu0 %v2160
    %v2199 = vpop.f32.mrb[0].mxu0
    %v2200 = vadd.f32 %v1762, %v2199
    %v2201 = vpop.f32.mrb[0].mxu0
    %v2202 = vadd.f32 %v1766, %v2201
    %v2203 = vpop.f32.mrb[0].mxu0
    %v2204 = vadd.f32 %v1762, %v2203
    %v2205 = vpop.f32.mrb[0].mxu0
    %v2206 = vadd.f32 %v1766, %v2205
    %2207 = vmatprep.mubr.bf16.mxu0 0
    %2208 = vmatmul.mubr.bf16.gmra.mrb[0].mxu0 %v2163
    %v2209 = vpop.f32.mrb[0].mxu0
    %v2210 = vadd.f32 %v1762, %v2209
    %v2211 = vpop.f32.mrb[0].mxu0
    %v2212 = vadd.f32 %v1766, %v2211
    %v2213 = vpop.f32.mrb[0].mxu0
    %v2214 = vadd.f32 %v1762, %v2213
    %v2215 = vpop.f32.mrb[0].mxu0
    %v2216 = vadd.f32 %v1766, %v2215
    %2217 = vdwg.mxu0
    %2218 = vmatprep.subr.bf16.mxu0 %v2034
    %2219 = vmatpush1.bf16.msra.mxu0 %v2033
    %2220 = vmatprep.subr.bf16.mxu0 %v2050
    %2221 = vmatpush1.bf16.msra.mxu0 %v2049
    %2222 = vmatprep.subr.bf16.mxu0 %v2066
    %2223 = vmatpush1.bf16.msra.mxu0 %v2065
    %2224 = vmatprep.subr.bf16.mxu0 %v2082
    %2225 = vmatpush1.bf16.msra.mxu0 %v2081
    %2226 = vmatprep.subr.bf16.mxu0 0
    %2227 = vmatpush1.bf16.msra.mxu0 0
    %2228 = vmatprep.subr.bf16.mxu0 0
    %2229 = vmatpush1.bf16.msra.mxu0 0
    %2230 = vmatprep.subr.bf16.mxu0 0
    %2231 = vmatpush1.bf16.msra.mxu0 0
    %2232 = vmatprep.subr.bf16.mxu0 0
    %2233 = vmatpush1.bf16.msra.mxu0 0
    %2234 = vmatprep.subr.bf16.mxu0 0
    %2235 = vmatpush1.bf16.msra.mxu0 0
    %2236 = vmatprep.subr.bf16.mxu0 0
    %2237 = vmatpush1.bf16.msra.mxu0 0
    %2238 = vmatprep.subr.bf16.mxu0 0
    %2239 = vmatpush1.bf16.msra.mxu0 0
    %2240 = vmatprep.subr.bf16.mxu0 0
    %2241 = vmatpush1.bf16.msra.mxu0 0
    %2242 = vmatprep.subr.bf16.mxu0 0
    %2243 = vmatpush1.bf16.msra.mxu0 0
    %2244 = vmatprep.subr.bf16.mxu0 0
    %2245 = vmatpush1.bf16.msra.mxu0 0
    %2246 = vmatprep.subr.bf16.mxu0 0
    %2247 = vmatpush1.bf16.msra.mxu0 0
    %2248 = vmatprep.subr.bf16.mxu0 0
    %2249 = vmatpush1.bf16.msra.mxu0 0
    %2250 = vmatprep.mubr.bf16.mxu0 0
    %2251 = vmatmul.mubr.bf16.gmra.mrb[0].mxu0 %v2160
    %v2252 = vpop.f32.mrb[0].mxu0
    %v2253 = vadd.f32 %v1770, %v2252
    %v2254 = vpop.f32.mrb[0].mxu0
    %v2255 = vadd.f32 %v1774, %v2254
    %v2256 = vpop.f32.mrb[0].mxu0
    %v2257 = vadd.f32 %v1770, %v2256
    %v2258 = vpop.f32.mrb[0].mxu0
    %v2259 = vadd.f32 %v1774, %v2258
    %2260 = vmatprep.mubr.bf16.mxu0 0
    %2261 = vmatmul.mubr.bf16.gmra.mrb[0].mxu0 %v2163
    %v2262 = vpop.f32.mrb[0].mxu0
    %v2263 = vadd.f32 %v1770, %v2262
    %v2264 = vpop.f32.mrb[0].mxu0
    %v2265 = vadd.f32 %v1774, %v2264
    %v2266 = vpop.f32.mrb[0].mxu0
    %v2267 = vadd.f32 %v1770, %v2266
    %v2268 = vpop.f32.mrb[0].mxu0
    %v2269 = vadd.f32 %v1774, %v2268
    %2270 = vdwg.mxu0
    %2271 = vmatprep.subr.bf16.mxu0 %v2036
    %2272 = vmatpush1.bf16.msra.mxu0 %v2035
    %2273 = vmatprep.subr.bf16.mxu0 %v2052
    %2274 = vmatpush1.bf16.msra.mxu0 %v2051
    %2275 = vmatprep.subr.bf16.mxu0 %v2068
    %2276 = vmatpush1.bf16.msra.mxu0 %v2067
    %2277 = vmatprep.subr.bf16.mxu0 %v2084
    %2278 = vmatpush1.bf16.msra.mxu0 %v2083
    %2279 = vmatprep.subr.bf16.mxu0 0
    %2280 = vmatpush1.bf16.msra.mxu0 0
    %2281 = vmatprep.subr.bf16.mxu0 0
    %2282 = vmatpush1.bf16.msra.mxu0 0
    %2283 = vmatprep.subr.bf16.mxu0 0
    %2284 = vmatpush1.bf16.msra.mxu0 0
    %2285 = vmatprep.subr.bf16.mxu0 0
    %2286 = vmatpush1.bf16.msra.mxu0 0
    %2287 = vmatprep.subr.bf16.mxu0 0
    %2288 = vmatpush1.bf16.msra.mxu0 0
    %2289 = vmatprep.subr.bf16.mxu0 0
    %2290 = vmatpush1.bf16.msra.mxu0 0
    %2291 = vmatprep.subr.bf16.mxu0 0
    %2292 = vmatpush1.bf16.msra.mxu0 0
    %2293 = vmatprep.subr.bf16.mxu0 0
    %2294 = vmatpush1.bf16.msra.mxu0 0
    %2295 = vmatprep.subr.bf16.mxu0 0
    %2296 = vmatpush1.bf16.msra.mxu0 0
    %2297 = vmatprep.subr.bf16.mxu0 0
    %2298 = vmatpush1.bf16.msra.mxu0 0
    %2299 = vmatprep.subr.bf16.mxu0 0
    %2300 = vmatpush1.bf16.msra.mxu0 0
    %2301 = vmatprep.subr.bf16.mxu0 0
    %2302 = vmatpush1.bf16.msra.mxu0 0
    %2303 = vmatprep.mubr.bf16.mxu0 0
    %2304 = vmatmul.mubr.bf16.gmra.mrb[0].mxu0 %v2160
    %v2305 = vpop.f32.mrb[0].mxu0
    %v2306 = vadd.f32 %v1778, %v2305
    %v2307 = vpop.f32.mrb[0].mxu0
    %v2308 = vadd.f32 %v1782, %v2307
    %v2309 = vpop.f32.mrb[0].mxu0
    %v2310 = vadd.f32 %v1778, %v2309
    %v2311 = vpop.f32.mrb[0].mxu0
    %v2312 = vadd.f32 %v1782, %v2311
    %2313 = vmatprep.mubr.bf16.mxu0 0
    %2314 = vmatmul.mubr.bf16.gmra.mrb[0].mxu0 %v2163
    %v2315 = vpop.f32.mrb[0].mxu0
    %v2316 = vadd.f32 %v1778, %v2315
    %v2317 = vpop.f32.mrb[0].mxu0
    %v2318 = vadd.f32 %v1782, %v2317
    %v2319 = vpop.f32.mrb[0].mxu0
    %v2320 = vadd.f32 %v1778, %v2319
    %v2321 = vpop.f32.mrb[0].mxu0
    %v2322 = vadd.f32 %v1782, %v2321
    %2323 = vdwg.mxu0
    %2324 = vmatprep.subr.bf16.mxu0 %v2038
    %2325 = vmatpush1.bf16.msra.mxu0 %v2037
    %2326 = vmatprep.subr.bf16.mxu0 %v2054
    %2327 = vmatpush1.bf16.msra.mxu0 %v2053
    %2328 = vmatprep.subr.bf16.mxu0 %v2070
    %2329 = vmatpush1.bf16.msra.mxu0 %v2069
    %2330 = vmatprep.subr.bf16.mxu0 %v2086
    %2331 = vmatpush1.bf16.msra.mxu0 %v2085
    %2332 = vmatprep.subr.bf16.mxu0 0
    %2333 = vmatpush1.bf16.msra.mxu0 0
    %2334 = vmatprep.subr.bf16.mxu0 0
    %2335 = vmatpush1.bf16.msra.mxu0 0
    %2336 = vmatprep.subr.bf16.mxu0 0
    %2337 = vmatpush1.bf16.msra.mxu0 0
    %2338 = vmatprep.subr.bf16.mxu0 0
    %2339 = vmatpush1.bf16.msra.mxu0 0
    %2340 = vmatprep.subr.bf16.mxu0 0
    %2341 = vmatpush1.bf16.msra.mxu0 0
    %2342 = vmatprep.subr.bf16.mxu0 0
    %2343 = vmatpush1.bf16.msra.mxu0 0
    %2344 = vmatprep.subr.bf16.mxu0 0
    %2345 = vmatpush1.bf16.msra.mxu0 0
    %2346 = vmatprep.subr.bf16.mxu0 0
    %2347 = vmatpush1.bf16.msra.mxu0 0
    %2348 = vmatprep.subr.bf16.mxu0 0
    %2349 = vmatpush1.bf16.msra.mxu0 0
    %2350 = vmatprep.subr.bf16.mxu0 0
    %2351 = vmatpush1.bf16.msra.mxu0 0
    %2352 = vmatprep.subr.bf16.mxu0 0
    %2353 = vmatpush1.bf16.msra.mxu0 0
    %2354 = vmatprep.subr.bf16.mxu0 0
    %2355 = vmatpush1.bf16.msra.mxu0 0
    %2356 = vmatprep.mubr.bf16.mxu0 0
    %2357 = vmatmul.mubr.bf16.gmra.mrb[0].mxu0 %v2160
    %v2358 = vpop.f32.mrb[0].mxu0
    %v2359 = vadd.f32 %v1786, %v2358
    %v2360 = vpop.f32.mrb[0].mxu0
    %v2361 = vadd.f32 %v1790, %v2360
    %v2362 = vpop.f32.mrb[0].mxu0
    %v2363 = vadd.f32 %v1786, %v2362
    %v2364 = vpop.f32.mrb[0].mxu0
    %v2365 = vadd.f32 %v1790, %v2364
    %2366 = vmatprep.mubr.bf16.mxu0 0
    %2367 = vmatmul.mubr.bf16.gmra.mrb[0].mxu0 %v2163
    %v2368 = vpop.f32.mrb[0].mxu0
    %v2369 = vadd.f32 %v1786, %v2368
    %v2370 = vpop.f32.mrb[0].mxu0
    %v2371 = vadd.f32 %v1790, %v2370
    %v2372 = vpop.f32.mrb[0].mxu0
    %v2373 = vadd.f32 %v1786, %v2372
    %v2374 = vpop.f32.mrb[0].mxu0
    %v2375 = vadd.f32 %v1790, %v2374
    %2376 = vdwg.mxu0
    %2377 = vmatprep.subr.bf16.mxu0 %v2040
    %2378 = vmatpush1.bf16.msra.mxu0 %v2039
    %2379 = vmatprep.subr.bf16.mxu0 %v2056
    %2380 = vmatpush1.bf16.msra.mxu0 %v2055
    %2381 = vmatprep.subr.bf16.mxu0 %v2072
    %2382 = vmatpush1.bf16.msra.mxu0 %v2071
    %2383 = vmatprep.subr.bf16.mxu0 %v2088
    %2384 = vmatpush1.bf16.msra.mxu0 %v2087
    %2385 = vmatprep.subr.bf16.mxu0 0
    %2386 = vmatpush1.bf16.msra.mxu0 0
    %2387 = vmatprep.subr.bf16.mxu0 0
    %2388 = vmatpush1.bf16.msra.mxu0 0
    %2389 = vmatprep.subr.bf16.mxu0 0
    %2390 = vmatpush1.bf16.msra.mxu0 0
    %2391 = vmatprep.subr.bf16.mxu0 0
    %2392 = vmatpush1.bf16.msra.mxu0 0
    %2393 = vmatprep.subr.bf16.mxu0 0
    %2394 = vmatpush1.bf16.msra.mxu0 0
    %2395 = vmatprep.subr.bf16.mxu0 0
    %2396 = vmatpush1.bf16.msra.mxu0 0
    %2397 = vmatprep.subr.bf16.mxu0 0
    %2398 = vmatpush1.bf16.msra.mxu0 0
    %2399 = vmatprep.subr.bf16.mxu0 0
    %2400 = vmatpush1.bf16.msra.mxu0 0
    %2401 = vmatprep.subr.bf16.mxu0 0
    %2402 = vmatpush1.bf16.msra.mxu0 0
    %2403 = vmatprep.subr.bf16.mxu0 0
    %2404 = vmatpush1.bf16.msra.mxu0 0
    %2405 = vmatprep.subr.bf16.mxu0 0
    %2406 = vmatpush1.bf16.msra.mxu0 0
    %2407 = vmatprep.subr.bf16.mxu0 0
    %2408 = vmatpush1.bf16.msra.mxu0 0
    %2409 = vmatprep.mubr.bf16.mxu0 0
    %2410 = vmatmul.mubr.bf16.gmra.mrb[0].mxu0 %v2160
    %v2411 = vpop.f32.mrb[0].mxu0
    %v2412 = vadd.f32 %v1794, %v2411
    %v2413 = vpop.f32.mrb[0].mxu0
    %v2414 = vadd.f32 %v1798, %v2413
    %v2415 = vpop.f32.mrb[0].mxu0
    %v2416 = vadd.f32 %v1794, %v2415
    %v2417 = vpop.f32.mrb[0].mxu0
    %v2418 = vadd.f32 %v1798, %v2417
    %2419 = vmatprep.mubr.bf16.mxu0 0
    %2420 = vmatmul.mubr.bf16.gmra.mrb[0].mxu0 %v2163
    %v2421 = vpop.f32.mrb[0].mxu0
    %v2422 = vadd.f32 %v1794, %v2421
    %v2423 = vpop.f32.mrb[0].mxu0
    %v2424 = vadd.f32 %v1798, %v2423
    %v2425 = vpop.f32.mrb[0].mxu0
    %v2426 = vadd.f32 %v1794, %v2425
    %v2427 = vpop.f32.mrb[0].mxu0
    %v2428 = vadd.f32 %v1798, %v2427
    %2429 = vdwg.mxu0
    %2430 = vmatprep.subr.bf16.mxu0 %v2042
    %2431 = vmatpush1.bf16.msra.mxu0 %v2041
    %2432 = vmatprep.subr.bf16.mxu0 %v2058
    %2433 = vmatpush1.bf16.msra.mxu0 %v2057
    %2434 = vmatprep.subr.bf16.mxu0 %v2074
    %2435 = vmatpush1.bf16.msra.mxu0 %v2073
    %2436 = vmatprep.subr.bf16.mxu0 %v2090
    %2437 = vmatpush1.bf16.msra.mxu0 %v2089
    %2438 = vmatprep.subr.bf16.mxu0 0
    %2439 = vmatpush1.bf16.msra.mxu0 0
    %2440 = vmatprep.subr.bf16.mxu0 0
    %2441 = vmatpush1.bf16.msra.mxu0 0
    %2442 = vmatprep.subr.bf16.mxu0 0
    %2443 = vmatpush1.bf16.msra.mxu0 0
    %2444 = vmatprep.subr.bf16.mxu0 0
    %2445 = vmatpush1.bf16.msra.mxu0 0
    %2446 = vmatprep.subr.bf16.mxu0 0
    %2447 = vmatpush1.bf16.msra.mxu0 0
    %2448 = vmatprep.subr.bf16.mxu0 0
    %2449 = vmatpush1.bf16.msra.mxu0 0
    %2450 = vmatprep.subr.bf16.mxu0 0
    %2451 = vmatpush1.bf16.msra.mxu0 0
    %2452 = vmatprep.subr.bf16.mxu0 0
    %2453 = vmatpush1.bf16.msra.mxu0 0
    %2454 = vmatprep.subr.bf16.mxu0 0
    %2455 = vmatpush1.bf16.msra.mxu0 0
    %2456 = vmatprep.subr.bf16.mxu0 0
    %2457 = vmatpush1.bf16.msra.mxu0 0
    %2458 = vmatprep.subr.bf16.mxu0 0
    %2459 = vmatpush1.bf16.msra.mxu0 0
    %2460 = vmatprep.subr.bf16.mxu0 0
    %2461 = vmatpush1.bf16.msra.mxu0 0
    %2462 = vmatprep.mubr.bf16.mxu0 0
    %2463 = vmatmul.mubr.bf16.gmra.mrb[0].mxu0 %v2160
    %v2464 = vpop.f32.mrb[0].mxu0
    %v2465 = vadd.f32 %v1802, %v2464
    %v2466 = vpop.f32.mrb[0].mxu0
    %v2467 = vadd.f32 %v1806, %v2466
    %v2468 = vpop.f32.mrb[0].mxu0
    %v2469 = vadd.f32 %v1802, %v2468
    %v2470 = vpop.f32.mrb[0].mxu0
    %v2471 = vadd.f32 %v1806, %v2470
    %2472 = vmatprep.mubr.bf16.mxu0 0
    %2473 = vmatmul.mubr.bf16.gmra.mrb[0].mxu0 %v2163
    %v2474 = vpop.f32.mrb[0].mxu0
    %v2475 = vadd.f32 %v1802, %v2474
    %v2476 = vpop.f32.mrb[0].mxu0
    %v2477 = vadd.f32 %v1806, %v2476
    %v2478 = vpop.f32.mrb[0].mxu0
    %v2479 = vadd.f32 %v1802, %v2478
    %v2480 = vpop.f32.mrb[0].mxu0
    %v2481 = vadd.f32 %v1806, %v2480
    %2482 = vdwg.mxu0
    %2483 = vmatprep.subr.bf16.mxu0 %v2044
    %2484 = vmatpush1.bf16.msra.mxu0 %v2043
    %2485 = vmatprep.subr.bf16.mxu0 %v2060
    %2486 = vmatpush1.bf16.msra.mxu0 %v2059
    %2487 = vmatprep.subr.bf16.mxu0 %v2076
    %2488 = vmatpush1.bf16.msra.mxu0 %v2075
    %2489 = vmatprep.subr.bf16.mxu0 %v2092
    %2490 = vmatpush1.bf16.msra.mxu0 %v2091
    %2491 = vmatprep.subr.bf16.mxu0 0
    %2492 = vmatpush1.bf16.msra.mxu0 0
    %2493 = vmatprep.subr.bf16.mxu0 0
    %2494 = vmatpush1.bf16.msra.mxu0 0
    %2495 = vmatprep.subr.bf16.mxu0 0
    %2496 = vmatpush1.bf16.msra.mxu0 0
    %2497 = vmatprep.subr.bf16.mxu0 0
    %2498 = vmatpush1.bf16.msra.mxu0 0
    %2499 = vmatprep.subr.bf16.mxu0 0
    %2500 = vmatpush1.bf16.msra.mxu0 0
    %2501 = vmatprep.subr.bf16.mxu0 0
    %2502 = vmatpush1.bf16.msra.mxu0 0
    %2503 = vmatprep.subr.bf16.mxu0 0
    %2504 = vmatpush1.bf16.msra.mxu0 0
    %2505 = vmatprep.subr.bf16.mxu0 0
    %2506 = vmatpush1.bf16.msra.mxu0 0
    %2507 = vmatprep.subr.bf16.mxu0 0
    %2508 = vmatpush1.bf16.msra.mxu0 0
    %2509 = vmatprep.subr.bf16.mxu0 0
    %2510 = vmatpush1.bf16.msra.mxu0 0
    %2511 = vmatprep.subr.bf16.mxu0 0
    %2512 = vmatpush1.bf16.msra.mxu0 0
    %2513 = vmatprep.subr.bf16.mxu0 0
    %2514 = vmatpush1.bf16.msra.mxu0 0
    %2515 = vmatprep.mubr.bf16.mxu0 0
    %2516 = vmatmul.mubr.bf16.gmra.mrb[0].mxu0 %v2160
    %v2517 = vpop.f32.mrb[0].mxu0
    %v2518 = vadd.f32 %v1810, %v2517
    %v2519 = vpop.f32.mrb[0].mxu0
    %v2520 = vadd.f32 %v1814, %v2519
    %v2521 = vpop.f32.mrb[0].mxu0
    %v2522 = vadd.f32 %v1810, %v2521
    %v2523 = vpop.f32.mrb[0].mxu0
    %v2524 = vadd.f32 %v1814, %v2523
    %2525 = vmatprep.mubr.bf16.mxu0 0
    %2526 = vmatmul.mubr.bf16.gmra.mrb[0].mxu0 %v2163
    %v2527 = vpop.f32.mrb[0].mxu0
    %v2528 = vadd.f32 %v1810, %v2527
    %v2529 = vpop.f32.mrb[0].mxu0
    %v2530 = vadd.f32 %v1814, %v2529
    %v2531 = vpop.f32.mrb[0].mxu0
    %v2532 = vadd.f32 %v1810, %v2531
    %v2533 = vpop.f32.mrb[0].mxu0
    %v2534 = vadd.f32 %v1814, %v2533
    %2535 = vdwg.mxu0
    %2536 = vmatprep.subr.bf16.mxu0 %v2046
    %2537 = vmatpush1.bf16.msra.mxu0 %v2045
    %2538 = vmatprep.subr.bf16.mxu0 %v2062
    %2539 = vmatpush1.bf16.msra.mxu0 %v2061
    %2540 = vmatprep.subr.bf16.mxu0 %v2078
    %2541 = vmatpush1.bf16.msra.mxu0 %v2077
    %2542 = vmatprep.subr.bf16.mxu0 %v2094
    %2543 = vmatpush1.bf16.msra.mxu0 %v2093
    %2544 = vmatprep.subr.bf16.mxu0 0
    %2545 = vmatpush1.bf16.msra.mxu0 0
    %2546 = vmatprep.subr.bf16.mxu0 0
    %2547 = vmatpush1.bf16.msra.mxu0 0
    %2548 = vmatprep.subr.bf16.mxu0 0
    %2549 = vmatpush1.bf16.msra.mxu0 0
    %2550 = vmatprep.subr.bf16.mxu0 0
    %2551 = vmatpush1.bf16.msra.mxu0 0
    %2552 = vmatprep.subr.bf16.mxu0 0
    %2553 = vmatpush1.bf16.msra.mxu0 0
    %2554 = vmatprep.subr.bf16.mxu0 0
    %2555 = vmatpush1.bf16.msra.mxu0 0
    %2556 = vmatprep.subr.bf16.mxu0 0
    %2557 = vmatpush1.bf16.msra.mxu0 0
    %2558 = vmatprep.subr.bf16.mxu0 0
    %2559 = vmatpush1.bf16.msra.mxu0 0
    %2560 = vmatprep.subr.bf16.mxu0 0
    %2561 = vmatpush1.bf16.msra.mxu0 0
    %2562 = vmatprep.subr.bf16.mxu0 0
    %2563 = vmatpush1.bf16.msra.mxu0 0
    %2564 = vmatprep.subr.bf16.mxu0 0
    %2565 = vmatpush1.bf16.msra.mxu0 0
    %2566 = vmatprep.subr.bf16.mxu0 0
    %2567 = vmatpush1.bf16.msra.mxu0 0
    %2568 = vmatprep.mubr.bf16.mxu0 0
    %2569 = vmatmul.mubr.bf16.gmra.mrb[0].mxu0 %v2160
    %v2570 = vpop.f32.mrb[0].mxu0
    %v2571 = vadd.f32 %v1818, %v2570
    %v2572 = vpop.f32.mrb[0].mxu0
    %v2573 = vadd.f32 %v1822, %v2572
    %v2574 = vpop.f32.mrb[0].mxu0
    %v2575 = vadd.f32 %v1818, %v2574
    %v2576 = vpop.f32.mrb[0].mxu0
    %v2577 = vadd.f32 %v1822, %v2576
    %2578 = vmatprep.mubr.bf16.mxu0 0
    %2579 = vmatmul.mubr.bf16.gmra.mrb[0].mxu0 %v2163
    %v2580 = vpop.f32.mrb[0].mxu0
    %v2581 = vadd.f32 %v1818, %v2580
    %v2582 = vpop.f32.mrb[0].mxu0
    %v2583 = vadd.f32 %v1822, %v2582
    %v2584 = vpop.f32.mrb[0].mxu0
    %v2585 = vadd.f32 %v1818, %v2584
    %v2586 = vpop.f32.mrb[0].mxu0
    %v2587 = vadd.f32 %v1822, %v2586
    %2588 = vdwg.mxu0
    %v2589 = vmax.f32 %v2200, 0.0
    %v2590 = vmax.f32 %v2202, 0.0
    %v2591 = vmax.f32 %v2253, 0.0
    %v2592 = vmax.f32 %v2255, 0.0
    %v2593 = vmax.f32 %v2306, 0.0
    %v2594 = vmax.f32 %v2308, 0.0
    %v2595 = vmax.f32 %v2359, 0.0
    %v2596 = vmax.f32 %v2361, 0.0
    %v2597 = vmax.f32 %v2412, 0.0
    %v2598 = vmax.f32 %v2414, 0.0
    %v2599 = vmax.f32 %v2465, 0.0
    %v2600 = vmax.f32 %v2467, 0.0
    %v2601 = vmax.f32 %v2518, 0.0
    %v2602 = vmax.f32 %v2520, 0.0
    %v2603 = vmax.f32 %v2571, 0.0
    %v2604 = vmax.f32 %v2573, 0.0
    %v2605 = vmax.f32 %v2204, 0.0
    %v2606 = vmax.f32 %v2206, 0.0
    %v2607 = vmax.f32 %v2257, 0.0
    %v2608 = vmax.f32 %v2259, 0.0
    %v2609 = vmax.f32 %v2310, 0.0
    %v2610 = vmax.f32 %v2312, 0.0
    %v2611 = vmax.f32 %v2363, 0.0
    %v2612 = vmax.f32 %v2365, 0.0
    %v2613 = vmax.f32 %v2416, 0.0
    %v2614 = vmax.f32 %v2418, 0.0
    %v2615 = vmax.f32 %v2469, 0.0
    %v2616 = vmax.f32 %v2471, 0.0
    %v2617 = vmax.f32 %v2522, 0.0
    %v2618 = vmax.f32 %v2524, 0.0
    %v2619 = vmax.f32 %v2575, 0.0
    %v2620 = vmax.f32 %v2577, 0.0
    %v2621 = vmax.f32 %v2210, 0.0
    %v2622 = vmax.f32 %v2212, 0.0
    %v2623 = vmax.f32 %v2263, 0.0
    %v2624 = vmax.f32 %v2265, 0.0
    %v2625 = vmax.f32 %v2316, 0.0
    %v2626 = vmax.f32 %v2318, 0.0
    %v2627 = vmax.f32 %v2369, 0.0
    %v2628 = vmax.f32 %v2371, 0.0
    %v2629 = vmax.f32 %v2422, 0.0
    %v2630 = vmax.f32 %v2424, 0.0
    %v2631 = vmax.f32 %v2475, 0.0
    %v2632 = vmax.f32 %v2477, 0.0
    %v2633 = vmax.f32 %v2528, 0.0
    %v2634 = vmax.f32 %v2530, 0.0
    %v2635 = vmax.f32 %v2581, 0.0
    %v2636 = vmax.f32 %v2583, 0.0
    %v2637 = vmax.f32 %v2214, 0.0
    %v2638 = vmax.f32 %v2216, 0.0
    %v2639 = vmax.f32 %v2267, 0.0
    %v2640 = vmax.f32 %v2269, 0.0
    %v2641 = vmax.f32 %v2320, 0.0
    %v2642 = vmax.f32 %v2322, 0.0
    %v2643 = vmax.f32 %v2373, 0.0
    %v2644 = vmax.f32 %v2375, 0.0
    %v2645 = vmax.f32 %v2426, 0.0
    %v2646 = vmax.f32 %v2428, 0.0
    %v2647 = vmax.f32 %v2479, 0.0
    %v2648 = vmax.f32 %v2481, 0.0
    %v2649 = vmax.f32 %v2532, 0.0
    %v2650 = vmax.f32 %v2534, 0.0
    %v2651 = vmax.f32 %v2585, 0.0
    %v2652 = vmax.f32 %v2587, 0.0
    %v2653 = vpack.c.bf16 %v2605, %v2589
    %v2654 = vpack.c.bf16 %v2606, %v2590
    %v2655 = vpack.c.bf16 %v2607, %v2591
    %v2656 = vpack.c.bf16 %v2608, %v2592
    %v2657 = vpack.c.bf16 %v2609, %v2593
    %v2658 = vpack.c.bf16 %v2610, %v2594
    %v2659 = vpack.c.bf16 %v2611, %v2595
    %v2660 = vpack.c.bf16 %v2612, %v2596
    %v2661 = vpack.c.bf16 %v2613, %v2597
    %v2662 = vpack.c.bf16 %v2614, %v2598
    %v2663 = vpack.c.bf16 %v2615, %v2599
    %v2664 = vpack.c.bf16 %v2616, %v2600
    %v2665 = vpack.c.bf16 %v2617, %v2601
    %v2666 = vpack.c.bf16 %v2618, %v2602
    %v2667 = vpack.c.bf16 %v2619, %v2603
    %v2668 = vpack.c.bf16 %v2620, %v2604
    %v2669 = vpack.c.bf16 %v2637, %v2621
    %v2670 = vpack.c.bf16 %v2638, %v2622
    %v2671 = vpack.c.bf16 %v2639, %v2623
    %v2672 = vpack.c.bf16 %v2640, %v2624
    %v2673 = vpack.c.bf16 %v2641, %v2625
    %v2674 = vpack.c.bf16 %v2642, %v2626
    %v2675 = vpack.c.bf16 %v2643, %v2627
    %v2676 = vpack.c.bf16 %v2644, %v2628
    %v2677 = vpack.c.bf16 %v2645, %v2629
    %v2678 = vpack.c.bf16 %v2646, %v2630
    %v2679 = vpack.c.bf16 %v2647, %v2631
    %v2680 = vpack.c.bf16 %v2648, %v2632
    %v2681 = vpack.c.bf16 %v2649, %v2633
    %v2682 = vpack.c.bf16 %v2650, %v2634
    %v2683 = vpack.c.bf16 %v2651, %v2635
    %v2684 = vpack.c.bf16 %v2652, %v2636
    %v2685 = vld [vmem:[%s15] sm:$0xf]
    %v2686 = vld [vmem:[%s15 + $0x4] sm:$0xf]
    %v2687 = vld [vmem:[%s15 + $0x8] sm:$0xf]
    %v2688 = vld [vmem:[%s15 + $0xc] sm:$0xf]
    %v2689 = vld [vmem:[%s15 + $0x10] sm:$0xf]
    %v2690 = vld [vmem:[%s15 + $0x14] sm:$0xf]
    %v2691 = vld [vmem:[%s15 + $0x18] sm:$0xf]
    %v2692 = vld [vmem:[%s15 + $0x1c] sm:$0xf]
    %v2693 = vld [vmem:[%s15 + $0x20] sm:$0xf]
    %v2694 = vld [vmem:[%s15 + $0x24] sm:$0xf]
    %v2695 = vld [vmem:[%s15 + $0x28] sm:$0xf]
    %v2696 = vld [vmem:[%s15 + $0x2c] sm:$0xf]
    %v2697 = vld [vmem:[%s15 + $0x30] sm:$0xf]
    %v2698 = vld [vmem:[%s15 + $0x34] sm:$0xf]
    %v2699 = vld [vmem:[%s15 + $0x38] sm:$0xf]
    %v2700 = vld [vmem:[%s15 + $0x3c] sm:$0xf]
    %v2701 = vld [vmem:[%s15 + $0x40] sm:$0xf]
    %v2702 = vld [vmem:[%s15 + $0x44] sm:$0xf]
    %v2703 = vld [vmem:[%s15 + $0x48] sm:$0xf]
    %v2704 = vld [vmem:[%s15 + $0x4c] sm:$0xf]
    %v2705 = vld [vmem:[%s15 + $0x50] sm:$0xf]
    %v2706 = vld [vmem:[%s15 + $0x54] sm:$0xf]
    %v2707 = vld [vmem:[%s15 + $0x58] sm:$0xf]
    %v2708 = vld [vmem:[%s15 + $0x5c] sm:$0xf]
    %v2709 = vld [vmem:[%s15 + $0x60] sm:$0xf]
    %v2710 = vld [vmem:[%s15 + $0x64] sm:$0xf]
    %v2711 = vld [vmem:[%s15 + $0x68] sm:$0xf]
    %v2712 = vld [vmem:[%s15 + $0x6c] sm:$0xf]
    %v2713 = vld [vmem:[%s15 + $0x70] sm:$0xf]
    %v2714 = vld [vmem:[%s15 + $0x74] sm:$0xf]
    %v2715 = vld [vmem:[%s15 + $0x78] sm:$0xf]
    %v2716 = vld [vmem:[%s15 + $0x7c] sm:$0xf]
    %v2717 = vld [vmem:[%s15 + $0x80] sm:$0xf]
    %v2718 = vld [vmem:[%s15 + $0x84] sm:$0xf]
    %v2719 = vld [vmem:[%s15 + $0x88] sm:$0xf]
    %v2720 = vld [vmem:[%s15 + $0x8c] sm:$0xf]
    %v2721 = vld [vmem:[%s15 + $0x90] sm:$0xf]
    %v2722 = vld [vmem:[%s15 + $0x94] sm:$0xf]
    %v2723 = vld [vmem:[%s15 + $0x98] sm:$0xf]
    %v2724 = vld [vmem:[%s15 + $0x9c] sm:$0xf]
    %v2725 = vld [vmem:[%s15 + $0xa0] sm:$0xf]
    %v2726 = vld [vmem:[%s15 + $0xa4] sm:$0xf]
    %v2727 = vld [vmem:[%s15 + $0xa8] sm:$0xf]
    %v2728 = vld [vmem:[%s15 + $0xac] sm:$0xf]
    %v2729 = vld [vmem:[%s15 + $0xb0] sm:$0xf]
    %v2730 = vld [vmem:[%s15 + $0xb4] sm:$0xf]
    %v2731 = vld [vmem:[%s15 + $0xb8] sm:$0xf]
    %v2732 = vld [vmem:[%s15 + $0xbc] sm:$0xf]
    %v2733 = vld [vmem:[%s15 + $0xc0] sm:$0xf]
    %v2734 = vld [vmem:[%s15 + $0xc4] sm:$0xf]
    %v2735 = vld [vmem:[%s15 + $0xc8] sm:$0xf]
    %v2736 = vld [vmem:[%s15 + $0xcc] sm:$0xf]
    %v2737 = vld [vmem:[%s15 + $0xd0] sm:$0xf]
    %v2738 = vld [vmem:[%s15 + $0xd4] sm:$0xf]
    %v2739 = vld [vmem:[%s15 + $0xd8] sm:$0xf]
    %v2740 = vld [vmem:[%s15 + $0xdc] sm:$0xf]
    %v2741 = vld [vmem:[%s15 + $0xe0] sm:$0xf]
    %v2742 = vld [vmem:[%s15 + $0xe4] sm:$0xf]
    %v2743 = vld [vmem:[%s15 + $0xe8] sm:$0xf]
    %v2744 = vld [vmem:[%s15 + $0xec] sm:$0xf]
    %v2745 = vld [vmem:[%s15 + $0xf0] sm:$0xf]
    %v2746 = vld [vmem:[%s15 + $0xf4] sm:$0xf]
    %v2747 = vld [vmem:[%s15 + $0xf8] sm:$0xf]
    %v2748 = vld [vmem:[%s15 + $0xfc] sm:$0xf]
    %v2749 = vld [vmem:[%s15 + $0x100] sm:$0xf]
    %v2750 = vld [vmem:[%s15 + $0x104] sm:$0xf]
    %v2751 = vld [vmem:[%s15 + $0x108] sm:$0xf]
    %v2752 = vld [vmem:[%s15 + $0x10c] sm:$0xf]
    %v2753 = vld [vmem:[%s15 + $0x110] sm:$0xf]
    %v2754 = vld [vmem:[%s15 + $0x114] sm:$0xf]
    %v2755 = vld [vmem:[%s15 + $0x118] sm:$0xf]
    %v2756 = vld [vmem:[%s15 + $0x11c] sm:$0xf]
    %v2757 = vld [vmem:[%s15 + $0x120] sm:$0xf]
    %v2758 = vld [vmem:[%s15 + $0x124] sm:$0xf]
    %v2759 = vld [vmem:[%s15 + $0x128] sm:$0xf]
    %v2760 = vld [vmem:[%s15 + $0x12c] sm:$0xf]
    %v2761 = vld [vmem:[%s15 + $0x130] sm:$0xf]
    %v2762 = vld [vmem:[%s15 + $0x134] sm:$0xf]
    %v2763 = vld [vmem:[%s15 + $0x138] sm:$0xf]
    %v2764 = vld [vmem:[%s15 + $0x13c] sm:$0xf]
    %v2765 = vld [vmem:[%s15 + $0x140] sm:$0xf]
    %v2766 = vld [vmem:[%s15 + $0x144] sm:$0xf]
    %v2767 = vld [vmem:[%s15 + $0x148] sm:$0xf]
    %v2768 = vld [vmem:[%s15 + $0x14c] sm:$0xf]
    %v2769 = vld [vmem:[%s15 + $0x150] sm:$0xf]
    %v2770 = vld [vmem:[%s15 + $0x154] sm:$0xf]
    %v2771 = vld [vmem:[%s15 + $0x158] sm:$0xf]
    %v2772 = vld [vmem:[%s15 + $0x15c] sm:$0xf]
    %v2773 = vld [vmem:[%s15 + $0x160] sm:$0xf]
    %v2774 = vld [vmem:[%s15 + $0x164] sm:$0xf]
    %v2775 = vld [vmem:[%s15 + $0x168] sm:$0xf]
    %v2776 = vld [vmem:[%s15 + $0x16c] sm:$0xf]
    %v2777 = vld [vmem:[%s15 + $0x170] sm:$0xf]
    %v2778 = vld [vmem:[%s15 + $0x174] sm:$0xf]
    %v2779 = vld [vmem:[%s15 + $0x178] sm:$0xf]
    %v2780 = vld [vmem:[%s15 + $0x17c] sm:$0xf]
    %v2781 = vld [vmem:[%s15 + $0x180] sm:$0xf]
    %v2782 = vld [vmem:[%s15 + $0x184] sm:$0xf]
    %v2783 = vld [vmem:[%s15 + $0x188] sm:$0xf]
    %v2784 = vld [vmem:[%s15 + $0x18c] sm:$0xf]
    %v2785 = vld [vmem:[%s15 + $0x190] sm:$0xf]
    %v2786 = vld [vmem:[%s15 + $0x194] sm:$0xf]
    %v2787 = vld [vmem:[%s15 + $0x198] sm:$0xf]
    %v2788 = vld [vmem:[%s15 + $0x19c] sm:$0xf]
    %v2789 = vld [vmem:[%s15 + $0x1a0] sm:$0xf]
    %v2790 = vld [vmem:[%s15 + $0x1a4] sm:$0xf]
    %v2791 = vld [vmem:[%s15 + $0x1a8] sm:$0xf]
    %v2792 = vld [vmem:[%s15 + $0x1ac] sm:$0xf]
    %v2793 = vld [vmem:[%s15 + $0x1b0] sm:$0xf]
    %v2794 = vld [vmem:[%s15 + $0x1b4] sm:$0xf]
    %v2795 = vld [vmem:[%s15 + $0x1b8] sm:$0xf]
    %v2796 = vld [vmem:[%s15 + $0x1bc] sm:$0xf]
    %v2797 = vld [vmem:[%s15 + $0x1c0] sm:$0xf]
    %v2798 = vld [vmem:[%s15 + $0x1c4] sm:$0xf]
    %v2799 = vld [vmem:[%s15 + $0x1c8] sm:$0xf]
    %v2800 = vld [vmem:[%s15 + $0x1cc] sm:$0xf]
    %v2801 = vld [vmem:[%s15 + $0x1d0] sm:$0xf]
    %v2802 = vld [vmem:[%s15 + $0x1d4] sm:$0xf]
    %v2803 = vld [vmem:[%s15 + $0x1d8] sm:$0xf]
    %v2804 = vld [vmem:[%s15 + $0x1dc] sm:$0xf]
    %v2805 = vld [vmem:[%s15 + $0x1e0] sm:$0xf]
    %v2806 = vld [vmem:[%s15 + $0x1e4] sm:$0xf]
    %v2807 = vld [vmem:[%s15 + $0x1e8] sm:$0xf]
    %v2808 = vld [vmem:[%s15 + $0x1ec] sm:$0xf]
    %v2809 = vld [vmem:[%s15 + $0x1f0] sm:$0xf]
    %v2810 = vld [vmem:[%s15 + $0x1f4] sm:$0xf]
    %v2811 = vld [vmem:[%s15 + $0x1f8] sm:$0xf]
    %v2812 = vld [vmem:[%s15 + $0x1fc] sm:$0xf]
    %v2813 = vld [vmem:[%s15 + $0x200] sm:$0xf]
    %v2814 = vld [vmem:[%s15 + $0x204] sm:$0xf]
    %v2815 = vld [vmem:[%s15 + $0x208] sm:$0xf]
    %v2816 = vld [vmem:[%s15 + $0x20c] sm:$0xf]
    %v2817 = vld [vmem:[%s15 + $0x210] sm:$0xf]
    %v2818 = vld [vmem:[%s15 + $0x214] sm:$0xf]
    %v2819 = vld [vmem:[%s15 + $0x218] sm:$0xf]
    %v2820 = vld [vmem:[%s15 + $0x21c] sm:$0xf]
    %v2821 = vld [vmem:[%s15 + $0x220] sm:$0xf]
    %v2822 = vld [vmem:[%s15 + $0x224] sm:$0xf]
    %v2823 = vld [vmem:[%s15 + $0x228] sm:$0xf]
    %v2824 = vld [vmem:[%s15 + $0x22c] sm:$0xf]
    %v2825 = vld [vmem:[%s15 + $0x230] sm:$0xf]
    %v2826 = vld [vmem:[%s15 + $0x234] sm:$0xf]
    %v2827 = vld [vmem:[%s15 + $0x238] sm:$0xf]
    %v2828 = vld [vmem:[%s15 + $0x23c] sm:$0xf]
    %v2829 = vld [vmem:[%s15 + $0x240] sm:$0xf]
    %v2830 = vld [vmem:[%s15 + $0x244] sm:$0xf]
    %v2831 = vld [vmem:[%s15 + $0x248] sm:$0xf]
    %v2832 = vld [vmem:[%s15 + $0x24c] sm:$0xf]
    %v2833 = vld [vmem:[%s15 + $0x250] sm:$0xf]
    %v2834 = vld [vmem:[%s15 + $0x254] sm:$0xf]
    %v2835 = vld [vmem:[%s15 + $0x258] sm:$0xf]
    %v2836 = vld [vmem:[%s15 + $0x25c] sm:$0xf]
    %v2837 = vld [vmem:[%s15 + $0x260] sm:$0xf]
    %v2838 = vld [vmem:[%s15 + $0x264] sm:$0xf]
    %v2839 = vld [vmem:[%s15 + $0x268] sm:$0xf]
    %v2840 = vld [vmem:[%s15 + $0x26c] sm:$0xf]
    %v2841 = vld [vmem:[%s15 + $0x270] sm:$0xf]
    %v2842 = vld [vmem:[%s15 + $0x274] sm:$0xf]
    %v2843 = vld [vmem:[%s15 + $0x278] sm:$0xf]
    %v2844 = vld [vmem:[%s15 + $0x27c] sm:$0xf]
    %v2845 = vld [vmem:[%s15 + $0x280] sm:$0xf]
    %v2846 = vld [vmem:[%s15 + $0x284] sm:$0xf]
    %v2847 = vld [vmem:[%s15 + $0x288] sm:$0xf]
    %v2848 = vld [vmem:[%s15 + $0x28c] sm:$0xf]
    %v2849 = vld [vmem:[%s15 + $0x290] sm:$0xf]
    %v2850 = vld [vmem:[%s15 + $0x294] sm:$0xf]
    %v2851 = vld [vmem:[%s15 + $0x298] sm:$0xf]
    %v2852 = vld [vmem:[%s15 + $0x29c] sm:$0xf]
    %v2853 = vld [vmem:[%s15 + $0x2a0] sm:$0xf]
    %v2854 = vld [vmem:[%s15 + $0x2a4] sm:$0xf]
    %v2855 = vld [vmem:[%s15 + $0x2a8] sm:$0xf]
    %v2856 = vld [vmem:[%s15 + $0x2ac] sm:$0xf]
    %v2857 = vld [vmem:[%s15 + $0x2b0] sm:$0xf]
    %v2858 = vld [vmem:[%s15 + $0x2b4] sm:$0xf]
    %v2859 = vld [vmem:[%s15 + $0x2b8] sm:$0xf]
    %v2860 = vld [vmem:[%s15 + $0x2bc] sm:$0xf]
    %v2861 = vld [vmem:[%s15 + $0x2c0] sm:$0xf]
    %v2862 = vld [vmem:[%s15 + $0x2c4] sm:$0xf]
    %v2863 = vld [vmem:[%s15 + $0x2c8] sm:$0xf]
    %v2864 = vld [vmem:[%s15 + $0x2cc] sm:$0xf]
    %v2865 = vld [vmem:[%s15 + $0x2d0] sm:$0xf]
    %v2866 = vld [vmem:[%s15 + $0x2d4] sm:$0xf]
    %v2867 = vld [vmem:[%s15 + $0x2d8] sm:$0xf]
    %v2868 = vld [vmem:[%s15 + $0x2dc] sm:$0xf]
    %v2869 = vld [vmem:[%s15 + $0x2e0] sm:$0xf]
    %v2870 = vld [vmem:[%s15 + $0x2e4] sm:$0xf]
    %v2871 = vld [vmem:[%s15 + $0x2e8] sm:$0xf]
    %v2872 = vld [vmem:[%s15 + $0x2ec] sm:$0xf]
    %v2873 = vld [vmem:[%s15 + $0x2f0] sm:$0xf]
    %v2874 = vld [vmem:[%s15 + $0x2f4] sm:$0xf]
    %v2875 = vld [vmem:[%s15 + $0x2f8] sm:$0xf]
    %v2876 = vld [vmem:[%s15 + $0x2fc] sm:$0xf]
    %v2877 = vld [vmem:[%s15 + $0x300] sm:$0xf]
    %v2878 = vld [vmem:[%s15 + $0x304] sm:$0xf]
    %v2879 = vld [vmem:[%s15 + $0x308] sm:$0xf]
    %v2880 = vld [vmem:[%s15 + $0x30c] sm:$0xf]
    %v2881 = vld [vmem:[%s15 + $0x310] sm:$0xf]
    %v2882 = vld [vmem:[%s15 + $0x314] sm:$0xf]
    %v2883 = vld [vmem:[%s15 + $0x318] sm:$0xf]
    %v2884 = vld [vmem:[%s15 + $0x31c] sm:$0xf]
    %v2885 = vld [vmem:[%s15 + $0x320] sm:$0xf]
    %v2886 = vld [vmem:[%s15 + $0x324] sm:$0xf]
    %v2887 = vld [vmem:[%s15 + $0x328] sm:$0xf]
    %v2888 = vld [vmem:[%s15 + $0x32c] sm:$0xf]
    %v2889 = vld [vmem:[%s15 + $0x330] sm:$0xf]
    %v2890 = vld [vmem:[%s15 + $0x334] sm:$0xf]
    %v2891 = vld [vmem:[%s15 + $0x338] sm:$0xf]
    %v2892 = vld [vmem:[%s15 + $0x33c] sm:$0xf]
    %v2893 = vld [vmem:[%s15 + $0x340] sm:$0xf]
    %v2894 = vld [vmem:[%s15 + $0x344] sm:$0xf]
    %v2895 = vld [vmem:[%s15 + $0x348] sm:$0xf]
    %v2896 = vld [vmem:[%s15 + $0x34c] sm:$0xf]
    %v2897 = vld [vmem:[%s15 + $0x350] sm:$0xf]
    %v2898 = vld [vmem:[%s15 + $0x354] sm:$0xf]
    %v2899 = vld [vmem:[%s15 + $0x358] sm:$0xf]
    %v2900 = vld [vmem:[%s15 + $0x35c] sm:$0xf]
    %v2901 = vld [vmem:[%s15 + $0x360] sm:$0xf]
    %v2902 = vld [vmem:[%s15 + $0x364] sm:$0xf]
    %v2903 = vld [vmem:[%s15 + $0x368] sm:$0xf]
    %v2904 = vld [vmem:[%s15 + $0x36c] sm:$0xf]
    %v2905 = vld [vmem:[%s15 + $0x370] sm:$0xf]
    %v2906 = vld [vmem:[%s15 + $0x374] sm:$0xf]
    %v2907 = vld [vmem:[%s15 + $0x378] sm:$0xf]
    %v2908 = vld [vmem:[%s15 + $0x37c] sm:$0xf]
    %v2909 = vld [vmem:[%s15 + $0x380] sm:$0xf]
    %v2910 = vld [vmem:[%s15 + $0x384] sm:$0xf]
    %v2911 = vld [vmem:[%s15 + $0x388] sm:$0xf]
    %v2912 = vld [vmem:[%s15 + $0x38c] sm:$0xf]
    %v2913 = vld [vmem:[%s15 + $0x390] sm:$0xf]
    %v2914 = vld [vmem:[%s15 + $0x394] sm:$0xf]
    %v2915 = vld [vmem:[%s15 + $0x398] sm:$0xf]
    %v2916 = vld [vmem:[%s15 + $0x39c] sm:$0xf]
    %v2917 = vld [vmem:[%s15 + $0x3a0] sm:$0xf]
    %v2918 = vld [vmem:[%s15 + $0x3a4] sm:$0xf]
    %v2919 = vld [vmem:[%s15 + $0x3a8] sm:$0xf]
    %v2920 = vld [vmem:[%s15 + $0x3ac] sm:$0xf]
    %v2921 = vld [vmem:[%s15 + $0x3b0] sm:$0xf]
    %v2922 = vld [vmem:[%s15 + $0x3b4] sm:$0xf]
    %v2923 = vld [vmem:[%s15 + $0x3b8] sm:$0xf]
    %v2924 = vld [vmem:[%s15 + $0x3bc] sm:$0xf]
    %v2925 = vld [vmem:[%s15 + $0x3c0] sm:$0xf]
    %v2926 = vld [vmem:[%s15 + $0x3c4] sm:$0xf]
    %v2927 = vld [vmem:[%s15 + $0x3c8] sm:$0xf]
    %v2928 = vld [vmem:[%s15 + $0x3cc] sm:$0xf]
    %v2929 = vld [vmem:[%s15 + $0x3d0] sm:$0xf]
    %v2930 = vld [vmem:[%s15 + $0x3d4] sm:$0xf]
    %v2931 = vld [vmem:[%s15 + $0x3d8] sm:$0xf]
    %v2932 = vld [vmem:[%s15 + $0x3dc] sm:$0xf]
    %v2933 = vld [vmem:[%s15 + $0x3e0] sm:$0xf]
    %v2934 = vld [vmem:[%s15 + $0x3e4] sm:$0xf]
    %v2935 = vld [vmem:[%s15 + $0x3e8] sm:$0xf]
    %v2936 = vld [vmem:[%s15 + $0x3ec] sm:$0xf]
    %v2937 = vld [vmem:[%s15 + $0x3f0] sm:$0xf]
    %v2938 = vld [vmem:[%s15 + $0x3f4] sm:$0xf]
    %v2939 = vld [vmem:[%s15 + $0x3f8] sm:$0xf]
    %v2940 = vld [vmem:[%s15 + $0x3fc] sm:$0xf]
    %v2941 = vld [vmem:[%s16] sm:$0x1]
    %v2943 = vlaneseq
    %v2944 = vshrl.u32 %v2943, 7
    %v2945 = vsub.s32 0, %v2944
    %v2946 = vrot.slane %v2941, %v2945
    %v3204 = vunpack.c.l.b16 %v2685
    %v3205 = vunpack.c.l.b16 %v2686
    %v3206 = vunpack.c.l.b16 %v2687
    %v3207 = vunpack.c.l.b16 %v2688
    %v3208 = vunpack.c.l.b16 %v2689
    %v3209 = vunpack.c.l.b16 %v2690
    %v3210 = vunpack.c.l.b16 %v2691
    %v3211 = vunpack.c.l.b16 %v2692
    %v3212 = vunpack.c.l.b16 %v2693
    %v3213 = vunpack.c.l.b16 %v2694
    %v3214 = vunpack.c.l.b16 %v2695
    %v3215 = vunpack.c.l.b16 %v2696
    %v3216 = vunpack.c.l.b16 %v2697
    %v3217 = vunpack.c.l.b16 %v2698
    %v3218 = vunpack.c.l.b16 %v2699
    %v3219 = vunpack.c.l.b16 %v2700
    %v3220 = vunpack.c.l.b16 %v2701
    %v3221 = vunpack.c.l.b16 %v2702
    %v3222 = vunpack.c.l.b16 %v2703
    %v3223 = vunpack.c.l.b16 %v2704
    %v3224 = vunpack.c.l.b16 %v2705
    %v3225 = vunpack.c.l.b16 %v2706
    %v3226 = vunpack.c.l.b16 %v2707
    %v3227 = vunpack.c.l.b16 %v2708
    %v3228 = vunpack.c.l.b16 %v2709
    %v3229 = vunpack.c.l.b16 %v2710
    %v3230 = vunpack.c.l.b16 %v2711
    %v3231 = vunpack.c.l.b16 %v2712
    %v3232 = vunpack.c.l.b16 %v2713
    %v3233 = vunpack.c.l.b16 %v2714
    %v3234 = vunpack.c.l.b16 %v2715
    %v3235 = vunpack.c.l.b16 %v2716
    %v3236 = vunpack.c.l.b16 %v2717
    %v3237 = vunpack.c.l.b16 %v2718
    %v3238 = vunpack.c.l.b16 %v2719
    %v3239 = vunpack.c.l.b16 %v2720
    %v3240 = vunpack.c.l.b16 %v2721
    %v3241 = vunpack.c.l.b16 %v2722
    %v3242 = vunpack.c.l.b16 %v2723
    %v3243 = vunpack.c.l.b16 %v2724
    %v3244 = vunpack.c.l.b16 %v2725
    %v3245 = vunpack.c.l.b16 %v2726
    %v3246 = vunpack.c.l.b16 %v2727
    %v3247 = vunpack.c.l.b16 %v2728
    %v3248 = vunpack.c.l.b16 %v2729
    %v3249 = vunpack.c.l.b16 %v2730
    %v3250 = vunpack.c.l.b16 %v2731
    %v3251 = vunpack.c.l.b16 %v2732
    %v3252 = vunpack.c.l.b16 %v2733
    %v3253 = vunpack.c.l.b16 %v2734
    %v3254 = vunpack.c.l.b16 %v2735
    %v3255 = vunpack.c.l.b16 %v2736
    %v3256 = vunpack.c.l.b16 %v2737
    %v3257 = vunpack.c.l.b16 %v2738
    %v3258 = vunpack.c.l.b16 %v2739
    %v3259 = vunpack.c.l.b16 %v2740
    %v3260 = vunpack.c.l.b16 %v2741
    %v3261 = vunpack.c.l.b16 %v2742
    %v3262 = vunpack.c.l.b16 %v2743
    %v3263 = vunpack.c.l.b16 %v2744
    %v3264 = vunpack.c.l.b16 %v2745
    %v3265 = vunpack.c.l.b16 %v2746
    %v3266 = vunpack.c.l.b16 %v2747
    %v3267 = vunpack.c.l.b16 %v2748
    %v3268 = vunpack.c.l.b16 %v2749
    %v3269 = vunpack.c.l.b16 %v2750
    %v3270 = vunpack.c.l.b16 %v2751
    %v3271 = vunpack.c.l.b16 %v2752
    %v3272 = vunpack.c.l.b16 %v2753
    %v3273 = vunpack.c.l.b16 %v2754
    %v3274 = vunpack.c.l.b16 %v2755
    %v3275 = vunpack.c.l.b16 %v2756
    %v3276 = vunpack.c.l.b16 %v2757
    %v3277 = vunpack.c.l.b16 %v2758
    %v3278 = vunpack.c.l.b16 %v2759
    %v3279 = vunpack.c.l.b16 %v2760
    %v3280 = vunpack.c.l.b16 %v2761
    %v3281 = vunpack.c.l.b16 %v2762
    %v3282 = vunpack.c.l.b16 %v2763
    %v3283 = vunpack.c.l.b16 %v2764
    %v3284 = vunpack.c.l.b16 %v2765
    %v3285 = vunpack.c.l.b16 %v2766
    %v3286 = vunpack.c.l.b16 %v2767
    %v3287 = vunpack.c.l.b16 %v2768
    %v3288 = vunpack.c.l.b16 %v2769
    %v3289 = vunpack.c.l.b16 %v2770
    %v3290 = vunpack.c.l.b16 %v2771
    %v3291 = vunpack.c.l.b16 %v2772
    %v3292 = vunpack.c.l.b16 %v2773
    %v3293 = vunpack.c.l.b16 %v2774
    %v3294 = vunpack.c.l.b16 %v2775
    %v3295 = vunpack.c.l.b16 %v2776
    %v3296 = vunpack.c.l.b16 %v2777
    %v3297 = vunpack.c.l.b16 %v2778
    %v3298 = vunpack.c.l.b16 %v2779
    %v3299 = vunpack.c.l.b16 %v2780
    %v3300 = vunpack.c.l.b16 %v2781
    %v3301 = vunpack.c.l.b16 %v2782
    %v3302 = vunpack.c.l.b16 %v2783
    %v3303 = vunpack.c.l.b16 %v2784
    %v3304 = vunpack.c.l.b16 %v2785
    %v3305 = vunpack.c.l.b16 %v2786
    %v3306 = vunpack.c.l.b16 %v2787
    %v3307 = vunpack.c.l.b16 %v2788
    %v3308 = vunpack.c.l.b16 %v2789
    %v3309 = vunpack.c.l.b16 %v2790
    %v3310 = vunpack.c.l.b16 %v2791
    %v3311 = vunpack.c.l.b16 %v2792
    %v3312 = vunpack.c.l.b16 %v2793
    %v3313 = vunpack.c.l.b16 %v2794
    %v3314 = vunpack.c.l.b16 %v2795
    %v3315 = vunpack.c.l.b16 %v2796
    %v3316 = vunpack.c.l.b16 %v2797
    %v3317 = vunpack.c.l.b16 %v2798
    %v3318 = vunpack.c.l.b16 %v2799
    %v3319 = vunpack.c.l.b16 %v2800
    %v3320 = vunpack.c.l.b16 %v2801
    %v3321 = vunpack.c.l.b16 %v2802
    %v3322 = vunpack.c.l.b16 %v2803
    %v3323 = vunpack.c.l.b16 %v2804
    %v3324 = vunpack.c.l.b16 %v2805
    %v3325 = vunpack.c.l.b16 %v2806
    %v3326 = vunpack.c.l.b16 %v2807
    %v3327 = vunpack.c.l.b16 %v2808
    %v3328 = vunpack.c.l.b16 %v2809
    %v3329 = vunpack.c.l.b16 %v2810
    %v3330 = vunpack.c.l.b16 %v2811
    %v3331 = vunpack.c.l.b16 %v2812
    %v3332 = vunpack.c.l.b16 %v2813
    %v3333 = vunpack.c.l.b16 %v2814
    %v3334 = vunpack.c.l.b16 %v2815
    %v3335 = vunpack.c.l.b16 %v2816
    %v3336 = vunpack.c.l.b16 %v2817
    %v3337 = vunpack.c.l.b16 %v2818
    %v3338 = vunpack.c.l.b16 %v2819
    %v3339 = vunpack.c.l.b16 %v2820
    %v3340 = vunpack.c.l.b16 %v2821
    %v3341 = vunpack.c.l.b16 %v2822
    %v3342 = vunpack.c.l.b16 %v2823
    %v3343 = vunpack.c.l.b16 %v2824
    %v3344 = vunpack.c.l.b16 %v2825
    %v3345 = vunpack.c.l.b16 %v2826
    %v3346 = vunpack.c.l.b16 %v2827
    %v3347 = vunpack.c.l.b16 %v2828
    %v3348 = vunpack.c.l.b16 %v2829
    %v3349 = vunpack.c.l.b16 %v2830
    %v3350 = vunpack.c.l.b16 %v2831
    %v3351 = vunpack.c.l.b16 %v2832
    %v3352 = vunpack.c.l.b16 %v2833
    %v3353 = vunpack.c.l.b16 %v2834
    %v3354 = vunpack.c.l.b16 %v2835
    %v3355 = vunpack.c.l.b16 %v2836
    %v3356 = vunpack.c.l.b16 %v2837
    %v3357 = vunpack.c.l.b16 %v2838
    %v3358 = vunpack.c.l.b16 %v2839
    %v3359 = vunpack.c.l.b16 %v2840
    %v3360 = vunpack.c.l.b16 %v2841
    %v3361 = vunpack.c.l.b16 %v2842
    %v3362 = vunpack.c.l.b16 %v2843
    %v3363 = vunpack.c.l.b16 %v2844
    %v3364 = vunpack.c.l.b16 %v2845
    %v3365 = vunpack.c.l.b16 %v2846
    %v3366 = vunpack.c.l.b16 %v2847
    %v3367 = vunpack.c.l.b16 %v2848
    %v3368 = vunpack.c.l.b16 %v2849
    %v3369 = vunpack.c.l.b16 %v2850
    %v3370 = vunpack.c.l.b16 %v2851
    %v3371 = vunpack.c.l.b16 %v2852
    %v3372 = vunpack.c.l.b16 %v2853
    %v3373 = vunpack.c.l.b16 %v2854
    %v3374 = vunpack.c.l.b16 %v2855
    %v3375 = vunpack.c.l.b16 %v2856
    %v3376 = vunpack.c.l.b16 %v2857
    %v3377 = vunpack.c.l.b16 %v2858
    %v3378 = vunpack.c.l.b16 %v2859
    %v3379 = vunpack.c.l.b16 %v2860
    %v3380 = vunpack.c.l.b16 %v2861
    %v3381 = vunpack.c.l.b16 %v2862
    %v3382 = vunpack.c.l.b16 %v2863
    %v3383 = vunpack.c.l.b16 %v2864
    %v3384 = vunpack.c.l.b16 %v2865
    %v3385 = vunpack.c.l.b16 %v2866
    %v3386 = vunpack.c.l.b16 %v2867
    %v3387 = vunpack.c.l.b16 %v2868
    %v3388 = vunpack.c.l.b16 %v2869
    %v3389 = vunpack.c.l.b16 %v2870
    %v3390 = vunpack.c.l.b16 %v2871
    %v3391 = vunpack.c.l.b16 %v2872
    %v3392 = vunpack.c.l.b16 %v2873
    %v3393 = vunpack.c.l.b16 %v2874
    %v3394 = vunpack.c.l.b16 %v2875
    %v3395 = vunpack.c.l.b16 %v2876
    %v3396 = vunpack.c.l.b16 %v2877
    %v3397 = vunpack.c.l.b16 %v2878
    %v3398 = vunpack.c.l.b16 %v2879
    %v3399 = vunpack.c.l.b16 %v2880
    %v3400 = vunpack.c.l.b16 %v2881
    %v3401 = vunpack.c.l.b16 %v2882
    %v3402 = vunpack.c.l.b16 %v2883
    %v3403 = vunpack.c.l.b16 %v2884
    %v3404 = vunpack.c.l.b16 %v2885
    %v3405 = vunpack.c.l.b16 %v2886
    %v3406 = vunpack.c.l.b16 %v2887
    %v3407 = vunpack.c.l.b16 %v2888
    %v3408 = vunpack.c.l.b16 %v2889
    %v3409 = vunpack.c.l.b16 %v2890
    %v3410 = vunpack.c.l.b16 %v2891
    %v3411 = vunpack.c.l.b16 %v2892
    %v3412 = vunpack.c.l.b16 %v2893
    %v3413 = vunpack.c.l.b16 %v2894
    %v3414 = vunpack.c.l.b16 %v2895
    %v3415 = vunpack.c.l.b16 %v2896
    %v3416 = vunpack.c.l.b16 %v2897
    %v3417 = vunpack.c.l.b16 %v2898
    %v3418 = vunpack.c.l.b16 %v2899
    %v3419 = vunpack.c.l.b16 %v2900
    %v3420 = vunpack.c.l.b16 %v2901
    %v3421 = vunpack.c.l.b16 %v2902
    %v3422 = vunpack.c.l.b16 %v2903
    %v3423 = vunpack.c.l.b16 %v2904
    %v3424 = vunpack.c.l.b16 %v2905
    %v3425 = vunpack.c.l.b16 %v2906
    %v3426 = vunpack.c.l.b16 %v2907
    %v3427 = vunpack.c.l.b16 %v2908
    %v3428 = vunpack.c.l.b16 %v2909
    %v3429 = vunpack.c.l.b16 %v2910
    %v3430 = vunpack.c.l.b16 %v2911
    %v3431 = vunpack.c.l.b16 %v2912
    %v3432 = vunpack.c.l.b16 %v2913
    %v3433 = vunpack.c.l.b16 %v2914
    %v3434 = vunpack.c.l.b16 %v2915
    %v3435 = vunpack.c.l.b16 %v2916
    %v3436 = vunpack.c.l.b16 %v2917
    %v3437 = vunpack.c.l.b16 %v2918
    %v3438 = vunpack.c.l.b16 %v2919
    %v3439 = vunpack.c.l.b16 %v2920
    %v3440 = vunpack.c.l.b16 %v2921
    %v3441 = vunpack.c.l.b16 %v2922
    %v3442 = vunpack.c.l.b16 %v2923
    %v3443 = vunpack.c.l.b16 %v2924
    %v3444 = vunpack.c.l.b16 %v2925
    %v3445 = vunpack.c.l.b16 %v2926
    %v3446 = vunpack.c.l.b16 %v2927
    %v3447 = vunpack.c.l.b16 %v2928
    %v3448 = vunpack.c.l.b16 %v2929
    %v3449 = vunpack.c.l.b16 %v2930
    %v3450 = vunpack.c.l.b16 %v2931
    %v3451 = vunpack.c.l.b16 %v2932
    %v3452 = vunpack.c.l.b16 %v2933
    %v3453 = vunpack.c.l.b16 %v2934
    %v3454 = vunpack.c.l.b16 %v2935
    %v3455 = vunpack.c.l.b16 %v2936
    %v3456 = vunpack.c.l.b16 %v2937
    %v3457 = vunpack.c.l.b16 %v2938
    %v3458 = vunpack.c.l.b16 %v2939
    %v3459 = vunpack.c.l.b16 %v2940
    %v3460 = vpack.c.b16 %v3205, %v3204
    %v3461 = vpack.c.b16 %v3207, %v3206
    %v3462 = vpack.c.b16 %v3209, %v3208
    %v3463 = vpack.c.b16 %v3211, %v3210
    %v3464 = vpack.c.b16 %v3213, %v3212
    %v3465 = vpack.c.b16 %v3215, %v3214
    %v3466 = vpack.c.b16 %v3217, %v3216
    %v3467 = vpack.c.b16 %v3219, %v3218
    %v3468 = vpack.c.b16 %v3221, %v3220
    %v3469 = vpack.c.b16 %v3223, %v3222
    %v3470 = vpack.c.b16 %v3225, %v3224
    %v3471 = vpack.c.b16 %v3227, %v3226
    %v3472 = vpack.c.b16 %v3229, %v3228
    %v3473 = vpack.c.b16 %v3231, %v3230
    %v3474 = vpack.c.b16 %v3233, %v3232
    %v3475 = vpack.c.b16 %v3235, %v3234
    %v3476 = vpack.c.b16 %v3237, %v3236
    %v3477 = vpack.c.b16 %v3239, %v3238
    %v3478 = vpack.c.b16 %v3241, %v3240
    %v3479 = vpack.c.b16 %v3243, %v3242
    %v3480 = vpack.c.b16 %v3245, %v3244
    %v3481 = vpack.c.b16 %v3247, %v3246
    %v3482 = vpack.c.b16 %v3249, %v3248
    %v3483 = vpack.c.b16 %v3251, %v3250
    %v3484 = vpack.c.b16 %v3253, %v3252
    %v3485 = vpack.c.b16 %v3255, %v3254
    %v3486 = vpack.c.b16 %v3257, %v3256
    %v3487 = vpack.c.b16 %v3259, %v3258
    %v3488 = vpack.c.b16 %v3261, %v3260
    %v3489 = vpack.c.b16 %v3263, %v3262
    %v3490 = vpack.c.b16 %v3265, %v3264
    %v3491 = vpack.c.b16 %v3267, %v3266
    %v3492 = vpack.c.b16 %v3269, %v3268
    %v3493 = vpack.c.b16 %v3271, %v3270
    %v3494 = vpack.c.b16 %v3273, %v3272
    %v3495 = vpack.c.b16 %v3275, %v3274
    %v3496 = vpack.c.b16 %v3277, %v3276
    %v3497 = vpack.c.b16 %v3279, %v3278
    %v3498 = vpack.c.b16 %v3281, %v3280
    %v3499 = vpack.c.b16 %v3283, %v3282
    %v3500 = vpack.c.b16 %v3285, %v3284
    %v3501 = vpack.c.b16 %v3287, %v3286
    %v3502 = vpack.c.b16 %v3289, %v3288
    %v3503 = vpack.c.b16 %v3291, %v3290
    %v3504 = vpack.c.b16 %v3293, %v3292
    %v3505 = vpack.c.b16 %v3295, %v3294
    %v3506 = vpack.c.b16 %v3297, %v3296
    %v3507 = vpack.c.b16 %v3299, %v3298
    %v3508 = vpack.c.b16 %v3301, %v3300
    %v3509 = vpack.c.b16 %v3303, %v3302
    %v3510 = vpack.c.b16 %v3305, %v3304
    %v3511 = vpack.c.b16 %v3307, %v3306
    %v3512 = vpack.c.b16 %v3309, %v3308
    %v3513 = vpack.c.b16 %v3311, %v3310
    %v3514 = vpack.c.b16 %v3313, %v3312
    %v3515 = vpack.c.b16 %v3315, %v3314
    %v3516 = vpack.c.b16 %v3317, %v3316
    %v3517 = vpack.c.b16 %v3319, %v3318
    %v3518 = vpack.c.b16 %v3321, %v3320
    %v3519 = vpack.c.b16 %v3323, %v3322
    %v3520 = vpack.c.b16 %v3325, %v3324
    %v3521 = vpack.c.b16 %v3327, %v3326
    %v3522 = vpack.c.b16 %v3329, %v3328
    %v3523 = vpack.c.b16 %v3331, %v3330
    %v3524 = vpack.c.b16 %v3333, %v3332
    %v3525 = vpack.c.b16 %v3335, %v3334
    %v3526 = vpack.c.b16 %v3337, %v3336
    %v3527 = vpack.c.b16 %v3339, %v3338
    %v3528 = vpack.c.b16 %v3341, %v3340
    %v3529 = vpack.c.b16 %v3343, %v3342
    %v3530 = vpack.c.b16 %v3345, %v3344
    %v3531 = vpack.c.b16 %v3347, %v3346
    %v3532 = vpack.c.b16 %v3349, %v3348
    %v3533 = vpack.c.b16 %v3351, %v3350
    %v3534 = vpack.c.b16 %v3353, %v3352
    %v3535 = vpack.c.b16 %v3355, %v3354
    %v3536 = vpack.c.b16 %v3357, %v3356
    %v3537 = vpack.c.b16 %v3359, %v3358
    %v3538 = vpack.c.b16 %v3361, %v3360
    %v3539 = vpack.c.b16 %v3363, %v3362
    %v3540 = vpack.c.b16 %v3365, %v3364
    %v3541 = vpack.c.b16 %v3367, %v3366
    %v3542 = vpack.c.b16 %v3369, %v3368
    %v3543 = vpack.c.b16 %v3371, %v3370
    %v3544 = vpack.c.b16 %v3373, %v3372
    %v3545 = vpack.c.b16 %v3375, %v3374
    %v3546 = vpack.c.b16 %v3377, %v3376
    %v3547 = vpack.c.b16 %v3379, %v3378
    %v3548 = vpack.c.b16 %v3381, %v3380
    %v3549 = vpack.c.b16 %v3383, %v3382
    %v3550 = vpack.c.b16 %v3385, %v3384
    %v3551 = vpack.c.b16 %v3387, %v3386
    %v3552 = vpack.c.b16 %v3389, %v3388
    %v3553 = vpack.c.b16 %v3391, %v3390
    %v3554 = vpack.c.b16 %v3393, %v3392
    %v3555 = vpack.c.b16 %v3395, %v3394
    %v3556 = vpack.c.b16 %v3397, %v3396
    %v3557 = vpack.c.b16 %v3399, %v3398
    %v3558 = vpack.c.b16 %v3401, %v3400
    %v3559 = vpack.c.b16 %v3403, %v3402
    %v3560 = vpack.c.b16 %v3405, %v3404
    %v3561 = vpack.c.b16 %v3407, %v3406
    %v3562 = vpack.c.b16 %v3409, %v3408
    %v3563 = vpack.c.b16 %v3411, %v3410
    %v3564 = vpack.c.b16 %v3413, %v3412
    %v3565 = vpack.c.b16 %v3415, %v3414
    %v3566 = vpack.c.b16 %v3417, %v3416
    %v3567 = vpack.c.b16 %v3419, %v3418
    %v3568 = vpack.c.b16 %v3421, %v3420
    %v3569 = vpack.c.b16 %v3423, %v3422
    %v3570 = vpack.c.b16 %v3425, %v3424
    %v3571 = vpack.c.b16 %v3427, %v3426
    %v3572 = vpack.c.b16 %v3429, %v3428
    %v3573 = vpack.c.b16 %v3431, %v3430
    %v3574 = vpack.c.b16 %v3433, %v3432
    %v3575 = vpack.c.b16 %v3435, %v3434
    %v3576 = vpack.c.b16 %v3437, %v3436
    %v3577 = vpack.c.b16 %v3439, %v3438
    %v3578 = vpack.c.b16 %v3441, %v3440
    %v3579 = vpack.c.b16 %v3443, %v3442
    %v3580 = vpack.c.b16 %v3445, %v3444
    %v3581 = vpack.c.b16 %v3447, %v3446
    %v3582 = vpack.c.b16 %v3449, %v3448
    %v3583 = vpack.c.b16 %v3451, %v3450
    %v3584 = vpack.c.b16 %v3453, %v3452
    %v3585 = vpack.c.b16 %v3455, %v3454
    %v3586 = vpack.c.b16 %v3457, %v3456
    %v3587 = vpack.c.b16 %v3459, %v3458
    %3716 = vmatprep.subr.bf16.mxu0 0
    %3717 = vmatpush1.bf16.msra.mxu0 %v3460
    %3718 = vmatprep.subr.bf16.mxu0 0
    %3719 = vmatpush1.bf16.msra.mxu0 %v3461
    %3720 = vmatprep.subr.bf16.mxu0 0
    %3721 = vmatpush1.bf16.msra.mxu0 %v3462
    %3722 = vmatprep.subr.bf16.mxu0 0
    %3723 = vmatpush1.bf16.msra.mxu0 %v3463
    %3724 = vmatprep.subr.bf16.mxu0 0
    %3725 = vmatpush1.bf16.msra.mxu0 %v3464
    %3726 = vmatprep.subr.bf16.mxu0 0
    %3727 = vmatpush1.bf16.msra.mxu0 %v3465
    %3728 = vmatprep.subr.bf16.mxu0 0
    %3729 = vmatpush1.bf16.msra.mxu0 %v3466
    %3730 = vmatprep.subr.bf16.mxu0 0
    %3731 = vmatpush1.bf16.msra.mxu0 %v3467
    %3732 = vmatprep.subr.bf16.mxu0 0
    %3733 = vmatpush1.bf16.msra.mxu0 %v3468
    %3734 = vmatprep.subr.bf16.mxu0 0
    %3735 = vmatpush1.bf16.msra.mxu0 %v3469
    %3736 = vmatprep.subr.bf16.mxu0 0
    %3737 = vmatpush1.bf16.msra.mxu0 %v3470
    %3738 = vmatprep.subr.bf16.mxu0 0
    %3739 = vmatpush1.bf16.msra.mxu0 %v3471
    %3740 = vmatprep.subr.bf16.mxu0 0
    %3741 = vmatpush1.bf16.msra.mxu0 %v3472
    %3742 = vmatprep.subr.bf16.mxu0 0
    %3743 = vmatpush1.bf16.msra.mxu0 %v3473
    %3744 = vmatprep.subr.bf16.mxu0 0
    %3745 = vmatpush1.bf16.msra.mxu0 %v3474
    %3746 = vmatprep.subr.bf16.mxu0 0
    %3747 = vmatpush1.bf16.msra.mxu0 %v3475
    %3748 = vmatprep.mubr.bf16.mxu0 %v2654
    %3749 = vmatmul.mubr.bf16.gmra.mrb[0].mxu0 %v2653
    %v3750 = vpop.f32.mrb[0].mxu0
    %v3751 = vadd.f32 %v2946, %v3750
    %v3752 = vpop.f32.mrb[0].mxu0
    %v3753 = vpop.f32.mrb[0].mxu0
    %v3754 = vadd.f32 %v2946, %v3753
    %v3755 = vpop.f32.mrb[0].mxu0
    %3756 = vmatprep.mubr.bf16.mxu0 %v2670
    %3757 = vmatmul.mubr.bf16.gmra.mrb[0].mxu0 %v2669
    %v3758 = vpop.f32.mrb[0].mxu0
    %v3759 = vadd.f32 %v2946, %v3758
    %v3760 = vpop.f32.mrb[0].mxu0
    %v3761 = vpop.f32.mrb[0].mxu0
    %v3762 = vadd.f32 %v2946, %v3761
    %v3763 = vpop.f32.mrb[0].mxu0
    %3764 = vdwg.mxu0
    %3765 = vmatprep.subr.bf16.mxu0 0
    %3766 = vmatpush1.bf16.msra.mxu0 %v3476
    %3767 = vmatprep.subr.bf16.mxu0 0
    %3768 = vmatpush1.bf16.msra.mxu0 %v3477
    %3769 = vmatprep.subr.bf16.mxu0 0
    %3770 = vmatpush1.bf16.msra.mxu0 %v3478
    %3771 = vmatprep.subr.bf16.mxu0 0
    %3772 = vmatpush1.bf16.msra.mxu0 %v3479
    %3773 = vmatprep.subr.bf16.mxu0 0
    %3774 = vmatpush1.bf16.msra.mxu0 %v3480
    %3775 = vmatprep.subr.bf16.mxu0 0
    %3776 = vmatpush1.bf16.msra.mxu0 %v3481
    %3777 = vmatprep.subr.bf16.mxu0 0
    %3778 = vmatpush1.bf16.msra.mxu0 %v3482
    %3779 = vmatprep.subr.bf16.mxu0 0
    %3780 = vmatpush1.bf16.msra.mxu0 %v3483
    %3781 = vmatprep.subr.bf16.mxu0 0
    %3782 = vmatpush1.bf16.msra.mxu0 %v3484
    %3783 = vmatprep.subr.bf16.mxu0 0
    %3784 = vmatpush1.bf16.msra.mxu0 %v3485
    %3785 = vmatprep.subr.bf16.mxu0 0
    %3786 = vmatpush1.bf16.msra.mxu0 %v3486
    %3787 = vmatprep.subr.bf16.mxu0 0
    %3788 = vmatpush1.bf16.msra.mxu0 %v3487
    %3789 = vmatprep.subr.bf16.mxu0 0
    %3790 = vmatpush1.bf16.msra.mxu0 %v3488
    %3791 = vmatprep.subr.bf16.mxu0 0
    %3792 = vmatpush1.bf16.msra.mxu0 %v3489
    %3793 = vmatprep.subr.bf16.mxu0 0
    %3794 = vmatpush1.bf16.msra.mxu0 %v3490
    %3795 = vmatprep.subr.bf16.mxu0 0
    %3796 = vmatpush1.bf16.msra.mxu0 %v3491
    %3797 = vmatprep.mubr.bf16.mxu0 %v2656
    %3798 = vmatmul.mubr.bf16.gmra.mrb[0].mxu0 %v2655
    %v3799 = vpop.f32.mrb[0].mxu0
    %v3800 = vadd.f32 %v3751, %v3799
    %v3801 = vpop.f32.mrb[0].mxu0
    %v3802 = vpop.f32.mrb[0].mxu0
    %v3803 = vadd.f32 %v3754, %v3802
    %v3804 = vpop.f32.mrb[0].mxu0
    %3805 = vmatprep.mubr.bf16.mxu0 %v2672
    %3806 = vmatmul.mubr.bf16.gmra.mrb[0].mxu0 %v2671
    %v3807 = vpop.f32.mrb[0].mxu0
    %v3808 = vadd.f32 %v3759, %v3807
    %v3809 = vpop.f32.mrb[0].mxu0
    %v3810 = vpop.f32.mrb[0].mxu0
    %v3811 = vadd.f32 %v3762, %v3810
    %v3812 = vpop.f32.mrb[0].mxu0
    %3813 = vdwg.mxu0
    %3814 = vmatprep.subr.bf16.mxu0 0
    %3815 = vmatpush1.bf16.msra.mxu0 %v3492
    %3816 = vmatprep.subr.bf16.mxu0 0
    %3817 = vmatpush1.bf16.msra.mxu0 %v3493
    %3818 = vmatprep.subr.bf16.mxu0 0
    %3819 = vmatpush1.bf16.msra.mxu0 %v3494
    %3820 = vmatprep.subr.bf16.mxu0 0
    %3821 = vmatpush1.bf16.msra.mxu0 %v3495
    %3822 = vmatprep.subr.bf16.mxu0 0
    %3823 = vmatpush1.bf16.msra.mxu0 %v3496
    %3824 = vmatprep.subr.bf16.mxu0 0
    %3825 = vmatpush1.bf16.msra.mxu0 %v3497
    %3826 = vmatprep.subr.bf16.mxu0 0
    %3827 = vmatpush1.bf16.msra.mxu0 %v3498
    %3828 = vmatprep.subr.bf16.mxu0 0
    %3829 = vmatpush1.bf16.msra.mxu0 %v3499
    %3830 = vmatprep.subr.bf16.mxu0 0
    %3831 = vmatpush1.bf16.msra.mxu0 %v3500
    %3832 = vmatprep.subr.bf16.mxu0 0
    %3833 = vmatpush1.bf16.msra.mxu0 %v3501
    %3834 = vmatprep.subr.bf16.mxu0 0
    %3835 = vmatpush1.bf16.msra.mxu0 %v3502
    %3836 = vmatprep.subr.bf16.mxu0 0
    %3837 = vmatpush1.bf16.msra.mxu0 %v3503
    %3838 = vmatprep.subr.bf16.mxu0 0
    %3839 = vmatpush1.bf16.msra.mxu0 %v3504
    %3840 = vmatprep.subr.bf16.mxu0 0
    %3841 = vmatpush1.bf16.msra.mxu0 %v3505
    %3842 = vmatprep.subr.bf16.mxu0 0
    %3843 = vmatpush1.bf16.msra.mxu0 %v3506
    %3844 = vmatprep.subr.bf16.mxu0 0
    %3845 = vmatpush1.bf16.msra.mxu0 %v3507
    %3846 = vmatprep.mubr.bf16.mxu0 %v2658
    %3847 = vmatmul.mubr.bf16.gmra.mrb[0].mxu0 %v2657
    %v3848 = vpop.f32.mrb[0].mxu0
    %v3849 = vadd.f32 %v3800, %v3848
    %v3850 = vpop.f32.mrb[0].mxu0
    %v3851 = vpop.f32.mrb[0].mxu0
    %v3852 = vadd.f32 %v3803, %v3851
    %v3853 = vpop.f32.mrb[0].mxu0
    %3854 = vmatprep.mubr.bf16.mxu0 %v2674
    %3855 = vmatmul.mubr.bf16.gmra.mrb[0].mxu0 %v2673
    %v3856 = vpop.f32.mrb[0].mxu0
    %v3857 = vadd.f32 %v3808, %v3856
    %v3858 = vpop.f32.mrb[0].mxu0
    %v3859 = vpop.f32.mrb[0].mxu0
    %v3860 = vadd.f32 %v3811, %v3859
    %v3861 = vpop.f32.mrb[0].mxu0
    %3862 = vdwg.mxu0
    %3863 = vmatprep.subr.bf16.mxu0 0
    %3864 = vmatpush1.bf16.msra.mxu0 %v3508
    %3865 = vmatprep.subr.bf16.mxu0 0
    %3866 = vmatpush1.bf16.msra.mxu0 %v3509
    %3867 = vmatprep.subr.bf16.mxu0 0
    %3868 = vmatpush1.bf16.msra.mxu0 %v3510
    %3869 = vmatprep.subr.bf16.mxu0 0
    %3870 = vmatpush1.bf16.msra.mxu0 %v3511
    %3871 = vmatprep.subr.bf16.mxu0 0
    %3872 = vmatpush1.bf16.msra.mxu0 %v3512
    %3873 = vmatprep.subr.bf16.mxu0 0
    %3874 = vmatpush1.bf16.msra.mxu0 %v3513
    %3875 = vmatprep.subr.bf16.mxu0 0
    %3876 = vmatpush1.bf16.msra.mxu0 %v3514
    %3877 = vmatprep.subr.bf16.mxu0 0
    %3878 = vmatpush1.bf16.msra.mxu0 %v3515
    %3879 = vmatprep.subr.bf16.mxu0 0
    %3880 = vmatpush1.bf16.msra.mxu0 %v3516
    %3881 = vmatprep.subr.bf16.mxu0 0
    %3882 = vmatpush1.bf16.msra.mxu0 %v3517
    %3883 = vmatprep.subr.bf16.mxu0 0
    %3884 = vmatpush1.bf16.msra.mxu0 %v3518
    %3885 = vmatprep.subr.bf16.mxu0 0
    %3886 = vmatpush1.bf16.msra.mxu0 %v3519
    %3887 = vmatprep.subr.bf16.mxu0 0
    %3888 = vmatpush1.bf16.msra.mxu0 %v3520
    %3889 = vmatprep.subr.bf16.mxu0 0
    %3890 = vmatpush1.bf16.msra.mxu0 %v3521
    %3891 = vmatprep.subr.bf16.mxu0 0
    %3892 = vmatpush1.bf16.msra.mxu0 %v3522
    %3893 = vmatprep.subr.bf16.mxu0 0
    %3894 = vmatpush1.bf16.msra.mxu0 %v3523
    %3895 = vmatprep.mubr.bf16.mxu0 %v2660
    %3896 = vmatmul.mubr.bf16.gmra.mrb[0].mxu0 %v2659
    %v3897 = vpop.f32.mrb[0].mxu0
    %v3898 = vadd.f32 %v3849, %v3897
    %v3899 = vpop.f32.mrb[0].mxu0
    %v3900 = vpop.f32.mrb[0].mxu0
    %v3901 = vadd.f32 %v3852, %v3900
    %v3902 = vpop.f32.mrb[0].mxu0
    %3903 = vmatprep.mubr.bf16.mxu0 %v2676
    %3904 = vmatmul.mubr.bf16.gmra.mrb[0].mxu0 %v2675
    %v3905 = vpop.f32.mrb[0].mxu0
    %v3906 = vadd.f32 %v3857, %v3905
    %v3907 = vpop.f32.mrb[0].mxu0
    %v3908 = vpop.f32.mrb[0].mxu0
    %v3909 = vadd.f32 %v3860, %v3908
    %v3910 = vpop.f32.mrb[0].mxu0
    %3911 = vdwg.mxu0
    %3912 = vmatprep.subr.bf16.mxu0 0
    %3913 = vmatpush1.bf16.msra.mxu0 %v3524
    %3914 = vmatprep.subr.bf16.mxu0 0
    %3915 = vmatpush1.bf16.msra.mxu0 %v3525
    %3916 = vmatprep.subr.bf16.mxu0 0
    %3917 = vmatpush1.bf16.msra.mxu0 %v3526
    %3918 = vmatprep.subr.bf16.mxu0 0
    %3919 = vmatpush1.bf16.msra.mxu0 %v3527
    %3920 = vmatprep.subr.bf16.mxu0 0
    %3921 = vmatpush1.bf16.msra.mxu0 %v3528
    %3922 = vmatprep.subr.bf16.mxu0 0
    %3923 = vmatpush1.bf16.msra.mxu0 %v3529
    %3924 = vmatprep.subr.bf16.mxu0 0
    %3925 = vmatpush1.bf16.msra.mxu0 %v3530
    %3926 = vmatprep.subr.bf16.mxu0 0
    %3927 = vmatpush1.bf16.msra.mxu0 %v3531
    %3928 = vmatprep.subr.bf16.mxu0 0
    %3929 = vmatpush1.bf16.msra.mxu0 %v3532
    %3930 = vmatprep.subr.bf16.mxu0 0
    %3931 = vmatpush1.bf16.msra.mxu0 %v3533
    %3932 = vmatprep.subr.bf16.mxu0 0
    %3933 = vmatpush1.bf16.msra.mxu0 %v3534
    %3934 = vmatprep.subr.bf16.mxu0 0
    %3935 = vmatpush1.bf16.msra.mxu0 %v3535
    %3936 = vmatprep.subr.bf16.mxu0 0
    %3937 = vmatpush1.bf16.msra.mxu0 %v3536
    %3938 = vmatprep.subr.bf16.mxu0 0
    %3939 = vmatpush1.bf16.msra.mxu0 %v3537
    %3940 = vmatprep.subr.bf16.mxu0 0
    %3941 = vmatpush1.bf16.msra.mxu0 %v3538
    %3942 = vmatprep.subr.bf16.mxu0 0
    %3943 = vmatpush1.bf16.msra.mxu0 %v3539
    %3944 = vmatprep.mubr.bf16.mxu0 %v2662
    %3945 = vmatmul.mubr.bf16.gmra.mrb[0].mxu0 %v2661
    %v3946 = vpop.f32.mrb[0].mxu0
    %v3947 = vadd.f32 %v3898, %v3946
    %v3948 = vpop.f32.mrb[0].mxu0
    %v3949 = vpop.f32.mrb[0].mxu0
    %v3950 = vadd.f32 %v3901, %v3949
    %v3951 = vpop.f32.mrb[0].mxu0
    %3952 = vmatprep.mubr.bf16.mxu0 %v2678
    %3953 = vmatmul.mubr.bf16.gmra.mrb[0].mxu0 %v2677
    %v3954 = vpop.f32.mrb[0].mxu0
    %v3955 = vadd.f32 %v3906, %v3954
    %v3956 = vpop.f32.mrb[0].mxu0
    %v3957 = vpop.f32.mrb[0].mxu0
    %v3958 = vadd.f32 %v3909, %v3957
    %v3959 = vpop.f32.mrb[0].mxu0
    %3960 = vdwg.mxu0
    %3961 = vmatprep.subr.bf16.mxu0 0
    %3962 = vmatpush1.bf16.msra.mxu0 %v3540
    %3963 = vmatprep.subr.bf16.mxu0 0
    %3964 = vmatpush1.bf16.msra.mxu0 %v3541
    %3965 = vmatprep.subr.bf16.mxu0 0
    %3966 = vmatpush1.bf16.msra.mxu0 %v3542
    %3967 = vmatprep.subr.bf16.mxu0 0
    %3968 = vmatpush1.bf16.msra.mxu0 %v3543
    %3969 = vmatprep.subr.bf16.mxu0 0
    %3970 = vmatpush1.bf16.msra.mxu0 %v3544
    %3971 = vmatprep.subr.bf16.mxu0 0
    %3972 = vmatpush1.bf16.msra.mxu0 %v3545
    %3973 = vmatprep.subr.bf16.mxu0 0
    %3974 = vmatpush1.bf16.msra.mxu0 %v3546
    %3975 = vmatprep.subr.bf16.mxu0 0
    %3976 = vmatpush1.bf16.msra.mxu0 %v3547
    %3977 = vmatprep.subr.bf16.mxu0 0
    %3978 = vmatpush1.bf16.msra.mxu0 %v3548
    %3979 = vmatprep.subr.bf16.mxu0 0
    %3980 = vmatpush1.bf16.msra.mxu0 %v3549
    %3981 = vmatprep.subr.bf16.mxu0 0
    %3982 = vmatpush1.bf16.msra.mxu0 %v3550
    %3983 = vmatprep.subr.bf16.mxu0 0
    %3984 = vmatpush1.bf16.msra.mxu0 %v3551
    %3985 = vmatprep.subr.bf16.mxu0 0
    %3986 = vmatpush1.bf16.msra.mxu0 %v3552
    %3987 = vmatprep.subr.bf16.mxu0 0
    %3988 = vmatpush1.bf16.msra.mxu0 %v3553
    %3989 = vmatprep.subr.bf16.mxu0 0
    %3990 = vmatpush1.bf16.msra.mxu0 %v3554
    %3991 = vmatprep.subr.bf16.mxu0 0
    %3992 = vmatpush1.bf16.msra.mxu0 %v3555
    %3993 = vmatprep.mubr.bf16.mxu0 %v2664
    %3994 = vmatmul.mubr.bf16.gmra.mrb[0].mxu0 %v2663
    %v3995 = vpop.f32.mrb[0].mxu0
    %v3996 = vadd.f32 %v3947, %v3995
    %v3997 = vpop.f32.mrb[0].mxu0
    %v3998 = vpop.f32.mrb[0].mxu0
    %v3999 = vadd.f32 %v3950, %v3998
    %v4000 = vpop.f32.mrb[0].mxu0
    %4001 = vmatprep.mubr.bf16.mxu0 %v2680
    %4002 = vmatmul.mubr.bf16.gmra.mrb[0].mxu0 %v2679
    %v4003 = vpop.f32.mrb[0].mxu0
    %v4004 = vadd.f32 %v3955, %v4003
    %v4005 = vpop.f32.mrb[0].mxu0
    %v4006 = vpop.f32.mrb[0].mxu0
    %v4007 = vadd.f32 %v3958, %v4006
    %v4008 = vpop.f32.mrb[0].mxu0
    %4009 = vdwg.mxu0
    %4010 = vmatprep.subr.bf16.mxu0 0
    %4011 = vmatpush1.bf16.msra.mxu0 %v3556
    %4012 = vmatprep.subr.bf16.mxu0 0
    %4013 = vmatpush1.bf16.msra.mxu0 %v3557
    %4014 = vmatprep.subr.bf16.mxu0 0
    %4015 = vmatpush1.bf16.msra.mxu0 %v3558
    %4016 = vmatprep.subr.bf16.mxu0 0
    %4017 = vmatpush1.bf16.msra.mxu0 %v3559
    %4018 = vmatprep.subr.bf16.mxu0 0
    %4019 = vmatpush1.bf16.msra.mxu0 %v3560
    %4020 = vmatprep.subr.bf16.mxu0 0
    %4021 = vmatpush1.bf16.msra.mxu0 %v3561
    %4022 = vmatprep.subr.bf16.mxu0 0
    %4023 = vmatpush1.bf16.msra.mxu0 %v3562
    %4024 = vmatprep.subr.bf16.mxu0 0
    %4025 = vmatpush1.bf16.msra.mxu0 %v3563
    %4026 = vmatprep.subr.bf16.mxu0 0
    %4027 = vmatpush1.bf16.msra.mxu0 %v3564
    %4028 = vmatprep.subr.bf16.mxu0 0
    %4029 = vmatpush1.bf16.msra.mxu0 %v3565
    %4030 = vmatprep.subr.bf16.mxu0 0
    %4031 = vmatpush1.bf16.msra.mxu0 %v3566
    %4032 = vmatprep.subr.bf16.mxu0 0
    %4033 = vmatpush1.bf16.msra.mxu0 %v3567
    %4034 = vmatprep.subr.bf16.mxu0 0
    %4035 = vmatpush1.bf16.msra.mxu0 %v3568
    %4036 = vmatprep.subr.bf16.mxu0 0
    %4037 = vmatpush1.bf16.msra.mxu0 %v3569
    %4038 = vmatprep.subr.bf16.mxu0 0
    %4039 = vmatpush1.bf16.msra.mxu0 %v3570
    %4040 = vmatprep.subr.bf16.mxu0 0
    %4041 = vmatpush1.bf16.msra.mxu0 %v3571
    %4042 = vmatprep.mubr.bf16.mxu0 %v2666
    %4043 = vmatmul.mubr.bf16.gmra.mrb[0].mxu0 %v2665
    %v4044 = vpop.f32.mrb[0].mxu0
    %v4045 = vadd.f32 %v3996, %v4044
    %v4046 = vpop.f32.mrb[0].mxu0
    %v4047 = vpop.f32.mrb[0].mxu0
    %v4048 = vadd.f32 %v3999, %v4047
    %v4049 = vpop.f32.mrb[0].mxu0
    %4050 = vmatprep.mubr.bf16.mxu0 %v2682
    %4051 = vmatmul.mubr.bf16.gmra.mrb[0].mxu0 %v2681
    %v4052 = vpop.f32.mrb[0].mxu0
    %v4053 = vadd.f32 %v4004, %v4052
    %v4054 = vpop.f32.mrb[0].mxu0
    %v4055 = vpop.f32.mrb[0].mxu0
    %v4056 = vadd.f32 %v4007, %v4055
    %v4057 = vpop.f32.mrb[0].mxu0
    %4058 = vdwg.mxu0
    %4059 = vmatprep.subr.bf16.mxu0 0
    %4060 = vmatpush1.bf16.msra.mxu0 %v3572
    %4061 = vmatprep.subr.bf16.mxu0 0
    %4062 = vmatpush1.bf16.msra.mxu0 %v3573
    %4063 = vmatprep.subr.bf16.mxu0 0
    %4064 = vmatpush1.bf16.msra.mxu0 %v3574
    %4065 = vmatprep.subr.bf16.mxu0 0
    %4066 = vmatpush1.bf16.msra.mxu0 %v3575
    %4067 = vmatprep.subr.bf16.mxu0 0
    %4068 = vmatpush1.bf16.msra.mxu0 %v3576
    %4069 = vmatprep.subr.bf16.mxu0 0
    %4070 = vmatpush1.bf16.msra.mxu0 %v3577
    %4071 = vmatprep.subr.bf16.mxu0 0
    %4072 = vmatpush1.bf16.msra.mxu0 %v3578
    %4073 = vmatprep.subr.bf16.mxu0 0
    %4074 = vmatpush1.bf16.msra.mxu0 %v3579
    %4075 = vmatprep.subr.bf16.mxu0 0
    %4076 = vmatpush1.bf16.msra.mxu0 %v3580
    %4077 = vmatprep.subr.bf16.mxu0 0
    %4078 = vmatpush1.bf16.msra.mxu0 %v3581
    %4079 = vmatprep.subr.bf16.mxu0 0
    %4080 = vmatpush1.bf16.msra.mxu0 %v3582
    %4081 = vmatprep.subr.bf16.mxu0 0
    %4082 = vmatpush1.bf16.msra.mxu0 %v3583
    %4083 = vmatprep.subr.bf16.mxu0 0
    %4084 = vmatpush1.bf16.msra.mxu0 %v3584
    %4085 = vmatprep.subr.bf16.mxu0 0
    %4086 = vmatpush1.bf16.msra.mxu0 %v3585
    %4087 = vmatprep.subr.bf16.mxu0 0
    %4088 = vmatpush1.bf16.msra.mxu0 %v3586
    %4089 = vmatprep.subr.bf16.mxu0 0
    %4090 = vmatpush1.bf16.msra.mxu0 %v3587
    %4091 = vmatprep.mubr.bf16.mxu0 %v2668
    %4092 = vmatmul.mubr.bf16.gmra.mrb[0].mxu0 %v2667
    %v4093 = vpop.f32.mrb[0].mxu0
    %v4094 = vadd.f32 %v4045, %v4093
    %v4095 = vpop.f32.mrb[0].mxu0
    %v4096 = vpop.f32.mrb[0].mxu0
    %v4097 = vadd.f32 %v4048, %v4096
    %v4098 = vpop.f32.mrb[0].mxu0
    %4099 = vmatprep.mubr.bf16.mxu0 %v2684
    %4100 = vmatmul.mubr.bf16.gmra.mrb[0].mxu0 %v2683
    %v4101 = vpop.f32.mrb[0].mxu0
    %v4102 = vadd.f32 %v4053, %v4101
    %v4103 = vpop.f32.mrb[0].mxu0
    %v4104 = vpop.f32.mrb[0].mxu0
    %v4105 = vadd.f32 %v4056, %v4104
    %v4106 = vpop.f32.mrb[0].mxu0
    %4107 = vdwg.mxu0
    %v4108 = vadd.f32 %v1685, %v4094
    %v4109 = vadd.f32 %v1686, %v4097
    %v4110 = vadd.f32 %v1687, %v4102
    %v4111 = vadd.f32 %v1688, %v4105
    %v4112 = vld [vmem:[%s17] sm:$0x1]
    %v4113 = vld [vmem:[%s18] sm:$0x1]
    %v4114 = vsel %vm291, %v4108, 0.0
    %4115 = vadd.xlane.f32.xlu0 %v4114
    %v4116 = vpop.xlane.xlu0 %4115
    %v4117 = vsel %vm291, %v4109, 0.0
    %4118 = vadd.xlane.f32.xlu0 %v4117
    %v4119 = vpop.xlane.xlu0 %4118
    %v4120 = vsel %vm291, %v4110, 0.0
    %4121 = vadd.xlane.f32.xlu0 %v4120
    %v4122 = vpop.xlane.xlu0 %4121
    %v4123 = vsel %vm291, %v4111, 0.0
    %4124 = vadd.xlane.f32.xlu0 %v4123
    %v4125 = vpop.xlane.xlu0 %4124
    %v4126 = vmul.f32 %v4116, %v1628
    %v4127 = vmul.f32 %v4119, %v1628
    %v4128 = vmul.f32 %v4122, %v1628
    %v4129 = vmul.f32 %v4125, %v1628
    %v4130 = vsub.f32 %v4108, %v4126
    %v4131 = vsub.f32 %v4109, %v4127
    %v4132 = vsub.f32 %v4110, %v4128
    %v4133 = vsub.f32 %v4111, %v4129
    %v4134 = vmul.f32 %v4130, %v4130
    %v4135 = vmul.f32 %v4131, %v4131
    %v4136 = vmul.f32 %v4132, %v4132
    %v4137 = vmul.f32 %v4133, %v4133
    %v4138 = vsel %vm291, %v4134, 0.0
    %4139 = vadd.xlane.f32.xlu0 %v4138
    %v4140 = vpop.xlane.xlu0 %4139
    %v4141 = vsel %vm291, %v4135, 0.0
    %4142 = vadd.xlane.f32.xlu0 %v4141
    %v4143 = vpop.xlane.xlu0 %4142
    %v4144 = vsel %vm291, %v4136, 0.0
    %4145 = vadd.xlane.f32.xlu0 %v4144
    %v4146 = vpop.xlane.xlu0 %4145
    %v4147 = vsel %vm291, %v4137, 0.0
    %4148 = vadd.xlane.f32.xlu0 %v4147
    %v4149 = vpop.xlane.xlu0 %4148
    %v4150 = vmul.f32 %v4140, %v1628
    %v4151 = vmul.f32 %v4143, %v1628
    %v4152 = vmul.f32 %v4146, %v1628
    %v4153 = vmul.f32 %v4149, %v1628
    %v4154 = vadd.f32 %v4150, 1e-05
    %v4155 = vadd.f32 %v4151, 1e-05
    %v4156 = vadd.f32 %v4152, 1e-05
    %v4157 = vadd.f32 %v4153, 1e-05
    %v4158 = vrsqrt.pop %v4154
    %v4159 = vrsqrt.pop %v4155
    %v4160 = vrsqrt.pop %v4156
    %v4161 = vrsqrt.pop %v4157
    %v4162 = vmul.f32 %v4130, %v4158
    %v4163 = vmul.f32 %v4131, %v4159
    %v4164 = vmul.f32 %v4132, %v4160
    %v4165 = vmul.f32 %v4133, %v4161
    %v4167 = vlaneseq
    %v4168 = vshrl.u32 %v4167, 7
    %v4169 = vsub.s32 0, %v4168
    %v4170 = vrot.slane %v4112, %v4169
    %v4172 = vmul.f32 %v4162, %v4170
    %v4173 = vmul.f32 %v4163, %v4170
    %v4174 = vmul.f32 %v4164, %v4170
    %v4175 = vmul.f32 %v4165, %v4170
    %v4177 = vlaneseq
    %v4178 = vshrl.u32 %v4177, 7
    %v4179 = vsub.s32 0, %v4178
    %v4180 = vrot.slane %v4113, %v4179
    %v4182 = vadd.f32 %v4172, %v4180
    %v4183 = vadd.f32 %v4173, %v4180
    %v4184 = vadd.f32 %v4174, %v4180
    %v4185 = vadd.f32 %v4175, %v4180
    %v4186 = vpack.c.bf16 %v4183, %v4182
    %v4187 = vpack.c.bf16 %v4185, %v4184
    %s4188 = scalar_lea.vmem %s7, 64
    %v4189 = vld [vmem:[%s4188] sm:$0xff]
    %v4190 = vld [vmem:[%s4188 + $0x8] sm:$0xff]
    %v4191 = vld [vmem:[%s4188 + $0x10] sm:$0xff]
    %v4192 = vld [vmem:[%s4188 + $0x18] sm:$0xff]
    %v4193 = vld [vmem:[%s4188 + $0x20] sm:$0xff]
    %v4194 = vld [vmem:[%s4188 + $0x28] sm:$0xff]
    %v4195 = vld [vmem:[%s4188 + $0x30] sm:$0xff]
    %v4196 = vld [vmem:[%s4188 + $0x38] sm:$0xff]
    %s4197 = scalar_lea.vmem %s8, 2
    %v4198 = vld [vmem:[%s4197] sm:$0x3]
    %v4200 = vlaneseq
    %v4201 = vshrl.u32 %v4200, 7
    %v4202 = vsub.s32 0, %v4201
    %v4203 = vrot.slane %v4198, %v4202
    %v4204 = vlaneseq
    %v4205 = vshrl.u32 %v4204, 7
    %v4206 = vsub.s32 1, %v4205
    %v4207 = vrot.slane %v4198, %v4206
    %v4218 = vunpack.c.l.b16 %v4189
    %v4219 = vunpack.c.h.b16 %v4189
    %v4220 = vunpack.c.l.b16 %v4190
    %v4221 = vunpack.c.h.b16 %v4190
    %v4222 = vunpack.c.l.b16 %v4191
    %v4223 = vunpack.c.h.b16 %v4191
    %v4224 = vunpack.c.l.b16 %v4192
    %v4225 = vunpack.c.h.b16 %v4192
    %v4226 = vunpack.c.l.b16 %v4193
    %v4227 = vunpack.c.h.b16 %v4193
    %v4228 = vunpack.c.l.b16 %v4194
    %v4229 = vunpack.c.h.b16 %v4194
    %v4230 = vunpack.c.l.b16 %v4195
    %v4231 = vunpack.c.h.b16 %v4195
    %v4232 = vunpack.c.l.b16 %v4196
    %v4233 = vunpack.c.h.b16 %v4196
    %v4234 = vpack.c.b16 %v4220, %v4218
    %v4235 = vpack.c.b16 %v4221, %v4219
    %v4236 = vpack.c.b16 %v4224, %v4222
    %v4237 = vpack.c.b16 %v4225, %v4223
    %v4238 = vpack.c.b16 %v4228, %v4226
    %v4239 = vpack.c.b16 %v4229, %v4227
    %v4240 = vpack.c.b16 %v4232, %v4230
    %v4241 = vpack.c.b16 %v4233, %v4231
    %v4251 = vsel %vm291, %v4186, 0
    %v4254 = vsel %vm291, %v4187, 0
    %4256 = vmatprep.subr.bf16.mxu0 %v4235
    %4257 = vmatpush1.bf16.msra.mxu0 %v4234
    %4258 = vmatprep.subr.bf16.mxu0 %v4237
    %4259 = vmatpush1.bf16.msra.mxu0 %v4236
    %4260 = vmatprep.subr.bf16.mxu0 %v4239
    %4261 = vmatpush1.bf16.msra.mxu0 %v4238
    %4262 = vmatprep.subr.bf16.mxu0 %v4241
    %4263 = vmatpush1.bf16.msra.mxu0 %v4240
    %4264 = vmatprep.subr.bf16.mxu0 0
    %4265 = vmatpush1.bf16.msra.mxu0 0
    %4266 = vmatprep.subr.bf16.mxu0 0
    %4267 = vmatpush1.bf16.msra.mxu0 0
    %4268 = vmatprep.subr.bf16.mxu0 0
    %4269 = vmatpush1.bf16.msra.mxu0 0
    %4270 = vmatprep.subr.bf16.mxu0 0
    %4271 = vmatpush1.bf16.msra.mxu0 0
    %4272 = vmatprep.subr.bf16.mxu0 0
    %4273 = vmatpush1.bf16.msra.mxu0 0
    %4274 = vmatprep.subr.bf16.mxu0 0
    %4275 = vmatpush1.bf16.msra.mxu0 0
    %4276 = vmatprep.subr.bf16.mxu0 0
    %4277 = vmatpush1.bf16.msra.mxu0 0
    %4278 = vmatprep.subr.bf16.mxu0 0
    %4279 = vmatpush1.bf16.msra.mxu0 0
    %4280 = vmatprep.subr.bf16.mxu0 0
    %4281 = vmatpush1.bf16.msra.mxu0 0
    %4282 = vmatprep.subr.bf16.mxu0 0
    %4283 = vmatpush1.bf16.msra.mxu0 0
    %4284 = vmatprep.subr.bf16.mxu0 0
    %4285 = vmatpush1.bf16.msra.mxu0 0
    %4286 = vmatprep.subr.bf16.mxu0 0
    %4287 = vmatpush1.bf16.msra.mxu0 0
    %4288 = vmatprep.mubr.bf16.mxu0 0
    %4289 = vmatmul.mubr.bf16.gmra.mrb[0].mxu0 %v4251
    %v4290 = vpop.f32.mrb[0].mxu0
    %v4291 = vadd.f32 %v4203, %v4290
    %v4292 = vpop.f32.mrb[0].mxu0
    %v4293 = vadd.f32 %v4207, %v4292
    %v4294 = vpop.f32.mrb[0].mxu0
    %v4295 = vadd.f32 %v4203, %v4294
    %v4296 = vpop.f32.mrb[0].mxu0
    %v4297 = vadd.f32 %v4207, %v4296
    %4298 = vmatprep.mubr.bf16.mxu0 0
    %4299 = vmatmul.mubr.bf16.gmra.mrb[0].mxu0 %v4254
    %v4300 = vpop.f32.mrb[0].mxu0
    %v4301 = vadd.f32 %v4203, %v4300
    %v4302 = vpop.f32.mrb[0].mxu0
    %v4303 = vadd.f32 %v4207, %v4302
    %v4304 = vpop.f32.mrb[0].mxu0
    %v4305 = vadd.f32 %v4203, %v4304
    %v4306 = vpop.f32.mrb[0].mxu0
    %v4307 = vadd.f32 %v4207, %v4306
    %4308 = vdwg.mxu0
    %4313 = vrot.lane.b32.xlu0 %v4291, 64
    %v4314 = vpop.permute.xlu0 %4313
    %4315 = vrot.lane.b32.xlu0 %v4295, 64
    %v4316 = vpop.permute.xlu0 %4315
    %4317 = vrot.lane.b32.xlu0 %v4301, 64
    %v4318 = vpop.permute.xlu0 %4317
    %4319 = vrot.lane.b32.xlu0 %v4305, 64
    %v4320 = vpop.permute.xlu0 %4319
    %v4321 = vsel %vm363, %v4291, 0
    %v4323 = vsel %vm363, %v4295, 0
    %v4325 = vsel %vm363, %v4301, 0
    %v4327 = vsel %vm363, %v4305, 0
    %v4329 = vsel %vm363, %v4314, 0
    %v4331 = vsel %vm363, %v4316, 0
    %v4333 = vsel %vm363, %v4318, 0
    %v4335 = vsel %vm363, %v4320, 0
    %4337 = vmatprep.subr.mxu0 0.0
    %4338 = vmatpush1.xpose.msra.mxu0 %v4329
    %4339 = vmatprep.subr.mxu0 0.0
    %4340 = vmatpush1.xpose.msra.mxu0 %v4331
    %4341 = vmatprep.subr.mxu0 0.0
    %4342 = vmatpush1.xpose.msra.mxu0 %v4333
    %4343 = vmatprep.subr.mxu0 0.0
    %4344 = vmatpush1.xpose.msra.mxu0 %v4335
    %4345 = vmatprep.subr.mxu0 0.0
    %4346 = vmatpush1.xpose.msra.mxu0 0.0
    %4347 = vmatprep.subr.mxu0 0.0
    %4348 = vmatpush1.xpose.msra.mxu0 0.0
    %4349 = vmatprep.subr.mxu0 0.0
    %4350 = vmatpush1.xpose.msra.mxu0 0.0
    %4351 = vmatprep.subr.mxu0 0.0
    %4352 = vmatpush1.xpose.msra.mxu0 0.0
    %4353 = vmatprep.subr.mxu0 0.0
    %4354 = vmatpush1.xpose.msra.mxu0 0.0
    %4355 = vmatprep.subr.mxu0 0.0
    %4356 = vmatpush1.xpose.msra.mxu0 0.0
    %4357 = vmatprep.subr.mxu0 0.0
    %4358 = vmatpush1.xpose.msra.mxu0 0.0
    %4359 = vmatprep.subr.mxu0 0.0
    %4360 = vmatpush1.xpose.msra.mxu0 0.0
    %4361 = vmatprep.subr.mxu0 0.0
    %4362 = vmatpush1.xpose.msra.mxu0 0.0
    %4363 = vmatprep.subr.mxu0 0.0
    %4364 = vmatpush1.xpose.msra.mxu0 0.0
    %4365 = vmatprep.subr.mxu0 0.0
    %4366 = vmatpush1.xpose.msra.mxu0 0.0
    %4367 = vmatprep.subr.mxu0 0.0
    %4368 = vmatpush1.xpose.msra.mxu0 0.0
    %4369 = vmatprep.subr.mxu0 0.0
    %4370 = vmatpush1.xpose.msra.mxu0 0.0
    %4371 = vmatprep.subr.mxu0 0.0
    %4372 = vmatpush1.xpose.msra.mxu0 0.0
    %4373 = vmatprep.subr.mxu0 0.0
    %4374 = vmatpush1.xpose.msra.mxu0 0.0
    %4375 = vmatprep.subr.mxu0 0.0
    %4376 = vmatpush1.xpose.msra.mxu0 0.0
    %4377 = vmatprep.subr.mxu0 0.0
    %4378 = vmatpush1.xpose.msra.mxu0 0.0
    %4379 = vmatprep.subr.mxu0 0.0
    %4380 = vmatpush1.xpose.msra.mxu0 0.0
    %4381 = vmatprep.subr.mxu0 0.0
    %4382 = vmatpush1.xpose.msra.mxu0 0.0
    %4383 = vmatprep.subr.mxu0 0.0
    %4384 = vmatpush1.xpose.msra.mxu0 0.0
    %4385 = vmatprep.subr.mxu0 0.0
    %4386 = vmatpush1.xpose.msra.mxu0 0.0
    %4387 = vmatprep.subr.mxu0 0.0
    %4388 = vmatpush1.xpose.msra.mxu0 0.0
    %4389 = vmatprep.subr.mxu0 0.0
    %4390 = vmatpush1.xpose.msra.mxu0 0.0
    %4391 = vmatprep.subr.mxu0 0.0
    %4392 = vmatpush1.xpose.msra.mxu0 0.0
    %4393 = vmatprep.subr.mxu0 0.0
    %4394 = vmatpush1.xpose.msra.mxu0 0.0
    %4395 = vmatprep.subr.mxu0 0.0
    %4396 = vmatpush1.xpose.msra.mxu0 0.0
    %4397 = vmatprep.subr.mxu0 0.0
    %4398 = vmatpush1.xpose.msra.mxu0 0.0
    %4399 = vmatprep.subr.mxu0 0.0
    %4400 = vmatpush1.xpose.msra.mxu0 0.0
    %4401 = vmatprep.mubr.f32.mxu0 0.0
    %4402 = vmatmul.mubr.f32.gmra.mrb[0].mxu0 %v4321
    %v4403 = vpop.f32.mrb[0].mxu0
    %v4404 = vadd.f32 0.0, %v4403
    %v4405 = vpop.f32.mrb[0].mxu0
    %4406 = vmatprep.mubr.f32.mxu0 0.0
    %4407 = vmatmul.mubr.f32.gmra.mrb[0].mxu0 %v4323
    %v4408 = vpop.f32.mrb[0].mxu0
    %v4409 = vadd.f32 0.0, %v4408
    %v4410 = vpop.f32.mrb[0].mxu0
    %4411 = vmatprep.mubr.f32.mxu0 0.0
    %4412 = vmatmul.mubr.f32.gmra.mrb[0].mxu0 %v4325
    %v4413 = vpop.f32.mrb[0].mxu0
    %v4414 = vadd.f32 0.0, %v4413
    %v4415 = vpop.f32.mrb[0].mxu0
    %4416 = vmatprep.mubr.f32.mxu0 0.0
    %4417 = vmatmul.mubr.f32.gmra.mrb[0].mxu0 %v4327
    %v4418 = vpop.f32.mrb[0].mxu0
    %v4419 = vadd.f32 0.0, %v4418
    %v4420 = vpop.f32.mrb[0].mxu0
    %4421 = vdwg.mxu0
    %v4422 = vmul.f32 %v4404, 0.25
    %v4423 = vmul.f32 %v4409, 0.25
    %v4424 = vmul.f32 %v4414, 0.25
    %v4425 = vmul.f32 %v4419, 0.25
    %v4426 = vadd.f32 %v4422, %v225
    %v4427 = vadd.f32 %v4423, %v226
    %v4428 = vadd.f32 %v4424, %v227
    %v4429 = vadd.f32 %v4425, %v228
    %v4430 = vsel %vm473, %v4426, -inf
    %4431 = vmax.xlane.f32.xlu0 %v4430
    %v4432 = vpop.xlane.xlu0 %4431
    %v4433 = vsel %vm473, %v4427, -inf
    %4434 = vmax.xlane.f32.xlu0 %v4433
    %v4435 = vpop.xlane.xlu0 %4434
    %v4436 = vsel %vm473, %v4428, -inf
    %4437 = vmax.xlane.f32.xlu0 %v4436
    %v4438 = vpop.xlane.xlu0 %4437
    %v4439 = vsel %vm473, %v4429, -inf
    %4440 = vmax.xlane.f32.xlu0 %v4439
    %v4441 = vpop.xlane.xlu0 %4440
    %v4442 = vsub.f32 %v4426, %v4432
    %v4443 = vsub.f32 %v4427, %v4435
    %v4444 = vsub.f32 %v4428, %v4438
    %v4445 = vsub.f32 %v4429, %v4441
    %v4446 = vmul.f32 %v4442, 1.442695
    %v4447 = vpow.pop %v4446
    %v4448 = vmul.f32 %v4443, 1.442695
    %v4449 = vpow.pop %v4448
    %v4450 = vmul.f32 %v4444, 1.442695
    %v4451 = vpow.pop %v4450
    %v4452 = vmul.f32 %v4445, 1.442695
    %v4453 = vpow.pop %v4452
    %v4454 = vsel %vm473, %v4447, 0.0
    %4455 = vadd.xlane.f32.xlu0 %v4454
    %v4456 = vpop.xlane.xlu0 %4455
    %v4457 = vsel %vm473, %v4449, 0.0
    %4458 = vadd.xlane.f32.xlu0 %v4457
    %v4459 = vpop.xlane.xlu0 %4458
    %v4460 = vsel %vm473, %v4451, 0.0
    %4461 = vadd.xlane.f32.xlu0 %v4460
    %v4462 = vpop.xlane.xlu0 %4461
    %v4463 = vsel %vm473, %v4453, 0.0
    %4464 = vadd.xlane.f32.xlu0 %v4463
    %v4465 = vpop.xlane.xlu0 %4464
    %v4466 = vrcp.pop %v4456
    %v4467 = vrcp.pop %v4459
    %v4468 = vrcp.pop %v4462
    %v4469 = vrcp.pop %v4465
    %v4470 = vmul.f32 %v4447, %v4466
    %v4471 = vmul.f32 %v4449, %v4467
    %v4472 = vmul.f32 %v4451, %v4468
    %v4473 = vmul.f32 %v4453, %v4469
    %v4475 = vsel %vm473, %v4470, 0
    %v4478 = vsel %vm473, %v4471, 0
    %v4481 = vsel %vm473, %v4472, 0
    %v4484 = vsel %vm473, %v4473, 0
    %4486 = vmatprep.subr.mxu0 0.0
    %4487 = vmatpush1.msra.mxu0 %v4293
    %4488 = vmatprep.subr.mxu0 0.0
    %4489 = vmatpush1.msra.mxu0 %v4297
    %4490 = vmatprep.subr.mxu0 0.0
    %4491 = vmatpush1.msra.mxu0 %v4303
    %4492 = vmatprep.subr.mxu0 0.0
    %4493 = vmatpush1.msra.mxu0 %v4307
    %4494 = vmatprep.subr.mxu0 0.0
    %4495 = vmatpush1.msra.mxu0 0.0
    %4496 = vmatprep.subr.mxu0 0.0
    %4497 = vmatpush1.msra.mxu0 0.0
    %4498 = vmatprep.subr.mxu0 0.0
    %4499 = vmatpush1.msra.mxu0 0.0
    %4500 = vmatprep.subr.mxu0 0.0
    %4501 = vmatpush1.msra.mxu0 0.0
    %4502 = vmatprep.subr.mxu0 0.0
    %4503 = vmatpush1.msra.mxu0 0.0
    %4504 = vmatprep.subr.mxu0 0.0
    %4505 = vmatpush1.msra.mxu0 0.0
    %4506 = vmatprep.subr.mxu0 0.0
    %4507 = vmatpush1.msra.mxu0 0.0
    %4508 = vmatprep.subr.mxu0 0.0
    %4509 = vmatpush1.msra.mxu0 0.0
    %4510 = vmatprep.subr.mxu0 0.0
    %4511 = vmatpush1.msra.mxu0 0.0
    %4512 = vmatprep.subr.mxu0 0.0
    %4513 = vmatpush1.msra.mxu0 0.0
    %4514 = vmatprep.subr.mxu0 0.0
    %4515 = vmatpush1.msra.mxu0 0.0
    %4516 = vmatprep.subr.mxu0 0.0
    %4517 = vmatpush1.msra.mxu0 0.0
    %4518 = vmatprep.subr.mxu0 0.0
    %4519 = vmatpush1.msra.mxu0 0.0
    %4520 = vmatprep.subr.mxu0 0.0
    %4521 = vmatpush1.msra.mxu0 0.0
    %4522 = vmatprep.subr.mxu0 0.0
    %4523 = vmatpush1.msra.mxu0 0.0
    %4524 = vmatprep.subr.mxu0 0.0
    %4525 = vmatpush1.msra.mxu0 0.0
    %4526 = vmatprep.subr.mxu0 0.0
    %4527 = vmatpush1.msra.mxu0 0.0
    %4528 = vmatprep.subr.mxu0 0.0
    %4529 = vmatpush1.msra.mxu0 0.0
    %4530 = vmatprep.subr.mxu0 0.0
    %4531 = vmatpush1.msra.mxu0 0.0
    %4532 = vmatprep.subr.mxu0 0.0
    %4533 = vmatpush1.msra.mxu0 0.0
    %4534 = vmatprep.subr.mxu0 0.0
    %4535 = vmatpush1.msra.mxu0 0.0
    %4536 = vmatprep.subr.mxu0 0.0
    %4537 = vmatpush1.msra.mxu0 0.0
    %4538 = vmatprep.subr.mxu0 0.0
    %4539 = vmatpush1.msra.mxu0 0.0
    %4540 = vmatprep.subr.mxu0 0.0
    %4541 = vmatpush1.msra.mxu0 0.0
    %4542 = vmatprep.subr.mxu0 0.0
    %4543 = vmatpush1.msra.mxu0 0.0
    %4544 = vmatprep.subr.mxu0 0.0
    %4545 = vmatpush1.msra.mxu0 0.0
    %4546 = vmatprep.subr.mxu0 0.0
    %4547 = vmatpush1.msra.mxu0 0.0
    %4548 = vmatprep.subr.mxu0 0.0
    %4549 = vmatpush1.msra.mxu0 0.0
    %4550 = vmatprep.mubr.f32.mxu0 0.0
    %4551 = vmatmul.mubr.f32.gmra.mrb[0].mxu0 %v4475
    %v4552 = vpop.f32.mrb[0].mxu0
    %v4553 = vadd.f32 0.0, %v4552
    %v4554 = vpop.f32.mrb[0].mxu0
    %4555 = vmatprep.mubr.f32.mxu0 0.0
    %4556 = vmatmul.mubr.f32.gmra.mrb[0].mxu0 %v4478
    %v4557 = vpop.f32.mrb[0].mxu0
    %v4558 = vadd.f32 0.0, %v4557
    %v4559 = vpop.f32.mrb[0].mxu0
    %4560 = vmatprep.mubr.f32.mxu0 0.0
    %4561 = vmatmul.mubr.f32.gmra.mrb[0].mxu0 %v4481
    %v4562 = vpop.f32.mrb[0].mxu0
    %v4563 = vadd.f32 0.0, %v4562
    %v4564 = vpop.f32.mrb[0].mxu0
    %4565 = vmatprep.mubr.f32.mxu0 0.0
    %4566 = vmatmul.mubr.f32.gmra.mrb[0].mxu0 %v4484
    %v4567 = vpop.f32.mrb[0].mxu0
    %v4568 = vadd.f32 0.0, %v4567
    %v4569 = vpop.f32.mrb[0].mxu0
    %4570 = vdwg.mxu0
    %4571 = vrot.lane.b32.xlu0 %v4291, 112
    %v4572 = vpop.permute.xlu0 %4571
    %4573 = vrot.lane.b32.xlu0 %v4295, 112
    %v4574 = vpop.permute.xlu0 %4573
    %4575 = vrot.lane.b32.xlu0 %v4301, 112
    %v4576 = vpop.permute.xlu0 %4575
    %4577 = vrot.lane.b32.xlu0 %v4305, 112
    %v4578 = vpop.permute.xlu0 %4577
    %4579 = vrot.lane.b32.xlu0 %v4291, 48
    %v4580 = vpop.permute.xlu0 %4579
    %4581 = vrot.lane.b32.xlu0 %v4295, 48
    %v4582 = vpop.permute.xlu0 %4581
    %4583 = vrot.lane.b32.xlu0 %v4301, 48
    %v4584 = vpop.permute.xlu0 %4583
    %4585 = vrot.lane.b32.xlu0 %v4305, 48
    %v4586 = vpop.permute.xlu0 %4585
    %v4587 = vsel %vm363, %v4572, 0
    %v4589 = vsel %vm363, %v4574, 0
    %v4591 = vsel %vm363, %v4576, 0
    %v4593 = vsel %vm363, %v4578, 0
    %v4595 = vsel %vm363, %v4580, 0
    %v4597 = vsel %vm363, %v4582, 0
    %v4599 = vsel %vm363, %v4584, 0
    %v4601 = vsel %vm363, %v4586, 0
    %4603 = vmatprep.subr.mxu0 0.0
    %4604 = vmatpush1.xpose.msra.mxu0 %v4595
    %4605 = vmatprep.subr.mxu0 0.0
    %4606 = vmatpush1.xpose.msra.mxu0 %v4597
    %4607 = vmatprep.subr.mxu0 0.0
    %4608 = vmatpush1.xpose.msra.mxu0 %v4599
    %4609 = vmatprep.subr.mxu0 0.0
    %4610 = vmatpush1.xpose.msra.mxu0 %v4601
    %4611 = vmatprep.subr.mxu0 0.0
    %4612 = vmatpush1.xpose.msra.mxu0 0.0
    %4613 = vmatprep.subr.mxu0 0.0
    %4614 = vmatpush1.xpose.msra.mxu0 0.0
    %4615 = vmatprep.subr.mxu0 0.0
    %4616 = vmatpush1.xpose.msra.mxu0 0.0
    %4617 = vmatprep.subr.mxu0 0.0
    %4618 = vmatpush1.xpose.msra.mxu0 0.0
    %4619 = vmatprep.subr.mxu0 0.0
    %4620 = vmatpush1.xpose.msra.mxu0 0.0
    %4621 = vmatprep.subr.mxu0 0.0
    %4622 = vmatpush1.xpose.msra.mxu0 0.0
    %4623 = vmatprep.subr.mxu0 0.0
    %4624 = vmatpush1.xpose.msra.mxu0 0.0
    %4625 = vmatprep.subr.mxu0 0.0
    %4626 = vmatpush1.xpose.msra.mxu0 0.0
    %4627 = vmatprep.subr.mxu0 0.0
    %4628 = vmatpush1.xpose.msra.mxu0 0.0
    %4629 = vmatprep.subr.mxu0 0.0
    %4630 = vmatpush1.xpose.msra.mxu0 0.0
    %4631 = vmatprep.subr.mxu0 0.0
    %4632 = vmatpush1.xpose.msra.mxu0 0.0
    %4633 = vmatprep.subr.mxu0 0.0
    %4634 = vmatpush1.xpose.msra.mxu0 0.0
    %4635 = vmatprep.subr.mxu0 0.0
    %4636 = vmatpush1.xpose.msra.mxu0 0.0
    %4637 = vmatprep.subr.mxu0 0.0
    %4638 = vmatpush1.xpose.msra.mxu0 0.0
    %4639 = vmatprep.subr.mxu0 0.0
    %4640 = vmatpush1.xpose.msra.mxu0 0.0
    %4641 = vmatprep.subr.mxu0 0.0
    %4642 = vmatpush1.xpose.msra.mxu0 0.0
    %4643 = vmatprep.subr.mxu0 0.0
    %4644 = vmatpush1.xpose.msra.mxu0 0.0
    %4645 = vmatprep.subr.mxu0 0.0
    %4646 = vmatpush1.xpose.msra.mxu0 0.0
    %4647 = vmatprep.subr.mxu0 0.0
    %4648 = vmatpush1.xpose.msra.mxu0 0.0
    %4649 = vmatprep.subr.mxu0 0.0
    %4650 = vmatpush1.xpose.msra.mxu0 0.0
    %4651 = vmatprep.subr.mxu0 0.0
    %4652 = vmatpush1.xpose.msra.mxu0 0.0
    %4653 = vmatprep.subr.mxu0 0.0
    %4654 = vmatpush1.xpose.msra.mxu0 0.0
    %4655 = vmatprep.subr.mxu0 0.0
    %4656 = vmatpush1.xpose.msra.mxu0 0.0
    %4657 = vmatprep.subr.mxu0 0.0
    %4658 = vmatpush1.xpose.msra.mxu0 0.0
    %4659 = vmatprep.subr.mxu0 0.0
    %4660 = vmatpush1.xpose.msra.mxu0 0.0
    %4661 = vmatprep.subr.mxu0 0.0
    %4662 = vmatpush1.xpose.msra.mxu0 0.0
    %4663 = vmatprep.subr.mxu0 0.0
    %4664 = vmatpush1.xpose.msra.mxu0 0.0
    %4665 = vmatprep.subr.mxu0 0.0
    %4666 = vmatpush1.xpose.msra.mxu0 0.0
    %4667 = vmatprep.mubr.f32.mxu0 0.0
    %4668 = vmatmul.mubr.f32.gmra.mrb[0].mxu0 %v4587
    %v4669 = vpop.f32.mrb[0].mxu0
    %v4670 = vadd.f32 0.0, %v4669
    %v4671 = vpop.f32.mrb[0].mxu0
    %4672 = vmatprep.mubr.f32.mxu0 0.0
    %4673 = vmatmul.mubr.f32.gmra.mrb[0].mxu0 %v4589
    %v4674 = vpop.f32.mrb[0].mxu0
    %v4675 = vadd.f32 0.0, %v4674
    %v4676 = vpop.f32.mrb[0].mxu0
    %4677 = vmatprep.mubr.f32.mxu0 0.0
    %4678 = vmatmul.mubr.f32.gmra.mrb[0].mxu0 %v4591
    %v4679 = vpop.f32.mrb[0].mxu0
    %v4680 = vadd.f32 0.0, %v4679
    %v4681 = vpop.f32.mrb[0].mxu0
    %4682 = vmatprep.mubr.f32.mxu0 0.0
    %4683 = vmatmul.mubr.f32.gmra.mrb[0].mxu0 %v4593
    %v4684 = vpop.f32.mrb[0].mxu0
    %v4685 = vadd.f32 0.0, %v4684
    %v4686 = vpop.f32.mrb[0].mxu0
    %4687 = vdwg.mxu0
    %v4688 = vmul.f32 %v4670, 0.25
    %v4689 = vmul.f32 %v4675, 0.25
    %v4690 = vmul.f32 %v4680, 0.25
    %v4691 = vmul.f32 %v4685, 0.25
    %v4692 = vadd.f32 %v4688, %v225
    %v4693 = vadd.f32 %v4689, %v226
    %v4694 = vadd.f32 %v4690, %v227
    %v4695 = vadd.f32 %v4691, %v228
    %v4696 = vsel %vm473, %v4692, -inf
    %4697 = vmax.xlane.f32.xlu0 %v4696
    %v4698 = vpop.xlane.xlu0 %4697
    %v4699 = vsel %vm473, %v4693, -inf
    %4700 = vmax.xlane.f32.xlu0 %v4699
    %v4701 = vpop.xlane.xlu0 %4700
    %v4702 = vsel %vm473, %v4694, -inf
    %4703 = vmax.xlane.f32.xlu0 %v4702
    %v4704 = vpop.xlane.xlu0 %4703
    %v4705 = vsel %vm473, %v4695, -inf
    %4706 = vmax.xlane.f32.xlu0 %v4705
    %v4707 = vpop.xlane.xlu0 %4706
    %v4708 = vsub.f32 %v4692, %v4698
    %v4709 = vsub.f32 %v4693, %v4701
    %v4710 = vsub.f32 %v4694, %v4704
    %v4711 = vsub.f32 %v4695, %v4707
    %v4712 = vmul.f32 %v4708, 1.442695
    %v4713 = vpow.pop %v4712
    %v4714 = vmul.f32 %v4709, 1.442695
    %v4715 = vpow.pop %v4714
    %v4716 = vmul.f32 %v4710, 1.442695
    %v4717 = vpow.pop %v4716
    %v4718 = vmul.f32 %v4711, 1.442695
    %v4719 = vpow.pop %v4718
    %v4720 = vsel %vm473, %v4713, 0.0
    %4721 = vadd.xlane.f32.xlu0 %v4720
    %v4722 = vpop.xlane.xlu0 %4721
    %v4723 = vsel %vm473, %v4715, 0.0
    %4724 = vadd.xlane.f32.xlu0 %v4723
    %v4725 = vpop.xlane.xlu0 %4724
    %v4726 = vsel %vm473, %v4717, 0.0
    %4727 = vadd.xlane.f32.xlu0 %v4726
    %v4728 = vpop.xlane.xlu0 %4727
    %v4729 = vsel %vm473, %v4719, 0.0
    %4730 = vadd.xlane.f32.xlu0 %v4729
    %v4731 = vpop.xlane.xlu0 %4730
    %v4732 = vrcp.pop %v4722
    %v4733 = vrcp.pop %v4725
    %v4734 = vrcp.pop %v4728
    %v4735 = vrcp.pop %v4731
    %v4736 = vmul.f32 %v4713, %v4732
    %v4737 = vmul.f32 %v4715, %v4733
    %v4738 = vmul.f32 %v4717, %v4734
    %v4739 = vmul.f32 %v4719, %v4735
    %4744 = vrot.lane.b32.xlu0 %v4293, 112
    %v4745 = vpop.permute.xlu0 %4744
    %4746 = vrot.lane.b32.xlu0 %v4297, 112
    %v4747 = vpop.permute.xlu0 %4746
    %4748 = vrot.lane.b32.xlu0 %v4303, 112
    %v4749 = vpop.permute.xlu0 %4748
    %4750 = vrot.lane.b32.xlu0 %v4307, 112
    %v4751 = vpop.permute.xlu0 %4750
    %v4757 = vsel %vm473, %v4736, 0
    %v4760 = vsel %vm473, %v4737, 0
    %v4763 = vsel %vm473, %v4738, 0
    %v4766 = vsel %vm473, %v4739, 0
    %4768 = vmatprep.subr.mxu0 0.0
    %4769 = vmatpush1.msra.mxu0 %v4745
    %4770 = vmatprep.subr.mxu0 0.0
    %4771 = vmatpush1.msra.mxu0 %v4747
    %4772 = vmatprep.subr.mxu0 0.0
    %4773 = vmatpush1.msra.mxu0 %v4749
    %4774 = vmatprep.subr.mxu0 0.0
    %4775 = vmatpush1.msra.mxu0 %v4751
    %4776 = vmatprep.subr.mxu0 0.0
    %4777 = vmatpush1.msra.mxu0 0.0
    %4778 = vmatprep.subr.mxu0 0.0
    %4779 = vmatpush1.msra.mxu0 0.0
    %4780 = vmatprep.subr.mxu0 0.0
    %4781 = vmatpush1.msra.mxu0 0.0
    %4782 = vmatprep.subr.mxu0 0.0
    %4783 = vmatpush1.msra.mxu0 0.0
    %4784 = vmatprep.subr.mxu0 0.0
    %4785 = vmatpush1.msra.mxu0 0.0
    %4786 = vmatprep.subr.mxu0 0.0
    %4787 = vmatpush1.msra.mxu0 0.0
    %4788 = vmatprep.subr.mxu0 0.0
    %4789 = vmatpush1.msra.mxu0 0.0
    %4790 = vmatprep.subr.mxu0 0.0
    %4791 = vmatpush1.msra.mxu0 0.0
    %4792 = vmatprep.subr.mxu0 0.0
    %4793 = vmatpush1.msra.mxu0 0.0
    %4794 = vmatprep.subr.mxu0 0.0
    %4795 = vmatpush1.msra.mxu0 0.0
    %4796 = vmatprep.subr.mxu0 0.0
    %4797 = vmatpush1.msra.mxu0 0.0
    %4798 = vmatprep.subr.mxu0 0.0
    %4799 = vmatpush1.msra.mxu0 0.0
    %4800 = vmatprep.subr.mxu0 0.0
    %4801 = vmatpush1.msra.mxu0 0.0
    %4802 = vmatprep.subr.mxu0 0.0
    %4803 = vmatpush1.msra.mxu0 0.0
    %4804 = vmatprep.subr.mxu0 0.0
    %4805 = vmatpush1.msra.mxu0 0.0
    %4806 = vmatprep.subr.mxu0 0.0
    %4807 = vmatpush1.msra.mxu0 0.0
    %4808 = vmatprep.subr.mxu0 0.0
    %4809 = vmatpush1.msra.mxu0 0.0
    %4810 = vmatprep.subr.mxu0 0.0
    %4811 = vmatpush1.msra.mxu0 0.0
    %4812 = vmatprep.subr.mxu0 0.0
    %4813 = vmatpush1.msra.mxu0 0.0
    %4814 = vmatprep.subr.mxu0 0.0
    %4815 = vmatpush1.msra.mxu0 0.0
    %4816 = vmatprep.subr.mxu0 0.0
    %4817 = vmatpush1.msra.mxu0 0.0
    %4818 = vmatprep.subr.mxu0 0.0
    %4819 = vmatpush1.msra.mxu0 0.0
    %4820 = vmatprep.subr.mxu0 0.0
    %4821 = vmatpush1.msra.mxu0 0.0
    %4822 = vmatprep.subr.mxu0 0.0
    %4823 = vmatpush1.msra.mxu0 0.0
    %4824 = vmatprep.subr.mxu0 0.0
    %4825 = vmatpush1.msra.mxu0 0.0
    %4826 = vmatprep.subr.mxu0 0.0
    %4827 = vmatpush1.msra.mxu0 0.0
    %4828 = vmatprep.subr.mxu0 0.0
    %4829 = vmatpush1.msra.mxu0 0.0
    %4830 = vmatprep.subr.mxu0 0.0
    %4831 = vmatpush1.msra.mxu0 0.0
    %4832 = vmatprep.mubr.f32.mxu0 0.0
    %4833 = vmatmul.mubr.f32.gmra.mrb[0].mxu0 %v4757
    %v4834 = vpop.f32.mrb[0].mxu0
    %v4835 = vadd.f32 0.0, %v4834
    %v4836 = vpop.f32.mrb[0].mxu0
    %4837 = vmatprep.mubr.f32.mxu0 0.0
    %4838 = vmatmul.mubr.f32.gmra.mrb[0].mxu0 %v4760
    %v4839 = vpop.f32.mrb[0].mxu0
    %v4840 = vadd.f32 0.0, %v4839
    %v4841 = vpop.f32.mrb[0].mxu0
    %4842 = vmatprep.mubr.f32.mxu0 0.0
    %4843 = vmatmul.mubr.f32.gmra.mrb[0].mxu0 %v4763
    %v4844 = vpop.f32.mrb[0].mxu0
    %v4845 = vadd.f32 0.0, %v4844
    %v4846 = vpop.f32.mrb[0].mxu0
    %4847 = vmatprep.mubr.f32.mxu0 0.0
    %4848 = vmatmul.mubr.f32.gmra.mrb[0].mxu0 %v4766
    %v4849 = vpop.f32.mrb[0].mxu0
    %v4850 = vadd.f32 0.0, %v4849
    %v4851 = vpop.f32.mrb[0].mxu0
    %4852 = vdwg.mxu0
    %4853 = vrot.lane.b32.xlu0 %v4291, 96
    %v4854 = vpop.permute.xlu0 %4853
    %4855 = vrot.lane.b32.xlu0 %v4295, 96
    %v4856 = vpop.permute.xlu0 %4855
    %4857 = vrot.lane.b32.xlu0 %v4301, 96
    %v4858 = vpop.permute.xlu0 %4857
    %4859 = vrot.lane.b32.xlu0 %v4305, 96
    %v4860 = vpop.permute.xlu0 %4859
    %4861 = vrot.lane.b32.xlu0 %v4291, 32
    %v4862 = vpop.permute.xlu0 %4861
    %4863 = vrot.lane.b32.xlu0 %v4295, 32
    %v4864 = vpop.permute.xlu0 %4863
    %4865 = vrot.lane.b32.xlu0 %v4301, 32
    %v4866 = vpop.permute.xlu0 %4865
    %4867 = vrot.lane.b32.xlu0 %v4305, 32
    %v4868 = vpop.permute.xlu0 %4867
    %v4869 = vsel %vm363, %v4854, 0
    %v4871 = vsel %vm363, %v4856, 0
    %v4873 = vsel %vm363, %v4858, 0
    %v4875 = vsel %vm363, %v4860, 0
    %v4877 = vsel %vm363, %v4862, 0
    %v4879 = vsel %vm363, %v4864, 0
    %v4881 = vsel %vm363, %v4866, 0
    %v4883 = vsel %vm363, %v4868, 0
    %4885 = vmatprep.subr.mxu0 0.0
    %4886 = vmatpush1.xpose.msra.mxu0 %v4877
    %4887 = vmatprep.subr.mxu0 0.0
    %4888 = vmatpush1.xpose.msra.mxu0 %v4879
    %4889 = vmatprep.subr.mxu0 0.0
    %4890 = vmatpush1.xpose.msra.mxu0 %v4881
    %4891 = vmatprep.subr.mxu0 0.0
    %4892 = vmatpush1.xpose.msra.mxu0 %v4883
    %4893 = vmatprep.subr.mxu0 0.0
    %4894 = vmatpush1.xpose.msra.mxu0 0.0
    %4895 = vmatprep.subr.mxu0 0.0
    %4896 = vmatpush1.xpose.msra.mxu0 0.0
    %4897 = vmatprep.subr.mxu0 0.0
    %4898 = vmatpush1.xpose.msra.mxu0 0.0
    %4899 = vmatprep.subr.mxu0 0.0
    %4900 = vmatpush1.xpose.msra.mxu0 0.0
    %4901 = vmatprep.subr.mxu0 0.0
    %4902 = vmatpush1.xpose.msra.mxu0 0.0
    %4903 = vmatprep.subr.mxu0 0.0
    %4904 = vmatpush1.xpose.msra.mxu0 0.0
    %4905 = vmatprep.subr.mxu0 0.0
    %4906 = vmatpush1.xpose.msra.mxu0 0.0
    %4907 = vmatprep.subr.mxu0 0.0
    %4908 = vmatpush1.xpose.msra.mxu0 0.0
    %4909 = vmatprep.subr.mxu0 0.0
    %4910 = vmatpush1.xpose.msra.mxu0 0.0
    %4911 = vmatprep.subr.mxu0 0.0
    %4912 = vmatpush1.xpose.msra.mxu0 0.0
    %4913 = vmatprep.subr.mxu0 0.0
    %4914 = vmatpush1.xpose.msra.mxu0 0.0
    %4915 = vmatprep.subr.mxu0 0.0
    %4916 = vmatpush1.xpose.msra.mxu0 0.0
    %4917 = vmatprep.subr.mxu0 0.0
    %4918 = vmatpush1.xpose.msra.mxu0 0.0
    %4919 = vmatprep.subr.mxu0 0.0
    %4920 = vmatpush1.xpose.msra.mxu0 0.0
    %4921 = vmatprep.subr.mxu0 0.0
    %4922 = vmatpush1.xpose.msra.mxu0 0.0
    %4923 = vmatprep.subr.mxu0 0.0
    %4924 = vmatpush1.xpose.msra.mxu0 0.0
    %4925 = vmatprep.subr.mxu0 0.0
    %4926 = vmatpush1.xpose.msra.mxu0 0.0
    %4927 = vmatprep.subr.mxu0 0.0
    %4928 = vmatpush1.xpose.msra.mxu0 0.0
    %4929 = vmatprep.subr.mxu0 0.0
    %4930 = vmatpush1.xpose.msra.mxu0 0.0
    %4931 = vmatprep.subr.mxu0 0.0
    %4932 = vmatpush1.xpose.msra.mxu0 0.0
    %4933 = vmatprep.subr.mxu0 0.0
    %4934 = vmatpush1.xpose.msra.mxu0 0.0
    %4935 = vmatprep.subr.mxu0 0.0
    %4936 = vmatpush1.xpose.msra.mxu0 0.0
    %4937 = vmatprep.subr.mxu0 0.0
    %4938 = vmatpush1.xpose.msra.mxu0 0.0
    %4939 = vmatprep.subr.mxu0 0.0
    %4940 = vmatpush1.xpose.msra.mxu0 0.0
    %4941 = vmatprep.subr.mxu0 0.0
    %4942 = vmatpush1.xpose.msra.mxu0 0.0
    %4943 = vmatprep.subr.mxu0 0.0
    %4944 = vmatpush1.xpose.msra.mxu0 0.0
    %4945 = vmatprep.subr.mxu0 0.0
    %4946 = vmatpush1.xpose.msra.mxu0 0.0
    %4947 = vmatprep.subr.mxu0 0.0
    %4948 = vmatpush1.xpose.msra.mxu0 0.0
    %4949 = vmatprep.mubr.f32.mxu0 0.0
    %4950 = vmatmul.mubr.f32.gmra.mrb[0].mxu0 %v4869
    %v4951 = vpop.f32.mrb[0].mxu0
    %v4952 = vadd.f32 0.0, %v4951
    %v4953 = vpop.f32.mrb[0].mxu0
    %4954 = vmatprep.mubr.f32.mxu0 0.0
    %4955 = vmatmul.mubr.f32.gmra.mrb[0].mxu0 %v4871
    %v4956 = vpop.f32.mrb[0].mxu0
    %v4957 = vadd.f32 0.0, %v4956
    %v4958 = vpop.f32.mrb[0].mxu0
    %4959 = vmatprep.mubr.f32.mxu0 0.0
    %4960 = vmatmul.mubr.f32.gmra.mrb[0].mxu0 %v4873
    %v4961 = vpop.f32.mrb[0].mxu0
    %v4962 = vadd.f32 0.0, %v4961
    %v4963 = vpop.f32.mrb[0].mxu0
    %4964 = vmatprep.mubr.f32.mxu0 0.0
    %4965 = vmatmul.mubr.f32.gmra.mrb[0].mxu0 %v4875
    %v4966 = vpop.f32.mrb[0].mxu0
    %v4967 = vadd.f32 0.0, %v4966
    %v4968 = vpop.f32.mrb[0].mxu0
    %4969 = vdwg.mxu0
    %v4970 = vmul.f32 %v4952, 0.25
    %v4971 = vmul.f32 %v4957, 0.25
    %v4972 = vmul.f32 %v4962, 0.25
    %v4973 = vmul.f32 %v4967, 0.25
    %v4974 = vadd.f32 %v4970, %v225
    %v4975 = vadd.f32 %v4971, %v226
    %v4976 = vadd.f32 %v4972, %v227
    %v4977 = vadd.f32 %v4973, %v228
    %v4978 = vsel %vm473, %v4974, -inf
    %4979 = vmax.xlane.f32.xlu0 %v4978
    %v4980 = vpop.xlane.xlu0 %4979
    %v4981 = vsel %vm473, %v4975, -inf
    %4982 = vmax.xlane.f32.xlu0 %v4981
    %v4983 = vpop.xlane.xlu0 %4982
    %v4984 = vsel %vm473, %v4976, -inf
    %4985 = vmax.xlane.f32.xlu0 %v4984
    %v4986 = vpop.xlane.xlu0 %4985
    %v4987 = vsel %vm473, %v4977, -inf
    %4988 = vmax.xlane.f32.xlu0 %v4987
    %v4989 = vpop.xlane.xlu0 %4988
    %v4990 = vsub.f32 %v4974, %v4980
    %v4991 = vsub.f32 %v4975, %v4983
    %v4992 = vsub.f32 %v4976, %v4986
    %v4993 = vsub.f32 %v4977, %v4989
    %v4994 = vmul.f32 %v4990, 1.442695
    %v4995 = vpow.pop %v4994
    %v4996 = vmul.f32 %v4991, 1.442695
    %v4997 = vpow.pop %v4996
    %v4998 = vmul.f32 %v4992, 1.442695
    %v4999 = vpow.pop %v4998
    %v5000 = vmul.f32 %v4993, 1.442695
    %v5001 = vpow.pop %v5000
    %v5002 = vsel %vm473, %v4995, 0.0
    %5003 = vadd.xlane.f32.xlu0 %v5002
    %v5004 = vpop.xlane.xlu0 %5003
    %v5005 = vsel %vm473, %v4997, 0.0
    %5006 = vadd.xlane.f32.xlu0 %v5005
    %v5007 = vpop.xlane.xlu0 %5006
    %v5008 = vsel %vm473, %v4999, 0.0
    %5009 = vadd.xlane.f32.xlu0 %v5008
    %v5010 = vpop.xlane.xlu0 %5009
    %v5011 = vsel %vm473, %v5001, 0.0
    %5012 = vadd.xlane.f32.xlu0 %v5011
    %v5013 = vpop.xlane.xlu0 %5012
    %v5014 = vrcp.pop %v5004
    %v5015 = vrcp.pop %v5007
    %v5016 = vrcp.pop %v5010
    %v5017 = vrcp.pop %v5013
    %v5018 = vmul.f32 %v4995, %v5014
    %v5019 = vmul.f32 %v4997, %v5015
    %v5020 = vmul.f32 %v4999, %v5016
    %v5021 = vmul.f32 %v5001, %v5017
    %5022 = vrot.lane.b32.xlu0 %v4293, 96
    %v5023 = vpop.permute.xlu0 %5022
    %5024 = vrot.lane.b32.xlu0 %v4297, 96
    %v5025 = vpop.permute.xlu0 %5024
    %5026 = vrot.lane.b32.xlu0 %v4303, 96
    %v5027 = vpop.permute.xlu0 %5026
    %5028 = vrot.lane.b32.xlu0 %v4307, 96
    %v5029 = vpop.permute.xlu0 %5028
    %v5035 = vsel %vm473, %v5018, 0
    %v5038 = vsel %vm473, %v5019, 0
    %v5041 = vsel %vm473, %v5020, 0
    %v5044 = vsel %vm473, %v5021, 0
    %5046 = vmatprep.subr.mxu0 0.0
    %5047 = vmatpush1.msra.mxu0 %v5023
    %5048 = vmatprep.subr.mxu0 0.0
    %5049 = vmatpush1.msra.mxu0 %v5025
    %5050 = vmatprep.subr.mxu0 0.0
    %5051 = vmatpush1.msra.mxu0 %v5027
    %5052 = vmatprep.subr.mxu0 0.0
    %5053 = vmatpush1.msra.mxu0 %v5029
    %5054 = vmatprep.subr.mxu0 0.0
    %5055 = vmatpush1.msra.mxu0 0.0
    %5056 = vmatprep.subr.mxu0 0.0
    %5057 = vmatpush1.msra.mxu0 0.0
    %5058 = vmatprep.subr.mxu0 0.0
    %5059 = vmatpush1.msra.mxu0 0.0
    %5060 = vmatprep.subr.mxu0 0.0
    %5061 = vmatpush1.msra.mxu0 0.0
    %5062 = vmatprep.subr.mxu0 0.0
    %5063 = vmatpush1.msra.mxu0 0.0
    %5064 = vmatprep.subr.mxu0 0.0
    %5065 = vmatpush1.msra.mxu0 0.0
    %5066 = vmatprep.subr.mxu0 0.0
    %5067 = vmatpush1.msra.mxu0 0.0
    %5068 = vmatprep.subr.mxu0 0.0
    %5069 = vmatpush1.msra.mxu0 0.0
    %5070 = vmatprep.subr.mxu0 0.0
    %5071 = vmatpush1.msra.mxu0 0.0
    %5072 = vmatprep.subr.mxu0 0.0
    %5073 = vmatpush1.msra.mxu0 0.0
    %5074 = vmatprep.subr.mxu0 0.0
    %5075 = vmatpush1.msra.mxu0 0.0
    %5076 = vmatprep.subr.mxu0 0.0
    %5077 = vmatpush1.msra.mxu0 0.0
    %5078 = vmatprep.subr.mxu0 0.0
    %5079 = vmatpush1.msra.mxu0 0.0
    %5080 = vmatprep.subr.mxu0 0.0
    %5081 = vmatpush1.msra.mxu0 0.0
    %5082 = vmatprep.subr.mxu0 0.0
    %5083 = vmatpush1.msra.mxu0 0.0
    %5084 = vmatprep.subr.mxu0 0.0
    %5085 = vmatpush1.msra.mxu0 0.0
    %5086 = vmatprep.subr.mxu0 0.0
    %5087 = vmatpush1.msra.mxu0 0.0
    %5088 = vmatprep.subr.mxu0 0.0
    %5089 = vmatpush1.msra.mxu0 0.0
    %5090 = vmatprep.subr.mxu0 0.0
    %5091 = vmatpush1.msra.mxu0 0.0
    %5092 = vmatprep.subr.mxu0 0.0
    %5093 = vmatpush1.msra.mxu0 0.0
    %5094 = vmatprep.subr.mxu0 0.0
    %5095 = vmatpush1.msra.mxu0 0.0
    %5096 = vmatprep.subr.mxu0 0.0
    %5097 = vmatpush1.msra.mxu0 0.0
    %5098 = vmatprep.subr.mxu0 0.0
    %5099 = vmatpush1.msra.mxu0 0.0
    %5100 = vmatprep.subr.mxu0 0.0
    %5101 = vmatpush1.msra.mxu0 0.0
    %5102 = vmatprep.subr.mxu0 0.0
    %5103 = vmatpush1.msra.mxu0 0.0
    %5104 = vmatprep.subr.mxu0 0.0
    %5105 = vmatpush1.msra.mxu0 0.0
    %5106 = vmatprep.subr.mxu0 0.0
    %5107 = vmatpush1.msra.mxu0 0.0
    %5108 = vmatprep.subr.mxu0 0.0
    %5109 = vmatpush1.msra.mxu0 0.0
    %5110 = vmatprep.mubr.f32.mxu0 0.0
    %5111 = vmatmul.mubr.f32.gmra.mrb[0].mxu0 %v5035
    %v5112 = vpop.f32.mrb[0].mxu0
    %v5113 = vadd.f32 0.0, %v5112
    %v5114 = vpop.f32.mrb[0].mxu0
    %5115 = vmatprep.mubr.f32.mxu0 0.0
    %5116 = vmatmul.mubr.f32.gmra.mrb[0].mxu0 %v5038
    %v5117 = vpop.f32.mrb[0].mxu0
    %v5118 = vadd.f32 0.0, %v5117
    %v5119 = vpop.f32.mrb[0].mxu0
    %5120 = vmatprep.mubr.f32.mxu0 0.0
    %5121 = vmatmul.mubr.f32.gmra.mrb[0].mxu0 %v5041
    %v5122 = vpop.f32.mrb[0].mxu0
    %v5123 = vadd.f32 0.0, %v5122
    %v5124 = vpop.f32.mrb[0].mxu0
    %5125 = vmatprep.mubr.f32.mxu0 0.0
    %5126 = vmatmul.mubr.f32.gmra.mrb[0].mxu0 %v5044
    %v5127 = vpop.f32.mrb[0].mxu0
    %v5128 = vadd.f32 0.0, %v5127
    %v5129 = vpop.f32.mrb[0].mxu0
    %5130 = vdwg.mxu0
    %5131 = vrot.lane.b32.xlu0 %v4291, 80
    %v5132 = vpop.permute.xlu0 %5131
    %5133 = vrot.lane.b32.xlu0 %v4295, 80
    %v5134 = vpop.permute.xlu0 %5133
    %5135 = vrot.lane.b32.xlu0 %v4301, 80
    %v5136 = vpop.permute.xlu0 %5135
    %5137 = vrot.lane.b32.xlu0 %v4305, 80
    %v5138 = vpop.permute.xlu0 %5137
    %5139 = vrot.lane.b32.xlu0 %v4291, 16
    %v5140 = vpop.permute.xlu0 %5139
    %5141 = vrot.lane.b32.xlu0 %v4295, 16
    %v5142 = vpop.permute.xlu0 %5141
    %5143 = vrot.lane.b32.xlu0 %v4301, 16
    %v5144 = vpop.permute.xlu0 %5143
    %5145 = vrot.lane.b32.xlu0 %v4305, 16
    %v5146 = vpop.permute.xlu0 %5145
    %v5147 = vsel %vm363, %v5132, 0
    %v5149 = vsel %vm363, %v5134, 0
    %v5151 = vsel %vm363, %v5136, 0
    %v5153 = vsel %vm363, %v5138, 0
    %v5155 = vsel %vm363, %v5140, 0
    %v5157 = vsel %vm363, %v5142, 0
    %v5159 = vsel %vm363, %v5144, 0
    %v5161 = vsel %vm363, %v5146, 0
    %5163 = vmatprep.subr.mxu0 0.0
    %5164 = vmatpush1.xpose.msra.mxu0 %v5155
    %5165 = vmatprep.subr.mxu0 0.0
    %5166 = vmatpush1.xpose.msra.mxu0 %v5157
    %5167 = vmatprep.subr.mxu0 0.0
    %5168 = vmatpush1.xpose.msra.mxu0 %v5159
    %5169 = vmatprep.subr.mxu0 0.0
    %5170 = vmatpush1.xpose.msra.mxu0 %v5161
    %5171 = vmatprep.subr.mxu0 0.0
    %5172 = vmatpush1.xpose.msra.mxu0 0.0
    %5173 = vmatprep.subr.mxu0 0.0
    %5174 = vmatpush1.xpose.msra.mxu0 0.0
    %5175 = vmatprep.subr.mxu0 0.0
    %5176 = vmatpush1.xpose.msra.mxu0 0.0
    %5177 = vmatprep.subr.mxu0 0.0
    %5178 = vmatpush1.xpose.msra.mxu0 0.0
    %5179 = vmatprep.subr.mxu0 0.0
    %5180 = vmatpush1.xpose.msra.mxu0 0.0
    %5181 = vmatprep.subr.mxu0 0.0
    %5182 = vmatpush1.xpose.msra.mxu0 0.0
    %5183 = vmatprep.subr.mxu0 0.0
    %5184 = vmatpush1.xpose.msra.mxu0 0.0
    %5185 = vmatprep.subr.mxu0 0.0
    %5186 = vmatpush1.xpose.msra.mxu0 0.0
    %5187 = vmatprep.subr.mxu0 0.0
    %5188 = vmatpush1.xpose.msra.mxu0 0.0
    %5189 = vmatprep.subr.mxu0 0.0
    %5190 = vmatpush1.xpose.msra.mxu0 0.0
    %5191 = vmatprep.subr.mxu0 0.0
    %5192 = vmatpush1.xpose.msra.mxu0 0.0
    %5193 = vmatprep.subr.mxu0 0.0
    %5194 = vmatpush1.xpose.msra.mxu0 0.0
    %5195 = vmatprep.subr.mxu0 0.0
    %5196 = vmatpush1.xpose.msra.mxu0 0.0
    %5197 = vmatprep.subr.mxu0 0.0
    %5198 = vmatpush1.xpose.msra.mxu0 0.0
    %5199 = vmatprep.subr.mxu0 0.0
    %5200 = vmatpush1.xpose.msra.mxu0 0.0
    %5201 = vmatprep.subr.mxu0 0.0
    %5202 = vmatpush1.xpose.msra.mxu0 0.0
    %5203 = vmatprep.subr.mxu0 0.0
    %5204 = vmatpush1.xpose.msra.mxu0 0.0
    %5205 = vmatprep.subr.mxu0 0.0
    %5206 = vmatpush1.xpose.msra.mxu0 0.0
    %5207 = vmatprep.subr.mxu0 0.0
    %5208 = vmatpush1.xpose.msra.mxu0 0.0
    %5209 = vmatprep.subr.mxu0 0.0
    %5210 = vmatpush1.xpose.msra.mxu0 0.0
    %5211 = vmatprep.subr.mxu0 0.0
    %5212 = vmatpush1.xpose.msra.mxu0 0.0
    %5213 = vmatprep.subr.mxu0 0.0
    %5214 = vmatpush1.xpose.msra.mxu0 0.0
    %5215 = vmatprep.subr.mxu0 0.0
    %5216 = vmatpush1.xpose.msra.mxu0 0.0
    %5217 = vmatprep.subr.mxu0 0.0
    %5218 = vmatpush1.xpose.msra.mxu0 0.0
    %5219 = vmatprep.subr.mxu0 0.0
    %5220 = vmatpush1.xpose.msra.mxu0 0.0
    %5221 = vmatprep.subr.mxu0 0.0
    %5222 = vmatpush1.xpose.msra.mxu0 0.0
    %5223 = vmatprep.subr.mxu0 0.0
    %5224 = vmatpush1.xpose.msra.mxu0 0.0
    %5225 = vmatprep.subr.mxu0 0.0
    %5226 = vmatpush1.xpose.msra.mxu0 0.0
    %5227 = vmatprep.mubr.f32.mxu0 0.0
    %5228 = vmatmul.mubr.f32.gmra.mrb[0].mxu0 %v5147
    %v5229 = vpop.f32.mrb[0].mxu0
    %v5230 = vadd.f32 0.0, %v5229
    %v5231 = vpop.f32.mrb[0].mxu0
    %5232 = vmatprep.mubr.f32.mxu0 0.0
    %5233 = vmatmul.mubr.f32.gmra.mrb[0].mxu0 %v5149
    %v5234 = vpop.f32.mrb[0].mxu0
    %v5235 = vadd.f32 0.0, %v5234
    %v5236 = vpop.f32.mrb[0].mxu0
    %5237 = vmatprep.mubr.f32.mxu0 0.0
    %5238 = vmatmul.mubr.f32.gmra.mrb[0].mxu0 %v5151
    %v5239 = vpop.f32.mrb[0].mxu0
    %v5240 = vadd.f32 0.0, %v5239
    %v5241 = vpop.f32.mrb[0].mxu0
    %5242 = vmatprep.mubr.f32.mxu0 0.0
    %5243 = vmatmul.mubr.f32.gmra.mrb[0].mxu0 %v5153
    %v5244 = vpop.f32.mrb[0].mxu0
    %v5245 = vadd.f32 0.0, %v5244
    %v5246 = vpop.f32.mrb[0].mxu0
    %5247 = vdwg.mxu0
    %v5248 = vmul.f32 %v5230, 0.25
    %v5249 = vmul.f32 %v5235, 0.25
    %v5250 = vmul.f32 %v5240, 0.25
    %v5251 = vmul.f32 %v5245, 0.25
    %v5252 = vadd.f32 %v5248, %v225
    %v5253 = vadd.f32 %v5249, %v226
    %v5254 = vadd.f32 %v5250, %v227
    %v5255 = vadd.f32 %v5251, %v228
    %v5256 = vsel %vm473, %v5252, -inf
    %5257 = vmax.xlane.f32.xlu0 %v5256
    %v5258 = vpop.xlane.xlu0 %5257
    %v5259 = vsel %vm473, %v5253, -inf
    %5260 = vmax.xlane.f32.xlu0 %v5259
    %v5261 = vpop.xlane.xlu0 %5260
    %v5262 = vsel %vm473, %v5254, -inf
    %5263 = vmax.xlane.f32.xlu0 %v5262
    %v5264 = vpop.xlane.xlu0 %5263
    %v5265 = vsel %vm473, %v5255, -inf
    %5266 = vmax.xlane.f32.xlu0 %v5265
    %v5267 = vpop.xlane.xlu0 %5266
    %v5268 = vsub.f32 %v5252, %v5258
    %v5269 = vsub.f32 %v5253, %v5261
    %v5270 = vsub.f32 %v5254, %v5264
    %v5271 = vsub.f32 %v5255, %v5267
    %v5272 = vmul.f32 %v5268, 1.442695
    %v5273 = vpow.pop %v5272
    %v5274 = vmul.f32 %v5269, 1.442695
    %v5275 = vpow.pop %v5274
    %v5276 = vmul.f32 %v5270, 1.442695
    %v5277 = vpow.pop %v5276
    %v5278 = vmul.f32 %v5271, 1.442695
    %v5279 = vpow.pop %v5278
    %v5280 = vsel %vm473, %v5273, 0.0
    %5281 = vadd.xlane.f32.xlu0 %v5280
    %v5282 = vpop.xlane.xlu0 %5281
    %v5283 = vsel %vm473, %v5275, 0.0
    %5284 = vadd.xlane.f32.xlu0 %v5283
    %v5285 = vpop.xlane.xlu0 %5284
    %v5286 = vsel %vm473, %v5277, 0.0
    %5287 = vadd.xlane.f32.xlu0 %v5286
    %v5288 = vpop.xlane.xlu0 %5287
    %v5289 = vsel %vm473, %v5279, 0.0
    %5290 = vadd.xlane.f32.xlu0 %v5289
    %v5291 = vpop.xlane.xlu0 %5290
    %v5292 = vrcp.pop %v5282
    %v5293 = vrcp.pop %v5285
    %v5294 = vrcp.pop %v5288
    %v5295 = vrcp.pop %v5291
    %v5296 = vmul.f32 %v5273, %v5292
    %v5297 = vmul.f32 %v5275, %v5293
    %v5298 = vmul.f32 %v5277, %v5294
    %v5299 = vmul.f32 %v5279, %v5295
    %5300 = vrot.lane.b32.xlu0 %v4293, 80
    %v5301 = vpop.permute.xlu0 %5300
    %5302 = vrot.lane.b32.xlu0 %v4297, 80
    %v5303 = vpop.permute.xlu0 %5302
    %5304 = vrot.lane.b32.xlu0 %v4303, 80
    %v5305 = vpop.permute.xlu0 %5304
    %5306 = vrot.lane.b32.xlu0 %v4307, 80
    %v5307 = vpop.permute.xlu0 %5306
    %v5313 = vsel %vm473, %v5296, 0
    %v5316 = vsel %vm473, %v5297, 0
    %v5319 = vsel %vm473, %v5298, 0
    %v5322 = vsel %vm473, %v5299, 0
    %5324 = vmatprep.subr.mxu0 0.0
    %5325 = vmatpush1.msra.mxu0 %v5301
    %5326 = vmatprep.subr.mxu0 0.0
    %5327 = vmatpush1.msra.mxu0 %v5303
    %5328 = vmatprep.subr.mxu0 0.0
    %5329 = vmatpush1.msra.mxu0 %v5305
    %5330 = vmatprep.subr.mxu0 0.0
    %5331 = vmatpush1.msra.mxu0 %v5307
    %5332 = vmatprep.subr.mxu0 0.0
    %5333 = vmatpush1.msra.mxu0 0.0
    %5334 = vmatprep.subr.mxu0 0.0
    %5335 = vmatpush1.msra.mxu0 0.0
    %5336 = vmatprep.subr.mxu0 0.0
    %5337 = vmatpush1.msra.mxu0 0.0
    %5338 = vmatprep.subr.mxu0 0.0
    %5339 = vmatpush1.msra.mxu0 0.0
    %5340 = vmatprep.subr.mxu0 0.0
    %5341 = vmatpush1.msra.mxu0 0.0
    %5342 = vmatprep.subr.mxu0 0.0
    %5343 = vmatpush1.msra.mxu0 0.0
    %5344 = vmatprep.subr.mxu0 0.0
    %5345 = vmatpush1.msra.mxu0 0.0
    %5346 = vmatprep.subr.mxu0 0.0
    %5347 = vmatpush1.msra.mxu0 0.0
    %5348 = vmatprep.subr.mxu0 0.0
    %5349 = vmatpush1.msra.mxu0 0.0
    %5350 = vmatprep.subr.mxu0 0.0
    %5351 = vmatpush1.msra.mxu0 0.0
    %5352 = vmatprep.subr.mxu0 0.0
    %5353 = vmatpush1.msra.mxu0 0.0
    %5354 = vmatprep.subr.mxu0 0.0
    %5355 = vmatpush1.msra.mxu0 0.0
    %5356 = vmatprep.subr.mxu0 0.0
    %5357 = vmatpush1.msra.mxu0 0.0
    %5358 = vmatprep.subr.mxu0 0.0
    %5359 = vmatpush1.msra.mxu0 0.0
    %5360 = vmatprep.subr.mxu0 0.0
    %5361 = vmatpush1.msra.mxu0 0.0
    %5362 = vmatprep.subr.mxu0 0.0
    %5363 = vmatpush1.msra.mxu0 0.0
    %5364 = vmatprep.subr.mxu0 0.0
    %5365 = vmatpush1.msra.mxu0 0.0
    %5366 = vmatprep.subr.mxu0 0.0
    %5367 = vmatpush1.msra.mxu0 0.0
    %5368 = vmatprep.subr.mxu0 0.0
    %5369 = vmatpush1.msra.mxu0 0.0
    %5370 = vmatprep.subr.mxu0 0.0
    %5371 = vmatpush1.msra.mxu0 0.0
    %5372 = vmatprep.subr.mxu0 0.0
    %5373 = vmatpush1.msra.mxu0 0.0
    %5374 = vmatprep.subr.mxu0 0.0
    %5375 = vmatpush1.msra.mxu0 0.0
    %5376 = vmatprep.subr.mxu0 0.0
    %5377 = vmatpush1.msra.mxu0 0.0
    %5378 = vmatprep.subr.mxu0 0.0
    %5379 = vmatpush1.msra.mxu0 0.0
    %5380 = vmatprep.subr.mxu0 0.0
    %5381 = vmatpush1.msra.mxu0 0.0
    %5382 = vmatprep.subr.mxu0 0.0
    %5383 = vmatpush1.msra.mxu0 0.0
    %5384 = vmatprep.subr.mxu0 0.0
    %5385 = vmatpush1.msra.mxu0 0.0
    %5386 = vmatprep.subr.mxu0 0.0
    %5387 = vmatpush1.msra.mxu0 0.0
    %5388 = vmatprep.mubr.f32.mxu0 0.0
    %5389 = vmatmul.mubr.f32.gmra.mrb[0].mxu0 %v5313
    %v5390 = vpop.f32.mrb[0].mxu0
    %v5391 = vadd.f32 0.0, %v5390
    %v5392 = vpop.f32.mrb[0].mxu0
    %5393 = vmatprep.mubr.f32.mxu0 0.0
    %5394 = vmatmul.mubr.f32.gmra.mrb[0].mxu0 %v5316
    %v5395 = vpop.f32.mrb[0].mxu0
    %v5396 = vadd.f32 0.0, %v5395
    %v5397 = vpop.f32.mrb[0].mxu0
    %5398 = vmatprep.mubr.f32.mxu0 0.0
    %5399 = vmatmul.mubr.f32.gmra.mrb[0].mxu0 %v5319
    %v5400 = vpop.f32.mrb[0].mxu0
    %v5401 = vadd.f32 0.0, %v5400
    %v5402 = vpop.f32.mrb[0].mxu0
    %5403 = vmatprep.mubr.f32.mxu0 0.0
    %5404 = vmatmul.mubr.f32.gmra.mrb[0].mxu0 %v5322
    %v5405 = vpop.f32.mrb[0].mxu0
    %v5406 = vadd.f32 0.0, %v5405
    %v5407 = vpop.f32.mrb[0].mxu0
    %5408 = vdwg.mxu0
    %5413 = vrot.lane.b32.xlu0 %v4835, 16
    %v5414 = vpop.permute.xlu0 %5413
    %5415 = vrot.lane.b32.xlu0 %v4840, 16
    %v5416 = vpop.permute.xlu0 %5415
    %5417 = vrot.lane.b32.xlu0 %v4845, 16
    %v5418 = vpop.permute.xlu0 %5417
    %5419 = vrot.lane.b32.xlu0 %v4850, 16
    %v5420 = vpop.permute.xlu0 %5419
    %5429 = vrot.lane.b32.xlu0 %v5113, 32
    %v5430 = vpop.permute.xlu0 %5429
    %5431 = vrot.lane.b32.xlu0 %v5118, 32
    %v5432 = vpop.permute.xlu0 %5431
    %5433 = vrot.lane.b32.xlu0 %v5123, 32
    %v5434 = vpop.permute.xlu0 %5433
    %5435 = vrot.lane.b32.xlu0 %v5128, 32
    %v5436 = vpop.permute.xlu0 %5435
    %5445 = vrot.lane.b32.xlu0 %v5391, 48
    %v5446 = vpop.permute.xlu0 %5445
    %5447 = vrot.lane.b32.xlu0 %v5396, 48
    %v5448 = vpop.permute.xlu0 %5447
    %5449 = vrot.lane.b32.xlu0 %v5401, 48
    %v5450 = vpop.permute.xlu0 %5449
    %5451 = vrot.lane.b32.xlu0 %v5406, 48
    %v5452 = vpop.permute.xlu0 %5451
    %v5457 = vsel %vm363, %v4553, %v5414
    %v5458 = vsel %vm363, %v4558, %v5416
    %v5459 = vsel %vm363, %v4563, %v5418
    %v5460 = vsel %vm363, %v4568, %v5420
    %v5461 = vsel %vm473, %v5457, %v5430
    %v5462 = vsel %vm473, %v5458, %v5432
    %v5463 = vsel %vm473, %v5459, %v5434
    %v5464 = vsel %vm473, %v5460, %v5436
    %v5465 = vsel %vm1509, %v5461, %v5446
    %v5466 = vsel %vm1509, %v5462, %v5448
    %v5467 = vsel %vm1509, %v5463, %v5450
    %v5468 = vsel %vm1509, %v5464, %v5452
    %v5469 = vpack.c.bf16 %v5466, %v5465
    %v5470 = vpack.c.bf16 %v5468, %v5467
    %s5471 = scalar_lea.vmem %s9, 32
    %v5472 = vld [vmem:[%s5471] sm:$0xf]
    %v5473 = vld [vmem:[%s5471 + $0x4] sm:$0xf]
    %v5474 = vld [vmem:[%s5471 + $0x8] sm:$0xf]
    %v5475 = vld [vmem:[%s5471 + $0xc] sm:$0xf]
    %v5476 = vld [vmem:[%s5471 + $0x10] sm:$0xf]
    %v5477 = vld [vmem:[%s5471 + $0x14] sm:$0xf]
    %v5478 = vld [vmem:[%s5471 + $0x18] sm:$0xf]
    %v5479 = vld [vmem:[%s5471 + $0x1c] sm:$0xf]
    %s5480 = scalar_lea.vmem %s10, 1
    %v5481 = vld [vmem:[%s5480] sm:$0x1]
    %v5483 = vlaneseq
    %v5484 = vshrl.u32 %v5483, 7
    %v5485 = vsub.s32 0, %v5484
    %v5486 = vrot.slane %v5481, %v5485
    %v5496 = vunpack.c.l.b16 %v5472
    %v5497 = vunpack.c.l.b16 %v5473
    %v5498 = vunpack.c.l.b16 %v5474
    %v5499 = vunpack.c.l.b16 %v5475
    %v5500 = vunpack.c.l.b16 %v5476
    %v5501 = vunpack.c.l.b16 %v5477
    %v5502 = vunpack.c.l.b16 %v5478
    %v5503 = vunpack.c.l.b16 %v5479
    %v5504 = vpack.c.b16 %v5497, %v5496
    %v5505 = vpack.c.b16 %v5499, %v5498
    %v5506 = vpack.c.b16 %v5501, %v5500
    %v5507 = vpack.c.b16 %v5503, %v5502
    %v5513 = vsel %vm291, %v5469, 0
    %v5516 = vsel %vm291, %v5470, 0
    %5518 = vmatprep.subr.bf16.mxu0 0
    %5519 = vmatpush1.bf16.msra.mxu0 %v5504
    %5520 = vmatprep.subr.bf16.mxu0 0
    %5521 = vmatpush1.bf16.msra.mxu0 %v5505
    %5522 = vmatprep.subr.bf16.mxu0 0
    %5523 = vmatpush1.bf16.msra.mxu0 %v5506
    %5524 = vmatprep.subr.bf16.mxu0 0
    %5525 = vmatpush1.bf16.msra.mxu0 %v5507
    %5526 = vmatprep.subr.bf16.mxu0 0
    %5527 = vmatpush1.bf16.msra.mxu0 0
    %5528 = vmatprep.subr.bf16.mxu0 0
    %5529 = vmatpush1.bf16.msra.mxu0 0
    %5530 = vmatprep.subr.bf16.mxu0 0
    %5531 = vmatpush1.bf16.msra.mxu0 0
    %5532 = vmatprep.subr.bf16.mxu0 0
    %5533 = vmatpush1.bf16.msra.mxu0 0
    %5534 = vmatprep.subr.bf16.mxu0 0
    %5535 = vmatpush1.bf16.msra.mxu0 0
    %5536 = vmatprep.subr.bf16.mxu0 0
    %5537 = vmatpush1.bf16.msra.mxu0 0
    %5538 = vmatprep.subr.bf16.mxu0 0
    %5539 = vmatpush1.bf16.msra.mxu0 0
    %5540 = vmatprep.subr.bf16.mxu0 0
    %5541 = vmatpush1.bf16.msra.mxu0 0
    %5542 = vmatprep.subr.bf16.mxu0 0
    %5543 = vmatpush1.bf16.msra.mxu0 0
    %5544 = vmatprep.subr.bf16.mxu0 0
    %5545 = vmatpush1.bf16.msra.mxu0 0
    %5546 = vmatprep.subr.bf16.mxu0 0
    %5547 = vmatpush1.bf16.msra.mxu0 0
    %5548 = vmatprep.subr.bf16.mxu0 0
    %5549 = vmatpush1.bf16.msra.mxu0 0
    %5550 = vmatprep.mubr.bf16.mxu0 0
    %5551 = vmatmul.mubr.bf16.gmra.mrb[0].mxu0 %v5513
    %v5552 = vpop.f32.mrb[0].mxu0
    %v5553 = vadd.f32 %v5486, %v5552
    %v5554 = vpop.f32.mrb[0].mxu0
    %v5555 = vpop.f32.mrb[0].mxu0
    %v5556 = vadd.f32 %v5486, %v5555
    %v5557 = vpop.f32.mrb[0].mxu0
    %5558 = vmatprep.mubr.bf16.mxu0 0
    %5559 = vmatmul.mubr.bf16.gmra.mrb[0].mxu0 %v5516
    %v5560 = vpop.f32.mrb[0].mxu0
    %v5561 = vadd.f32 %v5486, %v5560
    %v5562 = vpop.f32.mrb[0].mxu0
    %v5563 = vpop.f32.mrb[0].mxu0
    %v5564 = vadd.f32 %v5486, %v5563
    %v5565 = vpop.f32.mrb[0].mxu0
    %5566 = vdwg.mxu0
    %v5567 = vadd.f32 %v4182, %v5553
    %v5568 = vadd.f32 %v4183, %v5556
    %v5569 = vadd.f32 %v4184, %v5561
    %v5570 = vadd.f32 %v4185, %v5564
    %s5571 = scalar_lea.vmem %s11, 1
    %v5572 = vld [vmem:[%s5571] sm:$0x1]
    %s5573 = scalar_lea.vmem %s12, 1
    %v5574 = vld [vmem:[%s5573] sm:$0x1]
    %v5575 = vsel %vm291, %v5567, 0.0
    %5576 = vadd.xlane.f32.xlu0 %v5575
    %v5577 = vpop.xlane.xlu0 %5576
    %v5578 = vsel %vm291, %v5568, 0.0
    %5579 = vadd.xlane.f32.xlu0 %v5578
    %v5580 = vpop.xlane.xlu0 %5579
    %v5581 = vsel %vm291, %v5569, 0.0
    %5582 = vadd.xlane.f32.xlu0 %v5581
    %v5583 = vpop.xlane.xlu0 %5582
    %v5584 = vsel %vm291, %v5570, 0.0
    %5585 = vadd.xlane.f32.xlu0 %v5584
    %v5586 = vpop.xlane.xlu0 %5585
    %v5587 = vmul.f32 %v5577, %v1628
    %v5588 = vmul.f32 %v5580, %v1628
    %v5589 = vmul.f32 %v5583, %v1628
    %v5590 = vmul.f32 %v5586, %v1628
    %v5591 = vsub.f32 %v5567, %v5587
    %v5592 = vsub.f32 %v5568, %v5588
    %v5593 = vsub.f32 %v5569, %v5589
    %v5594 = vsub.f32 %v5570, %v5590
    %v5595 = vmul.f32 %v5591, %v5591
    %v5596 = vmul.f32 %v5592, %v5592
    %v5597 = vmul.f32 %v5593, %v5593
    %v5598 = vmul.f32 %v5594, %v5594
    %v5599 = vsel %vm291, %v5595, 0.0
    %5600 = vadd.xlane.f32.xlu0 %v5599
    %v5601 = vpop.xlane.xlu0 %5600
    %v5602 = vsel %vm291, %v5596, 0.0
    %5603 = vadd.xlane.f32.xlu0 %v5602
    %v5604 = vpop.xlane.xlu0 %5603
    %v5605 = vsel %vm291, %v5597, 0.0
    %5606 = vadd.xlane.f32.xlu0 %v5605
    %v5607 = vpop.xlane.xlu0 %5606
    %v5608 = vsel %vm291, %v5598, 0.0
    %5609 = vadd.xlane.f32.xlu0 %v5608
    %v5610 = vpop.xlane.xlu0 %5609
    %v5611 = vmul.f32 %v5601, %v1628
    %v5612 = vmul.f32 %v5604, %v1628
    %v5613 = vmul.f32 %v5607, %v1628
    %v5614 = vmul.f32 %v5610, %v1628
    %v5615 = vadd.f32 %v5611, 1e-05
    %v5616 = vadd.f32 %v5612, 1e-05
    %v5617 = vadd.f32 %v5613, 1e-05
    %v5618 = vadd.f32 %v5614, 1e-05
    %v5619 = vrsqrt.pop %v5615
    %v5620 = vrsqrt.pop %v5616
    %v5621 = vrsqrt.pop %v5617
    %v5622 = vrsqrt.pop %v5618
    %v5623 = vmul.f32 %v5591, %v5619
    %v5624 = vmul.f32 %v5592, %v5620
    %v5625 = vmul.f32 %v5593, %v5621
    %v5626 = vmul.f32 %v5594, %v5622
    %v5628 = vlaneseq
    %v5629 = vshrl.u32 %v5628, 7
    %v5630 = vsub.s32 0, %v5629
    %v5631 = vrot.slane %v5572, %v5630
    %v5633 = vmul.f32 %v5623, %v5631
    %v5634 = vmul.f32 %v5624, %v5631
    %v5635 = vmul.f32 %v5625, %v5631
    %v5636 = vmul.f32 %v5626, %v5631
    %v5638 = vlaneseq
    %v5639 = vshrl.u32 %v5638, 7
    %v5640 = vsub.s32 0, %v5639
    %v5641 = vrot.slane %v5574, %v5640
    %v5643 = vadd.f32 %v5633, %v5641
    %v5644 = vadd.f32 %v5634, %v5641
    %v5645 = vadd.f32 %v5635, %v5641
    %v5646 = vadd.f32 %v5636, %v5641
    %v5647 = vpack.c.bf16 %v5644, %v5643
    %v5648 = vpack.c.bf16 %v5646, %v5645
    %s5649 = scalar_lea.vmem %s13, 512
    %v5650 = vld [vmem:[%s5649] sm:$0xff]
    %v5651 = vld [vmem:[%s5649 + $0x8] sm:$0xff]
    %v5652 = vld [vmem:[%s5649 + $0x10] sm:$0xff]
    %v5653 = vld [vmem:[%s5649 + $0x18] sm:$0xff]
    %v5654 = vld [vmem:[%s5649 + $0x20] sm:$0xff]
    %v5655 = vld [vmem:[%s5649 + $0x28] sm:$0xff]
    %v5656 = vld [vmem:[%s5649 + $0x30] sm:$0xff]
    %v5657 = vld [vmem:[%s5649 + $0x38] sm:$0xff]
    %v5658 = vld [vmem:[%s5649 + $0x40] sm:$0xff]
    %v5659 = vld [vmem:[%s5649 + $0x48] sm:$0xff]
    %v5660 = vld [vmem:[%s5649 + $0x50] sm:$0xff]
    %v5661 = vld [vmem:[%s5649 + $0x58] sm:$0xff]
    %v5662 = vld [vmem:[%s5649 + $0x60] sm:$0xff]
    %v5663 = vld [vmem:[%s5649 + $0x68] sm:$0xff]
    %v5664 = vld [vmem:[%s5649 + $0x70] sm:$0xff]
    %v5665 = vld [vmem:[%s5649 + $0x78] sm:$0xff]
    %v5666 = vld [vmem:[%s5649 + $0x80] sm:$0xff]
    %v5667 = vld [vmem:[%s5649 + $0x88] sm:$0xff]
    %v5668 = vld [vmem:[%s5649 + $0x90] sm:$0xff]
    %v5669 = vld [vmem:[%s5649 + $0x98] sm:$0xff]
    %v5670 = vld [vmem:[%s5649 + $0xa0] sm:$0xff]
    %v5671 = vld [vmem:[%s5649 + $0xa8] sm:$0xff]
    %v5672 = vld [vmem:[%s5649 + $0xb0] sm:$0xff]
    %v5673 = vld [vmem:[%s5649 + $0xb8] sm:$0xff]
    %v5674 = vld [vmem:[%s5649 + $0xc0] sm:$0xff]
    %v5675 = vld [vmem:[%s5649 + $0xc8] sm:$0xff]
    %v5676 = vld [vmem:[%s5649 + $0xd0] sm:$0xff]
    %v5677 = vld [vmem:[%s5649 + $0xd8] sm:$0xff]
    %v5678 = vld [vmem:[%s5649 + $0xe0] sm:$0xff]
    %v5679 = vld [vmem:[%s5649 + $0xe8] sm:$0xff]
    %v5680 = vld [vmem:[%s5649 + $0xf0] sm:$0xff]
    %v5681 = vld [vmem:[%s5649 + $0xf8] sm:$0xff]
    %v5682 = vld [vmem:[%s5649 + $0x100] sm:$0xff]
    %v5683 = vld [vmem:[%s5649 + $0x108] sm:$0xff]
    %v5684 = vld [vmem:[%s5649 + $0x110] sm:$0xff]
    %v5685 = vld [vmem:[%s5649 + $0x118] sm:$0xff]
    %v5686 = vld [vmem:[%s5649 + $0x120] sm:$0xff]
    %v5687 = vld [vmem:[%s5649 + $0x128] sm:$0xff]
    %v5688 = vld [vmem:[%s5649 + $0x130] sm:$0xff]
    %v5689 = vld [vmem:[%s5649 + $0x138] sm:$0xff]
    %v5690 = vld [vmem:[%s5649 + $0x140] sm:$0xff]
    %v5691 = vld [vmem:[%s5649 + $0x148] sm:$0xff]
    %v5692 = vld [vmem:[%s5649 + $0x150] sm:$0xff]
    %v5693 = vld [vmem:[%s5649 + $0x158] sm:$0xff]
    %v5694 = vld [vmem:[%s5649 + $0x160] sm:$0xff]
    %v5695 = vld [vmem:[%s5649 + $0x168] sm:$0xff]
    %v5696 = vld [vmem:[%s5649 + $0x170] sm:$0xff]
    %v5697 = vld [vmem:[%s5649 + $0x178] sm:$0xff]
    %v5698 = vld [vmem:[%s5649 + $0x180] sm:$0xff]
    %v5699 = vld [vmem:[%s5649 + $0x188] sm:$0xff]
    %v5700 = vld [vmem:[%s5649 + $0x190] sm:$0xff]
    %v5701 = vld [vmem:[%s5649 + $0x198] sm:$0xff]
    %v5702 = vld [vmem:[%s5649 + $0x1a0] sm:$0xff]
    %v5703 = vld [vmem:[%s5649 + $0x1a8] sm:$0xff]
    %v5704 = vld [vmem:[%s5649 + $0x1b0] sm:$0xff]
    %v5705 = vld [vmem:[%s5649 + $0x1b8] sm:$0xff]
    %v5706 = vld [vmem:[%s5649 + $0x1c0] sm:$0xff]
    %v5707 = vld [vmem:[%s5649 + $0x1c8] sm:$0xff]
    %v5708 = vld [vmem:[%s5649 + $0x1d0] sm:$0xff]
    %v5709 = vld [vmem:[%s5649 + $0x1d8] sm:$0xff]
    %v5710 = vld [vmem:[%s5649 + $0x1e0] sm:$0xff]
    %v5711 = vld [vmem:[%s5649 + $0x1e8] sm:$0xff]
    %v5712 = vld [vmem:[%s5649 + $0x1f0] sm:$0xff]
    %v5713 = vld [vmem:[%s5649 + $0x1f8] sm:$0xff]
    %s5714 = scalar_lea.vmem %s14, 16
    %v5715 = vld [vmem:[%s5714] sm:$0xff]
    %v5716 = vld [vmem:[%s5714 + $0x8] sm:$0xff]
    %v5719 = vlaneseq
    %v5720 = vshrl.u32 %v5719, 7
    %v5721 = vsub.s32 0, %v5720
    %v5722 = vrot.slane %v5715, %v5721
    %v5723 = vlaneseq
    %v5724 = vshrl.u32 %v5723, 7
    %v5725 = vsub.s32 1, %v5724
    %v5726 = vrot.slane %v5715, %v5725
    %v5727 = vlaneseq
    %v5728 = vshrl.u32 %v5727, 7
    %v5729 = vsub.s32 2, %v5728
    %v5730 = vrot.slane %v5715, %v5729
    %v5731 = vlaneseq
    %v5732 = vshrl.u32 %v5731, 7
    %v5733 = vsub.s32 3, %v5732
    %v5734 = vrot.slane %v5715, %v5733
    %v5735 = vlaneseq
    %v5736 = vshrl.u32 %v5735, 7
    %v5737 = vsub.s32 4, %v5736
    %v5738 = vrot.slane %v5715, %v5737
    %v5739 = vlaneseq
    %v5740 = vshrl.u32 %v5739, 7
    %v5741 = vsub.s32 5, %v5740
    %v5742 = vrot.slane %v5715, %v5741
    %v5743 = vlaneseq
    %v5744 = vshrl.u32 %v5743, 7
    %v5745 = vsub.s32 6, %v5744
    %v5746 = vrot.slane %v5715, %v5745
    %v5747 = vlaneseq
    %v5748 = vshrl.u32 %v5747, 7
    %v5749 = vsub.s32 7, %v5748
    %v5750 = vrot.slane %v5715, %v5749
    %v5751 = vlaneseq
    %v5752 = vshrl.u32 %v5751, 7
    %v5753 = vsub.s32 0, %v5752
    %v5754 = vrot.slane %v5716, %v5753
    %v5755 = vlaneseq
    %v5756 = vshrl.u32 %v5755, 7
    %v5757 = vsub.s32 1, %v5756
    %v5758 = vrot.slane %v5716, %v5757
    %v5759 = vlaneseq
    %v5760 = vshrl.u32 %v5759, 7
    %v5761 = vsub.s32 2, %v5760
    %v5762 = vrot.slane %v5716, %v5761
    %v5763 = vlaneseq
    %v5764 = vshrl.u32 %v5763, 7
    %v5765 = vsub.s32 3, %v5764
    %v5766 = vrot.slane %v5716, %v5765
    %v5767 = vlaneseq
    %v5768 = vshrl.u32 %v5767, 7
    %v5769 = vsub.s32 4, %v5768
    %v5770 = vrot.slane %v5716, %v5769
    %v5771 = vlaneseq
    %v5772 = vshrl.u32 %v5771, 7
    %v5773 = vsub.s32 5, %v5772
    %v5774 = vrot.slane %v5716, %v5773
    %v5775 = vlaneseq
    %v5776 = vshrl.u32 %v5775, 7
    %v5777 = vsub.s32 6, %v5776
    %v5778 = vrot.slane %v5716, %v5777
    %v5779 = vlaneseq
    %v5780 = vshrl.u32 %v5779, 7
    %v5781 = vsub.s32 7, %v5780
    %v5782 = vrot.slane %v5716, %v5781
    %v5863 = vunpack.c.l.b16 %v5650
    %v5864 = vunpack.c.h.b16 %v5650
    %v5865 = vunpack.c.l.b16 %v5651
    %v5866 = vunpack.c.h.b16 %v5651
    %v5867 = vunpack.c.l.b16 %v5652
    %v5868 = vunpack.c.h.b16 %v5652
    %v5869 = vunpack.c.l.b16 %v5653
    %v5870 = vunpack.c.h.b16 %v5653
    %v5871 = vunpack.c.l.b16 %v5654
    %v5872 = vunpack.c.h.b16 %v5654
    %v5873 = vunpack.c.l.b16 %v5655
    %v5874 = vunpack.c.h.b16 %v5655
    %v5875 = vunpack.c.l.b16 %v5656
    %v5876 = vunpack.c.h.b16 %v5656
    %v5877 = vunpack.c.l.b16 %v5657
    %v5878 = vunpack.c.h.b16 %v5657
    %v5879 = vunpack.c.l.b16 %v5658
    %v5880 = vunpack.c.h.b16 %v5658
    %v5881 = vunpack.c.l.b16 %v5659
    %v5882 = vunpack.c.h.b16 %v5659
    %v5883 = vunpack.c.l.b16 %v5660
    %v5884 = vunpack.c.h.b16 %v5660
    %v5885 = vunpack.c.l.b16 %v5661
    %v5886 = vunpack.c.h.b16 %v5661
    %v5887 = vunpack.c.l.b16 %v5662
    %v5888 = vunpack.c.h.b16 %v5662
    %v5889 = vunpack.c.l.b16 %v5663
    %v5890 = vunpack.c.h.b16 %v5663
    %v5891 = vunpack.c.l.b16 %v5664
    %v5892 = vunpack.c.h.b16 %v5664
    %v5893 = vunpack.c.l.b16 %v5665
    %v5894 = vunpack.c.h.b16 %v5665
    %v5895 = vunpack.c.l.b16 %v5666
    %v5896 = vunpack.c.h.b16 %v5666
    %v5897 = vunpack.c.l.b16 %v5667
    %v5898 = vunpack.c.h.b16 %v5667
    %v5899 = vunpack.c.l.b16 %v5668
    %v5900 = vunpack.c.h.b16 %v5668
    %v5901 = vunpack.c.l.b16 %v5669
    %v5902 = vunpack.c.h.b16 %v5669
    %v5903 = vunpack.c.l.b16 %v5670
    %v5904 = vunpack.c.h.b16 %v5670
    %v5905 = vunpack.c.l.b16 %v5671
    %v5906 = vunpack.c.h.b16 %v5671
    %v5907 = vunpack.c.l.b16 %v5672
    %v5908 = vunpack.c.h.b16 %v5672
    %v5909 = vunpack.c.l.b16 %v5673
    %v5910 = vunpack.c.h.b16 %v5673
    %v5911 = vunpack.c.l.b16 %v5674
    %v5912 = vunpack.c.h.b16 %v5674
    %v5913 = vunpack.c.l.b16 %v5675
    %v5914 = vunpack.c.h.b16 %v5675
    %v5915 = vunpack.c.l.b16 %v5676
    %v5916 = vunpack.c.h.b16 %v5676
    %v5917 = vunpack.c.l.b16 %v5677
    %v5918 = vunpack.c.h.b16 %v5677
    %v5919 = vunpack.c.l.b16 %v5678
    %v5920 = vunpack.c.h.b16 %v5678
    %v5921 = vunpack.c.l.b16 %v5679
    %v5922 = vunpack.c.h.b16 %v5679
    %v5923 = vunpack.c.l.b16 %v5680
    %v5924 = vunpack.c.h.b16 %v5680
    %v5925 = vunpack.c.l.b16 %v5681
    %v5926 = vunpack.c.h.b16 %v5681
    %v5927 = vunpack.c.l.b16 %v5682
    %v5928 = vunpack.c.h.b16 %v5682
    %v5929 = vunpack.c.l.b16 %v5683
    %v5930 = vunpack.c.h.b16 %v5683
    %v5931 = vunpack.c.l.b16 %v5684
    %v5932 = vunpack.c.h.b16 %v5684
    %v5933 = vunpack.c.l.b16 %v5685
    %v5934 = vunpack.c.h.b16 %v5685
    %v5935 = vunpack.c.l.b16 %v5686
    %v5936 = vunpack.c.h.b16 %v5686
    %v5937 = vunpack.c.l.b16 %v5687
    %v5938 = vunpack.c.h.b16 %v5687
    %v5939 = vunpack.c.l.b16 %v5688
    %v5940 = vunpack.c.h.b16 %v5688
    %v5941 = vunpack.c.l.b16 %v5689
    %v5942 = vunpack.c.h.b16 %v5689
    %v5943 = vunpack.c.l.b16 %v5690
    %v5944 = vunpack.c.h.b16 %v5690
    %v5945 = vunpack.c.l.b16 %v5691
    %v5946 = vunpack.c.h.b16 %v5691
    %v5947 = vunpack.c.l.b16 %v5692
    %v5948 = vunpack.c.h.b16 %v5692
    %v5949 = vunpack.c.l.b16 %v5693
    %v5950 = vunpack.c.h.b16 %v5693
    %v5951 = vunpack.c.l.b16 %v5694
    %v5952 = vunpack.c.h.b16 %v5694
    %v5953 = vunpack.c.l.b16 %v5695
    %v5954 = vunpack.c.h.b16 %v5695
    %v5955 = vunpack.c.l.b16 %v5696
    %v5956 = vunpack.c.h.b16 %v5696
    %v5957 = vunpack.c.l.b16 %v5697
    %v5958 = vunpack.c.h.b16 %v5697
    %v5959 = vunpack.c.l.b16 %v5698
    %v5960 = vunpack.c.h.b16 %v5698
    %v5961 = vunpack.c.l.b16 %v5699
    %v5962 = vunpack.c.h.b16 %v5699
    %v5963 = vunpack.c.l.b16 %v5700
    %v5964 = vunpack.c.h.b16 %v5700
    %v5965 = vunpack.c.l.b16 %v5701
    %v5966 = vunpack.c.h.b16 %v5701
    %v5967 = vunpack.c.l.b16 %v5702
    %v5968 = vunpack.c.h.b16 %v5702
    %v5969 = vunpack.c.l.b16 %v5703
    %v5970 = vunpack.c.h.b16 %v5703
    %v5971 = vunpack.c.l.b16 %v5704
    %v5972 = vunpack.c.h.b16 %v5704
    %v5973 = vunpack.c.l.b16 %v5705
    %v5974 = vunpack.c.h.b16 %v5705
    %v5975 = vunpack.c.l.b16 %v5706
    %v5976 = vunpack.c.h.b16 %v5706
    %v5977 = vunpack.c.l.b16 %v5707
    %v5978 = vunpack.c.h.b16 %v5707
    %v5979 = vunpack.c.l.b16 %v5708
    %v5980 = vunpack.c.h.b16 %v5708
    %v5981 = vunpack.c.l.b16 %v5709
    %v5982 = vunpack.c.h.b16 %v5709
    %v5983 = vunpack.c.l.b16 %v5710
    %v5984 = vunpack.c.h.b16 %v5710
    %v5985 = vunpack.c.l.b16 %v5711
    %v5986 = vunpack.c.h.b16 %v5711
    %v5987 = vunpack.c.l.b16 %v5712
    %v5988 = vunpack.c.h.b16 %v5712
    %v5989 = vunpack.c.l.b16 %v5713
    %v5990 = vunpack.c.h.b16 %v5713
    %v5991 = vpack.c.b16 %v5879, %v5863
    %v5992 = vpack.c.b16 %v5880, %v5864
    %v5993 = vpack.c.b16 %v5881, %v5865
    %v5994 = vpack.c.b16 %v5882, %v5866
    %v5995 = vpack.c.b16 %v5883, %v5867
    %v5996 = vpack.c.b16 %v5884, %v5868
    %v5997 = vpack.c.b16 %v5885, %v5869
    %v5998 = vpack.c.b16 %v5886, %v5870
    %v5999 = vpack.c.b16 %v5887, %v5871
    %v6000 = vpack.c.b16 %v5888, %v5872
    %v6001 = vpack.c.b16 %v5889, %v5873
    %v6002 = vpack.c.b16 %v5890, %v5874
    %v6003 = vpack.c.b16 %v5891, %v5875
    %v6004 = vpack.c.b16 %v5892, %v5876
    %v6005 = vpack.c.b16 %v5893, %v5877
    %v6006 = vpack.c.b16 %v5894, %v5878
    %v6007 = vpack.c.b16 %v5911, %v5895
    %v6008 = vpack.c.b16 %v5912, %v5896
    %v6009 = vpack.c.b16 %v5913, %v5897
    %v6010 = vpack.c.b16 %v5914, %v5898
    %v6011 = vpack.c.b16 %v5915, %v5899
    %v6012 = vpack.c.b16 %v5916, %v5900
    %v6013 = vpack.c.b16 %v5917, %v5901
    %v6014 = vpack.c.b16 %v5918, %v5902
    %v6015 = vpack.c.b16 %v5919, %v5903
    %v6016 = vpack.c.b16 %v5920, %v5904
    %v6017 = vpack.c.b16 %v5921, %v5905
    %v6018 = vpack.c.b16 %v5922, %v5906
    %v6019 = vpack.c.b16 %v5923, %v5907
    %v6020 = vpack.c.b16 %v5924, %v5908
    %v6021 = vpack.c.b16 %v5925, %v5909
    %v6022 = vpack.c.b16 %v5926, %v5910
    %v6023 = vpack.c.b16 %v5943, %v5927
    %v6024 = vpack.c.b16 %v5944, %v5928
    %v6025 = vpack.c.b16 %v5945, %v5929
    %v6026 = vpack.c.b16 %v5946, %v5930
    %v6027 = vpack.c.b16 %v5947, %v5931
    %v6028 = vpack.c.b16 %v5948, %v5932
    %v6029 = vpack.c.b16 %v5949, %v5933
    %v6030 = vpack.c.b16 %v5950, %v5934
    %v6031 = vpack.c.b16 %v5951, %v5935
    %v6032 = vpack.c.b16 %v5952, %v5936
    %v6033 = vpack.c.b16 %v5953, %v5937
    %v6034 = vpack.c.b16 %v5954, %v5938
    %v6035 = vpack.c.b16 %v5955, %v5939
    %v6036 = vpack.c.b16 %v5956, %v5940
    %v6037 = vpack.c.b16 %v5957, %v5941
    %v6038 = vpack.c.b16 %v5958, %v5942
    %v6039 = vpack.c.b16 %v5975, %v5959
    %v6040 = vpack.c.b16 %v5976, %v5960
    %v6041 = vpack.c.b16 %v5977, %v5961
    %v6042 = vpack.c.b16 %v5978, %v5962
    %v6043 = vpack.c.b16 %v5979, %v5963
    %v6044 = vpack.c.b16 %v5980, %v5964
    %v6045 = vpack.c.b16 %v5981, %v5965
    %v6046 = vpack.c.b16 %v5982, %v5966
    %v6047 = vpack.c.b16 %v5983, %v5967
    %v6048 = vpack.c.b16 %v5984, %v5968
    %v6049 = vpack.c.b16 %v5985, %v5969
    %v6050 = vpack.c.b16 %v5986, %v5970
    %v6051 = vpack.c.b16 %v5987, %v5971
    %v6052 = vpack.c.b16 %v5988, %v5972
    %v6053 = vpack.c.b16 %v5989, %v5973
    %v6054 = vpack.c.b16 %v5990, %v5974
    %v6120 = vsel %vm291, %v5647, 0
    %v6123 = vsel %vm291, %v5648, 0
    %6125 = vmatprep.subr.bf16.mxu0 %v5992
    %6126 = vmatpush1.bf16.msra.mxu0 %v5991
    %6127 = vmatprep.subr.bf16.mxu0 %v6008
    %6128 = vmatpush1.bf16.msra.mxu0 %v6007
    %6129 = vmatprep.subr.bf16.mxu0 %v6024
    %6130 = vmatpush1.bf16.msra.mxu0 %v6023
    %6131 = vmatprep.subr.bf16.mxu0 %v6040
    %6132 = vmatpush1.bf16.msra.mxu0 %v6039
    %6133 = vmatprep.subr.bf16.mxu0 0
    %6134 = vmatpush1.bf16.msra.mxu0 0
    %6135 = vmatprep.subr.bf16.mxu0 0
    %6136 = vmatpush1.bf16.msra.mxu0 0
    %6137 = vmatprep.subr.bf16.mxu0 0
    %6138 = vmatpush1.bf16.msra.mxu0 0
    %6139 = vmatprep.subr.bf16.mxu0 0
    %6140 = vmatpush1.bf16.msra.mxu0 0
    %6141 = vmatprep.subr.bf16.mxu0 0
    %6142 = vmatpush1.bf16.msra.mxu0 0
    %6143 = vmatprep.subr.bf16.mxu0 0
    %6144 = vmatpush1.bf16.msra.mxu0 0
    %6145 = vmatprep.subr.bf16.mxu0 0
    %6146 = vmatpush1.bf16.msra.mxu0 0
    %6147 = vmatprep.subr.bf16.mxu0 0
    %6148 = vmatpush1.bf16.msra.mxu0 0
    %6149 = vmatprep.subr.bf16.mxu0 0
    %6150 = vmatpush1.bf16.msra.mxu0 0
    %6151 = vmatprep.subr.bf16.mxu0 0
    %6152 = vmatpush1.bf16.msra.mxu0 0
    %6153 = vmatprep.subr.bf16.mxu0 0
    %6154 = vmatpush1.bf16.msra.mxu0 0
    %6155 = vmatprep.subr.bf16.mxu0 0
    %6156 = vmatpush1.bf16.msra.mxu0 0
    %6157 = vmatprep.mubr.bf16.mxu0 0
    %6158 = vmatmul.mubr.bf16.gmra.mrb[0].mxu0 %v6120
    %v6159 = vpop.f32.mrb[0].mxu0
    %v6160 = vadd.f32 %v5722, %v6159
    %v6161 = vpop.f32.mrb[0].mxu0
    %v6162 = vadd.f32 %v5726, %v6161
    %v6163 = vpop.f32.mrb[0].mxu0
    %v6164 = vadd.f32 %v5722, %v6163
    %v6165 = vpop.f32.mrb[0].mxu0
    %v6166 = vadd.f32 %v5726, %v6165
    %6167 = vmatprep.mubr.bf16.mxu0 0
    %6168 = vmatmul.mubr.bf16.gmra.mrb[0].mxu0 %v6123
    %v6169 = vpop.f32.mrb[0].mxu0
    %v6170 = vadd.f32 %v5722, %v6169
    %v6171 = vpop.f32.mrb[0].mxu0
    %v6172 = vadd.f32 %v5726, %v6171
    %v6173 = vpop.f32.mrb[0].mxu0
    %v6174 = vadd.f32 %v5722, %v6173
    %v6175 = vpop.f32.mrb[0].mxu0
    %v6176 = vadd.f32 %v5726, %v6175
    %6177 = vdwg.mxu0
    %6178 = vmatprep.subr.bf16.mxu0 %v5994
    %6179 = vmatpush1.bf16.msra.mxu0 %v5993
    %6180 = vmatprep.subr.bf16.mxu0 %v6010
    %6181 = vmatpush1.bf16.msra.mxu0 %v6009
    %6182 = vmatprep.subr.bf16.mxu0 %v6026
    %6183 = vmatpush1.bf16.msra.mxu0 %v6025
    %6184 = vmatprep.subr.bf16.mxu0 %v6042
    %6185 = vmatpush1.bf16.msra.mxu0 %v6041
    %6186 = vmatprep.subr.bf16.mxu0 0
    %6187 = vmatpush1.bf16.msra.mxu0 0
    %6188 = vmatprep.subr.bf16.mxu0 0
    %6189 = vmatpush1.bf16.msra.mxu0 0
    %6190 = vmatprep.subr.bf16.mxu0 0
    %6191 = vmatpush1.bf16.msra.mxu0 0
    %6192 = vmatprep.subr.bf16.mxu0 0
    %6193 = vmatpush1.bf16.msra.mxu0 0
    %6194 = vmatprep.subr.bf16.mxu0 0
    %6195 = vmatpush1.bf16.msra.mxu0 0
    %6196 = vmatprep.subr.bf16.mxu0 0
    %6197 = vmatpush1.bf16.msra.mxu0 0
    %6198 = vmatprep.subr.bf16.mxu0 0
    %6199 = vmatpush1.bf16.msra.mxu0 0
    %6200 = vmatprep.subr.bf16.mxu0 0
    %6201 = vmatpush1.bf16.msra.mxu0 0
    %6202 = vmatprep.subr.bf16.mxu0 0
    %6203 = vmatpush1.bf16.msra.mxu0 0
    %6204 = vmatprep.subr.bf16.mxu0 0
    %6205 = vmatpush1.bf16.msra.mxu0 0
    %6206 = vmatprep.subr.bf16.mxu0 0
    %6207 = vmatpush1.bf16.msra.mxu0 0
    %6208 = vmatprep.subr.bf16.mxu0 0
    %6209 = vmatpush1.bf16.msra.mxu0 0
    %6210 = vmatprep.mubr.bf16.mxu0 0
    %6211 = vmatmul.mubr.bf16.gmra.mrb[0].mxu0 %v6120
    %v6212 = vpop.f32.mrb[0].mxu0
    %v6213 = vadd.f32 %v5730, %v6212
    %v6214 = vpop.f32.mrb[0].mxu0
    %v6215 = vadd.f32 %v5734, %v6214
    %v6216 = vpop.f32.mrb[0].mxu0
    %v6217 = vadd.f32 %v5730, %v6216
    %v6218 = vpop.f32.mrb[0].mxu0
    %v6219 = vadd.f32 %v5734, %v6218
    %6220 = vmatprep.mubr.bf16.mxu0 0
    %6221 = vmatmul.mubr.bf16.gmra.mrb[0].mxu0 %v6123
    %v6222 = vpop.f32.mrb[0].mxu0
    %v6223 = vadd.f32 %v5730, %v6222
    %v6224 = vpop.f32.mrb[0].mxu0
    %v6225 = vadd.f32 %v5734, %v6224
    %v6226 = vpop.f32.mrb[0].mxu0
    %v6227 = vadd.f32 %v5730, %v6226
    %v6228 = vpop.f32.mrb[0].mxu0
    %v6229 = vadd.f32 %v5734, %v6228
    %6230 = vdwg.mxu0
    %6231 = vmatprep.subr.bf16.mxu0 %v5996
    %6232 = vmatpush1.bf16.msra.mxu0 %v5995
    %6233 = vmatprep.subr.bf16.mxu0 %v6012
    %6234 = vmatpush1.bf16.msra.mxu0 %v6011
    %6235 = vmatprep.subr.bf16.mxu0 %v6028
    %6236 = vmatpush1.bf16.msra.mxu0 %v6027
    %6237 = vmatprep.subr.bf16.mxu0 %v6044
    %6238 = vmatpush1.bf16.msra.mxu0 %v6043
    %6239 = vmatprep.subr.bf16.mxu0 0
    %6240 = vmatpush1.bf16.msra.mxu0 0
    %6241 = vmatprep.subr.bf16.mxu0 0
    %6242 = vmatpush1.bf16.msra.mxu0 0
    %6243 = vmatprep.subr.bf16.mxu0 0
    %6244 = vmatpush1.bf16.msra.mxu0 0
    %6245 = vmatprep.subr.bf16.mxu0 0
    %6246 = vmatpush1.bf16.msra.mxu0 0
    %6247 = vmatprep.subr.bf16.mxu0 0
    %6248 = vmatpush1.bf16.msra.mxu0 0
    %6249 = vmatprep.subr.bf16.mxu0 0
    %6250 = vmatpush1.bf16.msra.mxu0 0
    %6251 = vmatprep.subr.bf16.mxu0 0
    %6252 = vmatpush1.bf16.msra.mxu0 0
    %6253 = vmatprep.subr.bf16.mxu0 0
    %6254 = vmatpush1.bf16.msra.mxu0 0
    %6255 = vmatprep.subr.bf16.mxu0 0
    %6256 = vmatpush1.bf16.msra.mxu0 0
    %6257 = vmatprep.subr.bf16.mxu0 0
    %6258 = vmatpush1.bf16.msra.mxu0 0
    %6259 = vmatprep.subr.bf16.mxu0 0
    %6260 = vmatpush1.bf16.msra.mxu0 0
    %6261 = vmatprep.subr.bf16.mxu0 0
    %6262 = vmatpush1.bf16.msra.mxu0 0
    %6263 = vmatprep.mubr.bf16.mxu0 0
    %6264 = vmatmul.mubr.bf16.gmra.mrb[0].mxu0 %v6120
    %v6265 = vpop.f32.mrb[0].mxu0
    %v6266 = vadd.f32 %v5738, %v6265
    %v6267 = vpop.f32.mrb[0].mxu0
    %v6268 = vadd.f32 %v5742, %v6267
    %v6269 = vpop.f32.mrb[0].mxu0
    %v6270 = vadd.f32 %v5738, %v6269
    %v6271 = vpop.f32.mrb[0].mxu0
    %v6272 = vadd.f32 %v5742, %v6271
    %6273 = vmatprep.mubr.bf16.mxu0 0
    %6274 = vmatmul.mubr.bf16.gmra.mrb[0].mxu0 %v6123
    %v6275 = vpop.f32.mrb[0].mxu0
    %v6276 = vadd.f32 %v5738, %v6275
    %v6277 = vpop.f32.mrb[0].mxu0
    %v6278 = vadd.f32 %v5742, %v6277
    %v6279 = vpop.f32.mrb[0].mxu0
    %v6280 = vadd.f32 %v5738, %v6279
    %v6281 = vpop.f32.mrb[0].mxu0
    %v6282 = vadd.f32 %v5742, %v6281
    %6283 = vdwg.mxu0
    %6284 = vmatprep.subr.bf16.mxu0 %v5998
    %6285 = vmatpush1.bf16.msra.mxu0 %v5997
    %6286 = vmatprep.subr.bf16.mxu0 %v6014
    %6287 = vmatpush1.bf16.msra.mxu0 %v6013
    %6288 = vmatprep.subr.bf16.mxu0 %v6030
    %6289 = vmatpush1.bf16.msra.mxu0 %v6029
    %6290 = vmatprep.subr.bf16.mxu0 %v6046
    %6291 = vmatpush1.bf16.msra.mxu0 %v6045
    %6292 = vmatprep.subr.bf16.mxu0 0
    %6293 = vmatpush1.bf16.msra.mxu0 0
    %6294 = vmatprep.subr.bf16.mxu0 0
    %6295 = vmatpush1.bf16.msra.mxu0 0
    %6296 = vmatprep.subr.bf16.mxu0 0
    %6297 = vmatpush1.bf16.msra.mxu0 0
    %6298 = vmatprep.subr.bf16.mxu0 0
    %6299 = vmatpush1.bf16.msra.mxu0 0
    %6300 = vmatprep.subr.bf16.mxu0 0
    %6301 = vmatpush1.bf16.msra.mxu0 0
    %6302 = vmatprep.subr.bf16.mxu0 0
    %6303 = vmatpush1.bf16.msra.mxu0 0
    %6304 = vmatprep.subr.bf16.mxu0 0
    %6305 = vmatpush1.bf16.msra.mxu0 0
    %6306 = vmatprep.subr.bf16.mxu0 0
    %6307 = vmatpush1.bf16.msra.mxu0 0
    %6308 = vmatprep.subr.bf16.mxu0 0
    %6309 = vmatpush1.bf16.msra.mxu0 0
    %6310 = vmatprep.subr.bf16.mxu0 0
    %6311 = vmatpush1.bf16.msra.mxu0 0
    %6312 = vmatprep.subr.bf16.mxu0 0
    %6313 = vmatpush1.bf16.msra.mxu0 0
    %6314 = vmatprep.subr.bf16.mxu0 0
    %6315 = vmatpush1.bf16.msra.mxu0 0
    %6316 = vmatprep.mubr.bf16.mxu0 0
    %6317 = vmatmul.mubr.bf16.gmra.mrb[0].mxu0 %v6120
    %v6318 = vpop.f32.mrb[0].mxu0
    %v6319 = vadd.f32 %v5746, %v6318
    %v6320 = vpop.f32.mrb[0].mxu0
    %v6321 = vadd.f32 %v5750, %v6320
    %v6322 = vpop.f32.mrb[0].mxu0
    %v6323 = vadd.f32 %v5746, %v6322
    %v6324 = vpop.f32.mrb[0].mxu0
    %v6325 = vadd.f32 %v5750, %v6324
    %6326 = vmatprep.mubr.bf16.mxu0 0
    %6327 = vmatmul.mubr.bf16.gmra.mrb[0].mxu0 %v6123
    %v6328 = vpop.f32.mrb[0].mxu0
    %v6329 = vadd.f32 %v5746, %v6328
    %v6330 = vpop.f32.mrb[0].mxu0
    %v6331 = vadd.f32 %v5750, %v6330
    %v6332 = vpop.f32.mrb[0].mxu0
    %v6333 = vadd.f32 %v5746, %v6332
    %v6334 = vpop.f32.mrb[0].mxu0
    %v6335 = vadd.f32 %v5750, %v6334
    %6336 = vdwg.mxu0
    %6337 = vmatprep.subr.bf16.mxu0 %v6000
    %6338 = vmatpush1.bf16.msra.mxu0 %v5999
    %6339 = vmatprep.subr.bf16.mxu0 %v6016
    %6340 = vmatpush1.bf16.msra.mxu0 %v6015
    %6341 = vmatprep.subr.bf16.mxu0 %v6032
    %6342 = vmatpush1.bf16.msra.mxu0 %v6031
    %6343 = vmatprep.subr.bf16.mxu0 %v6048
    %6344 = vmatpush1.bf16.msra.mxu0 %v6047
    %6345 = vmatprep.subr.bf16.mxu0 0
    %6346 = vmatpush1.bf16.msra.mxu0 0
    %6347 = vmatprep.subr.bf16.mxu0 0
    %6348 = vmatpush1.bf16.msra.mxu0 0
    %6349 = vmatprep.subr.bf16.mxu0 0
    %6350 = vmatpush1.bf16.msra.mxu0 0
    %6351 = vmatprep.subr.bf16.mxu0 0
    %6352 = vmatpush1.bf16.msra.mxu0 0
    %6353 = vmatprep.subr.bf16.mxu0 0
    %6354 = vmatpush1.bf16.msra.mxu0 0
    %6355 = vmatprep.subr.bf16.mxu0 0
    %6356 = vmatpush1.bf16.msra.mxu0 0
    %6357 = vmatprep.subr.bf16.mxu0 0
    %6358 = vmatpush1.bf16.msra.mxu0 0
    %6359 = vmatprep.subr.bf16.mxu0 0
    %6360 = vmatpush1.bf16.msra.mxu0 0
    %6361 = vmatprep.subr.bf16.mxu0 0
    %6362 = vmatpush1.bf16.msra.mxu0 0
    %6363 = vmatprep.subr.bf16.mxu0 0
    %6364 = vmatpush1.bf16.msra.mxu0 0
    %6365 = vmatprep.subr.bf16.mxu0 0
    %6366 = vmatpush1.bf16.msra.mxu0 0
    %6367 = vmatprep.subr.bf16.mxu0 0
    %6368 = vmatpush1.bf16.msra.mxu0 0
    %6369 = vmatprep.mubr.bf16.mxu0 0
    %6370 = vmatmul.mubr.bf16.gmra.mrb[0].mxu0 %v6120
    %v6371 = vpop.f32.mrb[0].mxu0
    %v6372 = vadd.f32 %v5754, %v6371
    %v6373 = vpop.f32.mrb[0].mxu0
    %v6374 = vadd.f32 %v5758, %v6373
    %v6375 = vpop.f32.mrb[0].mxu0
    %v6376 = vadd.f32 %v5754, %v6375
    %v6377 = vpop.f32.mrb[0].mxu0
    %v6378 = vadd.f32 %v5758, %v6377
    %6379 = vmatprep.mubr.bf16.mxu0 0
    %6380 = vmatmul.mubr.bf16.gmra.mrb[0].mxu0 %v6123
    %v6381 = vpop.f32.mrb[0].mxu0
    %v6382 = vadd.f32 %v5754, %v6381
    %v6383 = vpop.f32.mrb[0].mxu0
    %v6384 = vadd.f32 %v5758, %v6383
    %v6385 = vpop.f32.mrb[0].mxu0
    %v6386 = vadd.f32 %v5754, %v6385
    %v6387 = vpop.f32.mrb[0].mxu0
    %v6388 = vadd.f32 %v5758, %v6387
    %6389 = vdwg.mxu0
    %6390 = vmatprep.subr.bf16.mxu0 %v6002
    %6391 = vmatpush1.bf16.msra.mxu0 %v6001
    %6392 = vmatprep.subr.bf16.mxu0 %v6018
    %6393 = vmatpush1.bf16.msra.mxu0 %v6017
    %6394 = vmatprep.subr.bf16.mxu0 %v6034
    %6395 = vmatpush1.bf16.msra.mxu0 %v6033
    %6396 = vmatprep.subr.bf16.mxu0 %v6050
    %6397 = vmatpush1.bf16.msra.mxu0 %v6049
    %6398 = vmatprep.subr.bf16.mxu0 0
    %6399 = vmatpush1.bf16.msra.mxu0 0
    %6400 = vmatprep.subr.bf16.mxu0 0
    %6401 = vmatpush1.bf16.msra.mxu0 0
    %6402 = vmatprep.subr.bf16.mxu0 0
    %6403 = vmatpush1.bf16.msra.mxu0 0
    %6404 = vmatprep.subr.bf16.mxu0 0
    %6405 = vmatpush1.bf16.msra.mxu0 0
    %6406 = vmatprep.subr.bf16.mxu0 0
    %6407 = vmatpush1.bf16.msra.mxu0 0
    %6408 = vmatprep.subr.bf16.mxu0 0
    %6409 = vmatpush1.bf16.msra.mxu0 0
    %6410 = vmatprep.subr.bf16.mxu0 0
    %6411 = vmatpush1.bf16.msra.mxu0 0
    %6412 = vmatprep.subr.bf16.mxu0 0
    %6413 = vmatpush1.bf16.msra.mxu0 0
    %6414 = vmatprep.subr.bf16.mxu0 0
    %6415 = vmatpush1.bf16.msra.mxu0 0
    %6416 = vmatprep.subr.bf16.mxu0 0
    %6417 = vmatpush1.bf16.msra.mxu0 0
    %6418 = vmatprep.subr.bf16.mxu0 0
    %6419 = vmatpush1.bf16.msra.mxu0 0
    %6420 = vmatprep.subr.bf16.mxu0 0
    %6421 = vmatpush1.bf16.msra.mxu0 0
    %6422 = vmatprep.mubr.bf16.mxu0 0
    %6423 = vmatmul.mubr.bf16.gmra.mrb[0].mxu0 %v6120
    %v6424 = vpop.f32.mrb[0].mxu0
    %v6425 = vadd.f32 %v5762, %v6424
    %v6426 = vpop.f32.mrb[0].mxu0
    %v6427 = vadd.f32 %v5766, %v6426
    %v6428 = vpop.f32.mrb[0].mxu0
    %v6429 = vadd.f32 %v5762, %v6428
    %v6430 = vpop.f32.mrb[0].mxu0
    %v6431 = vadd.f32 %v5766, %v6430
    %6432 = vmatprep.mubr.bf16.mxu0 0
    %6433 = vmatmul.mubr.bf16.gmra.mrb[0].mxu0 %v6123
    %v6434 = vpop.f32.mrb[0].mxu0
    %v6435 = vadd.f32 %v5762, %v6434
    %v6436 = vpop.f32.mrb[0].mxu0
    %v6437 = vadd.f32 %v5766, %v6436
    %v6438 = vpop.f32.mrb[0].mxu0
    %v6439 = vadd.f32 %v5762, %v6438
    %v6440 = vpop.f32.mrb[0].mxu0
    %v6441 = vadd.f32 %v5766, %v6440
    %6442 = vdwg.mxu0
    %6443 = vmatprep.subr.bf16.mxu0 %v6004
    %6444 = vmatpush1.bf16.msra.mxu0 %v6003
    %6445 = vmatprep.subr.bf16.mxu0 %v6020
    %6446 = vmatpush1.bf16.msra.mxu0 %v6019
    %6447 = vmatprep.subr.bf16.mxu0 %v6036
    %6448 = vmatpush1.bf16.msra.mxu0 %v6035
    %6449 = vmatprep.subr.bf16.mxu0 %v6052
    %6450 = vmatpush1.bf16.msra.mxu0 %v6051
    %6451 = vmatprep.subr.bf16.mxu0 0
    %6452 = vmatpush1.bf16.msra.mxu0 0
    %6453 = vmatprep.subr.bf16.mxu0 0
    %6454 = vmatpush1.bf16.msra.mxu0 0
    %6455 = vmatprep.subr.bf16.mxu0 0
    %6456 = vmatpush1.bf16.msra.mxu0 0
    %6457 = vmatprep.subr.bf16.mxu0 0
    %6458 = vmatpush1.bf16.msra.mxu0 0
    %6459 = vmatprep.subr.bf16.mxu0 0
    %6460 = vmatpush1.bf16.msra.mxu0 0
    %6461 = vmatprep.subr.bf16.mxu0 0
    %6462 = vmatpush1.bf16.msra.mxu0 0
    %6463 = vmatprep.subr.bf16.mxu0 0
    %6464 = vmatpush1.bf16.msra.mxu0 0
    %6465 = vmatprep.subr.bf16.mxu0 0
    %6466 = vmatpush1.bf16.msra.mxu0 0
    %6467 = vmatprep.subr.bf16.mxu0 0
    %6468 = vmatpush1.bf16.msra.mxu0 0
    %6469 = vmatprep.subr.bf16.mxu0 0
    %6470 = vmatpush1.bf16.msra.mxu0 0
    %6471 = vmatprep.subr.bf16.mxu0 0
    %6472 = vmatpush1.bf16.msra.mxu0 0
    %6473 = vmatprep.subr.bf16.mxu0 0
    %6474 = vmatpush1.bf16.msra.mxu0 0
    %6475 = vmatprep.mubr.bf16.mxu0 0
    %6476 = vmatmul.mubr.bf16.gmra.mrb[0].mxu0 %v6120
    %v6477 = vpop.f32.mrb[0].mxu0
    %v6478 = vadd.f32 %v5770, %v6477
    %v6479 = vpop.f32.mrb[0].mxu0
    %v6480 = vadd.f32 %v5774, %v6479
    %v6481 = vpop.f32.mrb[0].mxu0
    %v6482 = vadd.f32 %v5770, %v6481
    %v6483 = vpop.f32.mrb[0].mxu0
    %v6484 = vadd.f32 %v5774, %v6483
    %6485 = vmatprep.mubr.bf16.mxu0 0
    %6486 = vmatmul.mubr.bf16.gmra.mrb[0].mxu0 %v6123
    %v6487 = vpop.f32.mrb[0].mxu0
    %v6488 = vadd.f32 %v5770, %v6487
    %v6489 = vpop.f32.mrb[0].mxu0
    %v6490 = vadd.f32 %v5774, %v6489
    %v6491 = vpop.f32.mrb[0].mxu0
    %v6492 = vadd.f32 %v5770, %v6491
    %v6493 = vpop.f32.mrb[0].mxu0
    %v6494 = vadd.f32 %v5774, %v6493
    %6495 = vdwg.mxu0
    %6496 = vmatprep.subr.bf16.mxu0 %v6006
    %6497 = vmatpush1.bf16.msra.mxu0 %v6005
    %6498 = vmatprep.subr.bf16.mxu0 %v6022
    %6499 = vmatpush1.bf16.msra.mxu0 %v6021
    %6500 = vmatprep.subr.bf16.mxu0 %v6038
    %6501 = vmatpush1.bf16.msra.mxu0 %v6037
    %6502 = vmatprep.subr.bf16.mxu0 %v6054
    %6503 = vmatpush1.bf16.msra.mxu0 %v6053
    %6504 = vmatprep.subr.bf16.mxu0 0
    %6505 = vmatpush1.bf16.msra.mxu0 0
    %6506 = vmatprep.subr.bf16.mxu0 0
    %6507 = vmatpush1.bf16.msra.mxu0 0
    %6508 = vmatprep.subr.bf16.mxu0 0
    %6509 = vmatpush1.bf16.msra.mxu0 0
    %6510 = vmatprep.subr.bf16.mxu0 0
    %6511 = vmatpush1.bf16.msra.mxu0 0
    %6512 = vmatprep.subr.bf16.mxu0 0
    %6513 = vmatpush1.bf16.msra.mxu0 0
    %6514 = vmatprep.subr.bf16.mxu0 0
    %6515 = vmatpush1.bf16.msra.mxu0 0
    %6516 = vmatprep.subr.bf16.mxu0 0
    %6517 = vmatpush1.bf16.msra.mxu0 0
    %6518 = vmatprep.subr.bf16.mxu0 0
    %6519 = vmatpush1.bf16.msra.mxu0 0
    %6520 = vmatprep.subr.bf16.mxu0 0
    %6521 = vmatpush1.bf16.msra.mxu0 0
    %6522 = vmatprep.subr.bf16.mxu0 0
    %6523 = vmatpush1.bf16.msra.mxu0 0
    %6524 = vmatprep.subr.bf16.mxu0 0
    %6525 = vmatpush1.bf16.msra.mxu0 0
    %6526 = vmatprep.subr.bf16.mxu0 0
    %6527 = vmatpush1.bf16.msra.mxu0 0
    %6528 = vmatprep.mubr.bf16.mxu0 0
    %6529 = vmatmul.mubr.bf16.gmra.mrb[0].mxu0 %v6120
    %v6530 = vpop.f32.mrb[0].mxu0
    %v6531 = vadd.f32 %v5778, %v6530
    %v6532 = vpop.f32.mrb[0].mxu0
    %v6533 = vadd.f32 %v5782, %v6532
    %v6534 = vpop.f32.mrb[0].mxu0
    %v6535 = vadd.f32 %v5778, %v6534
    %v6536 = vpop.f32.mrb[0].mxu0
    %v6537 = vadd.f32 %v5782, %v6536
    %6538 = vmatprep.mubr.bf16.mxu0 0
    %6539 = vmatmul.mubr.bf16.gmra.mrb[0].mxu0 %v6123
    %v6540 = vpop.f32.mrb[0].mxu0
    %v6541 = vadd.f32 %v5778, %v6540
    %v6542 = vpop.f32.mrb[0].mxu0
    %v6543 = vadd.f32 %v5782, %v6542
    %v6544 = vpop.f32.mrb[0].mxu0
    %v6545 = vadd.f32 %v5778, %v6544
    %v6546 = vpop.f32.mrb[0].mxu0
    %v6547 = vadd.f32 %v5782, %v6546
    %6548 = vdwg.mxu0
    %v6549 = vmax.f32 %v6160, 0.0
    %v6550 = vmax.f32 %v6162, 0.0
    %v6551 = vmax.f32 %v6213, 0.0
    %v6552 = vmax.f32 %v6215, 0.0
    %v6553 = vmax.f32 %v6266, 0.0
    %v6554 = vmax.f32 %v6268, 0.0
    %v6555 = vmax.f32 %v6319, 0.0
    %v6556 = vmax.f32 %v6321, 0.0
    %v6557 = vmax.f32 %v6372, 0.0
    %v6558 = vmax.f32 %v6374, 0.0
    %v6559 = vmax.f32 %v6425, 0.0
    %v6560 = vmax.f32 %v6427, 0.0
    %v6561 = vmax.f32 %v6478, 0.0
    %v6562 = vmax.f32 %v6480, 0.0
    %v6563 = vmax.f32 %v6531, 0.0
    %v6564 = vmax.f32 %v6533, 0.0
    %v6565 = vmax.f32 %v6164, 0.0
    %v6566 = vmax.f32 %v6166, 0.0
    %v6567 = vmax.f32 %v6217, 0.0
    %v6568 = vmax.f32 %v6219, 0.0
    %v6569 = vmax.f32 %v6270, 0.0
    %v6570 = vmax.f32 %v6272, 0.0
    %v6571 = vmax.f32 %v6323, 0.0
    %v6572 = vmax.f32 %v6325, 0.0
    %v6573 = vmax.f32 %v6376, 0.0
    %v6574 = vmax.f32 %v6378, 0.0
    %v6575 = vmax.f32 %v6429, 0.0
    %v6576 = vmax.f32 %v6431, 0.0
    %v6577 = vmax.f32 %v6482, 0.0
    %v6578 = vmax.f32 %v6484, 0.0
    %v6579 = vmax.f32 %v6535, 0.0
    %v6580 = vmax.f32 %v6537, 0.0
    %v6581 = vmax.f32 %v6170, 0.0
    %v6582 = vmax.f32 %v6172, 0.0
    %v6583 = vmax.f32 %v6223, 0.0
    %v6584 = vmax.f32 %v6225, 0.0
    %v6585 = vmax.f32 %v6276, 0.0
    %v6586 = vmax.f32 %v6278, 0.0
    %v6587 = vmax.f32 %v6329, 0.0
    %v6588 = vmax.f32 %v6331, 0.0
    %v6589 = vmax.f32 %v6382, 0.0
    %v6590 = vmax.f32 %v6384, 0.0
    %v6591 = vmax.f32 %v6435, 0.0
    %v6592 = vmax.f32 %v6437, 0.0
    %v6593 = vmax.f32 %v6488, 0.0
    %v6594 = vmax.f32 %v6490, 0.0
    %v6595 = vmax.f32 %v6541, 0.0
    %v6596 = vmax.f32 %v6543, 0.0
    %v6597 = vmax.f32 %v6174, 0.0
    %v6598 = vmax.f32 %v6176, 0.0
    %v6599 = vmax.f32 %v6227, 0.0
    %v6600 = vmax.f32 %v6229, 0.0
    %v6601 = vmax.f32 %v6280, 0.0
    %v6602 = vmax.f32 %v6282, 0.0
    %v6603 = vmax.f32 %v6333, 0.0
    %v6604 = vmax.f32 %v6335, 0.0
    %v6605 = vmax.f32 %v6386, 0.0
    %v6606 = vmax.f32 %v6388, 0.0
    %v6607 = vmax.f32 %v6439, 0.0
    %v6608 = vmax.f32 %v6441, 0.0
    %v6609 = vmax.f32 %v6492, 0.0
    %v6610 = vmax.f32 %v6494, 0.0
    %v6611 = vmax.f32 %v6545, 0.0
    %v6612 = vmax.f32 %v6547, 0.0
    %v6613 = vpack.c.bf16 %v6565, %v6549
    %v6614 = vpack.c.bf16 %v6566, %v6550
    %v6615 = vpack.c.bf16 %v6567, %v6551
    %v6616 = vpack.c.bf16 %v6568, %v6552
    %v6617 = vpack.c.bf16 %v6569, %v6553
    %v6618 = vpack.c.bf16 %v6570, %v6554
    %v6619 = vpack.c.bf16 %v6571, %v6555
    %v6620 = vpack.c.bf16 %v6572, %v6556
    %v6621 = vpack.c.bf16 %v6573, %v6557
    %v6622 = vpack.c.bf16 %v6574, %v6558
    %v6623 = vpack.c.bf16 %v6575, %v6559
    %v6624 = vpack.c.bf16 %v6576, %v6560
    %v6625 = vpack.c.bf16 %v6577, %v6561
    %v6626 = vpack.c.bf16 %v6578, %v6562
    %v6627 = vpack.c.bf16 %v6579, %v6563
    %v6628 = vpack.c.bf16 %v6580, %v6564
    %v6629 = vpack.c.bf16 %v6597, %v6581
    %v6630 = vpack.c.bf16 %v6598, %v6582
    %v6631 = vpack.c.bf16 %v6599, %v6583
    %v6632 = vpack.c.bf16 %v6600, %v6584
    %v6633 = vpack.c.bf16 %v6601, %v6585
    %v6634 = vpack.c.bf16 %v6602, %v6586
    %v6635 = vpack.c.bf16 %v6603, %v6587
    %v6636 = vpack.c.bf16 %v6604, %v6588
    %v6637 = vpack.c.bf16 %v6605, %v6589
    %v6638 = vpack.c.bf16 %v6606, %v6590
    %v6639 = vpack.c.bf16 %v6607, %v6591
    %v6640 = vpack.c.bf16 %v6608, %v6592
    %v6641 = vpack.c.bf16 %v6609, %v6593
    %v6642 = vpack.c.bf16 %v6610, %v6594
    %v6643 = vpack.c.bf16 %v6611, %v6595
    %v6644 = vpack.c.bf16 %v6612, %v6596
    %s6645 = scalar_lea.vmem %s15, 1024
    %v6646 = vld [vmem:[%s6645] sm:$0xf]
    %v6647 = vld [vmem:[%s6645 + $0x4] sm:$0xf]
    %v6648 = vld [vmem:[%s6645 + $0x8] sm:$0xf]
    %v6649 = vld [vmem:[%s6645 + $0xc] sm:$0xf]
    %v6650 = vld [vmem:[%s6645 + $0x10] sm:$0xf]
    %v6651 = vld [vmem:[%s6645 + $0x14] sm:$0xf]
    %v6652 = vld [vmem:[%s6645 + $0x18] sm:$0xf]
    %v6653 = vld [vmem:[%s6645 + $0x1c] sm:$0xf]
    %v6654 = vld [vmem:[%s6645 + $0x20] sm:$0xf]
    %v6655 = vld [vmem:[%s6645 + $0x24] sm:$0xf]
    %v6656 = vld [vmem:[%s6645 + $0x28] sm:$0xf]
    %v6657 = vld [vmem:[%s6645 + $0x2c] sm:$0xf]
    %v6658 = vld [vmem:[%s6645 + $0x30] sm:$0xf]
    %v6659 = vld [vmem:[%s6645 + $0x34] sm:$0xf]
    %v6660 = vld [vmem:[%s6645 + $0x38] sm:$0xf]
    %v6661 = vld [vmem:[%s6645 + $0x3c] sm:$0xf]
    %v6662 = vld [vmem:[%s6645 + $0x40] sm:$0xf]
    %v6663 = vld [vmem:[%s6645 + $0x44] sm:$0xf]
    %v6664 = vld [vmem:[%s6645 + $0x48] sm:$0xf]
    %v6665 = vld [vmem:[%s6645 + $0x4c] sm:$0xf]
    %v6666 = vld [vmem:[%s6645 + $0x50] sm:$0xf]
    %v6667 = vld [vmem:[%s6645 + $0x54] sm:$0xf]
    %v6668 = vld [vmem:[%s6645 + $0x58] sm:$0xf]
    %v6669 = vld [vmem:[%s6645 + $0x5c] sm:$0xf]
    %v6670 = vld [vmem:[%s6645 + $0x60] sm:$0xf]
    %v6671 = vld [vmem:[%s6645 + $0x64] sm:$0xf]
    %v6672 = vld [vmem:[%s6645 + $0x68] sm:$0xf]
    %v6673 = vld [vmem:[%s6645 + $0x6c] sm:$0xf]
    %v6674 = vld [vmem:[%s6645 + $0x70] sm:$0xf]
    %v6675 = vld [vmem:[%s6645 + $0x74] sm:$0xf]
    %v6676 = vld [vmem:[%s6645 + $0x78] sm:$0xf]
    %v6677 = vld [vmem:[%s6645 + $0x7c] sm:$0xf]
    %v6678 = vld [vmem:[%s6645 + $0x80] sm:$0xf]
    %v6679 = vld [vmem:[%s6645 + $0x84] sm:$0xf]
    %v6680 = vld [vmem:[%s6645 + $0x88] sm:$0xf]
    %v6681 = vld [vmem:[%s6645 + $0x8c] sm:$0xf]
    %v6682 = vld [vmem:[%s6645 + $0x90] sm:$0xf]
    %v6683 = vld [vmem:[%s6645 + $0x94] sm:$0xf]
    %v6684 = vld [vmem:[%s6645 + $0x98] sm:$0xf]
    %v6685 = vld [vmem:[%s6645 + $0x9c] sm:$0xf]
    %v6686 = vld [vmem:[%s6645 + $0xa0] sm:$0xf]
    %v6687 = vld [vmem:[%s6645 + $0xa4] sm:$0xf]
    %v6688 = vld [vmem:[%s6645 + $0xa8] sm:$0xf]
    %v6689 = vld [vmem:[%s6645 + $0xac] sm:$0xf]
    %v6690 = vld [vmem:[%s6645 + $0xb0] sm:$0xf]
    %v6691 = vld [vmem:[%s6645 + $0xb4] sm:$0xf]
    %v6692 = vld [vmem:[%s6645 + $0xb8] sm:$0xf]
    %v6693 = vld [vmem:[%s6645 + $0xbc] sm:$0xf]
    %v6694 = vld [vmem:[%s6645 + $0xc0] sm:$0xf]
    %v6695 = vld [vmem:[%s6645 + $0xc4] sm:$0xf]
    %v6696 = vld [vmem:[%s6645 + $0xc8] sm:$0xf]
    %v6697 = vld [vmem:[%s6645 + $0xcc] sm:$0xf]
    %v6698 = vld [vmem:[%s6645 + $0xd0] sm:$0xf]
    %v6699 = vld [vmem:[%s6645 + $0xd4] sm:$0xf]
    %v6700 = vld [vmem:[%s6645 + $0xd8] sm:$0xf]
    %v6701 = vld [vmem:[%s6645 + $0xdc] sm:$0xf]
    %v6702 = vld [vmem:[%s6645 + $0xe0] sm:$0xf]
    %v6703 = vld [vmem:[%s6645 + $0xe4] sm:$0xf]
    %v6704 = vld [vmem:[%s6645 + $0xe8] sm:$0xf]
    %v6705 = vld [vmem:[%s6645 + $0xec] sm:$0xf]
    %v6706 = vld [vmem:[%s6645 + $0xf0] sm:$0xf]
    %v6707 = vld [vmem:[%s6645 + $0xf4] sm:$0xf]
    %v6708 = vld [vmem:[%s6645 + $0xf8] sm:$0xf]
    %v6709 = vld [vmem:[%s6645 + $0xfc] sm:$0xf]
    %v6710 = vld [vmem:[%s6645 + $0x100] sm:$0xf]
    %v6711 = vld [vmem:[%s6645 + $0x104] sm:$0xf]
    %v6712 = vld [vmem:[%s6645 + $0x108] sm:$0xf]
    %v6713 = vld [vmem:[%s6645 + $0x10c] sm:$0xf]
    %v6714 = vld [vmem:[%s6645 + $0x110] sm:$0xf]
    %v6715 = vld [vmem:[%s6645 + $0x114] sm:$0xf]
    %v6716 = vld [vmem:[%s6645 + $0x118] sm:$0xf]
    %v6717 = vld [vmem:[%s6645 + $0x11c] sm:$0xf]
    %v6718 = vld [vmem:[%s6645 + $0x120] sm:$0xf]
    %v6719 = vld [vmem:[%s6645 + $0x124] sm:$0xf]
    %v6720 = vld [vmem:[%s6645 + $0x128] sm:$0xf]
    %v6721 = vld [vmem:[%s6645 + $0x12c] sm:$0xf]
    %v6722 = vld [vmem:[%s6645 + $0x130] sm:$0xf]
    %v6723 = vld [vmem:[%s6645 + $0x134] sm:$0xf]
    %v6724 = vld [vmem:[%s6645 + $0x138] sm:$0xf]
    %v6725 = vld [vmem:[%s6645 + $0x13c] sm:$0xf]
    %v6726 = vld [vmem:[%s6645 + $0x140] sm:$0xf]
    %v6727 = vld [vmem:[%s6645 + $0x144] sm:$0xf]
    %v6728 = vld [vmem:[%s6645 + $0x148] sm:$0xf]
    %v6729 = vld [vmem:[%s6645 + $0x14c] sm:$0xf]
    %v6730 = vld [vmem:[%s6645 + $0x150] sm:$0xf]
    %v6731 = vld [vmem:[%s6645 + $0x154] sm:$0xf]
    %v6732 = vld [vmem:[%s6645 + $0x158] sm:$0xf]
    %v6733 = vld [vmem:[%s6645 + $0x15c] sm:$0xf]
    %v6734 = vld [vmem:[%s6645 + $0x160] sm:$0xf]
    %v6735 = vld [vmem:[%s6645 + $0x164] sm:$0xf]
    %v6736 = vld [vmem:[%s6645 + $0x168] sm:$0xf]
    %v6737 = vld [vmem:[%s6645 + $0x16c] sm:$0xf]
    %v6738 = vld [vmem:[%s6645 + $0x170] sm:$0xf]
    %v6739 = vld [vmem:[%s6645 + $0x174] sm:$0xf]
    %v6740 = vld [vmem:[%s6645 + $0x178] sm:$0xf]
    %v6741 = vld [vmem:[%s6645 + $0x17c] sm:$0xf]
    %v6742 = vld [vmem:[%s6645 + $0x180] sm:$0xf]
    %v6743 = vld [vmem:[%s6645 + $0x184] sm:$0xf]
    %v6744 = vld [vmem:[%s6645 + $0x188] sm:$0xf]
    %v6745 = vld [vmem:[%s6645 + $0x18c] sm:$0xf]
    %v6746 = vld [vmem:[%s6645 + $0x190] sm:$0xf]
    %v6747 = vld [vmem:[%s6645 + $0x194] sm:$0xf]
    %v6748 = vld [vmem:[%s6645 + $0x198] sm:$0xf]
    %v6749 = vld [vmem:[%s6645 + $0x19c] sm:$0xf]
    %v6750 = vld [vmem:[%s6645 + $0x1a0] sm:$0xf]
    %v6751 = vld [vmem:[%s6645 + $0x1a4] sm:$0xf]
    %v6752 = vld [vmem:[%s6645 + $0x1a8] sm:$0xf]
    %v6753 = vld [vmem:[%s6645 + $0x1ac] sm:$0xf]
    %v6754 = vld [vmem:[%s6645 + $0x1b0] sm:$0xf]
    %v6755 = vld [vmem:[%s6645 + $0x1b4] sm:$0xf]
    %v6756 = vld [vmem:[%s6645 + $0x1b8] sm:$0xf]
    %v6757 = vld [vmem:[%s6645 + $0x1bc] sm:$0xf]
    %v6758 = vld [vmem:[%s6645 + $0x1c0] sm:$0xf]
    %v6759 = vld [vmem:[%s6645 + $0x1c4] sm:$0xf]
    %v6760 = vld [vmem:[%s6645 + $0x1c8] sm:$0xf]
    %v6761 = vld [vmem:[%s6645 + $0x1cc] sm:$0xf]
    %v6762 = vld [vmem:[%s6645 + $0x1d0] sm:$0xf]
    %v6763 = vld [vmem:[%s6645 + $0x1d4] sm:$0xf]
    %v6764 = vld [vmem:[%s6645 + $0x1d8] sm:$0xf]
    %v6765 = vld [vmem:[%s6645 + $0x1dc] sm:$0xf]
    %v6766 = vld [vmem:[%s6645 + $0x1e0] sm:$0xf]
    %v6767 = vld [vmem:[%s6645 + $0x1e4] sm:$0xf]
    %v6768 = vld [vmem:[%s6645 + $0x1e8] sm:$0xf]
    %v6769 = vld [vmem:[%s6645 + $0x1ec] sm:$0xf]
    %v6770 = vld [vmem:[%s6645 + $0x1f0] sm:$0xf]
    %v6771 = vld [vmem:[%s6645 + $0x1f4] sm:$0xf]
    %v6772 = vld [vmem:[%s6645 + $0x1f8] sm:$0xf]
    %v6773 = vld [vmem:[%s6645 + $0x1fc] sm:$0xf]
    %v6774 = vld [vmem:[%s6645 + $0x200] sm:$0xf]
    %v6775 = vld [vmem:[%s6645 + $0x204] sm:$0xf]
    %v6776 = vld [vmem:[%s6645 + $0x208] sm:$0xf]
    %v6777 = vld [vmem:[%s6645 + $0x20c] sm:$0xf]
    %v6778 = vld [vmem:[%s6645 + $0x210] sm:$0xf]
    %v6779 = vld [vmem:[%s6645 + $0x214] sm:$0xf]
    %v6780 = vld [vmem:[%s6645 + $0x218] sm:$0xf]
    %v6781 = vld [vmem:[%s6645 + $0x21c] sm:$0xf]
    %v6782 = vld [vmem:[%s6645 + $0x220] sm:$0xf]
    %v6783 = vld [vmem:[%s6645 + $0x224] sm:$0xf]
    %v6784 = vld [vmem:[%s6645 + $0x228] sm:$0xf]
    %v6785 = vld [vmem:[%s6645 + $0x22c] sm:$0xf]
    %v6786 = vld [vmem:[%s6645 + $0x230] sm:$0xf]
    %v6787 = vld [vmem:[%s6645 + $0x234] sm:$0xf]
    %v6788 = vld [vmem:[%s6645 + $0x238] sm:$0xf]
    %v6789 = vld [vmem:[%s6645 + $0x23c] sm:$0xf]
    %v6790 = vld [vmem:[%s6645 + $0x240] sm:$0xf]
    %v6791 = vld [vmem:[%s6645 + $0x244] sm:$0xf]
    %v6792 = vld [vmem:[%s6645 + $0x248] sm:$0xf]
    %v6793 = vld [vmem:[%s6645 + $0x24c] sm:$0xf]
    %v6794 = vld [vmem:[%s6645 + $0x250] sm:$0xf]
    %v6795 = vld [vmem:[%s6645 + $0x254] sm:$0xf]
    %v6796 = vld [vmem:[%s6645 + $0x258] sm:$0xf]
    %v6797 = vld [vmem:[%s6645 + $0x25c] sm:$0xf]
    %v6798 = vld [vmem:[%s6645 + $0x260] sm:$0xf]
    %v6799 = vld [vmem:[%s6645 + $0x264] sm:$0xf]
    %v6800 = vld [vmem:[%s6645 + $0x268] sm:$0xf]
    %v6801 = vld [vmem:[%s6645 + $0x26c] sm:$0xf]
    %v6802 = vld [vmem:[%s6645 + $0x270] sm:$0xf]
    %v6803 = vld [vmem:[%s6645 + $0x274] sm:$0xf]
    %v6804 = vld [vmem:[%s6645 + $0x278] sm:$0xf]
    %v6805 = vld [vmem:[%s6645 + $0x27c] sm:$0xf]
    %v6806 = vld [vmem:[%s6645 + $0x280] sm:$0xf]
    %v6807 = vld [vmem:[%s6645 + $0x284] sm:$0xf]
    %v6808 = vld [vmem:[%s6645 + $0x288] sm:$0xf]
    %v6809 = vld [vmem:[%s6645 + $0x28c] sm:$0xf]
    %v6810 = vld [vmem:[%s6645 + $0x290] sm:$0xf]
    %v6811 = vld [vmem:[%s6645 + $0x294] sm:$0xf]
    %v6812 = vld [vmem:[%s6645 + $0x298] sm:$0xf]
    %v6813 = vld [vmem:[%s6645 + $0x29c] sm:$0xf]
    %v6814 = vld [vmem:[%s6645 + $0x2a0] sm:$0xf]
    %v6815 = vld [vmem:[%s6645 + $0x2a4] sm:$0xf]
    %v6816 = vld [vmem:[%s6645 + $0x2a8] sm:$0xf]
    %v6817 = vld [vmem:[%s6645 + $0x2ac] sm:$0xf]
    %v6818 = vld [vmem:[%s6645 + $0x2b0] sm:$0xf]
    %v6819 = vld [vmem:[%s6645 + $0x2b4] sm:$0xf]
    %v6820 = vld [vmem:[%s6645 + $0x2b8] sm:$0xf]
    %v6821 = vld [vmem:[%s6645 + $0x2bc] sm:$0xf]
    %v6822 = vld [vmem:[%s6645 + $0x2c0] sm:$0xf]
    %v6823 = vld [vmem:[%s6645 + $0x2c4] sm:$0xf]
    %v6824 = vld [vmem:[%s6645 + $0x2c8] sm:$0xf]
    %v6825 = vld [vmem:[%s6645 + $0x2cc] sm:$0xf]
    %v6826 = vld [vmem:[%s6645 + $0x2d0] sm:$0xf]
    %v6827 = vld [vmem:[%s6645 + $0x2d4] sm:$0xf]
    %v6828 = vld [vmem:[%s6645 + $0x2d8] sm:$0xf]
    %v6829 = vld [vmem:[%s6645 + $0x2dc] sm:$0xf]
    %v6830 = vld [vmem:[%s6645 + $0x2e0] sm:$0xf]
    %v6831 = vld [vmem:[%s6645 + $0x2e4] sm:$0xf]
    %v6832 = vld [vmem:[%s6645 + $0x2e8] sm:$0xf]
    %v6833 = vld [vmem:[%s6645 + $0x2ec] sm:$0xf]
    %v6834 = vld [vmem:[%s6645 + $0x2f0] sm:$0xf]
    %v6835 = vld [vmem:[%s6645 + $0x2f4] sm:$0xf]
    %v6836 = vld [vmem:[%s6645 + $0x2f8] sm:$0xf]
    %v6837 = vld [vmem:[%s6645 + $0x2fc] sm:$0xf]
    %v6838 = vld [vmem:[%s6645 + $0x300] sm:$0xf]
    %v6839 = vld [vmem:[%s6645 + $0x304] sm:$0xf]
    %v6840 = vld [vmem:[%s6645 + $0x308] sm:$0xf]
    %v6841 = vld [vmem:[%s6645 + $0x30c] sm:$0xf]
    %v6842 = vld [vmem:[%s6645 + $0x310] sm:$0xf]
    %v6843 = vld [vmem:[%s6645 + $0x314] sm:$0xf]
    %v6844 = vld [vmem:[%s6645 + $0x318] sm:$0xf]
    %v6845 = vld [vmem:[%s6645 + $0x31c] sm:$0xf]
    %v6846 = vld [vmem:[%s6645 + $0x320] sm:$0xf]
    %v6847 = vld [vmem:[%s6645 + $0x324] sm:$0xf]
    %v6848 = vld [vmem:[%s6645 + $0x328] sm:$0xf]
    %v6849 = vld [vmem:[%s6645 + $0x32c] sm:$0xf]
    %v6850 = vld [vmem:[%s6645 + $0x330] sm:$0xf]
    %v6851 = vld [vmem:[%s6645 + $0x334] sm:$0xf]
    %v6852 = vld [vmem:[%s6645 + $0x338] sm:$0xf]
    %v6853 = vld [vmem:[%s6645 + $0x33c] sm:$0xf]
    %v6854 = vld [vmem:[%s6645 + $0x340] sm:$0xf]
    %v6855 = vld [vmem:[%s6645 + $0x344] sm:$0xf]
    %v6856 = vld [vmem:[%s6645 + $0x348] sm:$0xf]
    %v6857 = vld [vmem:[%s6645 + $0x34c] sm:$0xf]
    %v6858 = vld [vmem:[%s6645 + $0x350] sm:$0xf]
    %v6859 = vld [vmem:[%s6645 + $0x354] sm:$0xf]
    %v6860 = vld [vmem:[%s6645 + $0x358] sm:$0xf]
    %v6861 = vld [vmem:[%s6645 + $0x35c] sm:$0xf]
    %v6862 = vld [vmem:[%s6645 + $0x360] sm:$0xf]
    %v6863 = vld [vmem:[%s6645 + $0x364] sm:$0xf]
    %v6864 = vld [vmem:[%s6645 + $0x368] sm:$0xf]
    %v6865 = vld [vmem:[%s6645 + $0x36c] sm:$0xf]
    %v6866 = vld [vmem:[%s6645 + $0x370] sm:$0xf]
    %v6867 = vld [vmem:[%s6645 + $0x374] sm:$0xf]
    %v6868 = vld [vmem:[%s6645 + $0x378] sm:$0xf]
    %v6869 = vld [vmem:[%s6645 + $0x37c] sm:$0xf]
    %v6870 = vld [vmem:[%s6645 + $0x380] sm:$0xf]
    %v6871 = vld [vmem:[%s6645 + $0x384] sm:$0xf]
    %v6872 = vld [vmem:[%s6645 + $0x388] sm:$0xf]
    %v6873 = vld [vmem:[%s6645 + $0x38c] sm:$0xf]
    %v6874 = vld [vmem:[%s6645 + $0x390] sm:$0xf]
    %v6875 = vld [vmem:[%s6645 + $0x394] sm:$0xf]
    %v6876 = vld [vmem:[%s6645 + $0x398] sm:$0xf]
    %v6877 = vld [vmem:[%s6645 + $0x39c] sm:$0xf]
    %v6878 = vld [vmem:[%s6645 + $0x3a0] sm:$0xf]
    %v6879 = vld [vmem:[%s6645 + $0x3a4] sm:$0xf]
    %v6880 = vld [vmem:[%s6645 + $0x3a8] sm:$0xf]
    %v6881 = vld [vmem:[%s6645 + $0x3ac] sm:$0xf]
    %v6882 = vld [vmem:[%s6645 + $0x3b0] sm:$0xf]
    %v6883 = vld [vmem:[%s6645 + $0x3b4] sm:$0xf]
    %v6884 = vld [vmem:[%s6645 + $0x3b8] sm:$0xf]
    %v6885 = vld [vmem:[%s6645 + $0x3bc] sm:$0xf]
    %v6886 = vld [vmem:[%s6645 + $0x3c0] sm:$0xf]
    %v6887 = vld [vmem:[%s6645 + $0x3c4] sm:$0xf]
    %v6888 = vld [vmem:[%s6645 + $0x3c8] sm:$0xf]
    %v6889 = vld [vmem:[%s6645 + $0x3cc] sm:$0xf]
    %v6890 = vld [vmem:[%s6645 + $0x3d0] sm:$0xf]
    %v6891 = vld [vmem:[%s6645 + $0x3d4] sm:$0xf]
    %v6892 = vld [vmem:[%s6645 + $0x3d8] sm:$0xf]
    %v6893 = vld [vmem:[%s6645 + $0x3dc] sm:$0xf]
    %v6894 = vld [vmem:[%s6645 + $0x3e0] sm:$0xf]
    %v6895 = vld [vmem:[%s6645 + $0x3e4] sm:$0xf]
    %v6896 = vld [vmem:[%s6645 + $0x3e8] sm:$0xf]
    %v6897 = vld [vmem:[%s6645 + $0x3ec] sm:$0xf]
    %v6898 = vld [vmem:[%s6645 + $0x3f0] sm:$0xf]
    %v6899 = vld [vmem:[%s6645 + $0x3f4] sm:$0xf]
    %v6900 = vld [vmem:[%s6645 + $0x3f8] sm:$0xf]
    %v6901 = vld [vmem:[%s6645 + $0x3fc] sm:$0xf]
    %s6902 = scalar_lea.vmem %s16, 1
    %v6903 = vld [vmem:[%s6902] sm:$0x1]
    %v6905 = vlaneseq
    %v6906 = vshrl.u32 %v6905, 7
    %v6907 = vsub.s32 0, %v6906
    %v6908 = vrot.slane %v6903, %v6907
    %v7166 = vunpack.c.l.b16 %v6646
    %v7167 = vunpack.c.l.b16 %v6647
    %v7168 = vunpack.c.l.b16 %v6648
    %v7169 = vunpack.c.l.b16 %v6649
    %v7170 = vunpack.c.l.b16 %v6650
    %v7171 = vunpack.c.l.b16 %v6651
    %v7172 = vunpack.c.l.b16 %v6652
    %v7173 = vunpack.c.l.b16 %v6653
    %v7174 = vunpack.c.l.b16 %v6654
    %v7175 = vunpack.c.l.b16 %v6655
    %v7176 = vunpack.c.l.b16 %v6656
    %v7177 = vunpack.c.l.b16 %v6657
    %v7178 = vunpack.c.l.b16 %v6658
    %v7179 = vunpack.c.l.b16 %v6659
    %v7180 = vunpack.c.l.b16 %v6660
    %v7181 = vunpack.c.l.b16 %v6661
    %v7182 = vunpack.c.l.b16 %v6662
    %v7183 = vunpack.c.l.b16 %v6663
    %v7184 = vunpack.c.l.b16 %v6664
    %v7185 = vunpack.c.l.b16 %v6665
    %v7186 = vunpack.c.l.b16 %v6666
    %v7187 = vunpack.c.l.b16 %v6667
    %v7188 = vunpack.c.l.b16 %v6668
    %v7189 = vunpack.c.l.b16 %v6669
    %v7190 = vunpack.c.l.b16 %v6670
    %v7191 = vunpack.c.l.b16 %v6671
    %v7192 = vunpack.c.l.b16 %v6672
    %v7193 = vunpack.c.l.b16 %v6673
    %v7194 = vunpack.c.l.b16 %v6674
    %v7195 = vunpack.c.l.b16 %v6675
    %v7196 = vunpack.c.l.b16 %v6676
    %v7197 = vunpack.c.l.b16 %v6677
    %v7198 = vunpack.c.l.b16 %v6678
    %v7199 = vunpack.c.l.b16 %v6679
    %v7200 = vunpack.c.l.b16 %v6680
    %v7201 = vunpack.c.l.b16 %v6681
    %v7202 = vunpack.c.l.b16 %v6682
    %v7203 = vunpack.c.l.b16 %v6683
    %v7204 = vunpack.c.l.b16 %v6684
    %v7205 = vunpack.c.l.b16 %v6685
    %v7206 = vunpack.c.l.b16 %v6686
    %v7207 = vunpack.c.l.b16 %v6687
    %v7208 = vunpack.c.l.b16 %v6688
    %v7209 = vunpack.c.l.b16 %v6689
    %v7210 = vunpack.c.l.b16 %v6690
    %v7211 = vunpack.c.l.b16 %v6691
    %v7212 = vunpack.c.l.b16 %v6692
    %v7213 = vunpack.c.l.b16 %v6693
    %v7214 = vunpack.c.l.b16 %v6694
    %v7215 = vunpack.c.l.b16 %v6695
    %v7216 = vunpack.c.l.b16 %v6696
    %v7217 = vunpack.c.l.b16 %v6697
    %v7218 = vunpack.c.l.b16 %v6698
    %v7219 = vunpack.c.l.b16 %v6699
    %v7220 = vunpack.c.l.b16 %v6700
    %v7221 = vunpack.c.l.b16 %v6701
    %v7222 = vunpack.c.l.b16 %v6702
    %v7223 = vunpack.c.l.b16 %v6703
    %v7224 = vunpack.c.l.b16 %v6704
    %v7225 = vunpack.c.l.b16 %v6705
    %v7226 = vunpack.c.l.b16 %v6706
    %v7227 = vunpack.c.l.b16 %v6707
    %v7228 = vunpack.c.l.b16 %v6708
    %v7229 = vunpack.c.l.b16 %v6709
    %v7230 = vunpack.c.l.b16 %v6710
    %v7231 = vunpack.c.l.b16 %v6711
    %v7232 = vunpack.c.l.b16 %v6712
    %v7233 = vunpack.c.l.b16 %v6713
    %v7234 = vunpack.c.l.b16 %v6714
    %v7235 = vunpack.c.l.b16 %v6715
    %v7236 = vunpack.c.l.b16 %v6716
    %v7237 = vunpack.c.l.b16 %v6717
    %v7238 = vunpack.c.l.b16 %v6718
    %v7239 = vunpack.c.l.b16 %v6719
    %v7240 = vunpack.c.l.b16 %v6720
    %v7241 = vunpack.c.l.b16 %v6721
    %v7242 = vunpack.c.l.b16 %v6722
    %v7243 = vunpack.c.l.b16 %v6723
    %v7244 = vunpack.c.l.b16 %v6724
    %v7245 = vunpack.c.l.b16 %v6725
    %v7246 = vunpack.c.l.b16 %v6726
    %v7247 = vunpack.c.l.b16 %v6727
    %v7248 = vunpack.c.l.b16 %v6728
    %v7249 = vunpack.c.l.b16 %v6729
    %v7250 = vunpack.c.l.b16 %v6730
    %v7251 = vunpack.c.l.b16 %v6731
    %v7252 = vunpack.c.l.b16 %v6732
    %v7253 = vunpack.c.l.b16 %v6733
    %v7254 = vunpack.c.l.b16 %v6734
    %v7255 = vunpack.c.l.b16 %v6735
    %v7256 = vunpack.c.l.b16 %v6736
    %v7257 = vunpack.c.l.b16 %v6737
    %v7258 = vunpack.c.l.b16 %v6738
    %v7259 = vunpack.c.l.b16 %v6739
    %v7260 = vunpack.c.l.b16 %v6740
    %v7261 = vunpack.c.l.b16 %v6741
    %v7262 = vunpack.c.l.b16 %v6742
    %v7263 = vunpack.c.l.b16 %v6743
    %v7264 = vunpack.c.l.b16 %v6744
    %v7265 = vunpack.c.l.b16 %v6745
    %v7266 = vunpack.c.l.b16 %v6746
    %v7267 = vunpack.c.l.b16 %v6747
    %v7268 = vunpack.c.l.b16 %v6748
    %v7269 = vunpack.c.l.b16 %v6749
    %v7270 = vunpack.c.l.b16 %v6750
    %v7271 = vunpack.c.l.b16 %v6751
    %v7272 = vunpack.c.l.b16 %v6752
    %v7273 = vunpack.c.l.b16 %v6753
    %v7274 = vunpack.c.l.b16 %v6754
    %v7275 = vunpack.c.l.b16 %v6755
    %v7276 = vunpack.c.l.b16 %v6756
    %v7277 = vunpack.c.l.b16 %v6757
    %v7278 = vunpack.c.l.b16 %v6758
    %v7279 = vunpack.c.l.b16 %v6759
    %v7280 = vunpack.c.l.b16 %v6760
    %v7281 = vunpack.c.l.b16 %v6761
    %v7282 = vunpack.c.l.b16 %v6762
    %v7283 = vunpack.c.l.b16 %v6763
    %v7284 = vunpack.c.l.b16 %v6764
    %v7285 = vunpack.c.l.b16 %v6765
    %v7286 = vunpack.c.l.b16 %v6766
    %v7287 = vunpack.c.l.b16 %v6767
    %v7288 = vunpack.c.l.b16 %v6768
    %v7289 = vunpack.c.l.b16 %v6769
    %v7290 = vunpack.c.l.b16 %v6770
    %v7291 = vunpack.c.l.b16 %v6771
    %v7292 = vunpack.c.l.b16 %v6772
    %v7293 = vunpack.c.l.b16 %v6773
    %v7294 = vunpack.c.l.b16 %v6774
    %v7295 = vunpack.c.l.b16 %v6775
    %v7296 = vunpack.c.l.b16 %v6776
    %v7297 = vunpack.c.l.b16 %v6777
    %v7298 = vunpack.c.l.b16 %v6778
    %v7299 = vunpack.c.l.b16 %v6779
    %v7300 = vunpack.c.l.b16 %v6780
    %v7301 = vunpack.c.l.b16 %v6781
    %v7302 = vunpack.c.l.b16 %v6782
    %v7303 = vunpack.c.l.b16 %v6783
    %v7304 = vunpack.c.l.b16 %v6784
    %v7305 = vunpack.c.l.b16 %v6785
    %v7306 = vunpack.c.l.b16 %v6786
    %v7307 = vunpack.c.l.b16 %v6787
    %v7308 = vunpack.c.l.b16 %v6788
    %v7309 = vunpack.c.l.b16 %v6789
    %v7310 = vunpack.c.l.b16 %v6790
    %v7311 = vunpack.c.l.b16 %v6791
    %v7312 = vunpack.c.l.b16 %v6792
    %v7313 = vunpack.c.l.b16 %v6793
    %v7314 = vunpack.c.l.b16 %v6794
    %v7315 = vunpack.c.l.b16 %v6795
    %v7316 = vunpack.c.l.b16 %v6796
    %v7317 = vunpack.c.l.b16 %v6797
    %v7318 = vunpack.c.l.b16 %v6798
    %v7319 = vunpack.c.l.b16 %v6799
    %v7320 = vunpack.c.l.b16 %v6800
    %v7321 = vunpack.c.l.b16 %v6801
    %v7322 = vunpack.c.l.b16 %v6802
    %v7323 = vunpack.c.l.b16 %v6803
    %v7324 = vunpack.c.l.b16 %v6804
    %v7325 = vunpack.c.l.b16 %v6805
    %v7326 = vunpack.c.l.b16 %v6806
    %v7327 = vunpack.c.l.b16 %v6807
    %v7328 = vunpack.c.l.b16 %v6808
    %v7329 = vunpack.c.l.b16 %v6809
    %v7330 = vunpack.c.l.b16 %v6810
    %v7331 = vunpack.c.l.b16 %v6811
    %v7332 = vunpack.c.l.b16 %v6812
    %v7333 = vunpack.c.l.b16 %v6813
    %v7334 = vunpack.c.l.b16 %v6814
    %v7335 = vunpack.c.l.b16 %v6815
    %v7336 = vunpack.c.l.b16 %v6816
    %v7337 = vunpack.c.l.b16 %v6817
    %v7338 = vunpack.c.l.b16 %v6818
    %v7339 = vunpack.c.l.b16 %v6819
    %v7340 = vunpack.c.l.b16 %v6820
    %v7341 = vunpack.c.l.b16 %v6821
    %v7342 = vunpack.c.l.b16 %v6822
    %v7343 = vunpack.c.l.b16 %v6823
    %v7344 = vunpack.c.l.b16 %v6824
    %v7345 = vunpack.c.l.b16 %v6825
    %v7346 = vunpack.c.l.b16 %v6826
    %v7347 = vunpack.c.l.b16 %v6827
    %v7348 = vunpack.c.l.b16 %v6828
    %v7349 = vunpack.c.l.b16 %v6829
    %v7350 = vunpack.c.l.b16 %v6830
    %v7351 = vunpack.c.l.b16 %v6831
    %v7352 = vunpack.c.l.b16 %v6832
    %v7353 = vunpack.c.l.b16 %v6833
    %v7354 = vunpack.c.l.b16 %v6834
    %v7355 = vunpack.c.l.b16 %v6835
    %v7356 = vunpack.c.l.b16 %v6836
    %v7357 = vunpack.c.l.b16 %v6837
    %v7358 = vunpack.c.l.b16 %v6838
    %v7359 = vunpack.c.l.b16 %v6839
    %v7360 = vunpack.c.l.b16 %v6840
    %v7361 = vunpack.c.l.b16 %v6841
    %v7362 = vunpack.c.l.b16 %v6842
    %v7363 = vunpack.c.l.b16 %v6843
    %v7364 = vunpack.c.l.b16 %v6844
    %v7365 = vunpack.c.l.b16 %v6845
    %v7366 = vunpack.c.l.b16 %v6846
    %v7367 = vunpack.c.l.b16 %v6847
    %v7368 = vunpack.c.l.b16 %v6848
    %v7369 = vunpack.c.l.b16 %v6849
    %v7370 = vunpack.c.l.b16 %v6850
    %v7371 = vunpack.c.l.b16 %v6851
    %v7372 = vunpack.c.l.b16 %v6852
    %v7373 = vunpack.c.l.b16 %v6853
    %v7374 = vunpack.c.l.b16 %v6854
    %v7375 = vunpack.c.l.b16 %v6855
    %v7376 = vunpack.c.l.b16 %v6856
    %v7377 = vunpack.c.l.b16 %v6857
    %v7378 = vunpack.c.l.b16 %v6858
    %v7379 = vunpack.c.l.b16 %v6859
    %v7380 = vunpack.c.l.b16 %v6860
    %v7381 = vunpack.c.l.b16 %v6861
    %v7382 = vunpack.c.l.b16 %v6862
    %v7383 = vunpack.c.l.b16 %v6863
    %v7384 = vunpack.c.l.b16 %v6864
    %v7385 = vunpack.c.l.b16 %v6865
    %v7386 = vunpack.c.l.b16 %v6866
    %v7387 = vunpack.c.l.b16 %v6867
    %v7388 = vunpack.c.l.b16 %v6868
    %v7389 = vunpack.c.l.b16 %v6869
    %v7390 = vunpack.c.l.b16 %v6870
    %v7391 = vunpack.c.l.b16 %v6871
    %v7392 = vunpack.c.l.b16 %v6872
    %v7393 = vunpack.c.l.b16 %v6873
    %v7394 = vunpack.c.l.b16 %v6874
    %v7395 = vunpack.c.l.b16 %v6875
    %v7396 = vunpack.c.l.b16 %v6876
    %v7397 = vunpack.c.l.b16 %v6877
    %v7398 = vunpack.c.l.b16 %v6878
    %v7399 = vunpack.c.l.b16 %v6879
    %v7400 = vunpack.c.l.b16 %v6880
    %v7401 = vunpack.c.l.b16 %v6881
    %v7402 = vunpack.c.l.b16 %v6882
    %v7403 = vunpack.c.l.b16 %v6883
    %v7404 = vunpack.c.l.b16 %v6884
    %v7405 = vunpack.c.l.b16 %v6885
    %v7406 = vunpack.c.l.b16 %v6886
    %v7407 = vunpack.c.l.b16 %v6887
    %v7408 = vunpack.c.l.b16 %v6888
    %v7409 = vunpack.c.l.b16 %v6889
    %v7410 = vunpack.c.l.b16 %v6890
    %v7411 = vunpack.c.l.b16 %v6891
    %v7412 = vunpack.c.l.b16 %v6892
    %v7413 = vunpack.c.l.b16 %v6893
    %v7414 = vunpack.c.l.b16 %v6894
    %v7415 = vunpack.c.l.b16 %v6895
    %v7416 = vunpack.c.l.b16 %v6896
    %v7417 = vunpack.c.l.b16 %v6897
    %v7418 = vunpack.c.l.b16 %v6898
    %v7419 = vunpack.c.l.b16 %v6899
    %v7420 = vunpack.c.l.b16 %v6900
    %v7421 = vunpack.c.l.b16 %v6901
    %v7422 = vpack.c.b16 %v7167, %v7166
    %v7423 = vpack.c.b16 %v7169, %v7168
    %v7424 = vpack.c.b16 %v7171, %v7170
    %v7425 = vpack.c.b16 %v7173, %v7172
    %v7426 = vpack.c.b16 %v7175, %v7174
    %v7427 = vpack.c.b16 %v7177, %v7176
    %v7428 = vpack.c.b16 %v7179, %v7178
    %v7429 = vpack.c.b16 %v7181, %v7180
    %v7430 = vpack.c.b16 %v7183, %v7182
    %v7431 = vpack.c.b16 %v7185, %v7184
    %v7432 = vpack.c.b16 %v7187, %v7186
    %v7433 = vpack.c.b16 %v7189, %v7188
    %v7434 = vpack.c.b16 %v7191, %v7190
    %v7435 = vpack.c.b16 %v7193, %v7192
    %v7436 = vpack.c.b16 %v7195, %v7194
    %v7437 = vpack.c.b16 %v7197, %v7196
    %v7438 = vpack.c.b16 %v7199, %v7198
    %v7439 = vpack.c.b16 %v7201, %v7200
    %v7440 = vpack.c.b16 %v7203, %v7202
    %v7441 = vpack.c.b16 %v7205, %v7204
    %v7442 = vpack.c.b16 %v7207, %v7206
    %v7443 = vpack.c.b16 %v7209, %v7208
    %v7444 = vpack.c.b16 %v7211, %v7210
    %v7445 = vpack.c.b16 %v7213, %v7212
    %v7446 = vpack.c.b16 %v7215, %v7214
    %v7447 = vpack.c.b16 %v7217, %v7216
    %v7448 = vpack.c.b16 %v7219, %v7218
    %v7449 = vpack.c.b16 %v7221, %v7220
    %v7450 = vpack.c.b16 %v7223, %v7222
    %v7451 = vpack.c.b16 %v7225, %v7224
    %v7452 = vpack.c.b16 %v7227, %v7226
    %v7453 = vpack.c.b16 %v7229, %v7228
    %v7454 = vpack.c.b16 %v7231, %v7230
    %v7455 = vpack.c.b16 %v7233, %v7232
    %v7456 = vpack.c.b16 %v7235, %v7234
    %v7457 = vpack.c.b16 %v7237, %v7236
    %v7458 = vpack.c.b16 %v7239, %v7238
    %v7459 = vpack.c.b16 %v7241, %v7240
    %v7460 = vpack.c.b16 %v7243, %v7242
    %v7461 = vpack.c.b16 %v7245, %v7244
    %v7462 = vpack.c.b16 %v7247, %v7246
    %v7463 = vpack.c.b16 %v7249, %v7248
    %v7464 = vpack.c.b16 %v7251, %v7250
    %v7465 = vpack.c.b16 %v7253, %v7252
    %v7466 = vpack.c.b16 %v7255, %v7254
    %v7467 = vpack.c.b16 %v7257, %v7256
    %v7468 = vpack.c.b16 %v7259, %v7258
    %v7469 = vpack.c.b16 %v7261, %v7260
    %v7470 = vpack.c.b16 %v7263, %v7262
    %v7471 = vpack.c.b16 %v7265, %v7264
    %v7472 = vpack.c.b16 %v7267, %v7266
    %v7473 = vpack.c.b16 %v7269, %v7268
    %v7474 = vpack.c.b16 %v7271, %v7270
    %v7475 = vpack.c.b16 %v7273, %v7272
    %v7476 = vpack.c.b16 %v7275, %v7274
    %v7477 = vpack.c.b16 %v7277, %v7276
    %v7478 = vpack.c.b16 %v7279, %v7278
    %v7479 = vpack.c.b16 %v7281, %v7280
    %v7480 = vpack.c.b16 %v7283, %v7282
    %v7481 = vpack.c.b16 %v7285, %v7284
    %v7482 = vpack.c.b16 %v7287, %v7286
    %v7483 = vpack.c.b16 %v7289, %v7288
    %v7484 = vpack.c.b16 %v7291, %v7290
    %v7485 = vpack.c.b16 %v7293, %v7292
    %v7486 = vpack.c.b16 %v7295, %v7294
    %v7487 = vpack.c.b16 %v7297, %v7296
    %v7488 = vpack.c.b16 %v7299, %v7298
    %v7489 = vpack.c.b16 %v7301, %v7300
    %v7490 = vpack.c.b16 %v7303, %v7302
    %v7491 = vpack.c.b16 %v7305, %v7304
    %v7492 = vpack.c.b16 %v7307, %v7306
    %v7493 = vpack.c.b16 %v7309, %v7308
    %v7494 = vpack.c.b16 %v7311, %v7310
    %v7495 = vpack.c.b16 %v7313, %v7312
    %v7496 = vpack.c.b16 %v7315, %v7314
    %v7497 = vpack.c.b16 %v7317, %v7316
    %v7498 = vpack.c.b16 %v7319, %v7318
    %v7499 = vpack.c.b16 %v7321, %v7320
    %v7500 = vpack.c.b16 %v7323, %v7322
    %v7501 = vpack.c.b16 %v7325, %v7324
    %v7502 = vpack.c.b16 %v7327, %v7326
    %v7503 = vpack.c.b16 %v7329, %v7328
    %v7504 = vpack.c.b16 %v7331, %v7330
    %v7505 = vpack.c.b16 %v7333, %v7332
    %v7506 = vpack.c.b16 %v7335, %v7334
    %v7507 = vpack.c.b16 %v7337, %v7336
    %v7508 = vpack.c.b16 %v7339, %v7338
    %v7509 = vpack.c.b16 %v7341, %v7340
    %v7510 = vpack.c.b16 %v7343, %v7342
    %v7511 = vpack.c.b16 %v7345, %v7344
    %v7512 = vpack.c.b16 %v7347, %v7346
    %v7513 = vpack.c.b16 %v7349, %v7348
    %v7514 = vpack.c.b16 %v7351, %v7350
    %v7515 = vpack.c.b16 %v7353, %v7352
    %v7516 = vpack.c.b16 %v7355, %v7354
    %v7517 = vpack.c.b16 %v7357, %v7356
    %v7518 = vpack.c.b16 %v7359, %v7358
    %v7519 = vpack.c.b16 %v7361, %v7360
    %v7520 = vpack.c.b16 %v7363, %v7362
    %v7521 = vpack.c.b16 %v7365, %v7364
    %v7522 = vpack.c.b16 %v7367, %v7366
    %v7523 = vpack.c.b16 %v7369, %v7368
    %v7524 = vpack.c.b16 %v7371, %v7370
    %v7525 = vpack.c.b16 %v7373, %v7372
    %v7526 = vpack.c.b16 %v7375, %v7374
    %v7527 = vpack.c.b16 %v7377, %v7376
    %v7528 = vpack.c.b16 %v7379, %v7378
    %v7529 = vpack.c.b16 %v7381, %v7380
    %v7530 = vpack.c.b16 %v7383, %v7382
    %v7531 = vpack.c.b16 %v7385, %v7384
    %v7532 = vpack.c.b16 %v7387, %v7386
    %v7533 = vpack.c.b16 %v7389, %v7388
    %v7534 = vpack.c.b16 %v7391, %v7390
    %v7535 = vpack.c.b16 %v7393, %v7392
    %v7536 = vpack.c.b16 %v7395, %v7394
    %v7537 = vpack.c.b16 %v7397, %v7396
    %v7538 = vpack.c.b16 %v7399, %v7398
    %v7539 = vpack.c.b16 %v7401, %v7400
    %v7540 = vpack.c.b16 %v7403, %v7402
    %v7541 = vpack.c.b16 %v7405, %v7404
    %v7542 = vpack.c.b16 %v7407, %v7406
    %v7543 = vpack.c.b16 %v7409, %v7408
    %v7544 = vpack.c.b16 %v7411, %v7410
    %v7545 = vpack.c.b16 %v7413, %v7412
    %v7546 = vpack.c.b16 %v7415, %v7414
    %v7547 = vpack.c.b16 %v7417, %v7416
    %v7548 = vpack.c.b16 %v7419, %v7418
    %v7549 = vpack.c.b16 %v7421, %v7420
    %7678 = vmatprep.subr.bf16.mxu0 0
    %7679 = vmatpush1.bf16.msra.mxu0 %v7422
    %7680 = vmatprep.subr.bf16.mxu0 0
    %7681 = vmatpush1.bf16.msra.mxu0 %v7423
    %7682 = vmatprep.subr.bf16.mxu0 0
    %7683 = vmatpush1.bf16.msra.mxu0 %v7424
    %7684 = vmatprep.subr.bf16.mxu0 0
    %7685 = vmatpush1.bf16.msra.mxu0 %v7425
    %7686 = vmatprep.subr.bf16.mxu0 0
    %7687 = vmatpush1.bf16.msra.mxu0 %v7426
    %7688 = vmatprep.subr.bf16.mxu0 0
    %7689 = vmatpush1.bf16.msra.mxu0 %v7427
    %7690 = vmatprep.subr.bf16.mxu0 0
    %7691 = vmatpush1.bf16.msra.mxu0 %v7428
    %7692 = vmatprep.subr.bf16.mxu0 0
    %7693 = vmatpush1.bf16.msra.mxu0 %v7429
    %7694 = vmatprep.subr.bf16.mxu0 0
    %7695 = vmatpush1.bf16.msra.mxu0 %v7430
    %7696 = vmatprep.subr.bf16.mxu0 0
    %7697 = vmatpush1.bf16.msra.mxu0 %v7431
    %7698 = vmatprep.subr.bf16.mxu0 0
    %7699 = vmatpush1.bf16.msra.mxu0 %v7432
    %7700 = vmatprep.subr.bf16.mxu0 0
    %7701 = vmatpush1.bf16.msra.mxu0 %v7433
    %7702 = vmatprep.subr.bf16.mxu0 0
    %7703 = vmatpush1.bf16.msra.mxu0 %v7434
    %7704 = vmatprep.subr.bf16.mxu0 0
    %7705 = vmatpush1.bf16.msra.mxu0 %v7435
    %7706 = vmatprep.subr.bf16.mxu0 0
    %7707 = vmatpush1.bf16.msra.mxu0 %v7436
    %7708 = vmatprep.subr.bf16.mxu0 0
    %7709 = vmatpush1.bf16.msra.mxu0 %v7437
    %7710 = vmatprep.mubr.bf16.mxu0 %v6614
    %7711 = vmatmul.mubr.bf16.gmra.mrb[0].mxu0 %v6613
    %v7712 = vpop.f32.mrb[0].mxu0
    %v7713 = vadd.f32 %v6908, %v7712
    %v7714 = vpop.f32.mrb[0].mxu0
    %v7715 = vpop.f32.mrb[0].mxu0
    %v7716 = vadd.f32 %v6908, %v7715
    %v7717 = vpop.f32.mrb[0].mxu0
    %7718 = vmatprep.mubr.bf16.mxu0 %v6630
    %7719 = vmatmul.mubr.bf16.gmra.mrb[0].mxu0 %v6629
    %v7720 = vpop.f32.mrb[0].mxu0
    %v7721 = vadd.f32 %v6908, %v7720
    %v7722 = vpop.f32.mrb[0].mxu0
    %v7723 = vpop.f32.mrb[0].mxu0
    %v7724 = vadd.f32 %v6908, %v7723
    %v7725 = vpop.f32.mrb[0].mxu0
    %7726 = vdwg.mxu0
    %7727 = vmatprep.subr.bf16.mxu0 0
    %7728 = vmatpush1.bf16.msra.mxu0 %v7438
    %7729 = vmatprep.subr.bf16.mxu0 0
    %7730 = vmatpush1.bf16.msra.mxu0 %v7439
    %7731 = vmatprep.subr.bf16.mxu0 0
    %7732 = vmatpush1.bf16.msra.mxu0 %v7440
    %7733 = vmatprep.subr.bf16.mxu0 0
    %7734 = vmatpush1.bf16.msra.mxu0 %v7441
    %7735 = vmatprep.subr.bf16.mxu0 0
    %7736 = vmatpush1.bf16.msra.mxu0 %v7442
    %7737 = vmatprep.subr.bf16.mxu0 0
    %7738 = vmatpush1.bf16.msra.mxu0 %v7443
    %7739 = vmatprep.subr.bf16.mxu0 0
    %7740 = vmatpush1.bf16.msra.mxu0 %v7444
    %7741 = vmatprep.subr.bf16.mxu0 0
    %7742 = vmatpush1.bf16.msra.mxu0 %v7445
    %7743 = vmatprep.subr.bf16.mxu0 0
    %7744 = vmatpush1.bf16.msra.mxu0 %v7446
    %7745 = vmatprep.subr.bf16.mxu0 0
    %7746 = vmatpush1.bf16.msra.mxu0 %v7447
    %7747 = vmatprep.subr.bf16.mxu0 0
    %7748 = vmatpush1.bf16.msra.mxu0 %v7448
    %7749 = vmatprep.subr.bf16.mxu0 0
    %7750 = vmatpush1.bf16.msra.mxu0 %v7449
    %7751 = vmatprep.subr.bf16.mxu0 0
    %7752 = vmatpush1.bf16.msra.mxu0 %v7450
    %7753 = vmatprep.subr.bf16.mxu0 0
    %7754 = vmatpush1.bf16.msra.mxu0 %v7451
    %7755 = vmatprep.subr.bf16.mxu0 0
    %7756 = vmatpush1.bf16.msra.mxu0 %v7452
    %7757 = vmatprep.subr.bf16.mxu0 0
    %7758 = vmatpush1.bf16.msra.mxu0 %v7453
    %7759 = vmatprep.mubr.bf16.mxu0 %v6616
    %7760 = vmatmul.mubr.bf16.gmra.mrb[0].mxu0 %v6615
    %v7761 = vpop.f32.mrb[0].mxu0
    %v7762 = vadd.f32 %v7713, %v7761
    %v7763 = vpop.f32.mrb[0].mxu0
    %v7764 = vpop.f32.mrb[0].mxu0
    %v7765 = vadd.f32 %v7716, %v7764
    %v7766 = vpop.f32.mrb[0].mxu0
    %7767 = vmatprep.mubr.bf16.mxu0 %v6632
    %7768 = vmatmul.mubr.bf16.gmra.mrb[0].mxu0 %v6631
    %v7769 = vpop.f32.mrb[0].mxu0
    %v7770 = vadd.f32 %v7721, %v7769
    %v7771 = vpop.f32.mrb[0].mxu0
    %v7772 = vpop.f32.mrb[0].mxu0
    %v7773 = vadd.f32 %v7724, %v7772
    %v7774 = vpop.f32.mrb[0].mxu0
    %7775 = vdwg.mxu0
    %7776 = vmatprep.subr.bf16.mxu0 0
    %7777 = vmatpush1.bf16.msra.mxu0 %v7454
    %7778 = vmatprep.subr.bf16.mxu0 0
    %7779 = vmatpush1.bf16.msra.mxu0 %v7455
    %7780 = vmatprep.subr.bf16.mxu0 0
    %7781 = vmatpush1.bf16.msra.mxu0 %v7456
    %7782 = vmatprep.subr.bf16.mxu0 0
    %7783 = vmatpush1.bf16.msra.mxu0 %v7457
    %7784 = vmatprep.subr.bf16.mxu0 0
    %7785 = vmatpush1.bf16.msra.mxu0 %v7458
    %7786 = vmatprep.subr.bf16.mxu0 0
    %7787 = vmatpush1.bf16.msra.mxu0 %v7459
    %7788 = vmatprep.subr.bf16.mxu0 0
    %7789 = vmatpush1.bf16.msra.mxu0 %v7460
    %7790 = vmatprep.subr.bf16.mxu0 0
    %7791 = vmatpush1.bf16.msra.mxu0 %v7461
    %7792 = vmatprep.subr.bf16.mxu0 0
    %7793 = vmatpush1.bf16.msra.mxu0 %v7462
    %7794 = vmatprep.subr.bf16.mxu0 0
    %7795 = vmatpush1.bf16.msra.mxu0 %v7463
    %7796 = vmatprep.subr.bf16.mxu0 0
    %7797 = vmatpush1.bf16.msra.mxu0 %v7464
    %7798 = vmatprep.subr.bf16.mxu0 0
    %7799 = vmatpush1.bf16.msra.mxu0 %v7465
    %7800 = vmatprep.subr.bf16.mxu0 0
    %7801 = vmatpush1.bf16.msra.mxu0 %v7466
    %7802 = vmatprep.subr.bf16.mxu0 0
    %7803 = vmatpush1.bf16.msra.mxu0 %v7467
    %7804 = vmatprep.subr.bf16.mxu0 0
    %7805 = vmatpush1.bf16.msra.mxu0 %v7468
    %7806 = vmatprep.subr.bf16.mxu0 0
    %7807 = vmatpush1.bf16.msra.mxu0 %v7469
    %7808 = vmatprep.mubr.bf16.mxu0 %v6618
    %7809 = vmatmul.mubr.bf16.gmra.mrb[0].mxu0 %v6617
    %v7810 = vpop.f32.mrb[0].mxu0
    %v7811 = vadd.f32 %v7762, %v7810
    %v7812 = vpop.f32.mrb[0].mxu0
    %v7813 = vpop.f32.mrb[0].mxu0
    %v7814 = vadd.f32 %v7765, %v7813
    %v7815 = vpop.f32.mrb[0].mxu0
    %7816 = vmatprep.mubr.bf16.mxu0 %v6634
    %7817 = vmatmul.mubr.bf16.gmra.mrb[0].mxu0 %v6633
    %v7818 = vpop.f32.mrb[0].mxu0
    %v7819 = vadd.f32 %v7770, %v7818
    %v7820 = vpop.f32.mrb[0].mxu0
    %v7821 = vpop.f32.mrb[0].mxu0
    %v7822 = vadd.f32 %v7773, %v7821
    %v7823 = vpop.f32.mrb[0].mxu0
    %7824 = vdwg.mxu0
    %7825 = vmatprep.subr.bf16.mxu0 0
    %7826 = vmatpush1.bf16.msra.mxu0 %v7470
    %7827 = vmatprep.subr.bf16.mxu0 0
    %7828 = vmatpush1.bf16.msra.mxu0 %v7471
    %7829 = vmatprep.subr.bf16.mxu0 0
    %7830 = vmatpush1.bf16.msra.mxu0 %v7472
    %7831 = vmatprep.subr.bf16.mxu0 0
    %7832 = vmatpush1.bf16.msra.mxu0 %v7473
    %7833 = vmatprep.subr.bf16.mxu0 0
    %7834 = vmatpush1.bf16.msra.mxu0 %v7474
    %7835 = vmatprep.subr.bf16.mxu0 0
    %7836 = vmatpush1.bf16.msra.mxu0 %v7475
    %7837 = vmatprep.subr.bf16.mxu0 0
    %7838 = vmatpush1.bf16.msra.mxu0 %v7476
    %7839 = vmatprep.subr.bf16.mxu0 0
    %7840 = vmatpush1.bf16.msra.mxu0 %v7477
    %7841 = vmatprep.subr.bf16.mxu0 0
    %7842 = vmatpush1.bf16.msra.mxu0 %v7478
    %7843 = vmatprep.subr.bf16.mxu0 0
    %7844 = vmatpush1.bf16.msra.mxu0 %v7479
    %7845 = vmatprep.subr.bf16.mxu0 0
    %7846 = vmatpush1.bf16.msra.mxu0 %v7480
    %7847 = vmatprep.subr.bf16.mxu0 0
    %7848 = vmatpush1.bf16.msra.mxu0 %v7481
    %7849 = vmatprep.subr.bf16.mxu0 0
    %7850 = vmatpush1.bf16.msra.mxu0 %v7482
    %7851 = vmatprep.subr.bf16.mxu0 0
    %7852 = vmatpush1.bf16.msra.mxu0 %v7483
    %7853 = vmatprep.subr.bf16.mxu0 0
    %7854 = vmatpush1.bf16.msra.mxu0 %v7484
    %7855 = vmatprep.subr.bf16.mxu0 0
    %7856 = vmatpush1.bf16.msra.mxu0 %v7485
    %7857 = vmatprep.mubr.bf16.mxu0 %v6620
    %7858 = vmatmul.mubr.bf16.gmra.mrb[0].mxu0 %v6619
    %v7859 = vpop.f32.mrb[0].mxu0
    %v7860 = vadd.f32 %v7811, %v7859
    %v7861 = vpop.f32.mrb[0].mxu0
    %v7862 = vpop.f32.mrb[0].mxu0
    %v7863 = vadd.f32 %v7814, %v7862
    %v7864 = vpop.f32.mrb[0].mxu0
    %7865 = vmatprep.mubr.bf16.mxu0 %v6636
    %7866 = vmatmul.mubr.bf16.gmra.mrb[0].mxu0 %v6635
    %v7867 = vpop.f32.mrb[0].mxu0
    %v7868 = vadd.f32 %v7819, %v7867
    %v7869 = vpop.f32.mrb[0].mxu0
    %v7870 = vpop.f32.mrb[0].mxu0
    %v7871 = vadd.f32 %v7822, %v7870
    %v7872 = vpop.f32.mrb[0].mxu0
    %7873 = vdwg.mxu0
    %7874 = vmatprep.subr.bf16.mxu0 0
    %7875 = vmatpush1.bf16.msra.mxu0 %v7486
    %7876 = vmatprep.subr.bf16.mxu0 0
    %7877 = vmatpush1.bf16.msra.mxu0 %v7487
    %7878 = vmatprep.subr.bf16.mxu0 0
    %7879 = vmatpush1.bf16.msra.mxu0 %v7488
    %7880 = vmatprep.subr.bf16.mxu0 0
    %7881 = vmatpush1.bf16.msra.mxu0 %v7489
    %7882 = vmatprep.subr.bf16.mxu0 0
    %7883 = vmatpush1.bf16.msra.mxu0 %v7490
    %7884 = vmatprep.subr.bf16.mxu0 0
    %7885 = vmatpush1.bf16.msra.mxu0 %v7491
    %7886 = vmatprep.subr.bf16.mxu0 0
    %7887 = vmatpush1.bf16.msra.mxu0 %v7492
    %7888 = vmatprep.subr.bf16.mxu0 0
    %7889 = vmatpush1.bf16.msra.mxu0 %v7493
    %7890 = vmatprep.subr.bf16.mxu0 0
    %7891 = vmatpush1.bf16.msra.mxu0 %v7494
    %7892 = vmatprep.subr.bf16.mxu0 0
    %7893 = vmatpush1.bf16.msra.mxu0 %v7495
    %7894 = vmatprep.subr.bf16.mxu0 0
    %7895 = vmatpush1.bf16.msra.mxu0 %v7496
    %7896 = vmatprep.subr.bf16.mxu0 0
    %7897 = vmatpush1.bf16.msra.mxu0 %v7497
    %7898 = vmatprep.subr.bf16.mxu0 0
    %7899 = vmatpush1.bf16.msra.mxu0 %v7498
    %7900 = vmatprep.subr.bf16.mxu0 0
    %7901 = vmatpush1.bf16.msra.mxu0 %v7499
    %7902 = vmatprep.subr.bf16.mxu0 0
    %7903 = vmatpush1.bf16.msra.mxu0 %v7500
    %7904 = vmatprep.subr.bf16.mxu0 0
    %7905 = vmatpush1.bf16.msra.mxu0 %v7501
    %7906 = vmatprep.mubr.bf16.mxu0 %v6622
    %7907 = vmatmul.mubr.bf16.gmra.mrb[0].mxu0 %v6621
    %v7908 = vpop.f32.mrb[0].mxu0
    %v7909 = vadd.f32 %v7860, %v7908
    %v7910 = vpop.f32.mrb[0].mxu0
    %v7911 = vpop.f32.mrb[0].mxu0
    %v7912 = vadd.f32 %v7863, %v7911
    %v7913 = vpop.f32.mrb[0].mxu0
    %7914 = vmatprep.mubr.bf16.mxu0 %v6638
    %7915 = vmatmul.mubr.bf16.gmra.mrb[0].mxu0 %v6637
    %v7916 = vpop.f32.mrb[0].mxu0
    %v7917 = vadd.f32 %v7868, %v7916
    %v7918 = vpop.f32.mrb[0].mxu0
    %v7919 = vpop.f32.mrb[0].mxu0
    %v7920 = vadd.f32 %v7871, %v7919
    %v7921 = vpop.f32.mrb[0].mxu0
    %7922 = vdwg.mxu0
    %7923 = vmatprep.subr.bf16.mxu0 0
    %7924 = vmatpush1.bf16.msra.mxu0 %v7502
    %7925 = vmatprep.subr.bf16.mxu0 0
    %7926 = vmatpush1.bf16.msra.mxu0 %v7503
    %7927 = vmatprep.subr.bf16.mxu0 0
    %7928 = vmatpush1.bf16.msra.mxu0 %v7504
    %7929 = vmatprep.subr.bf16.mxu0 0
    %7930 = vmatpush1.bf16.msra.mxu0 %v7505
    %7931 = vmatprep.subr.bf16.mxu0 0
    %7932 = vmatpush1.bf16.msra.mxu0 %v7506
    %7933 = vmatprep.subr.bf16.mxu0 0
    %7934 = vmatpush1.bf16.msra.mxu0 %v7507
    %7935 = vmatprep.subr.bf16.mxu0 0
    %7936 = vmatpush1.bf16.msra.mxu0 %v7508
    %7937 = vmatprep.subr.bf16.mxu0 0
    %7938 = vmatpush1.bf16.msra.mxu0 %v7509
    %7939 = vmatprep.subr.bf16.mxu0 0
    %7940 = vmatpush1.bf16.msra.mxu0 %v7510
    %7941 = vmatprep.subr.bf16.mxu0 0
    %7942 = vmatpush1.bf16.msra.mxu0 %v7511
    %7943 = vmatprep.subr.bf16.mxu0 0
    %7944 = vmatpush1.bf16.msra.mxu0 %v7512
    %7945 = vmatprep.subr.bf16.mxu0 0
    %7946 = vmatpush1.bf16.msra.mxu0 %v7513
    %7947 = vmatprep.subr.bf16.mxu0 0
    %7948 = vmatpush1.bf16.msra.mxu0 %v7514
    %7949 = vmatprep.subr.bf16.mxu0 0
    %7950 = vmatpush1.bf16.msra.mxu0 %v7515
    %7951 = vmatprep.subr.bf16.mxu0 0
    %7952 = vmatpush1.bf16.msra.mxu0 %v7516
    %7953 = vmatprep.subr.bf16.mxu0 0
    %7954 = vmatpush1.bf16.msra.mxu0 %v7517
    %7955 = vmatprep.mubr.bf16.mxu0 %v6624
    %7956 = vmatmul.mubr.bf16.gmra.mrb[0].mxu0 %v6623
    %v7957 = vpop.f32.mrb[0].mxu0
    %v7958 = vadd.f32 %v7909, %v7957
    %v7959 = vpop.f32.mrb[0].mxu0
    %v7960 = vpop.f32.mrb[0].mxu0
    %v7961 = vadd.f32 %v7912, %v7960
    %v7962 = vpop.f32.mrb[0].mxu0
    %7963 = vmatprep.mubr.bf16.mxu0 %v6640
    %7964 = vmatmul.mubr.bf16.gmra.mrb[0].mxu0 %v6639
    %v7965 = vpop.f32.mrb[0].mxu0
    %v7966 = vadd.f32 %v7917, %v7965
    %v7967 = vpop.f32.mrb[0].mxu0
    %v7968 = vpop.f32.mrb[0].mxu0
    %v7969 = vadd.f32 %v7920, %v7968
    %v7970 = vpop.f32.mrb[0].mxu0
    %7971 = vdwg.mxu0
    %7972 = vmatprep.subr.bf16.mxu0 0
    %7973 = vmatpush1.bf16.msra.mxu0 %v7518
    %7974 = vmatprep.subr.bf16.mxu0 0
    %7975 = vmatpush1.bf16.msra.mxu0 %v7519
    %7976 = vmatprep.subr.bf16.mxu0 0
    %7977 = vmatpush1.bf16.msra.mxu0 %v7520
    %7978 = vmatprep.subr.bf16.mxu0 0
    %7979 = vmatpush1.bf16.msra.mxu0 %v7521
    %7980 = vmatprep.subr.bf16.mxu0 0
    %7981 = vmatpush1.bf16.msra.mxu0 %v7522
    %7982 = vmatprep.subr.bf16.mxu0 0
    %7983 = vmatpush1.bf16.msra.mxu0 %v7523
    %7984 = vmatprep.subr.bf16.mxu0 0
    %7985 = vmatpush1.bf16.msra.mxu0 %v7524
    %7986 = vmatprep.subr.bf16.mxu0 0
    %7987 = vmatpush1.bf16.msra.mxu0 %v7525
    %7988 = vmatprep.subr.bf16.mxu0 0
    %7989 = vmatpush1.bf16.msra.mxu0 %v7526
    %7990 = vmatprep.subr.bf16.mxu0 0
    %7991 = vmatpush1.bf16.msra.mxu0 %v7527
    %7992 = vmatprep.subr.bf16.mxu0 0
    %7993 = vmatpush1.bf16.msra.mxu0 %v7528
    %7994 = vmatprep.subr.bf16.mxu0 0
    %7995 = vmatpush1.bf16.msra.mxu0 %v7529
    %7996 = vmatprep.subr.bf16.mxu0 0
    %7997 = vmatpush1.bf16.msra.mxu0 %v7530
    %7998 = vmatprep.subr.bf16.mxu0 0
    %7999 = vmatpush1.bf16.msra.mxu0 %v7531
    %8000 = vmatprep.subr.bf16.mxu0 0
    %8001 = vmatpush1.bf16.msra.mxu0 %v7532
    %8002 = vmatprep.subr.bf16.mxu0 0
    %8003 = vmatpush1.bf16.msra.mxu0 %v7533
    %8004 = vmatprep.mubr.bf16.mxu0 %v6626
    %8005 = vmatmul.mubr.bf16.gmra.mrb[0].mxu0 %v6625
    %v8006 = vpop.f32.mrb[0].mxu0
    %v8007 = vadd.f32 %v7958, %v8006
    %v8008 = vpop.f32.mrb[0].mxu0
    %v8009 = vpop.f32.mrb[0].mxu0
    %v8010 = vadd.f32 %v7961, %v8009
    %v8011 = vpop.f32.mrb[0].mxu0
    %8012 = vmatprep.mubr.bf16.mxu0 %v6642
    %8013 = vmatmul.mubr.bf16.gmra.mrb[0].mxu0 %v6641
    %v8014 = vpop.f32.mrb[0].mxu0
    %v8015 = vadd.f32 %v7966, %v8014
    %v8016 = vpop.f32.mrb[0].mxu0
    %v8017 = vpop.f32.mrb[0].mxu0
    %v8018 = vadd.f32 %v7969, %v8017
    %v8019 = vpop.f32.mrb[0].mxu0
    %8020 = vdwg.mxu0
    %8021 = vmatprep.subr.bf16.mxu0 0
    %8022 = vmatpush1.bf16.msra.mxu0 %v7534
    %8023 = vmatprep.subr.bf16.mxu0 0
    %8024 = vmatpush1.bf16.msra.mxu0 %v7535
    %8025 = vmatprep.subr.bf16.mxu0 0
    %8026 = vmatpush1.bf16.msra.mxu0 %v7536
    %8027 = vmatprep.subr.bf16.mxu0 0
    %8028 = vmatpush1.bf16.msra.mxu0 %v7537
    %8029 = vmatprep.subr.bf16.mxu0 0
    %8030 = vmatpush1.bf16.msra.mxu0 %v7538
    %8031 = vmatprep.subr.bf16.mxu0 0
    %8032 = vmatpush1.bf16.msra.mxu0 %v7539
    %8033 = vmatprep.subr.bf16.mxu0 0
    %8034 = vmatpush1.bf16.msra.mxu0 %v7540
    %8035 = vmatprep.subr.bf16.mxu0 0
    %8036 = vmatpush1.bf16.msra.mxu0 %v7541
    %8037 = vmatprep.subr.bf16.mxu0 0
    %8038 = vmatpush1.bf16.msra.mxu0 %v7542
    %8039 = vmatprep.subr.bf16.mxu0 0
    %8040 = vmatpush1.bf16.msra.mxu0 %v7543
    %8041 = vmatprep.subr.bf16.mxu0 0
    %8042 = vmatpush1.bf16.msra.mxu0 %v7544
    %8043 = vmatprep.subr.bf16.mxu0 0
    %8044 = vmatpush1.bf16.msra.mxu0 %v7545
    %8045 = vmatprep.subr.bf16.mxu0 0
    %8046 = vmatpush1.bf16.msra.mxu0 %v7546
    %8047 = vmatprep.subr.bf16.mxu0 0
    %8048 = vmatpush1.bf16.msra.mxu0 %v7547
    %8049 = vmatprep.subr.bf16.mxu0 0
    %8050 = vmatpush1.bf16.msra.mxu0 %v7548
    %8051 = vmatprep.subr.bf16.mxu0 0
    %8052 = vmatpush1.bf16.msra.mxu0 %v7549
    %8053 = vmatprep.mubr.bf16.mxu0 %v6628
    %8054 = vmatmul.mubr.bf16.gmra.mrb[0].mxu0 %v6627
    %v8055 = vpop.f32.mrb[0].mxu0
    %v8056 = vadd.f32 %v8007, %v8055
    %v8057 = vpop.f32.mrb[0].mxu0
    %v8058 = vpop.f32.mrb[0].mxu0
    %v8059 = vadd.f32 %v8010, %v8058
    %v8060 = vpop.f32.mrb[0].mxu0
    %8061 = vmatprep.mubr.bf16.mxu0 %v6644
    %8062 = vmatmul.mubr.bf16.gmra.mrb[0].mxu0 %v6643
    %v8063 = vpop.f32.mrb[0].mxu0
    %v8064 = vadd.f32 %v8015, %v8063
    %v8065 = vpop.f32.mrb[0].mxu0
    %v8066 = vpop.f32.mrb[0].mxu0
    %v8067 = vadd.f32 %v8018, %v8066
    %v8068 = vpop.f32.mrb[0].mxu0
    %8069 = vdwg.mxu0
    %v8070 = vadd.f32 %v5643, %v8056
    %v8071 = vadd.f32 %v5644, %v8059
    %v8072 = vadd.f32 %v5645, %v8064
    %v8073 = vadd.f32 %v5646, %v8067
    %s8074 = scalar_lea.vmem %s17, 1
    %v8075 = vld [vmem:[%s8074] sm:$0x1]
    %s8076 = scalar_lea.vmem %s18, 1
    %v8077 = vld [vmem:[%s8076] sm:$0x1]
    %v8078 = vsel %vm291, %v8070, 0.0
    %8079 = vadd.xlane.f32.xlu0 %v8078
    %v8080 = vpop.xlane.xlu0 %8079
    %v8081 = vsel %vm291, %v8071, 0.0
    %8082 = vadd.xlane.f32.xlu0 %v8081
    %v8083 = vpop.xlane.xlu0 %8082
    %v8084 = vsel %vm291, %v8072, 0.0
    %8085 = vadd.xlane.f32.xlu0 %v8084
    %v8086 = vpop.xlane.xlu0 %8085
    %v8087 = vsel %vm291, %v8073, 0.0
    %8088 = vadd.xlane.f32.xlu0 %v8087
    %v8089 = vpop.xlane.xlu0 %8088
    %v8090 = vmul.f32 %v8080, %v1628
    %v8091 = vmul.f32 %v8083, %v1628
    %v8092 = vmul.f32 %v8086, %v1628
    %v8093 = vmul.f32 %v8089, %v1628
    %v8094 = vsub.f32 %v8070, %v8090
    %v8095 = vsub.f32 %v8071, %v8091
    %v8096 = vsub.f32 %v8072, %v8092
    %v8097 = vsub.f32 %v8073, %v8093
    %v8098 = vmul.f32 %v8094, %v8094
    %v8099 = vmul.f32 %v8095, %v8095
    %v8100 = vmul.f32 %v8096, %v8096
    %v8101 = vmul.f32 %v8097, %v8097
    %v8102 = vsel %vm291, %v8098, 0.0
    %8103 = vadd.xlane.f32.xlu0 %v8102
    %v8104 = vpop.xlane.xlu0 %8103
    %v8105 = vsel %vm291, %v8099, 0.0
    %8106 = vadd.xlane.f32.xlu0 %v8105
    %v8107 = vpop.xlane.xlu0 %8106
    %v8108 = vsel %vm291, %v8100, 0.0
    %8109 = vadd.xlane.f32.xlu0 %v8108
    %v8110 = vpop.xlane.xlu0 %8109
    %v8111 = vsel %vm291, %v8101, 0.0
    %8112 = vadd.xlane.f32.xlu0 %v8111
    %v8113 = vpop.xlane.xlu0 %8112
    %v8114 = vmul.f32 %v8104, %v1628
    %v8115 = vmul.f32 %v8107, %v1628
    %v8116 = vmul.f32 %v8110, %v1628
    %v8117 = vmul.f32 %v8113, %v1628
    %v8118 = vadd.f32 %v8114, 1e-05
    %v8119 = vadd.f32 %v8115, 1e-05
    %v8120 = vadd.f32 %v8116, 1e-05
    %v8121 = vadd.f32 %v8117, 1e-05
    %v8122 = vrsqrt.pop %v8118
    %v8123 = vrsqrt.pop %v8119
    %v8124 = vrsqrt.pop %v8120
    %v8125 = vrsqrt.pop %v8121
    %v8126 = vmul.f32 %v8094, %v8122
    %v8127 = vmul.f32 %v8095, %v8123
    %v8128 = vmul.f32 %v8096, %v8124
    %v8129 = vmul.f32 %v8097, %v8125
    %v8131 = vlaneseq
    %v8132 = vshrl.u32 %v8131, 7
    %v8133 = vsub.s32 0, %v8132
    %v8134 = vrot.slane %v8075, %v8133
    %v8136 = vmul.f32 %v8126, %v8134
    %v8137 = vmul.f32 %v8127, %v8134
    %v8138 = vmul.f32 %v8128, %v8134
    %v8139 = vmul.f32 %v8129, %v8134
    %v8141 = vlaneseq
    %v8142 = vshrl.u32 %v8141, 7
    %v8143 = vsub.s32 0, %v8142
    %v8144 = vrot.slane %v8077, %v8143
    %v8146 = vadd.f32 %v8136, %v8144
    %v8147 = vadd.f32 %v8137, %v8144
    %v8148 = vadd.f32 %v8138, %v8144
    %v8149 = vadd.f32 %v8139, %v8144
    %v8150 = vld [vmem:[%s3] sm:$0x3]
    %v8152 = vsel %vm473, %v8150, 0
    %8154 = vmatprep.subr.mxu0 0.0
    %8155 = vmatpush1.msra.mxu0 %v8146
    %8156 = vmatprep.subr.mxu0 0.0
    %8157 = vmatpush1.msra.mxu0 %v8147
    %8158 = vmatprep.subr.mxu0 0.0
    %8159 = vmatpush1.msra.mxu0 %v8148
    %8160 = vmatprep.subr.mxu0 0.0
    %8161 = vmatpush1.msra.mxu0 %v8149
    %8162 = vmatprep.subr.mxu0 0.0
    %8163 = vmatpush1.msra.mxu0 0.0
    %8164 = vmatprep.subr.mxu0 0.0
    %8165 = vmatpush1.msra.mxu0 0.0
    %8166 = vmatprep.subr.mxu0 0.0
    %8167 = vmatpush1.msra.mxu0 0.0
    %8168 = vmatprep.subr.mxu0 0.0
    %8169 = vmatpush1.msra.mxu0 0.0
    %8170 = vmatprep.subr.mxu0 0.0
    %8171 = vmatpush1.msra.mxu0 0.0
    %8172 = vmatprep.subr.mxu0 0.0
    %8173 = vmatpush1.msra.mxu0 0.0
    %8174 = vmatprep.subr.mxu0 0.0
    %8175 = vmatpush1.msra.mxu0 0.0
    %8176 = vmatprep.subr.mxu0 0.0
    %8177 = vmatpush1.msra.mxu0 0.0
    %8178 = vmatprep.subr.mxu0 0.0
    %8179 = vmatpush1.msra.mxu0 0.0
    %8180 = vmatprep.subr.mxu0 0.0
    %8181 = vmatpush1.msra.mxu0 0.0
    %8182 = vmatprep.subr.mxu0 0.0
    %8183 = vmatpush1.msra.mxu0 0.0
    %8184 = vmatprep.subr.mxu0 0.0
    %8185 = vmatpush1.msra.mxu0 0.0
    %8186 = vmatprep.subr.mxu0 0.0
    %8187 = vmatpush1.msra.mxu0 0.0
    %8188 = vmatprep.subr.mxu0 0.0
    %8189 = vmatpush1.msra.mxu0 0.0
    %8190 = vmatprep.subr.mxu0 0.0
    %8191 = vmatpush1.msra.mxu0 0.0
    %8192 = vmatprep.subr.mxu0 0.0
    %8193 = vmatpush1.msra.mxu0 0.0
    %8194 = vmatprep.subr.mxu0 0.0
    %8195 = vmatpush1.msra.mxu0 0.0
    %8196 = vmatprep.subr.mxu0 0.0
    %8197 = vmatpush1.msra.mxu0 0.0
    %8198 = vmatprep.subr.mxu0 0.0
    %8199 = vmatpush1.msra.mxu0 0.0
    %8200 = vmatprep.subr.mxu0 0.0
    %8201 = vmatpush1.msra.mxu0 0.0
    %8202 = vmatprep.subr.mxu0 0.0
    %8203 = vmatpush1.msra.mxu0 0.0
    %8204 = vmatprep.subr.mxu0 0.0
    %8205 = vmatpush1.msra.mxu0 0.0
    %8206 = vmatprep.subr.mxu0 0.0
    %8207 = vmatpush1.msra.mxu0 0.0
    %8208 = vmatprep.subr.mxu0 0.0
    %8209 = vmatpush1.msra.mxu0 0.0
    %8210 = vmatprep.subr.mxu0 0.0
    %8211 = vmatpush1.msra.mxu0 0.0
    %8212 = vmatprep.subr.mxu0 0.0
    %8213 = vmatpush1.msra.mxu0 0.0
    %8214 = vmatprep.subr.mxu0 0.0
    %8215 = vmatpush1.msra.mxu0 0.0
    %8216 = vmatprep.subr.mxu0 0.0
    %8217 = vmatpush1.msra.mxu0 0.0
    %8218 = vmatprep.mubr.f32.mxu0 0.0
    %8219 = vmatmul.mubr.f32.gmra.mrb[0].mxu0 %v8152
    %v8220 = vpop.f32.mrb[0].mxu0
    %v8221 = vadd.f32 0.0, %v8220
    %v8222 = vpop.f32.mrb[0].mxu0
    %8223 = vdwg.mxu0
    %v8224 = vld [vmem:[%s19] sm:$0xff]
    %v8225 = vld [vmem:[%s19 + $0x8] sm:$0xff]
    %v8226 = vld [vmem:[%s19 + $0x10] sm:$0xff]
    %v8227 = vld [vmem:[%s19 + $0x18] sm:$0xff]
    %v8228 = vld [vmem:[%s19 + $0x20] sm:$0xff]
    %v8229 = vld [vmem:[%s19 + $0x28] sm:$0xff]
    %v8230 = vld [vmem:[%s19 + $0x30] sm:$0xff]
    %v8231 = vld [vmem:[%s19 + $0x38] sm:$0xff]
    %v8232 = vld [vmem:[%s20] sm:$0x1]
    %v8234 = vlaneseq
    %v8235 = vshrl.u32 %v8234, 7
    %v8236 = vsub.s32 0, %v8235
    %v8237 = vrot.slane %v8232, %v8236
    %v8240 = vsel %vm291, %v8221, 0
    %8242 = vmatprep.subr.mxu0 0.0
    %8243 = vmatpush1.msra.mxu0 %v8224
    %8244 = vmatprep.subr.mxu0 0.0
    %8245 = vmatpush1.msra.mxu0 %v8225
    %8246 = vmatprep.subr.mxu0 0.0
    %8247 = vmatpush1.msra.mxu0 %v8226
    %8248 = vmatprep.subr.mxu0 0.0
    %8249 = vmatpush1.msra.mxu0 %v8227
    %8250 = vmatprep.subr.mxu0 0.0
    %8251 = vmatpush1.msra.mxu0 %v8228
    %8252 = vmatprep.subr.mxu0 0.0
    %8253 = vmatpush1.msra.mxu0 %v8229
    %8254 = vmatprep.subr.mxu0 0.0
    %8255 = vmatpush1.msra.mxu0 %v8230
    %8256 = vmatprep.subr.mxu0 0.0
    %8257 = vmatpush1.msra.mxu0 %v8231
    %8258 = vmatprep.subr.mxu0 0.0
    %8259 = vmatpush1.msra.mxu0 0.0
    %8260 = vmatprep.subr.mxu0 0.0
    %8261 = vmatpush1.msra.mxu0 0.0
    %8262 = vmatprep.subr.mxu0 0.0
    %8263 = vmatpush1.msra.mxu0 0.0
    %8264 = vmatprep.subr.mxu0 0.0
    %8265 = vmatpush1.msra.mxu0 0.0
    %8266 = vmatprep.subr.mxu0 0.0
    %8267 = vmatpush1.msra.mxu0 0.0
    %8268 = vmatprep.subr.mxu0 0.0
    %8269 = vmatpush1.msra.mxu0 0.0
    %8270 = vmatprep.subr.mxu0 0.0
    %8271 = vmatpush1.msra.mxu0 0.0
    %8272 = vmatprep.subr.mxu0 0.0
    %8273 = vmatpush1.msra.mxu0 0.0
    %8274 = vmatprep.subr.mxu0 0.0
    %8275 = vmatpush1.msra.mxu0 0.0
    %8276 = vmatprep.subr.mxu0 0.0
    %8277 = vmatpush1.msra.mxu0 0.0
    %8278 = vmatprep.subr.mxu0 0.0
    %8279 = vmatpush1.msra.mxu0 0.0
    %8280 = vmatprep.subr.mxu0 0.0
    %8281 = vmatpush1.msra.mxu0 0.0
    %8282 = vmatprep.subr.mxu0 0.0
    %8283 = vmatpush1.msra.mxu0 0.0
    %8284 = vmatprep.subr.mxu0 0.0
    %8285 = vmatpush1.msra.mxu0 0.0
    %8286 = vmatprep.subr.mxu0 0.0
    %8287 = vmatpush1.msra.mxu0 0.0
    %8288 = vmatprep.subr.mxu0 0.0
    %8289 = vmatpush1.msra.mxu0 0.0
    %8290 = vmatprep.subr.mxu0 0.0
    %8291 = vmatpush1.msra.mxu0 0.0
    %8292 = vmatprep.subr.mxu0 0.0
    %8293 = vmatpush1.msra.mxu0 0.0
    %8294 = vmatprep.subr.mxu0 0.0
    %8295 = vmatpush1.msra.mxu0 0.0
    %8296 = vmatprep.subr.mxu0 0.0
    %8297 = vmatpush1.msra.mxu0 0.0
    %8298 = vmatprep.subr.mxu0 0.0
    %8299 = vmatpush1.msra.mxu0 0.0
    %8300 = vmatprep.subr.mxu0 0.0
    %8301 = vmatpush1.msra.mxu0 0.0
    %8302 = vmatprep.subr.mxu0 0.0
    %8303 = vmatpush1.msra.mxu0 0.0
    %8304 = vmatprep.subr.mxu0 0.0
    %8305 = vmatpush1.msra.mxu0 0.0
    %8306 = vmatprep.mubr.f32.mxu0 0.0
    %8307 = vmatmul.mubr.f32.gmra.mrb[0].mxu0 %v8240
    %v8308 = vpop.f32.mrb[0].mxu0
    %v8309 = vadd.f32 %v8237, %v8308
    %v8310 = vpop.f32.mrb[0].mxu0
    %8311 = vdwg.mxu0
    %8312 = vst [vmem:[#allocation2] sm:$0x3] %v8309
    // Predicated region
    $region86: #{tpu_custom_call.1} parent=1 // pred_check
      _
    $region87: #{tpu_custom_call.1} parent=1 // pred_check_branch
      %8314 = sbr.rel (0) target = $region89
    $region88: #{tpu_custom_call.1} parent=1 // pred_region
      %s8316 = ssub.s32 32, 32
      %8317 = vsyncadd [#allocation3], %s8316
      %s8319 = sshll.u32 [#allocation2], 4
      %s8320 = int_to_ptr.vmem [resolvable:$true] %s8319
      %8322 = dma.vmem_to_hbm [thread:$0]  %s8320, 32, %s21, [#allocation3]
    $region89: #{tpu_custom_call.1} parent=1 // pred_fallthru
      _
    // Predicated region
    $region90: #{tpu_custom_call.1} parent=1 // pred_check
      _
    $region91: #{tpu_custom_call.1} parent=1 // pred_check_branch
      %8324 = sbr.rel (0) target = $region93
    $region92: #{tpu_custom_call.1} parent=1 // pred_region
      %8325 = dma.done [#allocation3], 32
    $region93: #{tpu_custom_call.1} parent=1 // pred_fallthru
      _
    %8326 = vsyncpa [#allocation3], 1

</llo_original>
